<compile_context>
chip_gen: v5e
topology: v5e:2x2
jax: 0.10.0
libtpu: 0.0.40
codegen_flags: <defaults>
</compile_context>

<pallas_src>
import math

import jax
import jax.numpy as jnp
from jax.experimental import pallas as pl
from jax.experimental.pallas import tpu as pltpu

VMEM_LIMIT = 48 * 1024 * 1024  # safe on v5e/v6e (128 MiB) and v7x (64 MiB)


def _round_up(a, b):
    return ((a + b - 1) // b) * b


# ---------------------------------------------------------------------------
# Kernel A: 3x3 stride-1 conv + BN (+residual) (+relu), in-kernel shifted taps
# ---------------------------------------------------------------------------
def _make_conv3x3_kernel(tap_offsets, m_img, has_residual, apply_relu):
    def kernel(x_ref, w_ref, s_ref, b_ref, *rest):
        if has_residual:
            res_ref, o_ref = rest
        else:
            (o_ref,) = rest
        cout = o_ref.shape[-1]
        acc = jnp.zeros((m_img, cout), jnp.float32)
        for t, lo in enumerate(tap_offsets):
            # static (but unaligned) row window of the padded per-image buffer
            xs = x_ref[0, lo:lo + m_img, :].astype(jnp.bfloat16)
            acc = acc + jnp.dot(xs, w_ref[t], preferred_element_type=jnp.float32)
        acc = acc * s_ref[...] + b_ref[...]          # folded BN, f32 epilogue
        if has_residual:
            acc = acc + res_ref[0].astype(jnp.float32)
        if apply_relu:
            acc = jnp.maximum(acc, 0.0)
        o_ref[0] = acc.astype(o_ref.dtype)

    return kernel


def conv3x3_s1(x_nhwc, p, residual=None, relu=True):
    """3x3, stride 1, pad 1 conv + folded BN (+residual) (+relu)."""
    N, H, W, C = x_nhwc.shape
    w9 = p["w9"]                          # (9, cin, cout) bf16
    cin_w = w9.shape[1]
    if cin_w != C:                        # stem: input channels padded 3 -> 8
        x_nhwc = jnp.pad(x_nhwc, ((0, 0), (0, 0), (0, 0), (0, cin_w - C)))
        C = cin_w
    cout = w9.shape[2]
    Hp, Wp = H + 2, W + 2
    m_img = Hp * Wp
    guard = Wp + 1
    rows = m_img + 2 * guard

    # one zero-padded copy (f32) per image, flattened, with guard rows so the
    # 9 shifted reads never leave the per-image buffer.
    xp = jnp.pad(x_nhwc.astype(jnp.float32), ((0, 0), (1, 1), (1, 1), (0, 0)))
    x_buf = jnp.pad(xp.reshape(N, m_img, C), ((0, 0), (guard, guard), (0, 0)))

    # start row (within the guarded buffer) of tap (di, dj) is di*Wp + dj
    tap_offsets = tuple(di * Wp + dj for di in range(3) for dj in range(3))

    in_specs = [
        pl.BlockSpec((1, rows, C), lambda n: (n, 0, 0)),
        pl.BlockSpec((9, C, cout), lambda n: (0, 0, 0)),
        pl.BlockSpec((1, cout), lambda n: (0, 0)),
        pl.BlockSpec((1, cout), lambda n: (0, 0)),
    ]
    args = [x_buf, w9, p["scale"].reshape(1, cout), p["bias"].reshape(1, cout)]
    if residual is not None:
        # residual in padded geometry (zeros on the border rows/cols)
        rp = jnp.pad(residual, ((0, 0), (1, 1), (1, 1), (0, 0))).reshape(N, m_img, cout)
        in_specs.append(pl.BlockSpec((1, m_img, cout), lambda n: (n, 0, 0)))
        args.append(rp)

    out = pl.pallas_call(
        _make_conv3x3_kernel(tap_offsets, m_img, residual is not None, relu),
        out_shape=jax.ShapeDtypeStruct((N, m_img, cout), jnp.bfloat16),
        grid=(N,),
        in_specs=in_specs,
        out_specs=pl.BlockSpec((1, m_img, cout), lambda n: (n, 0, 0)),
        compiler_params=pltpu.CompilerParams(
            dimension_semantics=("parallel",),
            vmem_limit_bytes=VMEM_LIMIT,
        ),
    )(*args)
    # padded geometry -> valid interior
    return out.reshape(N, Hp, Wp, cout)[:, 1:H + 1, 1:W + 1, :]


# ---------------------------------------------------------------------------
# Kernel B: generic K-tiled fused matmul  (x @ w) * scale + bias (+relu)
# ---------------------------------------------------------------------------
def _make_matmul_kernel(apply_relu):
    def kernel(x_ref, w_ref, s_ref, b_ref, o_ref, acc_ref):
        @pl.when(pl.program_id(1) == 0)
        def _():
            acc_ref[...] = jnp.zeros_like(acc_ref)

        acc_ref[...] += jnp.dot(x_ref[...], w_ref[...],
                                preferred_element_type=jnp.float32)

        @pl.when(pl.program_id(1) == pl.num_programs(1) - 1)
        def _():
            acc = acc_ref[...] * s_ref[...] + b_ref[...]
            if apply_relu:
                acc = jnp.maximum(acc, 0.0)
            o_ref[...] = acc.astype(o_ref.dtype)

    return kernel


def fused_matmul(x, w, scale, bias, relu=True, out_dtype=jnp.bfloat16):
    """out[M,N] = relu?( x[M,K] @ w[K,N] * scale[N] + bias[N] ), bf16 MXU / f32 acc."""
    M, K = x.shape
    K2, N = w.shape
    assert K == K2
    # >= 2 parallel M blocks (megacore / pipelining); K tiled when large.
    n_m = max(2, pl.cdiv(M, 256))
    tm = _round_up(pl.cdiv(M, n_m), 8)
    m_pad = n_m * tm
    n_k = pl.cdiv(K, 1152)
    tk = K if n_k == 1 else _round_up(pl.cdiv(K, n_k), 128)
    k_pad = n_k * tk

    xb = x.astype(jnp.bfloat16)
    wb = w.astype(jnp.bfloat16)
    if m_pad != M or k_pad != K:
        xb = jnp.pad(xb, ((0, m_pad - M), (0, k_pad - K)))
    if k_pad != K:
        wb = jnp.pad(wb, ((0, k_pad - K), (0, 0)))

    out = pl.pallas_call(
        _make_matmul_kernel(relu),
        out_shape=jax.ShapeDtypeStruct((m_pad, N), out_dtype),
        grid=(n_m, n_k),
        in_specs=[
            pl.BlockSpec((tm, tk), lambda i, k: (i, k)),
            pl.BlockSpec((tk, N), lambda i, k: (k, 0)),
            pl.BlockSpec((1, N), lambda i, k: (0, 0)),
            pl.BlockSpec((1, N), lambda i, k: (0, 0)),
        ],
        out_specs=pl.BlockSpec((tm, N), lambda i, k: (i, 0)),
        scratch_shapes=[pltpu.VMEM((tm, N), jnp.float32)],
        compiler_params=pltpu.CompilerParams(
            dimension_semantics=("parallel", "arbitrary"),
            vmem_limit_bytes=VMEM_LIMIT,
        ),
    )(xb, wb, scale.reshape(1, N), bias.reshape(1, N))
    return out[:M] if m_pad != M else out


def conv3x3_strided(x_nhwc, p, stride, relu=True):
    """3x3 stride-2 conv + BN (+relu) via (bf16) im2col + K-tiled fused matmul."""
    N, H, W, C = x_nhwc.shape
    cout = p["w9"].shape[2]
    xp = jnp.pad(x_nhwc, ((0, 0), (1, 1), (1, 1), (0, 0)))
    Ho = (H + 2 - 3) // stride + 1
    Wo = (W + 2 - 3) // stride + 1
    patches = []
    for i in range(3):
        for j in range(3):
            patches.append(xp[:, i:i + stride * Ho:stride, j:j + stride * Wo:stride, :])
    cols = jnp.concatenate(patches, axis=-1).reshape(N * Ho * Wo, 9 * C)
    wmat = p["w9"].reshape(9 * C, cout)
    out = fused_matmul(cols, wmat, p["scale"], p["bias"], relu=relu)
    return out.reshape(N, Ho, Wo, cout)


def conv1x1(x_nhwc, p, stride, relu=False):
    """1x1 conv + BN (shortcut path): spatial subsample + plain fused matmul."""
    N, H, W, C = x_nhwc.shape
    cout = p["w"].shape[1]
    xs = x_nhwc[:, ::stride, ::stride, :] if stride > 1 else x_nhwc
    Ho, Wo = xs.shape[1], xs.shape[2]
    out = fused_matmul(xs.reshape(N * Ho * Wo, C), p["w"], p["scale"], p["bias"], relu=relu)
    return out.reshape(N, Ho, Wo, cout)


# ---------------------------------------------------------------------------
# Kernel C: fused global avg-pool + classifier
# ---------------------------------------------------------------------------
def _pool_linear_kernel(x_ref, w_ref, b_ref, o_ref):
    pooled = jnp.mean(x_ref[...].astype(jnp.float32), axis=1)            # (N, C)
    acc = jnp.dot(pooled.astype(jnp.bfloat16), w_ref[...],
                  preferred_element_type=jnp.float32)
    o_ref[...] = acc + b_ref[...]


def pool_and_linear(x_nhwc, w, b):
    N, H, W, C = x_nhwc.shape
    n_out = w.shape[1]
    return pl.pallas_call(
        _pool_linear_kernel,
        out_shape=jax.ShapeDtypeStruct((N, n_out), jnp.float32),
        compiler_params=pltpu.CompilerParams(vmem_limit_bytes=VMEM_LIMIT),
    )(x_nhwc.reshape(N, H * W, C), w, b.reshape(1, n_out))


# ---------------------------------------------------------------------------
# Parameters and model structure (plain JAX glue)
# ---------------------------------------------------------------------------
def init_conv_bn(key, cin, cout, k, cin_pad=None):
    k1, k2, k3, k4, k5 = jax.random.split(key, 5)
    w = jax.random.normal(k1, (cout, cin, k, k), jnp.float32) * (1.0 / math.sqrt(cin * k * k))
    gamma = jax.random.uniform(k2, (cout,), jnp.float32, 0.5, 1.5)
    beta = jax.random.normal(k3, (cout,), jnp.float32) * 0.1
    run_mean = jax.random.normal(k4, (cout,), jnp.float32) * 0.1
    run_var = jax.random.uniform(k5, (cout,), jnp.float32, 0.5, 1.5)
    eps = 1e-5
    scale = gamma / jnp.sqrt(run_var + eps)
    bias = beta - run_mean * scale
    p = dict(k=k, scale=scale, bias=bias)
    if k == 3:
        # im2col / tap order is (kh, kw, cin) -> (9, cin, cout)
        w9 = jnp.transpose(w, (2, 3, 1, 0)).reshape(9, cin, cout)
        if cin_pad is not None and cin_pad > cin:
            w9 = jnp.pad(w9, ((0, 0), (0, cin_pad - cin), (0, 0)))
        p["w9"] = w9.astype(jnp.bfloat16)
    else:
        p["w"] = w.reshape(cout, cin).T.astype(jnp.bfloat16)      # (cin, cout)
    return p


def make_resnet18_params(key, num_classes=10):
    keys = iter(jax.random.split(key, 64))
    params = {"stem": init_conv_bn(next(keys), 3, 64, 3, cin_pad=8)}
    in_planes = 64
    layers = []
    for planes, nblocks, stride in [(64, 2, 1), (128, 2, 2), (256, 2, 2), (512, 2, 2)]:
        blocks = []
        strides = [stride] + [1] * (nblocks - 1)
        for s in strides:
            blk = {
                "stride": s,
                "conv1": init_conv_bn(next(keys), in_planes, planes, 3),
                "conv2": init_conv_bn(next(keys), planes, planes, 3),
            }
            if s != 1 or in_planes != planes:
                blk["shortcut"] = init_conv_bn(next(keys), in_planes, planes, 1)
            blocks.append(blk)
            in_planes = planes
        layers.append(blocks)
    params["layers"] = layers
    klin = next(keys)
    k1, k2 = jax.random.split(klin)
    lw = jax.random.normal(k1, (512, num_classes), jnp.float32) * (1.0 / math.sqrt(512))
    lb = jax.random.normal(k2, (num_classes,), jnp.float32) * 0.1
    # lane-dense classifier: pad N=10 -> 128; logits sliced afterwards.
    n_pad = _round_up(num_classes, 128)
    params["linear_w"] = jnp.pad(lw, ((0, 0), (0, n_pad - num_classes))).astype(jnp.bfloat16)
    params["linear_b"] = jnp.pad(lb, (0, n_pad - num_classes))
    params["num_classes"] = num_classes
    return params


def basic_block(x, blk):
    stride = blk["stride"]
    if stride == 1:
        out = conv3x3_s1(x, blk["conv1"], relu=True)
    else:
        out = conv3x3_strided(x, blk["conv1"], stride, relu=True)
    sc = conv1x1(x, blk["shortcut"], stride, relu=False) if "shortcut" in blk else x
    # bn2(conv2(out)) + shortcut, then relu -- fused in one Pallas call
    return conv3x3_s1(out, blk["conv2"], residual=sc, relu=True)


def resnet18_forward(params, x_nchw):
    x = jnp.transpose(x_nchw, (0, 2, 3, 1)).astype(jnp.bfloat16)  # NCHW -> NHWC
    x = conv3x3_s1(x, params["stem"], relu=True)
    for blocks in params["layers"]:
        for blk in blocks:
            x = basic_block(x, blk)
    # F.avg_pool2d(out, 4).view(N, -1) @ linear, fused (classifier lane-padded)
    logits = pool_and_linear(x, params["linear_w"], params["linear_b"])
    return logits[:, : params["num_classes"]]


# ---------------------------------------------------------------------------
if __name__ == "__main__":
    key = jax.random.PRNGKey(0)
    kx, kp = jax.random.split(key)
    # conv1 expects 3 input channels; ResNet-for-CIFAR geometry -> 32x32 spatial
    x = jax.random.normal(kx, (2, 3, 32, 32), jnp.float32)
    params = make_resnet18_params(kp, num_classes=10)

    out = resnet18_forward(params, x)
    out = jax.block_until_ready(out)
    assert out.shape == (2, 10), out.shape
    assert bool(jnp.all(jnp.isfinite(out)))
    print("KERNEL_OK")
</pallas_src>

<mosaic_0001>
module attributes {stable_mosaic.version = 11 : i64} {
  func.func @kernel(%arg0: i32, %arg1: memref<1x1226x8xf32, #tpu.memory_space<vmem>>, %arg2: memref<9x8x64xbf16, #tpu.memory_space<vmem>>, %arg3: memref<1x64xf32, #tpu.memory_space<vmem>>, %arg4: memref<1x64xf32, #tpu.memory_space<vmem>>, %arg5: memref<1x1156x64xbf16, #tpu.memory_space<vmem>>) attributes {dimension_semantics = [#tpu.dimension_semantics<parallel>], iteration_bounds = array<i64: 2>, scalar_prefetch = 0 : i64, scratch_operands = 0 : i64, tpu.core_type = #tpu.core_type<tc>, window_params = [{transform_indices = @transform_0, window_bounds = array<i64: 1, 1226, 8>}, {pipeline_mode = #tpu.pipeline_mode<synchronous>, transform_indices = @transform_1, window_bounds = array<i64: 9, 8, 64>}, {pipeline_mode = #tpu.pipeline_mode<synchronous>, transform_indices = @transform_2, window_bounds = array<i64: 1, 64>}, {pipeline_mode = #tpu.pipeline_mode<synchronous>, transform_indices = @transform_3, window_bounds = array<i64: 1, 64>}, {transform_indices = @transform_4, window_bounds = array<i64: 1, 1156, 64>}]} {
    %cst = arith.constant 0.000000e+00 : f32
    %0 = vector.broadcast %cst : f32 to vector<1156x64xf32>
    %c0 = arith.constant 0 : index
    %c0_0 = arith.constant 0 : index
    %c0_1 = arith.constant 0 : index
    %1 = vector.load %arg1[%c0, %c0_0, %c0_1] : memref<1x1226x8xf32, #tpu.memory_space<vmem>>, vector<1x1156x8xf32>
    %2 = vector.shape_cast %1 : vector<1x1156x8xf32> to vector<1156x8xf32>
    %3 = arith.truncf %2 : vector<1156x8xf32> to vector<1156x8xbf16>
    %c0_2 = arith.constant 0 : index
    %c0_3 = arith.constant 0 : index
    %c0_4 = arith.constant 0 : index
    %4 = vector.load %arg2[%c0_2, %c0_3, %c0_4] : memref<9x8x64xbf16, #tpu.memory_space<vmem>>, vector<1x8x64xbf16>
    %5 = vector.shape_cast %4 : vector<1x8x64xbf16> to vector<8x64xbf16>
    %cst_5 = arith.constant dense<0.000000e+00> : vector<1156x64xf32>
    %6 = tpu.matmul %3, %5, %cst_5 {dimension_numbers = #tpu.dot_dimension_numbers<[1], [0], [0], [1], [0, 0, 1, 1], [], []>} : vector<1156x8xbf16>, vector<8x64xbf16>, vector<1156x64xf32> -> vector<1156x64xf32>
    %7 = arith.addf %0, %6 : vector<1156x64xf32>
    %c0_6 = arith.constant 0 : index
    %c1 = arith.constant 1 : index
    %c0_7 = arith.constant 0 : index
    %8 = vector.load %arg1[%c0_6, %c1, %c0_7] : memref<1x1226x8xf32, #tpu.memory_space<vmem>>, vector<1x1156x8xf32>
    %9 = vector.shape_cast %8 : vector<1x1156x8xf32> to vector<1156x8xf32>
    %10 = arith.truncf %9 : vector<1156x8xf32> to vector<1156x8xbf16>
    %c1_8 = arith.constant 1 : index
    %c0_9 = arith.constant 0 : index
    %c0_10 = arith.constant 0 : index
    %11 = vector.load %arg2[%c1_8, %c0_9, %c0_10] : memref<9x8x64xbf16, #tpu.memory_space<vmem>>, vector<1x8x64xbf16>
    %12 = vector.shape_cast %11 : vector<1x8x64xbf16> to vector<8x64xbf16>
    %cst_11 = arith.constant dense<0.000000e+00> : vector<1156x64xf32>
    %13 = tpu.matmul %10, %12, %cst_11 {dimension_numbers = #tpu.dot_dimension_numbers<[1], [0], [0], [1], [0, 0, 1, 1], [], []>} : vector<1156x8xbf16>, vector<8x64xbf16>, vector<1156x64xf32> -> vector<1156x64xf32>
    %14 = arith.addf %7, %13 : vector<1156x64xf32>
    %c0_12 = arith.constant 0 : index
    %c2 = arith.constant 2 : index
    %c0_13 = arith.constant 0 : index
    %15 = vector.load %arg1[%c0_12, %c2, %c0_13] : memref<1x1226x8xf32, #tpu.memory_space<vmem>>, vector<1x1156x8xf32>
    %16 = vector.shape_cast %15 : vector<1x1156x8xf32> to vector<1156x8xf32>
    %17 = arith.truncf %16 : vector<1156x8xf32> to vector<1156x8xbf16>
    %c2_14 = arith.constant 2 : index
    %c0_15 = arith.constant 0 : index
    %c0_16 = arith.constant 0 : index
    %18 = vector.load %arg2[%c2_14, %c0_15, %c0_16] : memref<9x8x64xbf16, #tpu.memory_space<vmem>>, vector<1x8x64xbf16>
    %19 = vector.shape_cast %18 : vector<1x8x64xbf16> to vector<8x64xbf16>
    %cst_17 = arith.constant dense<0.000000e+00> : vector<1156x64xf32>
    %20 = tpu.matmul %17, %19, %cst_17 {dimension_numbers = #tpu.dot_dimension_numbers<[1], [0], [0], [1], [0, 0, 1, 1], [], []>} : vector<1156x8xbf16>, vector<8x64xbf16>, vector<1156x64xf32> -> vector<1156x64xf32>
    %21 = arith.addf %14, %20 : vector<1156x64xf32>
    %c0_18 = arith.constant 0 : index
    %c34 = arith.constant 34 : index
    %c0_19 = arith.constant 0 : index
    %22 = vector.load %arg1[%c0_18, %c34, %c0_19] : memref<1x1226x8xf32, #tpu.memory_space<vmem>>, vector<1x1156x8xf32>
    %23 = vector.shape_cast %22 : vector<1x1156x8xf32> to vector<1156x8xf32>
    %24 = arith.truncf %23 : vector<1156x8xf32> to vector<1156x8xbf16>
    %c3 = arith.constant 3 : index
    %c0_20 = arith.constant 0 : index
    %c0_21 = arith.constant 0 : index
    %25 = vector.load %arg2[%c3, %c0_20, %c0_21] : memref<9x8x64xbf16, #tpu.memory_space<vmem>>, vector<1x8x64xbf16>
    %26 = vector.shape_cast %25 : vector<1x8x64xbf16> to vector<8x64xbf16>
    %cst_22 = arith.constant dense<0.000000e+00> : vector<1156x64xf32>
    %27 = tpu.matmul %24, %26, %cst_22 {dimension_numbers = #tpu.dot_dimension_numbers<[1], [0], [0], [1], [0, 0, 1, 1], [], []>} : vector<1156x8xbf16>, vector<8x64xbf16>, vector<1156x64xf32> -> vector<1156x64xf32>
    %28 = arith.addf %21, %27 : vector<1156x64xf32>
    %c0_23 = arith.constant 0 : index
    %c35 = arith.constant 35 : index
    %c0_24 = arith.constant 0 : index
    %29 = vector.load %arg1[%c0_23, %c35, %c0_24] : memref<1x1226x8xf32, #tpu.memory_space<vmem>>, vector<1x1156x8xf32>
    %30 = vector.shape_cast %29 : vector<1x1156x8xf32> to vector<1156x8xf32>
    %31 = arith.truncf %30 : vector<1156x8xf32> to vector<1156x8xbf16>
    %c4 = arith.constant 4 : index
    %c0_25 = arith.constant 0 : index
    %c0_26 = arith.constant 0 : index
    %32 = vector.load %arg2[%c4, %c0_25, %c0_26] : memref<9x8x64xbf16, #tpu.memory_space<vmem>>, vector<1x8x64xbf16>
    %33 = vector.shape_cast %32 : vector<1x8x64xbf16> to vector<8x64xbf16>
    %cst_27 = arith.constant dense<0.000000e+00> : vector<1156x64xf32>
    %34 = tpu.matmul %31, %33, %cst_27 {dimension_numbers = #tpu.dot_dimension_numbers<[1], [0], [0], [1], [0, 0, 1, 1], [], []>} : vector<1156x8xbf16>, vector<8x64xbf16>, vector<1156x64xf32> -> vector<1156x64xf32>
    %35 = arith.addf %28, %34 : vector<1156x64xf32>
    %c0_28 = arith.constant 0 : index
    %c36 = arith.constant 36 : index
    %c0_29 = arith.constant 0 : index
    %36 = vector.load %arg1[%c0_28, %c36, %c0_29] : memref<1x1226x8xf32, #tpu.memory_space<vmem>>, vector<1x1156x8xf32>
    %37 = vector.shape_cast %36 : vector<1x1156x8xf32> to vector<1156x8xf32>
    %38 = arith.truncf %37 : vector<1156x8xf32> to vector<1156x8xbf16>
    %c5 = arith.constant 5 : index
    %c0_30 = arith.constant 0 : index
    %c0_31 = arith.constant 0 : index
    %39 = vector.load %arg2[%c5, %c0_30, %c0_31] : memref<9x8x64xbf16, #tpu.memory_space<vmem>>, vector<1x8x64xbf16>
    %40 = vector.shape_cast %39 : vector<1x8x64xbf16> to vector<8x64xbf16>
    %cst_32 = arith.constant dense<0.000000e+00> : vector<1156x64xf32>
    %41 = tpu.matmul %38, %40, %cst_32 {dimension_numbers = #tpu.dot_dimension_numbers<[1], [0], [0], [1], [0, 0, 1, 1], [], []>} : vector<1156x8xbf16>, vector<8x64xbf16>, vector<1156x64xf32> -> vector<1156x64xf32>
    %42 = arith.addf %35, %41 : vector<1156x64xf32>
    %c0_33 = arith.constant 0 : index
    %c68 = arith.constant 68 : index
    %c0_34 = arith.constant 0 : index
    %43 = vector.load %arg1[%c0_33, %c68, %c0_34] : memref<1x1226x8xf32, #tpu.memory_space<vmem>>, vector<1x1156x8xf32>
    %44 = vector.shape_cast %43 : vector<1x1156x8xf32> to vector<1156x8xf32>
    %45 = arith.truncf %44 : vector<1156x8xf32> to vector<1156x8xbf16>
    %c6 = arith.constant 6 : index
    %c0_35 = arith.constant 0 : index
    %c0_36 = arith.constant 0 : index
    %46 = vector.load %arg2[%c6, %c0_35, %c0_36] : memref<9x8x64xbf16, #tpu.memory_space<vmem>>, vector<1x8x64xbf16>
    %47 = vector.shape_cast %46 : vector<1x8x64xbf16> to vector<8x64xbf16>
    %cst_37 = arith.constant dense<0.000000e+00> : vector<1156x64xf32>
    %48 = tpu.matmul %45, %47, %cst_37 {dimension_numbers = #tpu.dot_dimension_numbers<[1], [0], [0], [1], [0, 0, 1, 1], [], []>} : vector<1156x8xbf16>, vector<8x64xbf16>, vector<1156x64xf32> -> vector<1156x64xf32>
    %49 = arith.addf %42, %48 : vector<1156x64xf32>
    %c0_38 = arith.constant 0 : index
    %c69 = arith.constant 69 : index
    %c0_39 = arith.constant 0 : index
    %50 = vector.load %arg1[%c0_38, %c69, %c0_39] : memref<1x1226x8xf32, #tpu.memory_space<vmem>>, vector<1x1156x8xf32>
    %51 = vector.shape_cast %50 : vector<1x1156x8xf32> to vector<1156x8xf32>
    %52 = arith.truncf %51 : vector<1156x8xf32> to vector<1156x8xbf16>
    %c7 = arith.constant 7 : index
    %c0_40 = arith.constant 0 : index
    %c0_41 = arith.constant 0 : index
    %53 = vector.load %arg2[%c7, %c0_40, %c0_41] : memref<9x8x64xbf16, #tpu.memory_space<vmem>>, vector<1x8x64xbf16>
    %54 = vector.shape_cast %53 : vector<1x8x64xbf16> to vector<8x64xbf16>
    %cst_42 = arith.constant dense<0.000000e+00> : vector<1156x64xf32>
    %55 = tpu.matmul %52, %54, %cst_42 {dimension_numbers = #tpu.dot_dimension_numbers<[1], [0], [0], [1], [0, 0, 1, 1], [], []>} : vector<1156x8xbf16>, vector<8x64xbf16>, vector<1156x64xf32> -> vector<1156x64xf32>
    %56 = arith.addf %49, %55 : vector<1156x64xf32>
    %c0_43 = arith.constant 0 : index
    %c70 = arith.constant 70 : index
    %c0_44 = arith.constant 0 : index
    %57 = vector.load %arg1[%c0_43, %c70, %c0_44] : memref<1x1226x8xf32, #tpu.memory_space<vmem>>, vector<1x1156x8xf32>
    %58 = vector.shape_cast %57 : vector<1x1156x8xf32> to vector<1156x8xf32>
    %59 = arith.truncf %58 : vector<1156x8xf32> to vector<1156x8xbf16>
    %c8 = arith.constant 8 : index
    %c0_45 = arith.constant 0 : index
    %c0_46 = arith.constant 0 : index
    %60 = vector.load %arg2[%c8, %c0_45, %c0_46] : memref<9x8x64xbf16, #tpu.memory_space<vmem>>, vector<1x8x64xbf16>
    %61 = vector.shape_cast %60 : vector<1x8x64xbf16> to vector<8x64xbf16>
    %cst_47 = arith.constant dense<0.000000e+00> : vector<1156x64xf32>
    %62 = tpu.matmul %59, %61, %cst_47 {dimension_numbers = #tpu.dot_dimension_numbers<[1], [0], [0], [1], [0, 0, 1, 1], [], []>} : vector<1156x8xbf16>, vector<8x64xbf16>, vector<1156x64xf32> -> vector<1156x64xf32>
    %63 = arith.addf %56, %62 : vector<1156x64xf32>
    %c0_48 = arith.constant 0 : index
    %c0_49 = arith.constant 0 : index
    %64 = vector.load %arg3[%c0_48, %c0_49] : memref<1x64xf32, #tpu.memory_space<vmem>>, vector<1x64xf32>
    %65 = vector.broadcast %64 : vector<1x64xf32> to vector<1156x64xf32>
    %66 = arith.mulf %63, %65 : vector<1156x64xf32>
    %c0_50 = arith.constant 0 : index
    %c0_51 = arith.constant 0 : index
    %67 = vector.load %arg4[%c0_50, %c0_51] : memref<1x64xf32, #tpu.memory_space<vmem>>, vector<1x64xf32>
    %68 = vector.broadcast %67 : vector<1x64xf32> to vector<1156x64xf32>
    %69 = arith.addf %66, %68 : vector<1156x64xf32>
    %cst_52 = arith.constant 0.000000e+00 : f32
    %70 = vector.broadcast %cst_52 : f32 to vector<1156x64xf32>
    %71 = arith.maximumf %69, %70 : vector<1156x64xf32>
    %72 = arith.truncf %71 : vector<1156x64xf32> to vector<1156x64xbf16>
    %c0_53 = arith.constant 0 : index
    %c0_54 = arith.constant 0 : index
    %c0_55 = arith.constant 0 : index
    %73 = vector.load %arg5[%c0_53, %c0_54, %c0_55] : memref<1x1156x64xbf16, #tpu.memory_space<vmem>>, vector<1x1156x64xbf16>
    %74 = vector.shape_cast %73 : vector<1x1156x64xbf16> to vector<1156x64xbf16>
    %75 = vector.shape_cast %72 : vector<1156x64xbf16> to vector<1x1156x64xbf16>
    tpu.vector_store %arg5[%c0_53, %c0_54, %c0_55], %75 {strides = array<i32>} : memref<1x1156x64xbf16, #tpu.memory_space<vmem>>, vector<1x1156x64xbf16>,
    return
  }
  func.func @transform_0(%arg0: i32) -> (i32, i32, i32) {
    %c0_i32 = arith.constant 0 : i32
    %c0_i32_0 = arith.constant 0 : i32
    %c0_i32_1 = arith.constant 0 : i32
    return %arg0, %c0_i32, %c0_i32_0 : i32, i32, i32
  }
  func.func @transform_1(%arg0: i32) -> (i32, i32, i32) {
    %c0_i32 = arith.constant 0 : i32
    %c0_i32_0 = arith.constant 0 : i32
    %c0_i32_1 = arith.constant 0 : i32
    %c0_i32_2 = arith.constant 0 : i32
    return %c0_i32, %c0_i32_0, %c0_i32_1 : i32, i32, i32
  }
  func.func @transform_2(%arg0: i32) -> (i32, i32) {
    %c0_i32 = arith.constant 0 : i32
    %c0_i32_0 = arith.constant 0 : i32
    %c0_i32_1 = arith.constant 0 : i32
    return %c0_i32, %c0_i32_0 : i32, i32
  }
  func.func @transform_3(%arg0: i32) -> (i32, i32) {
    %c0_i32 = arith.constant 0 : i32
    %c0_i32_0 = arith.constant 0 : i32
    %c0_i32_1 = arith.constant 0 : i32
    return %c0_i32, %c0_i32_0 : i32, i32
  }
  func.func @transform_4(%arg0: i32) -> (i32, i32, i32) {
    %c0_i32 = arith.constant 0 : i32
    %c0_i32_0 = arith.constant 0 : i32
    %c0_i32_1 = arith.constant 0 : i32
    return %arg0, %c0_i32, %c0_i32_0 : i32, i32, i32
  }
}

</mosaic_0001>

<llo_original>
// kernel: tpu_custom_call.1
$region0: #{tpu_custom_call.1}
  #allocation0 [shape = 'u32[]', space=smem, size = 0x4, offset = 0x4, fixed_abs, tag = 'smem constant byte address 0x4 - core index']
  #allocation1 [shape = 'u32[72,128]{1,0:T(1,128)}', space=vmem, size = 0x9000, scoped, tag = 'internal scratch']
  %s0 = inlined_call_operand.vmem [shape: f32[2,1226,8], index: 0, kind: input, shape index: {}]
  %s1 = inlined_call_operand.vmem [shape: bf16[9,8,64], index: 1, kind: input, shape index: {}]
  %s2 = inlined_call_operand.vmem [shape: f32[1,64], index: 2, kind: input, shape index: {}]
  %s3 = inlined_call_operand.vmem [shape: f32[1,64], index: 3, kind: input, shape index: {}]
  %s4 = inlined_call_operand.vmem [shape: bf16[2,1156,64], index: 4, kind: output, shape index: {}]
  %s5 = sld [smem:[#allocation0]]
  $region49: #{tpu_custom_call.1} parent=0
    _
  %s7 = ssub.s32 1, %s5
  %s8 = scalar_select 0, %s7, %s5
  loop: start=0, step=1, limit=4
  $region2: #{tpu_custom_call.1} parent=0 // loop_pre_header
    _
  $region3: #{tpu_custom_call.1} parent=0 // loop_header
    %s10 = sphi 0, %s14
    %p11 = scmp.ge.s32.totalorder %s10, 4
    %s20 = sphi 0, %s22
    %s23 = sphi 0, %s20
    %s24 = sphi 0, %s23
    %s40 = sphi 0, %s24
    %s44 = sphi 0, %s44
    %s46 = sphi 0, %s44
    %s47 = sphi 0, %s46
    %s61 = sphi 0, %s47
    %s65 = sphi 0, %s65
    %s67 = sphi 0, %s65
    %s68 = sphi 0, %s67
    %s82 = sphi 0, %s68
    %s86 = sphi 0, %s86
    %s88 = sphi 0, %s86
    %s89 = sphi 0, %s88
    %s103 = sphi 0, %s89
    %s109 = sphi 0, %s111
    %s112 = sphi 0, %s109
    %s113 = sphi 0, %s112
    %s129 = sphi 0, %s113
  $region4: #{tpu_custom_call.1} parent=0 // loop_header_branch
    %13 = sbr.rel (%p11) target = $region8
  $region5: #{tpu_custom_call.1} parent=0 // loop_body
    %s15 = ssub.s32 %s10, 1
    %s16 = ssub.s32 %s10, 2
    %s17 = sadd.s32 %s10, 1
    %s18 = ssub.s32 %s10, %s17
    %p19 = scmp.eq.s32.totalorder %s18, 0
    %s21 = sadd.s32 %s20, 1
    %s22 = scalar_select %p19, %s20, %s21
    %p25 = pneg %p19
    %p26 = scmp.eq.s32.totalorder %s10, 1
    %p27 = por %p25, %p26
    %p28 = scmp.ne.s32.totalorder %s20, %s23
    %p29 = scmp.eq.s32.totalorder %s10, 0
    %p30 = por %p28, %p29
    %p31 = scmp.ne.s32.totalorder %s20, %s23
    %p32 = scmp.eq.s32.totalorder %s15, 1
    %p33 = por %p31, %p32
    %p34 = scmp.ne.s32.totalorder %s23, %s24
    %p35 = scmp.eq.s32.totalorder %s15, 0
    %p36 = por %p34, %p35
    %p37 = scmp.ne.s32.totalorder %s23, %s24
    %p38 = scmp.eq.s32.totalorder %s16, 1
    %p39 = por %p37, %p38
    %p41 = scmp.ne.s32.totalorder %s24, %s40
    %p42 = scmp.eq.s32.totalorder %s16, 0
    %p43 = por %p41, %p42
    %s45 = sadd.s32 %s44, 1
    %p48 = scmp.eq.s32.totalorder %s10, 1
    %p49 = scmp.ne.s32.totalorder %s44, %s46
    %p50 = scmp.eq.s32.totalorder %s10, 0
    %p51 = por %p49, %p50
    %p52 = scmp.ne.s32.totalorder %s44, %s46
    %p53 = scmp.eq.s32.totalorder %s15, 1
    %p54 = por %p52, %p53
    %p55 = scmp.ne.s32.totalorder %s46, %s47
    %p56 = scmp.eq.s32.totalorder %s15, 0
    %p57 = por %p55, %p56
    %p58 = scmp.ne.s32.totalorder %s46, %s47
    %p59 = scmp.eq.s32.totalorder %s16, 1
    %p60 = por %p58, %p59
    %p62 = scmp.ne.s32.totalorder %s47, %s61
    %p63 = scmp.eq.s32.totalorder %s16, 0
    %p64 = por %p62, %p63
    %s66 = sadd.s32 %s65, 1
    %p69 = scmp.eq.s32.totalorder %s10, 1
    %p70 = scmp.ne.s32.totalorder %s65, %s67
    %p71 = scmp.eq.s32.totalorder %s10, 0
    %p72 = por %p70, %p71
    %p73 = scmp.ne.s32.totalorder %s65, %s67
    %p74 = scmp.eq.s32.totalorder %s15, 1
    %p75 = por %p73, %p74
    %p76 = scmp.ne.s32.totalorder %s67, %s68
    %p77 = scmp.eq.s32.totalorder %s15, 0
    %p78 = por %p76, %p77
    %p79 = scmp.ne.s32.totalorder %s67, %s68
    %p80 = scmp.eq.s32.totalorder %s16, 1
    %p81 = por %p79, %p80
    %p83 = scmp.ne.s32.totalorder %s68, %s82
    %p84 = scmp.eq.s32.totalorder %s16, 0
    %p85 = por %p83, %p84
    %s87 = sadd.s32 %s86, 1
    %p90 = scmp.eq.s32.totalorder %s10, 1
    %p91 = scmp.ne.s32.totalorder %s86, %s88
    %p92 = scmp.eq.s32.totalorder %s10, 0
    %p93 = por %p91, %p92
    %p94 = scmp.ne.s32.totalorder %s86, %s88
    %p95 = scmp.eq.s32.totalorder %s15, 1
    %p96 = por %p94, %p95
    %p97 = scmp.ne.s32.totalorder %s88, %s89
    %p98 = scmp.eq.s32.totalorder %s15, 0
    %p99 = por %p97, %p98
    %p100 = scmp.ne.s32.totalorder %s88, %s89
    %p101 = scmp.eq.s32.totalorder %s16, 1
    %p102 = por %p100, %p101
    %p104 = scmp.ne.s32.totalorder %s89, %s103
    %p105 = scmp.eq.s32.totalorder %s16, 0
    %p106 = por %p104, %p105
    %s107 = ssub.s32 %s10, %s17
    %p108 = scmp.eq.s32.totalorder %s107, 0
    %s110 = sadd.s32 %s109, 1
    %s111 = scalar_select %p108, %s109, %s110
    %p114 = pneg %p108
    %p115 = scmp.eq.s32.totalorder %s10, 1
    %p116 = por %p114, %p115
    %p117 = scmp.ne.s32.totalorder %s109, %s112
    %p118 = scmp.eq.s32.totalorder %s10, 0
    %p119 = por %p117, %p118
    %p120 = scmp.ne.s32.totalorder %s109, %s112
    %p121 = scmp.eq.s32.totalorder %s15, 1
    %p122 = por %p120, %p121
    %p123 = scmp.ne.s32.totalorder %s112, %s113
    %p124 = scmp.eq.s32.totalorder %s15, 0
    %p125 = por %p123, %p124
    %p126 = scmp.ne.s32.totalorder %s112, %s113
    %p127 = scmp.eq.s32.totalorder %s16, 1
    %p128 = por %p126, %p127
    %p130 = scmp.ne.s32.totalorder %s113, %s129
    %p131 = scmp.eq.s32.totalorder %s16, 0
    %p132 = por %p130, %p131
    %p133 = scmp.le.s32.totalorder 1, %s10
    %p134 = scmp.lt.s32.totalorder %s10, 3
    %p135 = pnand %p133, %p134
    %p136 = pneg %p135
    // Predicated region
    $region9: #{tpu_custom_call.1} parent=5 // pred_check
      _
    $region10: #{tpu_custom_call.1} parent=5 // pred_check_branch
      %138 = sbr.rel (%p135) target = $region12
    $region11: #{tpu_custom_call.1} parent=5 // pred_region
      %s139 = ssub.s32 %s10, 1
      // Predicated region
      $region13: #{tpu_custom_call.1} parent=11 // pred_check
        %p140 = pneg %p57
      $region14: #{tpu_custom_call.1} parent=11 // pred_check_branch
        %142 = sbr.rel (%p140) target = $region16
      $region15: #{tpu_custom_call.1} parent=11 // pred_region
        _
      $region16: #{tpu_custom_call.1} parent=11 // pred_fallthru
        _
      // Predicated region
      $region17: #{tpu_custom_call.1} parent=11 // pred_check
        %p143 = pneg %p78
      $region18: #{tpu_custom_call.1} parent=11 // pred_check_branch
        %145 = sbr.rel (%p143) target = $region20
      $region19: #{tpu_custom_call.1} parent=11 // pred_region
        _
      $region20: #{tpu_custom_call.1} parent=11 // pred_fallthru
        _
      // Predicated region
      $region21: #{tpu_custom_call.1} parent=11 // pred_check
        %p146 = pneg %p99
      $region22: #{tpu_custom_call.1} parent=11 // pred_check_branch
        %148 = sbr.rel (%p146) target = $region24
      $region23: #{tpu_custom_call.1} parent=11 // pred_region
        _
      $region24: #{tpu_custom_call.1} parent=11 // pred_fallthru
        _
    $region12: #{tpu_custom_call.1} parent=5 // pred_fallthru
      _
    %p149 = scmp.lt.s32.totalorder %s10, 2
    // Predicated region
    $region25: #{tpu_custom_call.1} parent=5 // pred_check
      %p150 = pneg %p149
    $region26: #{tpu_custom_call.1} parent=5 // pred_check_branch
      %152 = sbr.rel (%p150) target = $region28
    $region27: #{tpu_custom_call.1} parent=5 // pred_region
      // Predicated region
      $region29: #{tpu_custom_call.1} parent=27 // pred_check
        %p153 = pneg %p30
      $region30: #{tpu_custom_call.1} parent=27 // pred_check_branch
        %155 = sbr.rel (%p153) target = $region32
      $region31: #{tpu_custom_call.1} parent=27 // pred_region
        %p156 = scmp.lt.s32.totalorder %s10, 1
        %s157 = scalar_select %p156, %s10, 1
        %s158 = smul.addr %s157, 154
        %s159 = smul.addr %s158, 8
        %s160 = scalar_lea.vmem %s0, %s159
      $region32: #{tpu_custom_call.1} parent=27 // pred_fallthru
        _
    $region28: #{tpu_custom_call.1} parent=5 // pred_fallthru
      _
    %p161 = scmp.le.s32.totalorder 1, %s10
    %p162 = scmp.lt.s32.totalorder %s10, 3
    %p163 = pnand %p161, %p162
    %p164 = pneg %p163
    // Predicated region
    $region33: #{tpu_custom_call.1} parent=5 // pred_check
      _
    $region34: #{tpu_custom_call.1} parent=5 // pred_check_branch
      %166 = sbr.rel (%p163) target = $region36
    $region35: #{tpu_custom_call.1} parent=5 // pred_region
      %s167 = ssub.s32 %s10, 1
      %p168 = scmp.lt.s32.totalorder %s15, 1
      %s169 = scalar_select %p168, %s15, 1
      %s170 = smul.addr %s169, 154
      %s171 = smul.addr %s170, 8
      %s172 = scalar_lea.vmem %s0, %s171
      %p173 = pneg %p36
      %p174 = pneg %p33
      %p175 = pneg %p57
      %p176 = pneg %p54
      %p177 = pneg %p78
      %p178 = pneg %p75
      %p179 = pneg %p99
      %p180 = pneg %p96
      %p181 = pneg %p125
      %p182 = pneg %p122
      %p183 = scmp.lt.s32.totalorder %s15, 1
      %s184 = scalar_select %p183, %s15, 1
      %s185 = smul.addr %s184, 145
      %s186 = smul.addr %s185, 4
      %s187 = scalar_lea.vmem %s4, %s186
      %p188 = scmp.lt.s32.totalorder %s15, 1
      %s189 = scalar_select %p188, %s15, 1
      %s190 = smul.addr %s189, 154
      %s191 = smul.addr %s190, 8
      %s192 = scalar_lea.vmem %s0, %s191
      %p193 = scmp.lt.s32.totalorder %s15, 1
      %s194 = scalar_select %p193, %s15, 1
      %s195 = smul.addr %s194, 145
      %s196 = smul.addr %s195, 4
      %s197 = scalar_lea.vmem %s4, %s196
      %v199 = vld [vmem:[%s192] sm:$0xff]
      %v200 = vld [vmem:[%s192 + $0x8] sm:$0xff]
      %v201 = vld [vmem:[%s192 + $0x10] sm:$0xff]
      %v202 = vld [vmem:[%s192 + $0x18] sm:$0xff]
      %v203 = vld [vmem:[%s192 + $0x20] sm:$0xff]
      %v204 = vld [vmem:[%s192 + $0x28] sm:$0xff]
      %v205 = vld [vmem:[%s192 + $0x30] sm:$0xff]
      %v206 = vld [vmem:[%s192 + $0x38] sm:$0xff]
      %v207 = vld [vmem:[%s192 + $0x40] sm:$0xff]
      %v208 = vld [vmem:[%s192 + $0x48] sm:$0xff]
      %v209 = vld [vmem:[%s192 + $0x50] sm:$0xff]
      %v210 = vld [vmem:[%s192 + $0x58] sm:$0xff]
      %v211 = vld [vmem:[%s192 + $0x60] sm:$0xff]
      %v212 = vld [vmem:[%s192 + $0x68] sm:$0xff]
      %v213 = vld [vmem:[%s192 + $0x70] sm:$0xff]
      %v214 = vld [vmem:[%s192 + $0x78] sm:$0xff]
      %v215 = vld [vmem:[%s192 + $0x80] sm:$0xff]
      %v216 = vld [vmem:[%s192 + $0x88] sm:$0xff]
      %v217 = vld [vmem:[%s192 + $0x90] sm:$0xff]
      %v218 = vld [vmem:[%s192 + $0x98] sm:$0xff]
      %v219 = vld [vmem:[%s192 + $0xa0] sm:$0xff]
      %v220 = vld [vmem:[%s192 + $0xa8] sm:$0xff]
      %v221 = vld [vmem:[%s192 + $0xb0] sm:$0xff]
      %v222 = vld [vmem:[%s192 + $0xb8] sm:$0xff]
      %v223 = vld [vmem:[%s192 + $0xc0] sm:$0xff]
      %v224 = vld [vmem:[%s192 + $0xc8] sm:$0xff]
      %v225 = vld [vmem:[%s192 + $0xd0] sm:$0xff]
      %v226 = vld [vmem:[%s192 + $0xd8] sm:$0xff]
      %v227 = vld [vmem:[%s192 + $0xe0] sm:$0xff]
      %v228 = vld [vmem:[%s192 + $0xe8] sm:$0xff]
      %v229 = vld [vmem:[%s192 + $0xf0] sm:$0xff]
      %v230 = vld [vmem:[%s192 + $0xf8] sm:$0xff]
      %v231 = vld [vmem:[%s192 + $0x100] sm:$0xff]
      %v232 = vld [vmem:[%s192 + $0x108] sm:$0xff]
      %v233 = vld [vmem:[%s192 + $0x110] sm:$0xff]
      %v234 = vld [vmem:[%s192 + $0x118] sm:$0xff]
      %v235 = vld [vmem:[%s192 + $0x120] sm:$0xff]
      %v236 = vld [vmem:[%s192 + $0x128] sm:$0xff]
      %v237 = vld [vmem:[%s192 + $0x130] sm:$0xff]
      %v238 = vld [vmem:[%s192 + $0x138] sm:$0xff]
      %v239 = vld [vmem:[%s192 + $0x140] sm:$0xff]
      %v240 = vld [vmem:[%s192 + $0x148] sm:$0xff]
      %v241 = vld [vmem:[%s192 + $0x150] sm:$0xff]
      %v242 = vld [vmem:[%s192 + $0x158] sm:$0xff]
      %v243 = vld [vmem:[%s192 + $0x160] sm:$0xff]
      %v244 = vld [vmem:[%s192 + $0x168] sm:$0xff]
      %v245 = vld [vmem:[%s192 + $0x170] sm:$0xff]
      %v246 = vld [vmem:[%s192 + $0x178] sm:$0xff]
      %v247 = vld [vmem:[%s192 + $0x180] sm:$0xff]
      %v248 = vld [vmem:[%s192 + $0x188] sm:$0xff]
      %v249 = vld [vmem:[%s192 + $0x190] sm:$0xff]
      %v250 = vld [vmem:[%s192 + $0x198] sm:$0xff]
      %v251 = vld [vmem:[%s192 + $0x1a0] sm:$0xff]
      %v252 = vld [vmem:[%s192 + $0x1a8] sm:$0xff]
      %v253 = vld [vmem:[%s192 + $0x1b0] sm:$0xff]
      %v254 = vld [vmem:[%s192 + $0x1b8] sm:$0xff]
      %v255 = vld [vmem:[%s192 + $0x1c0] sm:$0xff]
      %v256 = vld [vmem:[%s192 + $0x1c8] sm:$0xff]
      %v257 = vld [vmem:[%s192 + $0x1d0] sm:$0xff]
      %v258 = vld [vmem:[%s192 + $0x1d8] sm:$0xff]
      %v259 = vld [vmem:[%s192 + $0x1e0] sm:$0xff]
      %v260 = vld [vmem:[%s192 + $0x1e8] sm:$0xff]
      %v261 = vld [vmem:[%s192 + $0x1f0] sm:$0xff]
      %v262 = vld [vmem:[%s192 + $0x1f8] sm:$0xff]
      %v263 = vld [vmem:[%s192 + $0x200] sm:$0xff]
      %v264 = vld [vmem:[%s192 + $0x208] sm:$0xff]
      %v265 = vld [vmem:[%s192 + $0x210] sm:$0xff]
      %v266 = vld [vmem:[%s192 + $0x218] sm:$0xff]
      %v267 = vld [vmem:[%s192 + $0x220] sm:$0xff]
      %v268 = vld [vmem:[%s192 + $0x228] sm:$0xff]
      %v269 = vld [vmem:[%s192 + $0x230] sm:$0xff]
      %v270 = vld [vmem:[%s192 + $0x238] sm:$0xff]
      %v271 = vld [vmem:[%s192 + $0x240] sm:$0xff]
      %v272 = vld [vmem:[%s192 + $0x248] sm:$0xff]
      %v273 = vld [vmem:[%s192 + $0x250] sm:$0xff]
      %v274 = vld [vmem:[%s192 + $0x258] sm:$0xff]
      %v275 = vld [vmem:[%s192 + $0x260] sm:$0xff]
      %v276 = vld [vmem:[%s192 + $0x268] sm:$0xff]
      %v277 = vld [vmem:[%s192 + $0x270] sm:$0xff]
      %v278 = vld [vmem:[%s192 + $0x278] sm:$0xff]
      %v279 = vld [vmem:[%s192 + $0x280] sm:$0xff]
      %v280 = vld [vmem:[%s192 + $0x288] sm:$0xff]
      %v281 = vld [vmem:[%s192 + $0x290] sm:$0xff]
      %v282 = vld [vmem:[%s192 + $0x298] sm:$0xff]
      %v283 = vld [vmem:[%s192 + $0x2a0] sm:$0xff]
      %v284 = vld [vmem:[%s192 + $0x2a8] sm:$0xff]
      %v285 = vld [vmem:[%s192 + $0x2b0] sm:$0xff]
      %v286 = vld [vmem:[%s192 + $0x2b8] sm:$0xff]
      %v287 = vld [vmem:[%s192 + $0x2c0] sm:$0xff]
      %v288 = vld [vmem:[%s192 + $0x2c8] sm:$0xff]
      %v289 = vld [vmem:[%s192 + $0x2d0] sm:$0xff]
      %v290 = vld [vmem:[%s192 + $0x2d8] sm:$0xff]
      %v291 = vld [vmem:[%s192 + $0x2e0] sm:$0xff]
      %v292 = vld [vmem:[%s192 + $0x2e8] sm:$0xff]
      %v293 = vld [vmem:[%s192 + $0x2f0] sm:$0xff]
      %v294 = vld [vmem:[%s192 + $0x2f8] sm:$0xff]
      %v295 = vld [vmem:[%s192 + $0x300] sm:$0xff]
      %v296 = vld [vmem:[%s192 + $0x308] sm:$0xff]
      %v297 = vld [vmem:[%s192 + $0x310] sm:$0xff]
      %v298 = vld [vmem:[%s192 + $0x318] sm:$0xff]
      %v299 = vld [vmem:[%s192 + $0x320] sm:$0xff]
      %v300 = vld [vmem:[%s192 + $0x328] sm:$0xff]
      %v301 = vld [vmem:[%s192 + $0x330] sm:$0xff]
      %v302 = vld [vmem:[%s192 + $0x338] sm:$0xff]
      %v303 = vld [vmem:[%s192 + $0x340] sm:$0xff]
      %v304 = vld [vmem:[%s192 + $0x348] sm:$0xff]
      %v305 = vld [vmem:[%s192 + $0x350] sm:$0xff]
      %v306 = vld [vmem:[%s192 + $0x358] sm:$0xff]
      %v307 = vld [vmem:[%s192 + $0x360] sm:$0xff]
      %v308 = vld [vmem:[%s192 + $0x368] sm:$0xff]
      %v309 = vld [vmem:[%s192 + $0x370] sm:$0xff]
      %v310 = vld [vmem:[%s192 + $0x378] sm:$0xff]
      %v311 = vld [vmem:[%s192 + $0x380] sm:$0xff]
      %v312 = vld [vmem:[%s192 + $0x388] sm:$0xff]
      %v313 = vld [vmem:[%s192 + $0x390] sm:$0xff]
      %v314 = vld [vmem:[%s192 + $0x398] sm:$0xff]
      %v315 = vld [vmem:[%s192 + $0x3a0] sm:$0xff]
      %v316 = vld [vmem:[%s192 + $0x3a8] sm:$0xff]
      %v317 = vld [vmem:[%s192 + $0x3b0] sm:$0xff]
      %v318 = vld [vmem:[%s192 + $0x3b8] sm:$0xff]
      %v319 = vld [vmem:[%s192 + $0x3c0] sm:$0xff]
      %v320 = vld [vmem:[%s192 + $0x3c8] sm:$0xff]
      %v321 = vld [vmem:[%s192 + $0x3d0] sm:$0xff]
      %v322 = vld [vmem:[%s192 + $0x3d8] sm:$0xff]
      %v323 = vld [vmem:[%s192 + $0x3e0] sm:$0xff]
      %v324 = vld [vmem:[%s192 + $0x3e8] sm:$0xff]
      %v325 = vld [vmem:[%s192 + $0x3f0] sm:$0xff]
      %v326 = vld [vmem:[%s192 + $0x3f8] sm:$0xff]
      %v327 = vld [vmem:[%s192 + $0x400] sm:$0xff]
      %v328 = vld [vmem:[%s192 + $0x408] sm:$0xff]
      %v329 = vld [vmem:[%s192 + $0x410] sm:$0xff]
      %v330 = vld [vmem:[%s192 + $0x418] sm:$0xff]
      %v331 = vld [vmem:[%s192 + $0x420] sm:$0xff]
      %v332 = vld [vmem:[%s192 + $0x428] sm:$0xff]
      %v333 = vld [vmem:[%s192 + $0x430] sm:$0xff]
      %v334 = vld [vmem:[%s192 + $0x438] sm:$0xff]
      %v335 = vld [vmem:[%s192 + $0x440] sm:$0xff]
      %v336 = vld [vmem:[%s192 + $0x448] sm:$0xff]
      %v337 = vld [vmem:[%s192 + $0x450] sm:$0xff]
      %v338 = vld [vmem:[%s192 + $0x458] sm:$0xff]
      %v339 = vld [vmem:[%s192 + $0x460] sm:$0xff]
      %v340 = vld [vmem:[%s192 + $0x468] sm:$0xff]
      %v341 = vld [vmem:[%s192 + $0x470] sm:$0xff]
      %v342 = vld [vmem:[%s192 + $0x478] sm:$0xff]
      %v343 = vld [vmem:[%s192 + $0x480] sm:$0xf]
      %v344 = vpack.c.bf16 %v200, %v199
      %v345 = vpack.c.bf16 %v202, %v201
      %v346 = vpack.c.bf16 %v204, %v203
      %v347 = vpack.c.bf16 %v206, %v205
      %v348 = vpack.c.bf16 %v208, %v207
      %v349 = vpack.c.bf16 %v210, %v209
      %v350 = vpack.c.bf16 %v212, %v211
      %v351 = vpack.c.bf16 %v214, %v213
      %v352 = vpack.c.bf16 %v216, %v215
      %v353 = vpack.c.bf16 %v218, %v217
      %v354 = vpack.c.bf16 %v220, %v219
      %v355 = vpack.c.bf16 %v222, %v221
      %v356 = vpack.c.bf16 %v224, %v223
      %v357 = vpack.c.bf16 %v226, %v225
      %v358 = vpack.c.bf16 %v228, %v227
      %v359 = vpack.c.bf16 %v230, %v229
      %v360 = vpack.c.bf16 %v232, %v231
      %v361 = vpack.c.bf16 %v234, %v233
      %v362 = vpack.c.bf16 %v236, %v235
      %v363 = vpack.c.bf16 %v238, %v237
      %v364 = vpack.c.bf16 %v240, %v239
      %v365 = vpack.c.bf16 %v242, %v241
      %v366 = vpack.c.bf16 %v244, %v243
      %v367 = vpack.c.bf16 %v246, %v245
      %v368 = vpack.c.bf16 %v248, %v247
      %v369 = vpack.c.bf16 %v250, %v249
      %v370 = vpack.c.bf16 %v252, %v251
      %v371 = vpack.c.bf16 %v254, %v253
      %v372 = vpack.c.bf16 %v256, %v255
      %v373 = vpack.c.bf16 %v258, %v257
      %v374 = vpack.c.bf16 %v260, %v259
      %v375 = vpack.c.bf16 %v262, %v261
      %v376 = vpack.c.bf16 %v264, %v263
      %v377 = vpack.c.bf16 %v266, %v265
      %v378 = vpack.c.bf16 %v268, %v267
      %v379 = vpack.c.bf16 %v270, %v269
      %v380 = vpack.c.bf16 %v272, %v271
      %v381 = vpack.c.bf16 %v274, %v273
      %v382 = vpack.c.bf16 %v276, %v275
      %v383 = vpack.c.bf16 %v278, %v277
      %v384 = vpack.c.bf16 %v280, %v279
      %v385 = vpack.c.bf16 %v282, %v281
      %v386 = vpack.c.bf16 %v284, %v283
      %v387 = vpack.c.bf16 %v286, %v285
      %v388 = vpack.c.bf16 %v288, %v287
      %v389 = vpack.c.bf16 %v290, %v289
      %v390 = vpack.c.bf16 %v292, %v291
      %v391 = vpack.c.bf16 %v294, %v293
      %v392 = vpack.c.bf16 %v296, %v295
      %v393 = vpack.c.bf16 %v298, %v297
      %v394 = vpack.c.bf16 %v300, %v299
      %v395 = vpack.c.bf16 %v302, %v301
      %v396 = vpack.c.bf16 %v304, %v303
      %v397 = vpack.c.bf16 %v306, %v305
      %v398 = vpack.c.bf16 %v308, %v307
      %v399 = vpack.c.bf16 %v310, %v309
      %v400 = vpack.c.bf16 %v312, %v311
      %v401 = vpack.c.bf16 %v314, %v313
      %v402 = vpack.c.bf16 %v316, %v315
      %v403 = vpack.c.bf16 %v318, %v317
      %v404 = vpack.c.bf16 %v320, %v319
      %v405 = vpack.c.bf16 %v322, %v321
      %v406 = vpack.c.bf16 %v324, %v323
      %v407 = vpack.c.bf16 %v326, %v325
      %v408 = vpack.c.bf16 %v328, %v327
      %v409 = vpack.c.bf16 %v330, %v329
      %v410 = vpack.c.bf16 %v332, %v331
      %v411 = vpack.c.bf16 %v334, %v333
      %v412 = vpack.c.bf16 %v336, %v335
      %v413 = vpack.c.bf16 %v338, %v337
      %v414 = vpack.c.bf16 %v340, %v339
      %v415 = vpack.c.bf16 %v342, %v341
      %v416 = vpack.c.bf16 %v343, %v343
      %v417 = vld [vmem:[%s1] sm:$0xf]
      %v418 = vld [vmem:[%s192 + $0x1] sm:$0xff]
      %v419 = vld [vmem:[%s192 + $0x9] sm:$0xff]
      %v420 = vld [vmem:[%s192 + $0x11] sm:$0xff]
      %v421 = vld [vmem:[%s192 + $0x19] sm:$0xff]
      %v422 = vld [vmem:[%s192 + $0x21] sm:$0xff]
      %v423 = vld [vmem:[%s192 + $0x29] sm:$0xff]
      %v424 = vld [vmem:[%s192 + $0x31] sm:$0xff]
      %v425 = vld [vmem:[%s192 + $0x39] sm:$0xff]
      %v426 = vld [vmem:[%s192 + $0x41] sm:$0xff]
      %v427 = vld [vmem:[%s192 + $0x49] sm:$0xff]
      %v428 = vld [vmem:[%s192 + $0x51] sm:$0xff]
      %v429 = vld [vmem:[%s192 + $0x59] sm:$0xff]
      %v430 = vld [vmem:[%s192 + $0x61] sm:$0xff]
      %v431 = vld [vmem:[%s192 + $0x69] sm:$0xff]
      %v432 = vld [vmem:[%s192 + $0x71] sm:$0xff]
      %v433 = vld [vmem:[%s192 + $0x79] sm:$0xff]
      %v434 = vld [vmem:[%s192 + $0x81] sm:$0xff]
      %v435 = vld [vmem:[%s192 + $0x89] sm:$0xff]
      %v436 = vld [vmem:[%s192 + $0x91] sm:$0xff]
      %v437 = vld [vmem:[%s192 + $0x99] sm:$0xff]
      %v438 = vld [vmem:[%s192 + $0xa1] sm:$0xff]
      %v439 = vld [vmem:[%s192 + $0xa9] sm:$0xff]
      %v440 = vld [vmem:[%s192 + $0xb1] sm:$0xff]
      %v441 = vld [vmem:[%s192 + $0xb9] sm:$0xff]
      %v442 = vld [vmem:[%s192 + $0xc1] sm:$0xff]
      %v443 = vld [vmem:[%s192 + $0xc9] sm:$0xff]
      %v444 = vld [vmem:[%s192 + $0xd1] sm:$0xff]
      %v445 = vld [vmem:[%s192 + $0xd9] sm:$0xff]
      %v446 = vld [vmem:[%s192 + $0xe1] sm:$0xff]
      %v447 = vld [vmem:[%s192 + $0xe9] sm:$0xff]
      %v448 = vld [vmem:[%s192 + $0xf1] sm:$0xff]
      %v449 = vld [vmem:[%s192 + $0xf9] sm:$0xff]
      %v450 = vld [vmem:[%s192 + $0x101] sm:$0xff]
      %v451 = vld [vmem:[%s192 + $0x109] sm:$0xff]
      %v452 = vld [vmem:[%s192 + $0x111] sm:$0xff]
      %v453 = vld [vmem:[%s192 + $0x119] sm:$0xff]
      %v454 = vld [vmem:[%s192 + $0x121] sm:$0xff]
      %v455 = vld [vmem:[%s192 + $0x129] sm:$0xff]
      %v456 = vld [vmem:[%s192 + $0x131] sm:$0xff]
      %v457 = vld [vmem:[%s192 + $0x139] sm:$0xff]
      %v458 = vld [vmem:[%s192 + $0x141] sm:$0xff]
      %v459 = vld [vmem:[%s192 + $0x149] sm:$0xff]
      %v460 = vld [vmem:[%s192 + $0x151] sm:$0xff]
      %v461 = vld [vmem:[%s192 + $0x159] sm:$0xff]
      %v462 = vld [vmem:[%s192 + $0x161] sm:$0xff]
      %v463 = vld [vmem:[%s192 + $0x169] sm:$0xff]
      %v464 = vld [vmem:[%s192 + $0x171] sm:$0xff]
      %v465 = vld [vmem:[%s192 + $0x179] sm:$0xff]
      %v466 = vld [vmem:[%s192 + $0x181] sm:$0xff]
      %v467 = vld [vmem:[%s192 + $0x189] sm:$0xff]
      %v468 = vld [vmem:[%s192 + $0x191] sm:$0xff]
      %v469 = vld [vmem:[%s192 + $0x199] sm:$0xff]
      %v470 = vld [vmem:[%s192 + $0x1a1] sm:$0xff]
      %v471 = vld [vmem:[%s192 + $0x1a9] sm:$0xff]
      %v472 = vld [vmem:[%s192 + $0x1b1] sm:$0xff]
      %v473 = vld [vmem:[%s192 + $0x1b9] sm:$0xff]
      %v474 = vld [vmem:[%s192 + $0x1c1] sm:$0xff]
      %v475 = vld [vmem:[%s192 + $0x1c9] sm:$0xff]
      %v476 = vld [vmem:[%s192 + $0x1d1] sm:$0xff]
      %v477 = vld [vmem:[%s192 + $0x1d9] sm:$0xff]
      %v478 = vld [vmem:[%s192 + $0x1e1] sm:$0xff]
      %v479 = vld [vmem:[%s192 + $0x1e9] sm:$0xff]
      %v480 = vld [vmem:[%s192 + $0x1f1] sm:$0xff]
      %v481 = vld [vmem:[%s192 + $0x1f9] sm:$0xff]
      %v482 = vld [vmem:[%s192 + $0x201] sm:$0xff]
      %v483 = vld [vmem:[%s192 + $0x209] sm:$0xff]
      %v484 = vld [vmem:[%s192 + $0x211] sm:$0xff]
      %v485 = vld [vmem:[%s192 + $0x219] sm:$0xff]
      %v486 = vld [vmem:[%s192 + $0x221] sm:$0xff]
      %v487 = vld [vmem:[%s192 + $0x229] sm:$0xff]
      %v488 = vld [vmem:[%s192 + $0x231] sm:$0xff]
      %v489 = vld [vmem:[%s192 + $0x239] sm:$0xff]
      %v490 = vld [vmem:[%s192 + $0x241] sm:$0xff]
      %v491 = vld [vmem:[%s192 + $0x249] sm:$0xff]
      %v492 = vld [vmem:[%s192 + $0x251] sm:$0xff]
      %v493 = vld [vmem:[%s192 + $0x259] sm:$0xff]
      %v494 = vld [vmem:[%s192 + $0x261] sm:$0xff]
      %v495 = vld [vmem:[%s192 + $0x269] sm:$0xff]
      %v496 = vld [vmem:[%s192 + $0x271] sm:$0xff]
      %v497 = vld [vmem:[%s192 + $0x279] sm:$0xff]
      %v498 = vld [vmem:[%s192 + $0x281] sm:$0xff]
      %v499 = vld [vmem:[%s192 + $0x289] sm:$0xff]
      %v500 = vld [vmem:[%s192 + $0x291] sm:$0xff]
      %v501 = vld [vmem:[%s192 + $0x299] sm:$0xff]
      %v502 = vld [vmem:[%s192 + $0x2a1] sm:$0xff]
      %v503 = vld [vmem:[%s192 + $0x2a9] sm:$0xff]
      %v504 = vld [vmem:[%s192 + $0x2b1] sm:$0xff]
      %v505 = vld [vmem:[%s192 + $0x2b9] sm:$0xff]
      %v506 = vld [vmem:[%s192 + $0x2c1] sm:$0xff]
      %v507 = vld [vmem:[%s192 + $0x2c9] sm:$0xff]
      %v508 = vld [vmem:[%s192 + $0x2d1] sm:$0xff]
      %v509 = vld [vmem:[%s192 + $0x2d9] sm:$0xff]
      %v510 = vld [vmem:[%s192 + $0x2e1] sm:$0xff]
      %v511 = vld [vmem:[%s192 + $0x2e9] sm:$0xff]
      %v512 = vld [vmem:[%s192 + $0x2f1] sm:$0xff]
      %v513 = vld [vmem:[%s192 + $0x2f9] sm:$0xff]
      %v514 = vld [vmem:[%s192 + $0x301] sm:$0xff]
      %v515 = vld [vmem:[%s192 + $0x309] sm:$0xff]
      %v516 = vld [vmem:[%s192 + $0x311] sm:$0xff]
      %v517 = vld [vmem:[%s192 + $0x319] sm:$0xff]
      %v518 = vld [vmem:[%s192 + $0x321] sm:$0xff]
      %v519 = vld [vmem:[%s192 + $0x329] sm:$0xff]
      %v520 = vld [vmem:[%s192 + $0x331] sm:$0xff]
      %v521 = vld [vmem:[%s192 + $0x339] sm:$0xff]
      %v522 = vld [vmem:[%s192 + $0x341] sm:$0xff]
      %v523 = vld [vmem:[%s192 + $0x349] sm:$0xff]
      %v524 = vld [vmem:[%s192 + $0x351] sm:$0xff]
      %v525 = vld [vmem:[%s192 + $0x359] sm:$0xff]
      %v526 = vld [vmem:[%s192 + $0x361] sm:$0xff]
      %v527 = vld [vmem:[%s192 + $0x369] sm:$0xff]
      %v528 = vld [vmem:[%s192 + $0x371] sm:$0xff]
      %v529 = vld [vmem:[%s192 + $0x379] sm:$0xff]
      %v530 = vld [vmem:[%s192 + $0x381] sm:$0xff]
      %v531 = vld [vmem:[%s192 + $0x389] sm:$0xff]
      %v532 = vld [vmem:[%s192 + $0x391] sm:$0xff]
      %v533 = vld [vmem:[%s192 + $0x399] sm:$0xff]
      %v534 = vld [vmem:[%s192 + $0x3a1] sm:$0xff]
      %v535 = vld [vmem:[%s192 + $0x3a9] sm:$0xff]
      %v536 = vld [vmem:[%s192 + $0x3b1] sm:$0xff]
      %v537 = vld [vmem:[%s192 + $0x3b9] sm:$0xff]
      %v538 = vld [vmem:[%s192 + $0x3c1] sm:$0xff]
      %v539 = vld [vmem:[%s192 + $0x3c9] sm:$0xff]
      %v540 = vld [vmem:[%s192 + $0x3d1] sm:$0xff]
      %v541 = vld [vmem:[%s192 + $0x3d9] sm:$0xff]
      %v542 = vld [vmem:[%s192 + $0x3e1] sm:$0xff]
      %v543 = vld [vmem:[%s192 + $0x3e9] sm:$0xff]
      %v544 = vld [vmem:[%s192 + $0x3f1] sm:$0xff]
      %v545 = vld [vmem:[%s192 + $0x3f9] sm:$0xff]
      %v546 = vld [vmem:[%s192 + $0x401] sm:$0xff]
      %v547 = vld [vmem:[%s192 + $0x409] sm:$0xff]
      %v548 = vld [vmem:[%s192 + $0x411] sm:$0xff]
      %v549 = vld [vmem:[%s192 + $0x419] sm:$0xff]
      %v550 = vld [vmem:[%s192 + $0x421] sm:$0xff]
      %v551 = vld [vmem:[%s192 + $0x429] sm:$0xff]
      %v552 = vld [vmem:[%s192 + $0x431] sm:$0xff]
      %v553 = vld [vmem:[%s192 + $0x439] sm:$0xff]
      %v554 = vld [vmem:[%s192 + $0x441] sm:$0xff]
      %v555 = vld [vmem:[%s192 + $0x449] sm:$0xff]
      %v556 = vld [vmem:[%s192 + $0x451] sm:$0xff]
      %v557 = vld [vmem:[%s192 + $0x459] sm:$0xff]
      %v558 = vld [vmem:[%s192 + $0x461] sm:$0xff]
      %v559 = vld [vmem:[%s192 + $0x469] sm:$0xff]
      %v560 = vld [vmem:[%s192 + $0x471] sm:$0xff]
      %v561 = vld [vmem:[%s192 + $0x479] sm:$0xff]
      %v562 = vld [vmem:[%s192 + $0x481] sm:$0xf]
      %v563 = vpack.c.bf16 %v419, %v418
      %v564 = vpack.c.bf16 %v421, %v420
      %v565 = vpack.c.bf16 %v423, %v422
      %v566 = vpack.c.bf16 %v425, %v424
      %v567 = vpack.c.bf16 %v427, %v426
      %v568 = vpack.c.bf16 %v429, %v428
      %v569 = vpack.c.bf16 %v431, %v430
      %v570 = vpack.c.bf16 %v433, %v432
      %v571 = vpack.c.bf16 %v435, %v434
      %v572 = vpack.c.bf16 %v437, %v436
      %v573 = vpack.c.bf16 %v439, %v438
      %v574 = vpack.c.bf16 %v441, %v440
      %v575 = vpack.c.bf16 %v443, %v442
      %v576 = vpack.c.bf16 %v445, %v444
      %v577 = vpack.c.bf16 %v447, %v446
      %v578 = vpack.c.bf16 %v449, %v448
      %v579 = vpack.c.bf16 %v451, %v450
      %v580 = vpack.c.bf16 %v453, %v452
      %v581 = vpack.c.bf16 %v455, %v454
      %v582 = vpack.c.bf16 %v457, %v456
      %v583 = vpack.c.bf16 %v459, %v458
      %v584 = vpack.c.bf16 %v461, %v460
      %v585 = vpack.c.bf16 %v463, %v462
      %v586 = vpack.c.bf16 %v465, %v464
      %v587 = vpack.c.bf16 %v467, %v466
      %v588 = vpack.c.bf16 %v469, %v468
      %v589 = vpack.c.bf16 %v471, %v470
      %v590 = vpack.c.bf16 %v473, %v472
      %v591 = vpack.c.bf16 %v475, %v474
      %v592 = vpack.c.bf16 %v477, %v476
      %v593 = vpack.c.bf16 %v479, %v478
      %v594 = vpack.c.bf16 %v481, %v480
      %v595 = vpack.c.bf16 %v483, %v482
      %v596 = vpack.c.bf16 %v485, %v484
      %v597 = vpack.c.bf16 %v487, %v486
      %v598 = vpack.c.bf16 %v489, %v488
      %v599 = vpack.c.bf16 %v491, %v490
      %v600 = vpack.c.bf16 %v493, %v492
      %v601 = vpack.c.bf16 %v495, %v494
      %v602 = vpack.c.bf16 %v497, %v496
      %v603 = vpack.c.bf16 %v499, %v498
      %v604 = vpack.c.bf16 %v501, %v500
      %v605 = vpack.c.bf16 %v503, %v502
      %v606 = vpack.c.bf16 %v505, %v504
      %v607 = vpack.c.bf16 %v507, %v506
      %v608 = vpack.c.bf16 %v509, %v508
      %v609 = vpack.c.bf16 %v511, %v510
      %v610 = vpack.c.bf16 %v513, %v512
      %v611 = vpack.c.bf16 %v515, %v514
      %v612 = vpack.c.bf16 %v517, %v516
      %v613 = vpack.c.bf16 %v519, %v518
      %v614 = vpack.c.bf16 %v521, %v520
      %v615 = vpack.c.bf16 %v523, %v522
      %v616 = vpack.c.bf16 %v525, %v524
      %v617 = vpack.c.bf16 %v527, %v526
      %v618 = vpack.c.bf16 %v529, %v528
      %v619 = vpack.c.bf16 %v531, %v530
      %v620 = vpack.c.bf16 %v533, %v532
      %v621 = vpack.c.bf16 %v535, %v534
      %v622 = vpack.c.bf16 %v537, %v536
      %v623 = vpack.c.bf16 %v539, %v538
      %v624 = vpack.c.bf16 %v541, %v540
      %v625 = vpack.c.bf16 %v543, %v542
      %v626 = vpack.c.bf16 %v545, %v544
      %v627 = vpack.c.bf16 %v547, %v546
      %v628 = vpack.c.bf16 %v549, %v548
      %v629 = vpack.c.bf16 %v551, %v550
      %v630 = vpack.c.bf16 %v553, %v552
      %v631 = vpack.c.bf16 %v555, %v554
      %v632 = vpack.c.bf16 %v557, %v556
      %v633 = vpack.c.bf16 %v559, %v558
      %v634 = vpack.c.bf16 %v561, %v560
      %v635 = vpack.c.bf16 %v562, %v562
      %s636 = scalar_lea.vmem %s1, 4
      %v637 = vld [vmem:[%s636] sm:$0xf]
      %vm638 = vcmask 64512
      %v640 = vsel %vm638, %v563, 0
      %v643 = vsel %vm638, %v564, 0
      %v646 = vsel %vm638, %v565, 0
      %v649 = vsel %vm638, %v566, 0
      %v652 = vsel %vm638, %v567, 0
      %v655 = vsel %vm638, %v568, 0
      %v658 = vsel %vm638, %v569, 0
      %v661 = vsel %vm638, %v570, 0
      %v664 = vsel %vm638, %v571, 0
      %v667 = vsel %vm638, %v572, 0
      %v670 = vsel %vm638, %v573, 0
      %v673 = vsel %vm638, %v574, 0
      %v676 = vsel %vm638, %v575, 0
      %v679 = vsel %vm638, %v576, 0
      %v682 = vsel %vm638, %v577, 0
      %v685 = vsel %vm638, %v578, 0
      %v688 = vsel %vm638, %v579, 0
      %v691 = vsel %vm638, %v580, 0
      %v694 = vsel %vm638, %v581, 0
      %v697 = vsel %vm638, %v582, 0
      %v700 = vsel %vm638, %v583, 0
      %v703 = vsel %vm638, %v584, 0
      %v706 = vsel %vm638, %v585, 0
      %v709 = vsel %vm638, %v586, 0
      %v712 = vsel %vm638, %v587, 0
      %v715 = vsel %vm638, %v588, 0
      %v718 = vsel %vm638, %v589, 0
      %v721 = vsel %vm638, %v590, 0
      %v724 = vsel %vm638, %v591, 0
      %v727 = vsel %vm638, %v592, 0
      %v730 = vsel %vm638, %v593, 0
      %v733 = vsel %vm638, %v594, 0
      %v736 = vsel %vm638, %v595, 0
      %v739 = vsel %vm638, %v596, 0
      %v742 = vsel %vm638, %v597, 0
      %v745 = vsel %vm638, %v598, 0
      %v748 = vsel %vm638, %v599, 0
      %v751 = vsel %vm638, %v600, 0
      %v754 = vsel %vm638, %v601, 0
      %v757 = vsel %vm638, %v602, 0
      %v760 = vsel %vm638, %v603, 0
      %v763 = vsel %vm638, %v604, 0
      %v766 = vsel %vm638, %v605, 0
      %v769 = vsel %vm638, %v606, 0
      %v772 = vsel %vm638, %v607, 0
      %v775 = vsel %vm638, %v608, 0
      %v778 = vsel %vm638, %v609, 0
      %v781 = vsel %vm638, %v610, 0
      %v784 = vsel %vm638, %v611, 0
      %v787 = vsel %vm638, %v612, 0
      %v790 = vsel %vm638, %v613, 0
      %v793 = vsel %vm638, %v614, 0
      %v796 = vsel %vm638, %v615, 0
      %v799 = vsel %vm638, %v616, 0
      %v802 = vsel %vm638, %v617, 0
      %v805 = vsel %vm638, %v618, 0
      %v808 = vsel %vm638, %v619, 0
      %v811 = vsel %vm638, %v620, 0
      %v814 = vsel %vm638, %v621, 0
      %v817 = vsel %vm638, %v622, 0
      %v820 = vsel %vm638, %v623, 0
      %v823 = vsel %vm638, %v624, 0
      %v826 = vsel %vm638, %v625, 0
      %v829 = vsel %vm638, %v626, 0
      %v832 = vsel %vm638, %v627, 0
      %v835 = vsel %vm638, %v628, 0
      %v838 = vsel %vm638, %v629, 0
      %v841 = vsel %vm638, %v630, 0
      %v844 = vsel %vm638, %v631, 0
      %v847 = vsel %vm638, %v632, 0
      %v850 = vsel %vm638, %v633, 0
      %v853 = vsel %vm638, %v634, 0
      %v856 = vsel %vm638, %v635, 0
      %vm858 = vcmask 1043456
      %v860 = vsel %vm858, %v637, 0
      %862 = vmatpush.bf16.msra.mxu0 0
      %863 = vmatpush.bf16.msra.mxu0 0
      %864 = vmatpush.bf16.msra.mxu0 0
      %865 = vmatpush.bf16.msra.mxu0 0
      %866 = vmatpush.bf16.msra.mxu0 0
      %867 = vmatpush.bf16.msra.mxu0 0
      %868 = vmatpush.bf16.msra.mxu0 0
      %869 = vmatpush.bf16.msra.mxu0 %v860
      %870 = vmatmul.bf16.gmra.mxu0 %v640
      %v871 = vpop.f32.mrf.mxu0
      %v872 = vadd.f32 0.0, %v871
      %v873 = vpop.f32.mrf.mxu0
      %v874 = vadd.f32 0.0, %v873
      %875 = vmatmul.bf16.gmra.mxu0 %v643
      %v876 = vpop.f32.mrf.mxu0
      %v877 = vadd.f32 0.0, %v876
      %v878 = vpop.f32.mrf.mxu0
      %v879 = vadd.f32 0.0, %v878
      %880 = vmatmul.bf16.gmra.mxu0 %v646
      %v881 = vpop.f32.mrf.mxu0
      %v882 = vadd.f32 0.0, %v881
      %v883 = vpop.f32.mrf.mxu0
      %v884 = vadd.f32 0.0, %v883
      %885 = vmatmul.bf16.gmra.mxu0 %v649
      %v886 = vpop.f32.mrf.mxu0
      %v887 = vadd.f32 0.0, %v886
      %v888 = vpop.f32.mrf.mxu0
      %v889 = vadd.f32 0.0, %v888
      %890 = vmatmul.bf16.gmra.mxu0 %v652
      %v891 = vpop.f32.mrf.mxu0
      %v892 = vadd.f32 0.0, %v891
      %v893 = vpop.f32.mrf.mxu0
      %v894 = vadd.f32 0.0, %v893
      %895 = vmatmul.bf16.gmra.mxu0 %v655
      %v896 = vpop.f32.mrf.mxu0
      %v897 = vadd.f32 0.0, %v896
      %v898 = vpop.f32.mrf.mxu0
      %v899 = vadd.f32 0.0, %v898
      %900 = vmatmul.bf16.gmra.mxu0 %v658
      %v901 = vpop.f32.mrf.mxu0
      %v902 = vadd.f32 0.0, %v901
      %v903 = vpop.f32.mrf.mxu0
      %v904 = vadd.f32 0.0, %v903
      %905 = vmatmul.bf16.gmra.mxu0 %v661
      %v906 = vpop.f32.mrf.mxu0
      %v907 = vadd.f32 0.0, %v906
      %v908 = vpop.f32.mrf.mxu0
      %v909 = vadd.f32 0.0, %v908
      %910 = vmatmul.bf16.gmra.mxu0 %v664
      %v911 = vpop.f32.mrf.mxu0
      %v912 = vadd.f32 0.0, %v911
      %v913 = vpop.f32.mrf.mxu0
      %v914 = vadd.f32 0.0, %v913
      %915 = vmatmul.bf16.gmra.mxu0 %v667
      %v916 = vpop.f32.mrf.mxu0
      %v917 = vadd.f32 0.0, %v916
      %v918 = vpop.f32.mrf.mxu0
      %v919 = vadd.f32 0.0, %v918
      %920 = vmatmul.bf16.gmra.mxu0 %v670
      %v921 = vpop.f32.mrf.mxu0
      %v922 = vadd.f32 0.0, %v921
      %v923 = vpop.f32.mrf.mxu0
      %v924 = vadd.f32 0.0, %v923
      %925 = vmatmul.bf16.gmra.mxu0 %v673
      %v926 = vpop.f32.mrf.mxu0
      %v927 = vadd.f32 0.0, %v926
      %v928 = vpop.f32.mrf.mxu0
      %v929 = vadd.f32 0.0, %v928
      %930 = vmatmul.bf16.gmra.mxu0 %v676
      %v931 = vpop.f32.mrf.mxu0
      %v932 = vadd.f32 0.0, %v931
      %v933 = vpop.f32.mrf.mxu0
      %v934 = vadd.f32 0.0, %v933
      %935 = vmatmul.bf16.gmra.mxu0 %v679
      %v936 = vpop.f32.mrf.mxu0
      %v937 = vadd.f32 0.0, %v936
      %v938 = vpop.f32.mrf.mxu0
      %v939 = vadd.f32 0.0, %v938
      %940 = vmatmul.bf16.gmra.mxu0 %v682
      %v941 = vpop.f32.mrf.mxu0
      %v942 = vadd.f32 0.0, %v941
      %v943 = vpop.f32.mrf.mxu0
      %v944 = vadd.f32 0.0, %v943
      %945 = vmatmul.bf16.gmra.mxu0 %v685
      %v946 = vpop.f32.mrf.mxu0
      %v947 = vadd.f32 0.0, %v946
      %v948 = vpop.f32.mrf.mxu0
      %v949 = vadd.f32 0.0, %v948
      %950 = vmatmul.bf16.gmra.mxu0 %v688
      %v951 = vpop.f32.mrf.mxu0
      %v952 = vadd.f32 0.0, %v951
      %v953 = vpop.f32.mrf.mxu0
      %v954 = vadd.f32 0.0, %v953
      %955 = vmatmul.bf16.gmra.mxu0 %v691
      %v956 = vpop.f32.mrf.mxu0
      %v957 = vadd.f32 0.0, %v956
      %v958 = vpop.f32.mrf.mxu0
      %v959 = vadd.f32 0.0, %v958
      %960 = vmatmul.bf16.gmra.mxu0 %v694
      %v961 = vpop.f32.mrf.mxu0
      %v962 = vadd.f32 0.0, %v961
      %v963 = vpop.f32.mrf.mxu0
      %v964 = vadd.f32 0.0, %v963
      %965 = vmatmul.bf16.gmra.mxu0 %v697
      %v966 = vpop.f32.mrf.mxu0
      %v967 = vadd.f32 0.0, %v966
      %v968 = vpop.f32.mrf.mxu0
      %v969 = vadd.f32 0.0, %v968
      %970 = vmatmul.bf16.gmra.mxu0 %v700
      %v971 = vpop.f32.mrf.mxu0
      %v972 = vadd.f32 0.0, %v971
      %v973 = vpop.f32.mrf.mxu0
      %v974 = vadd.f32 0.0, %v973
      %975 = vmatmul.bf16.gmra.mxu0 %v703
      %v976 = vpop.f32.mrf.mxu0
      %v977 = vadd.f32 0.0, %v976
      %v978 = vpop.f32.mrf.mxu0
      %v979 = vadd.f32 0.0, %v978
      %980 = vmatmul.bf16.gmra.mxu0 %v706
      %v981 = vpop.f32.mrf.mxu0
      %v982 = vadd.f32 0.0, %v981
      %v983 = vpop.f32.mrf.mxu0
      %v984 = vadd.f32 0.0, %v983
      %985 = vmatmul.bf16.gmra.mxu0 %v709
      %v986 = vpop.f32.mrf.mxu0
      %v987 = vadd.f32 0.0, %v986
      %v988 = vpop.f32.mrf.mxu0
      %v989 = vadd.f32 0.0, %v988
      %990 = vmatmul.bf16.gmra.mxu0 %v712
      %v991 = vpop.f32.mrf.mxu0
      %v992 = vadd.f32 0.0, %v991
      %v993 = vpop.f32.mrf.mxu0
      %v994 = vadd.f32 0.0, %v993
      %995 = vmatmul.bf16.gmra.mxu0 %v715
      %v996 = vpop.f32.mrf.mxu0
      %v997 = vadd.f32 0.0, %v996
      %v998 = vpop.f32.mrf.mxu0
      %v999 = vadd.f32 0.0, %v998
      %1000 = vmatmul.bf16.gmra.mxu0 %v718
      %v1001 = vpop.f32.mrf.mxu0
      %v1002 = vadd.f32 0.0, %v1001
      %v1003 = vpop.f32.mrf.mxu0
      %v1004 = vadd.f32 0.0, %v1003
      %1005 = vmatmul.bf16.gmra.mxu0 %v721
      %v1006 = vpop.f32.mrf.mxu0
      %v1007 = vadd.f32 0.0, %v1006
      %v1008 = vpop.f32.mrf.mxu0
      %v1009 = vadd.f32 0.0, %v1008
      %1010 = vmatmul.bf16.gmra.mxu0 %v724
      %v1011 = vpop.f32.mrf.mxu0
      %v1012 = vadd.f32 0.0, %v1011
      %v1013 = vpop.f32.mrf.mxu0
      %v1014 = vadd.f32 0.0, %v1013
      %1015 = vmatmul.bf16.gmra.mxu0 %v727
      %v1016 = vpop.f32.mrf.mxu0
      %v1017 = vadd.f32 0.0, %v1016
      %v1018 = vpop.f32.mrf.mxu0
      %v1019 = vadd.f32 0.0, %v1018
      %1020 = vmatmul.bf16.gmra.mxu0 %v730
      %v1021 = vpop.f32.mrf.mxu0
      %v1022 = vadd.f32 0.0, %v1021
      %v1023 = vpop.f32.mrf.mxu0
      %v1024 = vadd.f32 0.0, %v1023
      %1025 = vmatmul.bf16.gmra.mxu0 %v733
      %v1026 = vpop.f32.mrf.mxu0
      %v1027 = vadd.f32 0.0, %v1026
      %v1028 = vpop.f32.mrf.mxu0
      %v1029 = vadd.f32 0.0, %v1028
      %1030 = vmatmul.bf16.gmra.mxu0 %v736
      %v1031 = vpop.f32.mrf.mxu0
      %v1032 = vadd.f32 0.0, %v1031
      %v1033 = vpop.f32.mrf.mxu0
      %v1034 = vadd.f32 0.0, %v1033
      %1035 = vmatmul.bf16.gmra.mxu0 %v739
      %v1036 = vpop.f32.mrf.mxu0
      %v1037 = vadd.f32 0.0, %v1036
      %v1038 = vpop.f32.mrf.mxu0
      %v1039 = vadd.f32 0.0, %v1038
      %1040 = vmatmul.bf16.gmra.mxu0 %v742
      %v1041 = vpop.f32.mrf.mxu0
      %v1042 = vadd.f32 0.0, %v1041
      %v1043 = vpop.f32.mrf.mxu0
      %v1044 = vadd.f32 0.0, %v1043
      %1045 = vmatmul.bf16.gmra.mxu0 %v745
      %v1046 = vpop.f32.mrf.mxu0
      %v1047 = vadd.f32 0.0, %v1046
      %v1048 = vpop.f32.mrf.mxu0
      %v1049 = vadd.f32 0.0, %v1048
      %1050 = vmatmul.bf16.gmra.mxu0 %v748
      %v1051 = vpop.f32.mrf.mxu0
      %v1052 = vadd.f32 0.0, %v1051
      %v1053 = vpop.f32.mrf.mxu0
      %v1054 = vadd.f32 0.0, %v1053
      %1055 = vmatmul.bf16.gmra.mxu0 %v751
      %v1056 = vpop.f32.mrf.mxu0
      %v1057 = vadd.f32 0.0, %v1056
      %v1058 = vpop.f32.mrf.mxu0
      %v1059 = vadd.f32 0.0, %v1058
      %1060 = vmatmul.bf16.gmra.mxu0 %v754
      %v1061 = vpop.f32.mrf.mxu0
      %v1062 = vadd.f32 0.0, %v1061
      %v1063 = vpop.f32.mrf.mxu0
      %v1064 = vadd.f32 0.0, %v1063
      %1065 = vmatmul.bf16.gmra.mxu0 %v757
      %v1066 = vpop.f32.mrf.mxu0
      %v1067 = vadd.f32 0.0, %v1066
      %v1068 = vpop.f32.mrf.mxu0
      %v1069 = vadd.f32 0.0, %v1068
      %1070 = vmatmul.bf16.gmra.mxu0 %v760
      %v1071 = vpop.f32.mrf.mxu0
      %v1072 = vadd.f32 0.0, %v1071
      %v1073 = vpop.f32.mrf.mxu0
      %v1074 = vadd.f32 0.0, %v1073
      %1075 = vmatmul.bf16.gmra.mxu0 %v763
      %v1076 = vpop.f32.mrf.mxu0
      %v1077 = vadd.f32 0.0, %v1076
      %v1078 = vpop.f32.mrf.mxu0
      %v1079 = vadd.f32 0.0, %v1078
      %1080 = vmatmul.bf16.gmra.mxu0 %v766
      %v1081 = vpop.f32.mrf.mxu0
      %v1082 = vadd.f32 0.0, %v1081
      %v1083 = vpop.f32.mrf.mxu0
      %v1084 = vadd.f32 0.0, %v1083
      %1085 = vmatmul.bf16.gmra.mxu0 %v769
      %v1086 = vpop.f32.mrf.mxu0
      %v1087 = vadd.f32 0.0, %v1086
      %v1088 = vpop.f32.mrf.mxu0
      %v1089 = vadd.f32 0.0, %v1088
      %1090 = vmatmul.bf16.gmra.mxu0 %v772
      %v1091 = vpop.f32.mrf.mxu0
      %v1092 = vadd.f32 0.0, %v1091
      %v1093 = vpop.f32.mrf.mxu0
      %v1094 = vadd.f32 0.0, %v1093
      %1095 = vmatmul.bf16.gmra.mxu0 %v775
      %v1096 = vpop.f32.mrf.mxu0
      %v1097 = vadd.f32 0.0, %v1096
      %v1098 = vpop.f32.mrf.mxu0
      %v1099 = vadd.f32 0.0, %v1098
      %1100 = vmatmul.bf16.gmra.mxu0 %v778
      %v1101 = vpop.f32.mrf.mxu0
      %v1102 = vadd.f32 0.0, %v1101
      %v1103 = vpop.f32.mrf.mxu0
      %v1104 = vadd.f32 0.0, %v1103
      %1105 = vmatmul.bf16.gmra.mxu0 %v781
      %v1106 = vpop.f32.mrf.mxu0
      %v1107 = vadd.f32 0.0, %v1106
      %v1108 = vpop.f32.mrf.mxu0
      %v1109 = vadd.f32 0.0, %v1108
      %1110 = vmatmul.bf16.gmra.mxu0 %v784
      %v1111 = vpop.f32.mrf.mxu0
      %v1112 = vadd.f32 0.0, %v1111
      %v1113 = vpop.f32.mrf.mxu0
      %v1114 = vadd.f32 0.0, %v1113
      %1115 = vmatmul.bf16.gmra.mxu0 %v787
      %v1116 = vpop.f32.mrf.mxu0
      %v1117 = vadd.f32 0.0, %v1116
      %v1118 = vpop.f32.mrf.mxu0
      %v1119 = vadd.f32 0.0, %v1118
      %1120 = vmatmul.bf16.gmra.mxu0 %v790
      %v1121 = vpop.f32.mrf.mxu0
      %v1122 = vadd.f32 0.0, %v1121
      %v1123 = vpop.f32.mrf.mxu0
      %v1124 = vadd.f32 0.0, %v1123
      %1125 = vmatmul.bf16.gmra.mxu0 %v793
      %v1126 = vpop.f32.mrf.mxu0
      %v1127 = vadd.f32 0.0, %v1126
      %v1128 = vpop.f32.mrf.mxu0
      %v1129 = vadd.f32 0.0, %v1128
      %1130 = vmatmul.bf16.gmra.mxu0 %v796
      %v1131 = vpop.f32.mrf.mxu0
      %v1132 = vadd.f32 0.0, %v1131
      %v1133 = vpop.f32.mrf.mxu0
      %v1134 = vadd.f32 0.0, %v1133
      %1135 = vmatmul.bf16.gmra.mxu0 %v799
      %v1136 = vpop.f32.mrf.mxu0
      %v1137 = vadd.f32 0.0, %v1136
      %v1138 = vpop.f32.mrf.mxu0
      %v1139 = vadd.f32 0.0, %v1138
      %1140 = vmatmul.bf16.gmra.mxu0 %v802
      %v1141 = vpop.f32.mrf.mxu0
      %v1142 = vadd.f32 0.0, %v1141
      %v1143 = vpop.f32.mrf.mxu0
      %v1144 = vadd.f32 0.0, %v1143
      %1145 = vmatmul.bf16.gmra.mxu0 %v805
      %v1146 = vpop.f32.mrf.mxu0
      %v1147 = vadd.f32 0.0, %v1146
      %v1148 = vpop.f32.mrf.mxu0
      %v1149 = vadd.f32 0.0, %v1148
      %1150 = vmatmul.bf16.gmra.mxu0 %v808
      %v1151 = vpop.f32.mrf.mxu0
      %v1152 = vadd.f32 0.0, %v1151
      %v1153 = vpop.f32.mrf.mxu0
      %v1154 = vadd.f32 0.0, %v1153
      %1155 = vmatmul.bf16.gmra.mxu0 %v811
      %v1156 = vpop.f32.mrf.mxu0
      %v1157 = vadd.f32 0.0, %v1156
      %v1158 = vpop.f32.mrf.mxu0
      %v1159 = vadd.f32 0.0, %v1158
      %1160 = vmatmul.bf16.gmra.mxu0 %v814
      %v1161 = vpop.f32.mrf.mxu0
      %v1162 = vadd.f32 0.0, %v1161
      %v1163 = vpop.f32.mrf.mxu0
      %v1164 = vadd.f32 0.0, %v1163
      %1165 = vmatmul.bf16.gmra.mxu0 %v817
      %v1166 = vpop.f32.mrf.mxu0
      %v1167 = vadd.f32 0.0, %v1166
      %v1168 = vpop.f32.mrf.mxu0
      %v1169 = vadd.f32 0.0, %v1168
      %1170 = vmatmul.bf16.gmra.mxu0 %v820
      %v1171 = vpop.f32.mrf.mxu0
      %v1172 = vadd.f32 0.0, %v1171
      %v1173 = vpop.f32.mrf.mxu0
      %v1174 = vadd.f32 0.0, %v1173
      %1175 = vmatmul.bf16.gmra.mxu0 %v823
      %v1176 = vpop.f32.mrf.mxu0
      %v1177 = vadd.f32 0.0, %v1176
      %v1178 = vpop.f32.mrf.mxu0
      %v1179 = vadd.f32 0.0, %v1178
      %1180 = vmatmul.bf16.gmra.mxu0 %v826
      %v1181 = vpop.f32.mrf.mxu0
      %v1182 = vadd.f32 0.0, %v1181
      %v1183 = vpop.f32.mrf.mxu0
      %v1184 = vadd.f32 0.0, %v1183
      %1185 = vmatmul.bf16.gmra.mxu0 %v829
      %v1186 = vpop.f32.mrf.mxu0
      %v1187 = vadd.f32 0.0, %v1186
      %v1188 = vpop.f32.mrf.mxu0
      %v1189 = vadd.f32 0.0, %v1188
      %1190 = vmatmul.bf16.gmra.mxu0 %v832
      %v1191 = vpop.f32.mrf.mxu0
      %v1192 = vadd.f32 0.0, %v1191
      %v1193 = vpop.f32.mrf.mxu0
      %v1194 = vadd.f32 0.0, %v1193
      %1195 = vmatmul.bf16.gmra.mxu0 %v835
      %v1196 = vpop.f32.mrf.mxu0
      %v1197 = vadd.f32 0.0, %v1196
      %v1198 = vpop.f32.mrf.mxu0
      %v1199 = vadd.f32 0.0, %v1198
      %1200 = vmatmul.bf16.gmra.mxu0 %v838
      %v1201 = vpop.f32.mrf.mxu0
      %v1202 = vadd.f32 0.0, %v1201
      %v1203 = vpop.f32.mrf.mxu0
      %v1204 = vadd.f32 0.0, %v1203
      %1205 = vmatmul.bf16.gmra.mxu0 %v841
      %v1206 = vpop.f32.mrf.mxu0
      %v1207 = vadd.f32 0.0, %v1206
      %v1208 = vpop.f32.mrf.mxu0
      %v1209 = vadd.f32 0.0, %v1208
      %1210 = vmatmul.bf16.gmra.mxu0 %v844
      %v1211 = vpop.f32.mrf.mxu0
      %v1212 = vadd.f32 0.0, %v1211
      %v1213 = vpop.f32.mrf.mxu0
      %v1214 = vadd.f32 0.0, %v1213
      %1215 = vmatmul.bf16.gmra.mxu0 %v847
      %v1216 = vpop.f32.mrf.mxu0
      %v1217 = vadd.f32 0.0, %v1216
      %v1218 = vpop.f32.mrf.mxu0
      %v1219 = vadd.f32 0.0, %v1218
      %1220 = vmatmul.bf16.gmra.mxu0 %v850
      %v1221 = vpop.f32.mrf.mxu0
      %v1222 = vadd.f32 0.0, %v1221
      %v1223 = vpop.f32.mrf.mxu0
      %v1224 = vadd.f32 0.0, %v1223
      %1225 = vmatmul.bf16.gmra.mxu0 %v853
      %v1226 = vpop.f32.mrf.mxu0
      %v1227 = vadd.f32 0.0, %v1226
      %v1228 = vpop.f32.mrf.mxu0
      %v1229 = vadd.f32 0.0, %v1228
      %1230 = vmatmul.bf16.gmra.mxu0 %v856
      %v1231 = vpop.f32.mrf.mxu0
      %v1232 = vadd.f32 0.0, %v1231
      %v1233 = vpop.f32.mrf.mxu0
      %1234 = vdwg.mxu0
      %v1236 = vsel %vm638, %v344, 0
      %v1239 = vsel %vm638, %v345, 0
      %v1242 = vsel %vm638, %v346, 0
      %v1245 = vsel %vm638, %v347, 0
      %v1248 = vsel %vm638, %v348, 0
      %v1251 = vsel %vm638, %v349, 0
      %v1254 = vsel %vm638, %v350, 0
      %v1257 = vsel %vm638, %v351, 0
      %v1260 = vsel %vm638, %v352, 0
      %v1263 = vsel %vm638, %v353, 0
      %v1266 = vsel %vm638, %v354, 0
      %v1269 = vsel %vm638, %v355, 0
      %v1272 = vsel %vm638, %v356, 0
      %v1275 = vsel %vm638, %v357, 0
      %v1278 = vsel %vm638, %v358, 0
      %v1281 = vsel %vm638, %v359, 0
      %v1284 = vsel %vm638, %v360, 0
      %v1287 = vsel %vm638, %v361, 0
      %v1290 = vsel %vm638, %v362, 0
      %v1293 = vsel %vm638, %v363, 0
      %v1296 = vsel %vm638, %v364, 0
      %v1299 = vsel %vm638, %v365, 0
      %v1302 = vsel %vm638, %v366, 0
      %v1305 = vsel %vm638, %v367, 0
      %v1308 = vsel %vm638, %v368, 0
      %v1311 = vsel %vm638, %v369, 0
      %v1314 = vsel %vm638, %v370, 0
      %v1317 = vsel %vm638, %v371, 0
      %v1320 = vsel %vm638, %v372, 0
      %v1323 = vsel %vm638, %v373, 0
      %v1326 = vsel %vm638, %v374, 0
      %v1329 = vsel %vm638, %v375, 0
      %v1332 = vsel %vm638, %v376, 0
      %v1335 = vsel %vm638, %v377, 0
      %v1338 = vsel %vm638, %v378, 0
      %v1341 = vsel %vm638, %v379, 0
      %v1344 = vsel %vm638, %v380, 0
      %v1347 = vsel %vm638, %v381, 0
      %v1350 = vsel %vm638, %v382, 0
      %v1353 = vsel %vm638, %v383, 0
      %v1356 = vsel %vm638, %v384, 0
      %v1359 = vsel %vm638, %v385, 0
      %v1362 = vsel %vm638, %v386, 0
      %v1365 = vsel %vm638, %v387, 0
      %v1368 = vsel %vm638, %v388, 0
      %v1371 = vsel %vm638, %v389, 0
      %v1374 = vsel %vm638, %v390, 0
      %v1377 = vsel %vm638, %v391, 0
      %v1380 = vsel %vm638, %v392, 0
      %v1383 = vsel %vm638, %v393, 0
      %v1386 = vsel %vm638, %v394, 0
      %v1389 = vsel %vm638, %v395, 0
      %v1392 = vsel %vm638, %v396, 0
      %v1395 = vsel %vm638, %v397, 0
      %v1398 = vsel %vm638, %v398, 0
      %v1401 = vsel %vm638, %v399, 0
      %v1404 = vsel %vm638, %v400, 0
      %v1407 = vsel %vm638, %v401, 0
      %v1410 = vsel %vm638, %v402, 0
      %v1413 = vsel %vm638, %v403, 0
      %v1416 = vsel %vm638, %v404, 0
      %v1419 = vsel %vm638, %v405, 0
      %v1422 = vsel %vm638, %v406, 0
      %v1425 = vsel %vm638, %v407, 0
      %v1428 = vsel %vm638, %v408, 0
      %v1431 = vsel %vm638, %v409, 0
      %v1434 = vsel %vm638, %v410, 0
      %v1437 = vsel %vm638, %v411, 0
      %v1440 = vsel %vm638, %v412, 0
      %v1443 = vsel %vm638, %v413, 0
      %v1446 = vsel %vm638, %v414, 0
      %v1449 = vsel %vm638, %v415, 0
      %v1452 = vsel %vm638, %v416, 0
      %v1455 = vsel %vm858, %v417, 0
      %1457 = vmatpush.bf16.msra.mxu0 0
      %1458 = vmatpush.bf16.msra.mxu0 0
      %1459 = vmatpush.bf16.msra.mxu0 0
      %1460 = vmatpush.bf16.msra.mxu0 0
      %1461 = vmatpush.bf16.msra.mxu0 0
      %1462 = vmatpush.bf16.msra.mxu0 0
      %1463 = vmatpush.bf16.msra.mxu0 0
      %1464 = vmatpush.bf16.msra.mxu0 %v1455
      %1465 = vmatmul.bf16.gmra.mxu0 %v1236
      %v1466 = vpop.f32.mrf.mxu0
      %v1467 = vadd.f32 %v872, %v1466
      %v1468 = vpop.f32.mrf.mxu0
      %v1469 = vadd.f32 %v874, %v1468
      %1470 = vmatmul.bf16.gmra.mxu0 %v1239
      %v1471 = vpop.f32.mrf.mxu0
      %v1472 = vadd.f32 %v877, %v1471
      %v1473 = vpop.f32.mrf.mxu0
      %v1474 = vadd.f32 %v879, %v1473
      %1475 = vmatmul.bf16.gmra.mxu0 %v1242
      %v1476 = vpop.f32.mrf.mxu0
      %v1477 = vadd.f32 %v882, %v1476
      %v1478 = vpop.f32.mrf.mxu0
      %v1479 = vadd.f32 %v884, %v1478
      %1480 = vmatmul.bf16.gmra.mxu0 %v1245
      %v1481 = vpop.f32.mrf.mxu0
      %v1482 = vadd.f32 %v887, %v1481
      %v1483 = vpop.f32.mrf.mxu0
      %v1484 = vadd.f32 %v889, %v1483
      %1485 = vmatmul.bf16.gmra.mxu0 %v1248
      %v1486 = vpop.f32.mrf.mxu0
      %v1487 = vadd.f32 %v892, %v1486
      %v1488 = vpop.f32.mrf.mxu0
      %v1489 = vadd.f32 %v894, %v1488
      %1490 = vmatmul.bf16.gmra.mxu0 %v1251
      %v1491 = vpop.f32.mrf.mxu0
      %v1492 = vadd.f32 %v897, %v1491
      %v1493 = vpop.f32.mrf.mxu0
      %v1494 = vadd.f32 %v899, %v1493
      %1495 = vmatmul.bf16.gmra.mxu0 %v1254
      %v1496 = vpop.f32.mrf.mxu0
      %v1497 = vadd.f32 %v902, %v1496
      %v1498 = vpop.f32.mrf.mxu0
      %v1499 = vadd.f32 %v904, %v1498
      %1500 = vmatmul.bf16.gmra.mxu0 %v1257
      %v1501 = vpop.f32.mrf.mxu0
      %v1502 = vadd.f32 %v907, %v1501
      %v1503 = vpop.f32.mrf.mxu0
      %v1504 = vadd.f32 %v909, %v1503
      %1505 = vmatmul.bf16.gmra.mxu0 %v1260
      %v1506 = vpop.f32.mrf.mxu0
      %v1507 = vadd.f32 %v912, %v1506
      %v1508 = vpop.f32.mrf.mxu0
      %v1509 = vadd.f32 %v914, %v1508
      %1510 = vmatmul.bf16.gmra.mxu0 %v1263
      %v1511 = vpop.f32.mrf.mxu0
      %v1512 = vadd.f32 %v917, %v1511
      %v1513 = vpop.f32.mrf.mxu0
      %v1514 = vadd.f32 %v919, %v1513
      %1515 = vmatmul.bf16.gmra.mxu0 %v1266
      %v1516 = vpop.f32.mrf.mxu0
      %v1517 = vadd.f32 %v922, %v1516
      %v1518 = vpop.f32.mrf.mxu0
      %v1519 = vadd.f32 %v924, %v1518
      %1520 = vmatmul.bf16.gmra.mxu0 %v1269
      %v1521 = vpop.f32.mrf.mxu0
      %v1522 = vadd.f32 %v927, %v1521
      %v1523 = vpop.f32.mrf.mxu0
      %v1524 = vadd.f32 %v929, %v1523
      %1525 = vmatmul.bf16.gmra.mxu0 %v1272
      %v1526 = vpop.f32.mrf.mxu0
      %v1527 = vadd.f32 %v932, %v1526
      %v1528 = vpop.f32.mrf.mxu0
      %v1529 = vadd.f32 %v934, %v1528
      %1530 = vmatmul.bf16.gmra.mxu0 %v1275
      %v1531 = vpop.f32.mrf.mxu0
      %v1532 = vadd.f32 %v937, %v1531
      %v1533 = vpop.f32.mrf.mxu0
      %v1534 = vadd.f32 %v939, %v1533
      %1535 = vmatmul.bf16.gmra.mxu0 %v1278
      %v1536 = vpop.f32.mrf.mxu0
      %v1537 = vadd.f32 %v942, %v1536
      %v1538 = vpop.f32.mrf.mxu0
      %v1539 = vadd.f32 %v944, %v1538
      %1540 = vmatmul.bf16.gmra.mxu0 %v1281
      %v1541 = vpop.f32.mrf.mxu0
      %v1542 = vadd.f32 %v947, %v1541
      %v1543 = vpop.f32.mrf.mxu0
      %v1544 = vadd.f32 %v949, %v1543
      %1545 = vmatmul.bf16.gmra.mxu0 %v1284
      %v1546 = vpop.f32.mrf.mxu0
      %v1547 = vadd.f32 %v952, %v1546
      %v1548 = vpop.f32.mrf.mxu0
      %v1549 = vadd.f32 %v954, %v1548
      %1550 = vmatmul.bf16.gmra.mxu0 %v1287
      %v1551 = vpop.f32.mrf.mxu0
      %v1552 = vadd.f32 %v957, %v1551
      %v1553 = vpop.f32.mrf.mxu0
      %v1554 = vadd.f32 %v959, %v1553
      %1555 = vmatmul.bf16.gmra.mxu0 %v1290
      %v1556 = vpop.f32.mrf.mxu0
      %v1557 = vadd.f32 %v962, %v1556
      %v1558 = vpop.f32.mrf.mxu0
      %v1559 = vadd.f32 %v964, %v1558
      %1560 = vmatmul.bf16.gmra.mxu0 %v1293
      %v1561 = vpop.f32.mrf.mxu0
      %v1562 = vadd.f32 %v967, %v1561
      %v1563 = vpop.f32.mrf.mxu0
      %v1564 = vadd.f32 %v969, %v1563
      %1565 = vmatmul.bf16.gmra.mxu0 %v1296
      %v1566 = vpop.f32.mrf.mxu0
      %v1567 = vadd.f32 %v972, %v1566
      %v1568 = vpop.f32.mrf.mxu0
      %v1569 = vadd.f32 %v974, %v1568
      %1570 = vmatmul.bf16.gmra.mxu0 %v1299
      %v1571 = vpop.f32.mrf.mxu0
      %v1572 = vadd.f32 %v977, %v1571
      %v1573 = vpop.f32.mrf.mxu0
      %v1574 = vadd.f32 %v979, %v1573
      %1575 = vmatmul.bf16.gmra.mxu0 %v1302
      %v1576 = vpop.f32.mrf.mxu0
      %v1577 = vadd.f32 %v982, %v1576
      %v1578 = vpop.f32.mrf.mxu0
      %v1579 = vadd.f32 %v984, %v1578
      %1580 = vmatmul.bf16.gmra.mxu0 %v1305
      %v1581 = vpop.f32.mrf.mxu0
      %v1582 = vadd.f32 %v987, %v1581
      %v1583 = vpop.f32.mrf.mxu0
      %v1584 = vadd.f32 %v989, %v1583
      %1585 = vmatmul.bf16.gmra.mxu0 %v1308
      %v1586 = vpop.f32.mrf.mxu0
      %v1587 = vadd.f32 %v992, %v1586
      %v1588 = vpop.f32.mrf.mxu0
      %v1589 = vadd.f32 %v994, %v1588
      %1590 = vmatmul.bf16.gmra.mxu0 %v1311
      %v1591 = vpop.f32.mrf.mxu0
      %v1592 = vadd.f32 %v997, %v1591
      %v1593 = vpop.f32.mrf.mxu0
      %v1594 = vadd.f32 %v999, %v1593
      %1595 = vmatmul.bf16.gmra.mxu0 %v1314
      %v1596 = vpop.f32.mrf.mxu0
      %v1597 = vadd.f32 %v1002, %v1596
      %v1598 = vpop.f32.mrf.mxu0
      %v1599 = vadd.f32 %v1004, %v1598
      %1600 = vmatmul.bf16.gmra.mxu0 %v1317
      %v1601 = vpop.f32.mrf.mxu0
      %v1602 = vadd.f32 %v1007, %v1601
      %v1603 = vpop.f32.mrf.mxu0
      %v1604 = vadd.f32 %v1009, %v1603
      %1605 = vmatmul.bf16.gmra.mxu0 %v1320
      %v1606 = vpop.f32.mrf.mxu0
      %v1607 = vadd.f32 %v1012, %v1606
      %v1608 = vpop.f32.mrf.mxu0
      %v1609 = vadd.f32 %v1014, %v1608
      %1610 = vmatmul.bf16.gmra.mxu0 %v1323
      %v1611 = vpop.f32.mrf.mxu0
      %v1612 = vadd.f32 %v1017, %v1611
      %v1613 = vpop.f32.mrf.mxu0
      %v1614 = vadd.f32 %v1019, %v1613
      %1615 = vmatmul.bf16.gmra.mxu0 %v1326
      %v1616 = vpop.f32.mrf.mxu0
      %v1617 = vadd.f32 %v1022, %v1616
      %v1618 = vpop.f32.mrf.mxu0
      %v1619 = vadd.f32 %v1024, %v1618
      %1620 = vmatmul.bf16.gmra.mxu0 %v1329
      %v1621 = vpop.f32.mrf.mxu0
      %v1622 = vadd.f32 %v1027, %v1621
      %v1623 = vpop.f32.mrf.mxu0
      %v1624 = vadd.f32 %v1029, %v1623
      %1625 = vmatmul.bf16.gmra.mxu0 %v1332
      %v1626 = vpop.f32.mrf.mxu0
      %v1627 = vadd.f32 %v1032, %v1626
      %v1628 = vpop.f32.mrf.mxu0
      %v1629 = vadd.f32 %v1034, %v1628
      %1630 = vmatmul.bf16.gmra.mxu0 %v1335
      %v1631 = vpop.f32.mrf.mxu0
      %v1632 = vadd.f32 %v1037, %v1631
      %v1633 = vpop.f32.mrf.mxu0
      %v1634 = vadd.f32 %v1039, %v1633
      %1635 = vmatmul.bf16.gmra.mxu0 %v1338
      %v1636 = vpop.f32.mrf.mxu0
      %v1637 = vadd.f32 %v1042, %v1636
      %v1638 = vpop.f32.mrf.mxu0
      %v1639 = vadd.f32 %v1044, %v1638
      %1640 = vmatmul.bf16.gmra.mxu0 %v1341
      %v1641 = vpop.f32.mrf.mxu0
      %v1642 = vadd.f32 %v1047, %v1641
      %v1643 = vpop.f32.mrf.mxu0
      %v1644 = vadd.f32 %v1049, %v1643
      %1645 = vmatmul.bf16.gmra.mxu0 %v1344
      %v1646 = vpop.f32.mrf.mxu0
      %v1647 = vadd.f32 %v1052, %v1646
      %v1648 = vpop.f32.mrf.mxu0
      %v1649 = vadd.f32 %v1054, %v1648
      %1650 = vmatmul.bf16.gmra.mxu0 %v1347
      %v1651 = vpop.f32.mrf.mxu0
      %v1652 = vadd.f32 %v1057, %v1651
      %v1653 = vpop.f32.mrf.mxu0
      %v1654 = vadd.f32 %v1059, %v1653
      %1655 = vmatmul.bf16.gmra.mxu0 %v1350
      %v1656 = vpop.f32.mrf.mxu0
      %v1657 = vadd.f32 %v1062, %v1656
      %v1658 = vpop.f32.mrf.mxu0
      %v1659 = vadd.f32 %v1064, %v1658
      %1660 = vmatmul.bf16.gmra.mxu0 %v1353
      %v1661 = vpop.f32.mrf.mxu0
      %v1662 = vadd.f32 %v1067, %v1661
      %v1663 = vpop.f32.mrf.mxu0
      %v1664 = vadd.f32 %v1069, %v1663
      %1665 = vmatmul.bf16.gmra.mxu0 %v1356
      %v1666 = vpop.f32.mrf.mxu0
      %v1667 = vadd.f32 %v1072, %v1666
      %v1668 = vpop.f32.mrf.mxu0
      %v1669 = vadd.f32 %v1074, %v1668
      %1670 = vmatmul.bf16.gmra.mxu0 %v1359
      %v1671 = vpop.f32.mrf.mxu0
      %v1672 = vadd.f32 %v1077, %v1671
      %v1673 = vpop.f32.mrf.mxu0
      %v1674 = vadd.f32 %v1079, %v1673
      %1675 = vmatmul.bf16.gmra.mxu0 %v1362
      %v1676 = vpop.f32.mrf.mxu0
      %v1677 = vadd.f32 %v1082, %v1676
      %v1678 = vpop.f32.mrf.mxu0
      %v1679 = vadd.f32 %v1084, %v1678
      %1680 = vmatmul.bf16.gmra.mxu0 %v1365
      %v1681 = vpop.f32.mrf.mxu0
      %v1682 = vadd.f32 %v1087, %v1681
      %v1683 = vpop.f32.mrf.mxu0
      %v1684 = vadd.f32 %v1089, %v1683
      %1685 = vmatmul.bf16.gmra.mxu0 %v1368
      %v1686 = vpop.f32.mrf.mxu0
      %v1687 = vadd.f32 %v1092, %v1686
      %v1688 = vpop.f32.mrf.mxu0
      %v1689 = vadd.f32 %v1094, %v1688
      %1690 = vmatmul.bf16.gmra.mxu0 %v1371
      %v1691 = vpop.f32.mrf.mxu0
      %v1692 = vadd.f32 %v1097, %v1691
      %v1693 = vpop.f32.mrf.mxu0
      %v1694 = vadd.f32 %v1099, %v1693
      %1695 = vmatmul.bf16.gmra.mxu0 %v1374
      %v1696 = vpop.f32.mrf.mxu0
      %v1697 = vadd.f32 %v1102, %v1696
      %v1698 = vpop.f32.mrf.mxu0
      %v1699 = vadd.f32 %v1104, %v1698
      %1700 = vmatmul.bf16.gmra.mxu0 %v1377
      %v1701 = vpop.f32.mrf.mxu0
      %v1702 = vadd.f32 %v1107, %v1701
      %v1703 = vpop.f32.mrf.mxu0
      %v1704 = vadd.f32 %v1109, %v1703
      %1705 = vmatmul.bf16.gmra.mxu0 %v1380
      %v1706 = vpop.f32.mrf.mxu0
      %v1707 = vadd.f32 %v1112, %v1706
      %v1708 = vpop.f32.mrf.mxu0
      %v1709 = vadd.f32 %v1114, %v1708
      %1710 = vmatmul.bf16.gmra.mxu0 %v1383
      %v1711 = vpop.f32.mrf.mxu0
      %v1712 = vadd.f32 %v1117, %v1711
      %v1713 = vpop.f32.mrf.mxu0
      %v1714 = vadd.f32 %v1119, %v1713
      %1715 = vmatmul.bf16.gmra.mxu0 %v1386
      %v1716 = vpop.f32.mrf.mxu0
      %v1717 = vadd.f32 %v1122, %v1716
      %v1718 = vpop.f32.mrf.mxu0
      %v1719 = vadd.f32 %v1124, %v1718
      %1720 = vmatmul.bf16.gmra.mxu0 %v1389
      %v1721 = vpop.f32.mrf.mxu0
      %v1722 = vadd.f32 %v1127, %v1721
      %v1723 = vpop.f32.mrf.mxu0
      %v1724 = vadd.f32 %v1129, %v1723
      %1725 = vmatmul.bf16.gmra.mxu0 %v1392
      %v1726 = vpop.f32.mrf.mxu0
      %v1727 = vadd.f32 %v1132, %v1726
      %v1728 = vpop.f32.mrf.mxu0
      %v1729 = vadd.f32 %v1134, %v1728
      %1730 = vmatmul.bf16.gmra.mxu0 %v1395
      %v1731 = vpop.f32.mrf.mxu0
      %v1732 = vadd.f32 %v1137, %v1731
      %v1733 = vpop.f32.mrf.mxu0
      %v1734 = vadd.f32 %v1139, %v1733
      %1735 = vmatmul.bf16.gmra.mxu0 %v1398
      %v1736 = vpop.f32.mrf.mxu0
      %v1737 = vadd.f32 %v1142, %v1736
      %v1738 = vpop.f32.mrf.mxu0
      %v1739 = vadd.f32 %v1144, %v1738
      %1740 = vmatmul.bf16.gmra.mxu0 %v1401
      %v1741 = vpop.f32.mrf.mxu0
      %v1742 = vadd.f32 %v1147, %v1741
      %v1743 = vpop.f32.mrf.mxu0
      %v1744 = vadd.f32 %v1149, %v1743
      %1745 = vmatmul.bf16.gmra.mxu0 %v1404
      %v1746 = vpop.f32.mrf.mxu0
      %v1747 = vadd.f32 %v1152, %v1746
      %v1748 = vpop.f32.mrf.mxu0
      %v1749 = vadd.f32 %v1154, %v1748
      %1750 = vmatmul.bf16.gmra.mxu0 %v1407
      %v1751 = vpop.f32.mrf.mxu0
      %v1752 = vadd.f32 %v1157, %v1751
      %v1753 = vpop.f32.mrf.mxu0
      %v1754 = vadd.f32 %v1159, %v1753
      %1755 = vmatmul.bf16.gmra.mxu0 %v1410
      %v1756 = vpop.f32.mrf.mxu0
      %v1757 = vadd.f32 %v1162, %v1756
      %v1758 = vpop.f32.mrf.mxu0
      %v1759 = vadd.f32 %v1164, %v1758
      %1760 = vmatmul.bf16.gmra.mxu0 %v1413
      %v1761 = vpop.f32.mrf.mxu0
      %v1762 = vadd.f32 %v1167, %v1761
      %v1763 = vpop.f32.mrf.mxu0
      %v1764 = vadd.f32 %v1169, %v1763
      %1765 = vmatmul.bf16.gmra.mxu0 %v1416
      %v1766 = vpop.f32.mrf.mxu0
      %v1767 = vadd.f32 %v1172, %v1766
      %v1768 = vpop.f32.mrf.mxu0
      %v1769 = vadd.f32 %v1174, %v1768
      %1770 = vmatmul.bf16.gmra.mxu0 %v1419
      %v1771 = vpop.f32.mrf.mxu0
      %v1772 = vadd.f32 %v1177, %v1771
      %v1773 = vpop.f32.mrf.mxu0
      %v1774 = vadd.f32 %v1179, %v1773
      %1775 = vmatmul.bf16.gmra.mxu0 %v1422
      %v1776 = vpop.f32.mrf.mxu0
      %v1777 = vadd.f32 %v1182, %v1776
      %v1778 = vpop.f32.mrf.mxu0
      %v1779 = vadd.f32 %v1184, %v1778
      %1780 = vmatmul.bf16.gmra.mxu0 %v1425
      %v1781 = vpop.f32.mrf.mxu0
      %v1782 = vadd.f32 %v1187, %v1781
      %v1783 = vpop.f32.mrf.mxu0
      %v1784 = vadd.f32 %v1189, %v1783
      %1785 = vmatmul.bf16.gmra.mxu0 %v1428
      %v1786 = vpop.f32.mrf.mxu0
      %v1787 = vadd.f32 %v1192, %v1786
      %v1788 = vpop.f32.mrf.mxu0
      %v1789 = vadd.f32 %v1194, %v1788
      %1790 = vmatmul.bf16.gmra.mxu0 %v1431
      %v1791 = vpop.f32.mrf.mxu0
      %v1792 = vadd.f32 %v1197, %v1791
      %v1793 = vpop.f32.mrf.mxu0
      %v1794 = vadd.f32 %v1199, %v1793
      %1795 = vmatmul.bf16.gmra.mxu0 %v1434
      %v1796 = vpop.f32.mrf.mxu0
      %v1797 = vadd.f32 %v1202, %v1796
      %v1798 = vpop.f32.mrf.mxu0
      %v1799 = vadd.f32 %v1204, %v1798
      %1800 = vmatmul.bf16.gmra.mxu0 %v1437
      %v1801 = vpop.f32.mrf.mxu0
      %v1802 = vadd.f32 %v1207, %v1801
      %v1803 = vpop.f32.mrf.mxu0
      %v1804 = vadd.f32 %v1209, %v1803
      %1805 = vmatmul.bf16.gmra.mxu0 %v1440
      %v1806 = vpop.f32.mrf.mxu0
      %v1807 = vadd.f32 %v1212, %v1806
      %v1808 = vpop.f32.mrf.mxu0
      %v1809 = vadd.f32 %v1214, %v1808
      %1810 = vmatmul.bf16.gmra.mxu0 %v1443
      %v1811 = vpop.f32.mrf.mxu0
      %v1812 = vadd.f32 %v1217, %v1811
      %v1813 = vpop.f32.mrf.mxu0
      %v1814 = vadd.f32 %v1219, %v1813
      %1815 = vmatmul.bf16.gmra.mxu0 %v1446
      %v1816 = vpop.f32.mrf.mxu0
      %v1817 = vadd.f32 %v1222, %v1816
      %v1818 = vpop.f32.mrf.mxu0
      %v1819 = vadd.f32 %v1224, %v1818
      %1820 = vmatmul.bf16.gmra.mxu0 %v1449
      %v1821 = vpop.f32.mrf.mxu0
      %v1822 = vadd.f32 %v1227, %v1821
      %v1823 = vpop.f32.mrf.mxu0
      %v1824 = vadd.f32 %v1229, %v1823
      %1825 = vmatmul.bf16.gmra.mxu0 %v1452
      %v1826 = vpop.f32.mrf.mxu0
      %v1827 = vadd.f32 %v1232, %v1826
      %v1828 = vpop.f32.mrf.mxu0
      %1829 = vdwg.mxu0
      %v1830 = vld [vmem:[%s192 + $0x2] sm:$0xff]
      %v1831 = vld [vmem:[%s192 + $0xa] sm:$0xff]
      %v1832 = vld [vmem:[%s192 + $0x12] sm:$0xff]
      %v1833 = vld [vmem:[%s192 + $0x1a] sm:$0xff]
      %v1834 = vld [vmem:[%s192 + $0x22] sm:$0xff]
      %v1835 = vld [vmem:[%s192 + $0x2a] sm:$0xff]
      %v1836 = vld [vmem:[%s192 + $0x32] sm:$0xff]
      %v1837 = vld [vmem:[%s192 + $0x3a] sm:$0xff]
      %v1838 = vld [vmem:[%s192 + $0x42] sm:$0xff]
      %v1839 = vld [vmem:[%s192 + $0x4a] sm:$0xff]
      %v1840 = vld [vmem:[%s192 + $0x52] sm:$0xff]
      %v1841 = vld [vmem:[%s192 + $0x5a] sm:$0xff]
      %v1842 = vld [vmem:[%s192 + $0x62] sm:$0xff]
      %v1843 = vld [vmem:[%s192 + $0x6a] sm:$0xff]
      %v1844 = vld [vmem:[%s192 + $0x72] sm:$0xff]
      %v1845 = vld [vmem:[%s192 + $0x7a] sm:$0xff]
      %v1846 = vld [vmem:[%s192 + $0x82] sm:$0xff]
      %v1847 = vld [vmem:[%s192 + $0x8a] sm:$0xff]
      %v1848 = vld [vmem:[%s192 + $0x92] sm:$0xff]
      %v1849 = vld [vmem:[%s192 + $0x9a] sm:$0xff]
      %v1850 = vld [vmem:[%s192 + $0xa2] sm:$0xff]
      %v1851 = vld [vmem:[%s192 + $0xaa] sm:$0xff]
      %v1852 = vld [vmem:[%s192 + $0xb2] sm:$0xff]
      %v1853 = vld [vmem:[%s192 + $0xba] sm:$0xff]
      %v1854 = vld [vmem:[%s192 + $0xc2] sm:$0xff]
      %v1855 = vld [vmem:[%s192 + $0xca] sm:$0xff]
      %v1856 = vld [vmem:[%s192 + $0xd2] sm:$0xff]
      %v1857 = vld [vmem:[%s192 + $0xda] sm:$0xff]
      %v1858 = vld [vmem:[%s192 + $0xe2] sm:$0xff]
      %v1859 = vld [vmem:[%s192 + $0xea] sm:$0xff]
      %v1860 = vld [vmem:[%s192 + $0xf2] sm:$0xff]
      %v1861 = vld [vmem:[%s192 + $0xfa] sm:$0xff]
      %v1862 = vld [vmem:[%s192 + $0x102] sm:$0xff]
      %v1863 = vld [vmem:[%s192 + $0x10a] sm:$0xff]
      %v1864 = vld [vmem:[%s192 + $0x112] sm:$0xff]
      %v1865 = vld [vmem:[%s192 + $0x11a] sm:$0xff]
      %v1866 = vld [vmem:[%s192 + $0x122] sm:$0xff]
      %v1867 = vld [vmem:[%s192 + $0x12a] sm:$0xff]
      %v1868 = vld [vmem:[%s192 + $0x132] sm:$0xff]
      %v1869 = vld [vmem:[%s192 + $0x13a] sm:$0xff]
      %v1870 = vld [vmem:[%s192 + $0x142] sm:$0xff]
      %v1871 = vld [vmem:[%s192 + $0x14a] sm:$0xff]
      %v1872 = vld [vmem:[%s192 + $0x152] sm:$0xff]
      %v1873 = vld [vmem:[%s192 + $0x15a] sm:$0xff]
      %v1874 = vld [vmem:[%s192 + $0x162] sm:$0xff]
      %v1875 = vld [vmem:[%s192 + $0x16a] sm:$0xff]
      %v1876 = vld [vmem:[%s192 + $0x172] sm:$0xff]
      %v1877 = vld [vmem:[%s192 + $0x17a] sm:$0xff]
      %v1878 = vld [vmem:[%s192 + $0x182] sm:$0xff]
      %v1879 = vld [vmem:[%s192 + $0x18a] sm:$0xff]
      %v1880 = vld [vmem:[%s192 + $0x192] sm:$0xff]
      %v1881 = vld [vmem:[%s192 + $0x19a] sm:$0xff]
      %v1882 = vld [vmem:[%s192 + $0x1a2] sm:$0xff]
      %v1883 = vld [vmem:[%s192 + $0x1aa] sm:$0xff]
      %v1884 = vld [vmem:[%s192 + $0x1b2] sm:$0xff]
      %v1885 = vld [vmem:[%s192 + $0x1ba] sm:$0xff]
      %v1886 = vld [vmem:[%s192 + $0x1c2] sm:$0xff]
      %v1887 = vld [vmem:[%s192 + $0x1ca] sm:$0xff]
      %v1888 = vld [vmem:[%s192 + $0x1d2] sm:$0xff]
      %v1889 = vld [vmem:[%s192 + $0x1da] sm:$0xff]
      %v1890 = vld [vmem:[%s192 + $0x1e2] sm:$0xff]
      %v1891 = vld [vmem:[%s192 + $0x1ea] sm:$0xff]
      %v1892 = vld [vmem:[%s192 + $0x1f2] sm:$0xff]
      %v1893 = vld [vmem:[%s192 + $0x1fa] sm:$0xff]
      %v1894 = vld [vmem:[%s192 + $0x202] sm:$0xff]
      %v1895 = vld [vmem:[%s192 + $0x20a] sm:$0xff]
      %v1896 = vld [vmem:[%s192 + $0x212] sm:$0xff]
      %v1897 = vld [vmem:[%s192 + $0x21a] sm:$0xff]
      %v1898 = vld [vmem:[%s192 + $0x222] sm:$0xff]
      %v1899 = vld [vmem:[%s192 + $0x22a] sm:$0xff]
      %v1900 = vld [vmem:[%s192 + $0x232] sm:$0xff]
      %v1901 = vld [vmem:[%s192 + $0x23a] sm:$0xff]
      %v1902 = vld [vmem:[%s192 + $0x242] sm:$0xff]
      %v1903 = vld [vmem:[%s192 + $0x24a] sm:$0xff]
      %v1904 = vld [vmem:[%s192 + $0x252] sm:$0xff]
      %v1905 = vld [vmem:[%s192 + $0x25a] sm:$0xff]
      %v1906 = vld [vmem:[%s192 + $0x262] sm:$0xff]
      %v1907 = vld [vmem:[%s192 + $0x26a] sm:$0xff]
      %v1908 = vld [vmem:[%s192 + $0x272] sm:$0xff]
      %v1909 = vld [vmem:[%s192 + $0x27a] sm:$0xff]
      %v1910 = vld [vmem:[%s192 + $0x282] sm:$0xff]
      %v1911 = vld [vmem:[%s192 + $0x28a] sm:$0xff]
      %v1912 = vld [vmem:[%s192 + $0x292] sm:$0xff]
      %v1913 = vld [vmem:[%s192 + $0x29a] sm:$0xff]
      %v1914 = vld [vmem:[%s192 + $0x2a2] sm:$0xff]
      %v1915 = vld [vmem:[%s192 + $0x2aa] sm:$0xff]
      %v1916 = vld [vmem:[%s192 + $0x2b2] sm:$0xff]
      %v1917 = vld [vmem:[%s192 + $0x2ba] sm:$0xff]
      %v1918 = vld [vmem:[%s192 + $0x2c2] sm:$0xff]
      %v1919 = vld [vmem:[%s192 + $0x2ca] sm:$0xff]
      %v1920 = vld [vmem:[%s192 + $0x2d2] sm:$0xff]
      %v1921 = vld [vmem:[%s192 + $0x2da] sm:$0xff]
      %v1922 = vld [vmem:[%s192 + $0x2e2] sm:$0xff]
      %v1923 = vld [vmem:[%s192 + $0x2ea] sm:$0xff]
      %v1924 = vld [vmem:[%s192 + $0x2f2] sm:$0xff]
      %v1925 = vld [vmem:[%s192 + $0x2fa] sm:$0xff]
      %v1926 = vld [vmem:[%s192 + $0x302] sm:$0xff]
      %v1927 = vld [vmem:[%s192 + $0x30a] sm:$0xff]
      %v1928 = vld [vmem:[%s192 + $0x312] sm:$0xff]
      %v1929 = vld [vmem:[%s192 + $0x31a] sm:$0xff]
      %v1930 = vld [vmem:[%s192 + $0x322] sm:$0xff]
      %v1931 = vld [vmem:[%s192 + $0x32a] sm:$0xff]
      %v1932 = vld [vmem:[%s192 + $0x332] sm:$0xff]
      %v1933 = vld [vmem:[%s192 + $0x33a] sm:$0xff]
      %v1934 = vld [vmem:[%s192 + $0x342] sm:$0xff]
      %v1935 = vld [vmem:[%s192 + $0x34a] sm:$0xff]
      %v1936 = vld [vmem:[%s192 + $0x352] sm:$0xff]
      %v1937 = vld [vmem:[%s192 + $0x35a] sm:$0xff]
      %v1938 = vld [vmem:[%s192 + $0x362] sm:$0xff]
      %v1939 = vld [vmem:[%s192 + $0x36a] sm:$0xff]
      %v1940 = vld [vmem:[%s192 + $0x372] sm:$0xff]
      %v1941 = vld [vmem:[%s192 + $0x37a] sm:$0xff]
      %v1942 = vld [vmem:[%s192 + $0x382] sm:$0xff]
      %v1943 = vld [vmem:[%s192 + $0x38a] sm:$0xff]
      %v1944 = vld [vmem:[%s192 + $0x392] sm:$0xff]
      %v1945 = vld [vmem:[%s192 + $0x39a] sm:$0xff]
      %v1946 = vld [vmem:[%s192 + $0x3a2] sm:$0xff]
      %v1947 = vld [vmem:[%s192 + $0x3aa] sm:$0xff]
      %v1948 = vld [vmem:[%s192 + $0x3b2] sm:$0xff]
      %v1949 = vld [vmem:[%s192 + $0x3ba] sm:$0xff]
      %v1950 = vld [vmem:[%s192 + $0x3c2] sm:$0xff]
      %v1951 = vld [vmem:[%s192 + $0x3ca] sm:$0xff]
      %v1952 = vld [vmem:[%s192 + $0x3d2] sm:$0xff]
      %v1953 = vld [vmem:[%s192 + $0x3da] sm:$0xff]
      %v1954 = vld [vmem:[%s192 + $0x3e2] sm:$0xff]
      %v1955 = vld [vmem:[%s192 + $0x3ea] sm:$0xff]
      %v1956 = vld [vmem:[%s192 + $0x3f2] sm:$0xff]
      %v1957 = vld [vmem:[%s192 + $0x3fa] sm:$0xff]
      %v1958 = vld [vmem:[%s192 + $0x402] sm:$0xff]
      %v1959 = vld [vmem:[%s192 + $0x40a] sm:$0xff]
      %v1960 = vld [vmem:[%s192 + $0x412] sm:$0xff]
      %v1961 = vld [vmem:[%s192 + $0x41a] sm:$0xff]
      %v1962 = vld [vmem:[%s192 + $0x422] sm:$0xff]
      %v1963 = vld [vmem:[%s192 + $0x42a] sm:$0xff]
      %v1964 = vld [vmem:[%s192 + $0x432] sm:$0xff]
      %v1965 = vld [vmem:[%s192 + $0x43a] sm:$0xff]
      %v1966 = vld [vmem:[%s192 + $0x442] sm:$0xff]
      %v1967 = vld [vmem:[%s192 + $0x44a] sm:$0xff]
      %v1968 = vld [vmem:[%s192 + $0x452] sm:$0xff]
      %v1969 = vld [vmem:[%s192 + $0x45a] sm:$0xff]
      %v1970 = vld [vmem:[%s192 + $0x462] sm:$0xff]
      %v1971 = vld [vmem:[%s192 + $0x46a] sm:$0xff]
      %v1972 = vld [vmem:[%s192 + $0x472] sm:$0xff]
      %v1973 = vld [vmem:[%s192 + $0x47a] sm:$0xff]
      %v1974 = vld [vmem:[%s192 + $0x482] sm:$0xf]
      %v1975 = vpack.c.bf16 %v1831, %v1830
      %v1976 = vpack.c.bf16 %v1833, %v1832
      %v1977 = vpack.c.bf16 %v1835, %v1834
      %v1978 = vpack.c.bf16 %v1837, %v1836
      %v1979 = vpack.c.bf16 %v1839, %v1838
      %v1980 = vpack.c.bf16 %v1841, %v1840
      %v1981 = vpack.c.bf16 %v1843, %v1842
      %v1982 = vpack.c.bf16 %v1845, %v1844
      %v1983 = vpack.c.bf16 %v1847, %v1846
      %v1984 = vpack.c.bf16 %v1849, %v1848
      %v1985 = vpack.c.bf16 %v1851, %v1850
      %v1986 = vpack.c.bf16 %v1853, %v1852
      %v1987 = vpack.c.bf16 %v1855, %v1854
      %v1988 = vpack.c.bf16 %v1857, %v1856
      %v1989 = vpack.c.bf16 %v1859, %v1858
      %v1990 = vpack.c.bf16 %v1861, %v1860
      %v1991 = vpack.c.bf16 %v1863, %v1862
      %v1992 = vpack.c.bf16 %v1865, %v1864
      %v1993 = vpack.c.bf16 %v1867, %v1866
      %v1994 = vpack.c.bf16 %v1869, %v1868
      %v1995 = vpack.c.bf16 %v1871, %v1870
      %v1996 = vpack.c.bf16 %v1873, %v1872
      %v1997 = vpack.c.bf16 %v1875, %v1874
      %v1998 = vpack.c.bf16 %v1877, %v1876
      %v1999 = vpack.c.bf16 %v1879, %v1878
      %v2000 = vpack.c.bf16 %v1881, %v1880
      %v2001 = vpack.c.bf16 %v1883, %v1882
      %v2002 = vpack.c.bf16 %v1885, %v1884
      %v2003 = vpack.c.bf16 %v1887, %v1886
      %v2004 = vpack.c.bf16 %v1889, %v1888
      %v2005 = vpack.c.bf16 %v1891, %v1890
      %v2006 = vpack.c.bf16 %v1893, %v1892
      %v2007 = vpack.c.bf16 %v1895, %v1894
      %v2008 = vpack.c.bf16 %v1897, %v1896
      %v2009 = vpack.c.bf16 %v1899, %v1898
      %v2010 = vpack.c.bf16 %v1901, %v1900
      %v2011 = vpack.c.bf16 %v1903, %v1902
      %v2012 = vpack.c.bf16 %v1905, %v1904
      %v2013 = vpack.c.bf16 %v1907, %v1906
      %v2014 = vpack.c.bf16 %v1909, %v1908
      %v2015 = vpack.c.bf16 %v1911, %v1910
      %v2016 = vpack.c.bf16 %v1913, %v1912
      %v2017 = vpack.c.bf16 %v1915, %v1914
      %v2018 = vpack.c.bf16 %v1917, %v1916
      %v2019 = vpack.c.bf16 %v1919, %v1918
      %v2020 = vpack.c.bf16 %v1921, %v1920
      %v2021 = vpack.c.bf16 %v1923, %v1922
      %v2022 = vpack.c.bf16 %v1925, %v1924
      %v2023 = vpack.c.bf16 %v1927, %v1926
      %v2024 = vpack.c.bf16 %v1929, %v1928
      %v2025 = vpack.c.bf16 %v1931, %v1930
      %v2026 = vpack.c.bf16 %v1933, %v1932
      %v2027 = vpack.c.bf16 %v1935, %v1934
      %v2028 = vpack.c.bf16 %v1937, %v1936
      %v2029 = vpack.c.bf16 %v1939, %v1938
      %v2030 = vpack.c.bf16 %v1941, %v1940
      %v2031 = vpack.c.bf16 %v1943, %v1942
      %v2032 = vpack.c.bf16 %v1945, %v1944
      %v2033 = vpack.c.bf16 %v1947, %v1946
      %v2034 = vpack.c.bf16 %v1949, %v1948
      %v2035 = vpack.c.bf16 %v1951, %v1950
      %v2036 = vpack.c.bf16 %v1953, %v1952
      %v2037 = vpack.c.bf16 %v1955, %v1954
      %v2038 = vpack.c.bf16 %v1957, %v1956
      %v2039 = vpack.c.bf16 %v1959, %v1958
      %v2040 = vpack.c.bf16 %v1961, %v1960
      %v2041 = vpack.c.bf16 %v1963, %v1962
      %v2042 = vpack.c.bf16 %v1965, %v1964
      %v2043 = vpack.c.bf16 %v1967, %v1966
      %v2044 = vpack.c.bf16 %v1969, %v1968
      %v2045 = vpack.c.bf16 %v1971, %v1970
      %v2046 = vpack.c.bf16 %v1973, %v1972
      %v2047 = vpack.c.bf16 %v1974, %v1974
      %s2048 = scalar_lea.vmem %s1, 8
      %v2049 = vld [vmem:[%s2048] sm:$0xf]
      %v2051 = vsel %vm638, %v1975, 0
      %v2054 = vsel %vm638, %v1976, 0
      %v2057 = vsel %vm638, %v1977, 0
      %v2060 = vsel %vm638, %v1978, 0
      %v2063 = vsel %vm638, %v1979, 0
      %v2066 = vsel %vm638, %v1980, 0
      %v2069 = vsel %vm638, %v1981, 0
      %v2072 = vsel %vm638, %v1982, 0
      %v2075 = vsel %vm638, %v1983, 0
      %v2078 = vsel %vm638, %v1984, 0
      %v2081 = vsel %vm638, %v1985, 0
      %v2084 = vsel %vm638, %v1986, 0
      %v2087 = vsel %vm638, %v1987, 0
      %v2090 = vsel %vm638, %v1988, 0
      %v2093 = vsel %vm638, %v1989, 0
      %v2096 = vsel %vm638, %v1990, 0
      %v2099 = vsel %vm638, %v1991, 0
      %v2102 = vsel %vm638, %v1992, 0
      %v2105 = vsel %vm638, %v1993, 0
      %v2108 = vsel %vm638, %v1994, 0
      %v2111 = vsel %vm638, %v1995, 0
      %v2114 = vsel %vm638, %v1996, 0
      %v2117 = vsel %vm638, %v1997, 0
      %v2120 = vsel %vm638, %v1998, 0
      %v2123 = vsel %vm638, %v1999, 0
      %v2126 = vsel %vm638, %v2000, 0
      %v2129 = vsel %vm638, %v2001, 0
      %v2132 = vsel %vm638, %v2002, 0
      %v2135 = vsel %vm638, %v2003, 0
      %v2138 = vsel %vm638, %v2004, 0
      %v2141 = vsel %vm638, %v2005, 0
      %v2144 = vsel %vm638, %v2006, 0
      %v2147 = vsel %vm638, %v2007, 0
      %v2150 = vsel %vm638, %v2008, 0
      %v2153 = vsel %vm638, %v2009, 0
      %v2156 = vsel %vm638, %v2010, 0
      %v2159 = vsel %vm638, %v2011, 0
      %v2162 = vsel %vm638, %v2012, 0
      %v2165 = vsel %vm638, %v2013, 0
      %v2168 = vsel %vm638, %v2014, 0
      %v2171 = vsel %vm638, %v2015, 0
      %v2174 = vsel %vm638, %v2016, 0
      %v2177 = vsel %vm638, %v2017, 0
      %v2180 = vsel %vm638, %v2018, 0
      %v2183 = vsel %vm638, %v2019, 0
      %v2186 = vsel %vm638, %v2020, 0
      %v2189 = vsel %vm638, %v2021, 0
      %v2192 = vsel %vm638, %v2022, 0
      %v2195 = vsel %vm638, %v2023, 0
      %v2198 = vsel %vm638, %v2024, 0
      %v2201 = vsel %vm638, %v2025, 0
      %v2204 = vsel %vm638, %v2026, 0
      %v2207 = vsel %vm638, %v2027, 0
      %v2210 = vsel %vm638, %v2028, 0
      %v2213 = vsel %vm638, %v2029, 0
      %v2216 = vsel %vm638, %v2030, 0
      %v2219 = vsel %vm638, %v2031, 0
      %v2222 = vsel %vm638, %v2032, 0
      %v2225 = vsel %vm638, %v2033, 0
      %v2228 = vsel %vm638, %v2034, 0
      %v2231 = vsel %vm638, %v2035, 0
      %v2234 = vsel %vm638, %v2036, 0
      %v2237 = vsel %vm638, %v2037, 0
      %v2240 = vsel %vm638, %v2038, 0
      %v2243 = vsel %vm638, %v2039, 0
      %v2246 = vsel %vm638, %v2040, 0
      %v2249 = vsel %vm638, %v2041, 0
      %v2252 = vsel %vm638, %v2042, 0
      %v2255 = vsel %vm638, %v2043, 0
      %v2258 = vsel %vm638, %v2044, 0
      %v2261 = vsel %vm638, %v2045, 0
      %v2264 = vsel %vm638, %v2046, 0
      %v2267 = vsel %vm638, %v2047, 0
      %v2270 = vsel %vm858, %v2049, 0
      %2272 = vmatpush.bf16.msra.mxu0 0
      %2273 = vmatpush.bf16.msra.mxu0 0
      %2274 = vmatpush.bf16.msra.mxu0 0
      %2275 = vmatpush.bf16.msra.mxu0 0
      %2276 = vmatpush.bf16.msra.mxu0 0
      %2277 = vmatpush.bf16.msra.mxu0 0
      %2278 = vmatpush.bf16.msra.mxu0 0
      %2279 = vmatpush.bf16.msra.mxu0 %v2270
      %2280 = vmatmul.bf16.gmra.mxu0 %v2051
      %v2281 = vpop.f32.mrf.mxu0
      %v2282 = vadd.f32 0.0, %v2281
      %v2283 = vpop.f32.mrf.mxu0
      %v2284 = vadd.f32 0.0, %v2283
      %2285 = vmatmul.bf16.gmra.mxu0 %v2054
      %v2286 = vpop.f32.mrf.mxu0
      %v2287 = vadd.f32 0.0, %v2286
      %v2288 = vpop.f32.mrf.mxu0
      %v2289 = vadd.f32 0.0, %v2288
      %2290 = vmatmul.bf16.gmra.mxu0 %v2057
      %v2291 = vpop.f32.mrf.mxu0
      %v2292 = vadd.f32 0.0, %v2291
      %v2293 = vpop.f32.mrf.mxu0
      %v2294 = vadd.f32 0.0, %v2293
      %2295 = vmatmul.bf16.gmra.mxu0 %v2060
      %v2296 = vpop.f32.mrf.mxu0
      %v2297 = vadd.f32 0.0, %v2296
      %v2298 = vpop.f32.mrf.mxu0
      %v2299 = vadd.f32 0.0, %v2298
      %2300 = vmatmul.bf16.gmra.mxu0 %v2063
      %v2301 = vpop.f32.mrf.mxu0
      %v2302 = vadd.f32 0.0, %v2301
      %v2303 = vpop.f32.mrf.mxu0
      %v2304 = vadd.f32 0.0, %v2303
      %2305 = vmatmul.bf16.gmra.mxu0 %v2066
      %v2306 = vpop.f32.mrf.mxu0
      %v2307 = vadd.f32 0.0, %v2306
      %v2308 = vpop.f32.mrf.mxu0
      %v2309 = vadd.f32 0.0, %v2308
      %2310 = vmatmul.bf16.gmra.mxu0 %v2069
      %v2311 = vpop.f32.mrf.mxu0
      %v2312 = vadd.f32 0.0, %v2311
      %v2313 = vpop.f32.mrf.mxu0
      %v2314 = vadd.f32 0.0, %v2313
      %2315 = vmatmul.bf16.gmra.mxu0 %v2072
      %v2316 = vpop.f32.mrf.mxu0
      %v2317 = vadd.f32 0.0, %v2316
      %v2318 = vpop.f32.mrf.mxu0
      %v2319 = vadd.f32 0.0, %v2318
      %2320 = vmatmul.bf16.gmra.mxu0 %v2075
      %v2321 = vpop.f32.mrf.mxu0
      %v2322 = vadd.f32 0.0, %v2321
      %v2323 = vpop.f32.mrf.mxu0
      %v2324 = vadd.f32 0.0, %v2323
      %2325 = vmatmul.bf16.gmra.mxu0 %v2078
      %v2326 = vpop.f32.mrf.mxu0
      %v2327 = vadd.f32 0.0, %v2326
      %v2328 = vpop.f32.mrf.mxu0
      %v2329 = vadd.f32 0.0, %v2328
      %2330 = vmatmul.bf16.gmra.mxu0 %v2081
      %v2331 = vpop.f32.mrf.mxu0
      %v2332 = vadd.f32 0.0, %v2331
      %v2333 = vpop.f32.mrf.mxu0
      %v2334 = vadd.f32 0.0, %v2333
      %2335 = vmatmul.bf16.gmra.mxu0 %v2084
      %v2336 = vpop.f32.mrf.mxu0
      %v2337 = vadd.f32 0.0, %v2336
      %v2338 = vpop.f32.mrf.mxu0
      %v2339 = vadd.f32 0.0, %v2338
      %2340 = vmatmul.bf16.gmra.mxu0 %v2087
      %v2341 = vpop.f32.mrf.mxu0
      %v2342 = vadd.f32 0.0, %v2341
      %v2343 = vpop.f32.mrf.mxu0
      %v2344 = vadd.f32 0.0, %v2343
      %2345 = vmatmul.bf16.gmra.mxu0 %v2090
      %v2346 = vpop.f32.mrf.mxu0
      %v2347 = vadd.f32 0.0, %v2346
      %v2348 = vpop.f32.mrf.mxu0
      %v2349 = vadd.f32 0.0, %v2348
      %2350 = vmatmul.bf16.gmra.mxu0 %v2093
      %v2351 = vpop.f32.mrf.mxu0
      %v2352 = vadd.f32 0.0, %v2351
      %v2353 = vpop.f32.mrf.mxu0
      %v2354 = vadd.f32 0.0, %v2353
      %2355 = vmatmul.bf16.gmra.mxu0 %v2096
      %v2356 = vpop.f32.mrf.mxu0
      %v2357 = vadd.f32 0.0, %v2356
      %v2358 = vpop.f32.mrf.mxu0
      %v2359 = vadd.f32 0.0, %v2358
      %2360 = vmatmul.bf16.gmra.mxu0 %v2099
      %v2361 = vpop.f32.mrf.mxu0
      %v2362 = vadd.f32 0.0, %v2361
      %v2363 = vpop.f32.mrf.mxu0
      %v2364 = vadd.f32 0.0, %v2363
      %2365 = vmatmul.bf16.gmra.mxu0 %v2102
      %v2366 = vpop.f32.mrf.mxu0
      %v2367 = vadd.f32 0.0, %v2366
      %v2368 = vpop.f32.mrf.mxu0
      %v2369 = vadd.f32 0.0, %v2368
      %2370 = vmatmul.bf16.gmra.mxu0 %v2105
      %v2371 = vpop.f32.mrf.mxu0
      %v2372 = vadd.f32 0.0, %v2371
      %v2373 = vpop.f32.mrf.mxu0
      %v2374 = vadd.f32 0.0, %v2373
      %2375 = vmatmul.bf16.gmra.mxu0 %v2108
      %v2376 = vpop.f32.mrf.mxu0
      %v2377 = vadd.f32 0.0, %v2376
      %v2378 = vpop.f32.mrf.mxu0
      %v2379 = vadd.f32 0.0, %v2378
      %2380 = vmatmul.bf16.gmra.mxu0 %v2111
      %v2381 = vpop.f32.mrf.mxu0
      %v2382 = vadd.f32 0.0, %v2381
      %v2383 = vpop.f32.mrf.mxu0
      %v2384 = vadd.f32 0.0, %v2383
      %2385 = vmatmul.bf16.gmra.mxu0 %v2114
      %v2386 = vpop.f32.mrf.mxu0
      %v2387 = vadd.f32 0.0, %v2386
      %v2388 = vpop.f32.mrf.mxu0
      %v2389 = vadd.f32 0.0, %v2388
      %2390 = vmatmul.bf16.gmra.mxu0 %v2117
      %v2391 = vpop.f32.mrf.mxu0
      %v2392 = vadd.f32 0.0, %v2391
      %v2393 = vpop.f32.mrf.mxu0
      %v2394 = vadd.f32 0.0, %v2393
      %2395 = vmatmul.bf16.gmra.mxu0 %v2120
      %v2396 = vpop.f32.mrf.mxu0
      %v2397 = vadd.f32 0.0, %v2396
      %v2398 = vpop.f32.mrf.mxu0
      %v2399 = vadd.f32 0.0, %v2398
      %2400 = vmatmul.bf16.gmra.mxu0 %v2123
      %v2401 = vpop.f32.mrf.mxu0
      %v2402 = vadd.f32 0.0, %v2401
      %v2403 = vpop.f32.mrf.mxu0
      %v2404 = vadd.f32 0.0, %v2403
      %2405 = vmatmul.bf16.gmra.mxu0 %v2126
      %v2406 = vpop.f32.mrf.mxu0
      %v2407 = vadd.f32 0.0, %v2406
      %v2408 = vpop.f32.mrf.mxu0
      %v2409 = vadd.f32 0.0, %v2408
      %2410 = vmatmul.bf16.gmra.mxu0 %v2129
      %v2411 = vpop.f32.mrf.mxu0
      %v2412 = vadd.f32 0.0, %v2411
      %v2413 = vpop.f32.mrf.mxu0
      %v2414 = vadd.f32 0.0, %v2413
      %2415 = vmatmul.bf16.gmra.mxu0 %v2132
      %v2416 = vpop.f32.mrf.mxu0
      %v2417 = vadd.f32 0.0, %v2416
      %v2418 = vpop.f32.mrf.mxu0
      %v2419 = vadd.f32 0.0, %v2418
      %2420 = vmatmul.bf16.gmra.mxu0 %v2135
      %v2421 = vpop.f32.mrf.mxu0
      %v2422 = vadd.f32 0.0, %v2421
      %v2423 = vpop.f32.mrf.mxu0
      %v2424 = vadd.f32 0.0, %v2423
      %2425 = vmatmul.bf16.gmra.mxu0 %v2138
      %v2426 = vpop.f32.mrf.mxu0
      %v2427 = vadd.f32 0.0, %v2426
      %v2428 = vpop.f32.mrf.mxu0
      %v2429 = vadd.f32 0.0, %v2428
      %2430 = vmatmul.bf16.gmra.mxu0 %v2141
      %v2431 = vpop.f32.mrf.mxu0
      %v2432 = vadd.f32 0.0, %v2431
      %v2433 = vpop.f32.mrf.mxu0
      %v2434 = vadd.f32 0.0, %v2433
      %2435 = vmatmul.bf16.gmra.mxu0 %v2144
      %v2436 = vpop.f32.mrf.mxu0
      %v2437 = vadd.f32 0.0, %v2436
      %v2438 = vpop.f32.mrf.mxu0
      %v2439 = vadd.f32 0.0, %v2438
      %2440 = vmatmul.bf16.gmra.mxu0 %v2147
      %v2441 = vpop.f32.mrf.mxu0
      %v2442 = vadd.f32 0.0, %v2441
      %v2443 = vpop.f32.mrf.mxu0
      %v2444 = vadd.f32 0.0, %v2443
      %2445 = vmatmul.bf16.gmra.mxu0 %v2150
      %v2446 = vpop.f32.mrf.mxu0
      %v2447 = vadd.f32 0.0, %v2446
      %v2448 = vpop.f32.mrf.mxu0
      %v2449 = vadd.f32 0.0, %v2448
      %2450 = vmatmul.bf16.gmra.mxu0 %v2153
      %v2451 = vpop.f32.mrf.mxu0
      %v2452 = vadd.f32 0.0, %v2451
      %v2453 = vpop.f32.mrf.mxu0
      %v2454 = vadd.f32 0.0, %v2453
      %2455 = vmatmul.bf16.gmra.mxu0 %v2156
      %v2456 = vpop.f32.mrf.mxu0
      %v2457 = vadd.f32 0.0, %v2456
      %v2458 = vpop.f32.mrf.mxu0
      %v2459 = vadd.f32 0.0, %v2458
      %2460 = vmatmul.bf16.gmra.mxu0 %v2159
      %v2461 = vpop.f32.mrf.mxu0
      %v2462 = vadd.f32 0.0, %v2461
      %v2463 = vpop.f32.mrf.mxu0
      %v2464 = vadd.f32 0.0, %v2463
      %2465 = vmatmul.bf16.gmra.mxu0 %v2162
      %v2466 = vpop.f32.mrf.mxu0
      %v2467 = vadd.f32 0.0, %v2466
      %v2468 = vpop.f32.mrf.mxu0
      %v2469 = vadd.f32 0.0, %v2468
      %2470 = vmatmul.bf16.gmra.mxu0 %v2165
      %v2471 = vpop.f32.mrf.mxu0
      %v2472 = vadd.f32 0.0, %v2471
      %v2473 = vpop.f32.mrf.mxu0
      %v2474 = vadd.f32 0.0, %v2473
      %2475 = vmatmul.bf16.gmra.mxu0 %v2168
      %v2476 = vpop.f32.mrf.mxu0
      %v2477 = vadd.f32 0.0, %v2476
      %v2478 = vpop.f32.mrf.mxu0
      %v2479 = vadd.f32 0.0, %v2478
      %2480 = vmatmul.bf16.gmra.mxu0 %v2171
      %v2481 = vpop.f32.mrf.mxu0
      %v2482 = vadd.f32 0.0, %v2481
      %v2483 = vpop.f32.mrf.mxu0
      %v2484 = vadd.f32 0.0, %v2483
      %2485 = vmatmul.bf16.gmra.mxu0 %v2174
      %v2486 = vpop.f32.mrf.mxu0
      %v2487 = vadd.f32 0.0, %v2486
      %v2488 = vpop.f32.mrf.mxu0
      %v2489 = vadd.f32 0.0, %v2488
      %2490 = vmatmul.bf16.gmra.mxu0 %v2177
      %v2491 = vpop.f32.mrf.mxu0
      %v2492 = vadd.f32 0.0, %v2491
      %v2493 = vpop.f32.mrf.mxu0
      %v2494 = vadd.f32 0.0, %v2493
      %2495 = vmatmul.bf16.gmra.mxu0 %v2180
      %v2496 = vpop.f32.mrf.mxu0
      %v2497 = vadd.f32 0.0, %v2496
      %v2498 = vpop.f32.mrf.mxu0
      %v2499 = vadd.f32 0.0, %v2498
      %2500 = vmatmul.bf16.gmra.mxu0 %v2183
      %v2501 = vpop.f32.mrf.mxu0
      %v2502 = vadd.f32 0.0, %v2501
      %v2503 = vpop.f32.mrf.mxu0
      %v2504 = vadd.f32 0.0, %v2503
      %2505 = vmatmul.bf16.gmra.mxu0 %v2186
      %v2506 = vpop.f32.mrf.mxu0
      %v2507 = vadd.f32 0.0, %v2506
      %v2508 = vpop.f32.mrf.mxu0
      %v2509 = vadd.f32 0.0, %v2508
      %2510 = vmatmul.bf16.gmra.mxu0 %v2189
      %v2511 = vpop.f32.mrf.mxu0
      %v2512 = vadd.f32 0.0, %v2511
      %v2513 = vpop.f32.mrf.mxu0
      %v2514 = vadd.f32 0.0, %v2513
      %2515 = vmatmul.bf16.gmra.mxu0 %v2192
      %v2516 = vpop.f32.mrf.mxu0
      %v2517 = vadd.f32 0.0, %v2516
      %v2518 = vpop.f32.mrf.mxu0
      %v2519 = vadd.f32 0.0, %v2518
      %2520 = vmatmul.bf16.gmra.mxu0 %v2195
      %v2521 = vpop.f32.mrf.mxu0
      %v2522 = vadd.f32 0.0, %v2521
      %v2523 = vpop.f32.mrf.mxu0
      %v2524 = vadd.f32 0.0, %v2523
      %2525 = vmatmul.bf16.gmra.mxu0 %v2198
      %v2526 = vpop.f32.mrf.mxu0
      %v2527 = vadd.f32 0.0, %v2526
      %v2528 = vpop.f32.mrf.mxu0
      %v2529 = vadd.f32 0.0, %v2528
      %2530 = vmatmul.bf16.gmra.mxu0 %v2201
      %v2531 = vpop.f32.mrf.mxu0
      %v2532 = vadd.f32 0.0, %v2531
      %v2533 = vpop.f32.mrf.mxu0
      %v2534 = vadd.f32 0.0, %v2533
      %2535 = vmatmul.bf16.gmra.mxu0 %v2204
      %v2536 = vpop.f32.mrf.mxu0
      %v2537 = vadd.f32 0.0, %v2536
      %v2538 = vpop.f32.mrf.mxu0
      %v2539 = vadd.f32 0.0, %v2538
      %2540 = vmatmul.bf16.gmra.mxu0 %v2207
      %v2541 = vpop.f32.mrf.mxu0
      %v2542 = vadd.f32 0.0, %v2541
      %v2543 = vpop.f32.mrf.mxu0
      %v2544 = vadd.f32 0.0, %v2543
      %2545 = vmatmul.bf16.gmra.mxu0 %v2210
      %v2546 = vpop.f32.mrf.mxu0
      %v2547 = vadd.f32 0.0, %v2546
      %v2548 = vpop.f32.mrf.mxu0
      %v2549 = vadd.f32 0.0, %v2548
      %2550 = vmatmul.bf16.gmra.mxu0 %v2213
      %v2551 = vpop.f32.mrf.mxu0
      %v2552 = vadd.f32 0.0, %v2551
      %v2553 = vpop.f32.mrf.mxu0
      %v2554 = vadd.f32 0.0, %v2553
      %2555 = vmatmul.bf16.gmra.mxu0 %v2216
      %v2556 = vpop.f32.mrf.mxu0
      %v2557 = vadd.f32 0.0, %v2556
      %v2558 = vpop.f32.mrf.mxu0
      %v2559 = vadd.f32 0.0, %v2558
      %2560 = vmatmul.bf16.gmra.mxu0 %v2219
      %v2561 = vpop.f32.mrf.mxu0
      %v2562 = vadd.f32 0.0, %v2561
      %v2563 = vpop.f32.mrf.mxu0
      %v2564 = vadd.f32 0.0, %v2563
      %2565 = vmatmul.bf16.gmra.mxu0 %v2222
      %v2566 = vpop.f32.mrf.mxu0
      %v2567 = vadd.f32 0.0, %v2566
      %v2568 = vpop.f32.mrf.mxu0
      %v2569 = vadd.f32 0.0, %v2568
      %2570 = vmatmul.bf16.gmra.mxu0 %v2225
      %v2571 = vpop.f32.mrf.mxu0
      %v2572 = vadd.f32 0.0, %v2571
      %v2573 = vpop.f32.mrf.mxu0
      %v2574 = vadd.f32 0.0, %v2573
      %2575 = vmatmul.bf16.gmra.mxu0 %v2228
      %v2576 = vpop.f32.mrf.mxu0
      %v2577 = vadd.f32 0.0, %v2576
      %v2578 = vpop.f32.mrf.mxu0
      %v2579 = vadd.f32 0.0, %v2578
      %2580 = vmatmul.bf16.gmra.mxu0 %v2231
      %v2581 = vpop.f32.mrf.mxu0
      %v2582 = vadd.f32 0.0, %v2581
      %v2583 = vpop.f32.mrf.mxu0
      %v2584 = vadd.f32 0.0, %v2583
      %2585 = vmatmul.bf16.gmra.mxu0 %v2234
      %v2586 = vpop.f32.mrf.mxu0
      %v2587 = vadd.f32 0.0, %v2586
      %v2588 = vpop.f32.mrf.mxu0
      %v2589 = vadd.f32 0.0, %v2588
      %2590 = vmatmul.bf16.gmra.mxu0 %v2237
      %v2591 = vpop.f32.mrf.mxu0
      %v2592 = vadd.f32 0.0, %v2591
      %v2593 = vpop.f32.mrf.mxu0
      %v2594 = vadd.f32 0.0, %v2593
      %2595 = vmatmul.bf16.gmra.mxu0 %v2240
      %v2596 = vpop.f32.mrf.mxu0
      %v2597 = vadd.f32 0.0, %v2596
      %v2598 = vpop.f32.mrf.mxu0
      %v2599 = vadd.f32 0.0, %v2598
      %2600 = vmatmul.bf16.gmra.mxu0 %v2243
      %v2601 = vpop.f32.mrf.mxu0
      %v2602 = vadd.f32 0.0, %v2601
      %v2603 = vpop.f32.mrf.mxu0
      %v2604 = vadd.f32 0.0, %v2603
      %2605 = vmatmul.bf16.gmra.mxu0 %v2246
      %v2606 = vpop.f32.mrf.mxu0
      %v2607 = vadd.f32 0.0, %v2606
      %v2608 = vpop.f32.mrf.mxu0
      %v2609 = vadd.f32 0.0, %v2608
      %2610 = vmatmul.bf16.gmra.mxu0 %v2249
      %v2611 = vpop.f32.mrf.mxu0
      %v2612 = vadd.f32 0.0, %v2611
      %v2613 = vpop.f32.mrf.mxu0
      %v2614 = vadd.f32 0.0, %v2613
      %2615 = vmatmul.bf16.gmra.mxu0 %v2252
      %v2616 = vpop.f32.mrf.mxu0
      %v2617 = vadd.f32 0.0, %v2616
      %v2618 = vpop.f32.mrf.mxu0
      %v2619 = vadd.f32 0.0, %v2618
      %2620 = vmatmul.bf16.gmra.mxu0 %v2255
      %v2621 = vpop.f32.mrf.mxu0
      %v2622 = vadd.f32 0.0, %v2621
      %v2623 = vpop.f32.mrf.mxu0
      %v2624 = vadd.f32 0.0, %v2623
      %2625 = vmatmul.bf16.gmra.mxu0 %v2258
      %v2626 = vpop.f32.mrf.mxu0
      %v2627 = vadd.f32 0.0, %v2626
      %v2628 = vpop.f32.mrf.mxu0
      %v2629 = vadd.f32 0.0, %v2628
      %2630 = vmatmul.bf16.gmra.mxu0 %v2261
      %v2631 = vpop.f32.mrf.mxu0
      %v2632 = vadd.f32 0.0, %v2631
      %v2633 = vpop.f32.mrf.mxu0
      %v2634 = vadd.f32 0.0, %v2633
      %2635 = vmatmul.bf16.gmra.mxu0 %v2264
      %v2636 = vpop.f32.mrf.mxu0
      %v2637 = vadd.f32 0.0, %v2636
      %v2638 = vpop.f32.mrf.mxu0
      %v2639 = vadd.f32 0.0, %v2638
      %2640 = vmatmul.bf16.gmra.mxu0 %v2267
      %v2641 = vpop.f32.mrf.mxu0
      %v2642 = vadd.f32 0.0, %v2641
      %v2643 = vpop.f32.mrf.mxu0
      %2644 = vdwg.mxu0
      %v2645 = vadd.f32 %v1467, %v2282
      %v2646 = vadd.f32 %v1469, %v2284
      %v2647 = vadd.f32 %v1472, %v2287
      %v2648 = vadd.f32 %v1474, %v2289
      %v2649 = vadd.f32 %v1477, %v2292
      %v2650 = vadd.f32 %v1479, %v2294
      %v2651 = vadd.f32 %v1482, %v2297
      %v2652 = vadd.f32 %v1484, %v2299
      %v2653 = vadd.f32 %v1487, %v2302
      %v2654 = vadd.f32 %v1489, %v2304
      %v2655 = vadd.f32 %v1492, %v2307
      %v2656 = vadd.f32 %v1494, %v2309
      %v2657 = vadd.f32 %v1497, %v2312
      %v2658 = vadd.f32 %v1499, %v2314
      %v2659 = vadd.f32 %v1502, %v2317
      %v2660 = vadd.f32 %v1504, %v2319
      %v2661 = vadd.f32 %v1507, %v2322
      %v2662 = vadd.f32 %v1509, %v2324
      %v2663 = vadd.f32 %v1512, %v2327
      %v2664 = vadd.f32 %v1514, %v2329
      %v2665 = vadd.f32 %v1517, %v2332
      %v2666 = vadd.f32 %v1519, %v2334
      %v2667 = vadd.f32 %v1522, %v2337
      %v2668 = vadd.f32 %v1524, %v2339
      %v2669 = vadd.f32 %v1527, %v2342
      %v2670 = vadd.f32 %v1529, %v2344
      %v2671 = vadd.f32 %v1532, %v2347
      %v2672 = vadd.f32 %v1534, %v2349
      %v2673 = vadd.f32 %v1537, %v2352
      %v2674 = vadd.f32 %v1539, %v2354
      %v2675 = vadd.f32 %v1542, %v2357
      %v2676 = vadd.f32 %v1544, %v2359
      %v2677 = vadd.f32 %v1547, %v2362
      %v2678 = vadd.f32 %v1549, %v2364
      %v2679 = vadd.f32 %v1552, %v2367
      %v2680 = vadd.f32 %v1554, %v2369
      %v2681 = vadd.f32 %v1557, %v2372
      %v2682 = vadd.f32 %v1559, %v2374
      %v2683 = vadd.f32 %v1562, %v2377
      %v2684 = vadd.f32 %v1564, %v2379
      %v2685 = vadd.f32 %v1567, %v2382
      %v2686 = vadd.f32 %v1569, %v2384
      %v2687 = vadd.f32 %v1572, %v2387
      %v2688 = vadd.f32 %v1574, %v2389
      %v2689 = vadd.f32 %v1577, %v2392
      %v2690 = vadd.f32 %v1579, %v2394
      %v2691 = vadd.f32 %v1582, %v2397
      %v2692 = vadd.f32 %v1584, %v2399
      %v2693 = vadd.f32 %v1587, %v2402
      %v2694 = vadd.f32 %v1589, %v2404
      %v2695 = vadd.f32 %v1592, %v2407
      %v2696 = vadd.f32 %v1594, %v2409
      %v2697 = vadd.f32 %v1597, %v2412
      %v2698 = vadd.f32 %v1599, %v2414
      %v2699 = vadd.f32 %v1602, %v2417
      %v2700 = vadd.f32 %v1604, %v2419
      %v2701 = vadd.f32 %v1607, %v2422
      %v2702 = vadd.f32 %v1609, %v2424
      %v2703 = vadd.f32 %v1612, %v2427
      %v2704 = vadd.f32 %v1614, %v2429
      %v2705 = vadd.f32 %v1617, %v2432
      %v2706 = vadd.f32 %v1619, %v2434
      %v2707 = vadd.f32 %v1622, %v2437
      %v2708 = vadd.f32 %v1624, %v2439
      %v2709 = vadd.f32 %v1627, %v2442
      %v2710 = vadd.f32 %v1629, %v2444
      %v2711 = vadd.f32 %v1632, %v2447
      %v2712 = vadd.f32 %v1634, %v2449
      %v2713 = vadd.f32 %v1637, %v2452
      %v2714 = vadd.f32 %v1639, %v2454
      %v2715 = vadd.f32 %v1642, %v2457
      %v2716 = vadd.f32 %v1644, %v2459
      %v2717 = vadd.f32 %v1647, %v2462
      %v2718 = vadd.f32 %v1649, %v2464
      %v2719 = vadd.f32 %v1652, %v2467
      %v2720 = vadd.f32 %v1654, %v2469
      %v2721 = vadd.f32 %v1657, %v2472
      %v2722 = vadd.f32 %v1659, %v2474
      %v2723 = vadd.f32 %v1662, %v2477
      %v2724 = vadd.f32 %v1664, %v2479
      %v2725 = vadd.f32 %v1667, %v2482
      %v2726 = vadd.f32 %v1669, %v2484
      %v2727 = vadd.f32 %v1672, %v2487
      %v2728 = vadd.f32 %v1674, %v2489
      %v2729 = vadd.f32 %v1677, %v2492
      %v2730 = vadd.f32 %v1679, %v2494
      %v2731 = vadd.f32 %v1682, %v2497
      %v2732 = vadd.f32 %v1684, %v2499
      %v2733 = vadd.f32 %v1687, %v2502
      %v2734 = vadd.f32 %v1689, %v2504
      %v2735 = vadd.f32 %v1692, %v2507
      %v2736 = vadd.f32 %v1694, %v2509
      %v2737 = vadd.f32 %v1697, %v2512
      %v2738 = vadd.f32 %v1699, %v2514
      %v2739 = vadd.f32 %v1702, %v2517
      %v2740 = vadd.f32 %v1704, %v2519
      %v2741 = vadd.f32 %v1707, %v2522
      %v2742 = vadd.f32 %v1709, %v2524
      %v2743 = vadd.f32 %v1712, %v2527
      %v2744 = vadd.f32 %v1714, %v2529
      %v2745 = vadd.f32 %v1717, %v2532
      %v2746 = vadd.f32 %v1719, %v2534
      %v2747 = vadd.f32 %v1722, %v2537
      %v2748 = vadd.f32 %v1724, %v2539
      %v2749 = vadd.f32 %v1727, %v2542
      %v2750 = vadd.f32 %v1729, %v2544
      %v2751 = vadd.f32 %v1732, %v2547
      %v2752 = vadd.f32 %v1734, %v2549
      %v2753 = vadd.f32 %v1737, %v2552
      %v2754 = vadd.f32 %v1739, %v2554
      %v2755 = vadd.f32 %v1742, %v2557
      %v2756 = vadd.f32 %v1744, %v2559
      %v2757 = vadd.f32 %v1747, %v2562
      %v2758 = vadd.f32 %v1749, %v2564
      %v2759 = vadd.f32 %v1752, %v2567
      %v2760 = vadd.f32 %v1754, %v2569
      %v2761 = vadd.f32 %v1757, %v2572
      %v2762 = vadd.f32 %v1759, %v2574
      %v2763 = vadd.f32 %v1762, %v2577
      %v2764 = vadd.f32 %v1764, %v2579
      %v2765 = vadd.f32 %v1767, %v2582
      %v2766 = vadd.f32 %v1769, %v2584
      %v2767 = vadd.f32 %v1772, %v2587
      %v2768 = vadd.f32 %v1774, %v2589
      %v2769 = vadd.f32 %v1777, %v2592
      %v2770 = vadd.f32 %v1779, %v2594
      %v2771 = vadd.f32 %v1782, %v2597
      %v2772 = vadd.f32 %v1784, %v2599
      %v2773 = vadd.f32 %v1787, %v2602
      %v2774 = vadd.f32 %v1789, %v2604
      %v2775 = vadd.f32 %v1792, %v2607
      %v2776 = vadd.f32 %v1794, %v2609
      %v2777 = vadd.f32 %v1797, %v2612
      %v2778 = vadd.f32 %v1799, %v2614
      %v2779 = vadd.f32 %v1802, %v2617
      %v2780 = vadd.f32 %v1804, %v2619
      %v2781 = vadd.f32 %v1807, %v2622
      %v2782 = vadd.f32 %v1809, %v2624
      %v2783 = vadd.f32 %v1812, %v2627
      %v2784 = vadd.f32 %v1814, %v2629
      %v2785 = vadd.f32 %v1817, %v2632
      %v2786 = vadd.f32 %v1819, %v2634
      %v2787 = vadd.f32 %v1822, %v2637
      %v2788 = vadd.f32 %v1824, %v2639
      %v2789 = vadd.f32 %v1827, %v2642
      %v2790 = vld [vmem:[%s192 + $0x22] sm:$0xff]
      %v2791 = vld [vmem:[%s192 + $0x2a] sm:$0xff]
      %v2792 = vld [vmem:[%s192 + $0x32] sm:$0xff]
      %v2793 = vld [vmem:[%s192 + $0x3a] sm:$0xff]
      %v2794 = vld [vmem:[%s192 + $0x42] sm:$0xff]
      %v2795 = vld [vmem:[%s192 + $0x4a] sm:$0xff]
      %v2796 = vld [vmem:[%s192 + $0x52] sm:$0xff]
      %v2797 = vld [vmem:[%s192 + $0x5a] sm:$0xff]
      %v2798 = vld [vmem:[%s192 + $0x62] sm:$0xff]
      %v2799 = vld [vmem:[%s192 + $0x6a] sm:$0xff]
      %v2800 = vld [vmem:[%s192 + $0x72] sm:$0xff]
      %v2801 = vld [vmem:[%s192 + $0x7a] sm:$0xff]
      %v2802 = vld [vmem:[%s192 + $0x82] sm:$0xff]
      %v2803 = vld [vmem:[%s192 + $0x8a] sm:$0xff]
      %v2804 = vld [vmem:[%s192 + $0x92] sm:$0xff]
      %v2805 = vld [vmem:[%s192 + $0x9a] sm:$0xff]
      %v2806 = vld [vmem:[%s192 + $0xa2] sm:$0xff]
      %v2807 = vld [vmem:[%s192 + $0xaa] sm:$0xff]
      %v2808 = vld [vmem:[%s192 + $0xb2] sm:$0xff]
      %v2809 = vld [vmem:[%s192 + $0xba] sm:$0xff]
      %v2810 = vld [vmem:[%s192 + $0xc2] sm:$0xff]
      %v2811 = vld [vmem:[%s192 + $0xca] sm:$0xff]
      %v2812 = vld [vmem:[%s192 + $0xd2] sm:$0xff]
      %v2813 = vld [vmem:[%s192 + $0xda] sm:$0xff]
      %v2814 = vld [vmem:[%s192 + $0xe2] sm:$0xff]
      %v2815 = vld [vmem:[%s192 + $0xea] sm:$0xff]
      %v2816 = vld [vmem:[%s192 + $0xf2] sm:$0xff]
      %v2817 = vld [vmem:[%s192 + $0xfa] sm:$0xff]
      %v2818 = vld [vmem:[%s192 + $0x102] sm:$0xff]
      %v2819 = vld [vmem:[%s192 + $0x10a] sm:$0xff]
      %v2820 = vld [vmem:[%s192 + $0x112] sm:$0xff]
      %v2821 = vld [vmem:[%s192 + $0x11a] sm:$0xff]
      %v2822 = vld [vmem:[%s192 + $0x122] sm:$0xff]
      %v2823 = vld [vmem:[%s192 + $0x12a] sm:$0xff]
      %v2824 = vld [vmem:[%s192 + $0x132] sm:$0xff]
      %v2825 = vld [vmem:[%s192 + $0x13a] sm:$0xff]
      %v2826 = vld [vmem:[%s192 + $0x142] sm:$0xff]
      %v2827 = vld [vmem:[%s192 + $0x14a] sm:$0xff]
      %v2828 = vld [vmem:[%s192 + $0x152] sm:$0xff]
      %v2829 = vld [vmem:[%s192 + $0x15a] sm:$0xff]
      %v2830 = vld [vmem:[%s192 + $0x162] sm:$0xff]
      %v2831 = vld [vmem:[%s192 + $0x16a] sm:$0xff]
      %v2832 = vld [vmem:[%s192 + $0x172] sm:$0xff]
      %v2833 = vld [vmem:[%s192 + $0x17a] sm:$0xff]
      %v2834 = vld [vmem:[%s192 + $0x182] sm:$0xff]
      %v2835 = vld [vmem:[%s192 + $0x18a] sm:$0xff]
      %v2836 = vld [vmem:[%s192 + $0x192] sm:$0xff]
      %v2837 = vld [vmem:[%s192 + $0x19a] sm:$0xff]
      %v2838 = vld [vmem:[%s192 + $0x1a2] sm:$0xff]
      %v2839 = vld [vmem:[%s192 + $0x1aa] sm:$0xff]
      %v2840 = vld [vmem:[%s192 + $0x1b2] sm:$0xff]
      %v2841 = vld [vmem:[%s192 + $0x1ba] sm:$0xff]
      %v2842 = vld [vmem:[%s192 + $0x1c2] sm:$0xff]
      %v2843 = vld [vmem:[%s192 + $0x1ca] sm:$0xff]
      %v2844 = vld [vmem:[%s192 + $0x1d2] sm:$0xff]
      %v2845 = vld [vmem:[%s192 + $0x1da] sm:$0xff]
      %v2846 = vld [vmem:[%s192 + $0x1e2] sm:$0xff]
      %v2847 = vld [vmem:[%s192 + $0x1ea] sm:$0xff]
      %v2848 = vld [vmem:[%s192 + $0x1f2] sm:$0xff]
      %v2849 = vld [vmem:[%s192 + $0x1fa] sm:$0xff]
      %v2850 = vld [vmem:[%s192 + $0x202] sm:$0xff]
      %v2851 = vld [vmem:[%s192 + $0x20a] sm:$0xff]
      %v2852 = vld [vmem:[%s192 + $0x212] sm:$0xff]
      %v2853 = vld [vmem:[%s192 + $0x21a] sm:$0xff]
      %v2854 = vld [vmem:[%s192 + $0x222] sm:$0xff]
      %v2855 = vld [vmem:[%s192 + $0x22a] sm:$0xff]
      %v2856 = vld [vmem:[%s192 + $0x232] sm:$0xff]
      %v2857 = vld [vmem:[%s192 + $0x23a] sm:$0xff]
      %v2858 = vld [vmem:[%s192 + $0x242] sm:$0xff]
      %v2859 = vld [vmem:[%s192 + $0x24a] sm:$0xff]
      %v2860 = vld [vmem:[%s192 + $0x252] sm:$0xff]
      %v2861 = vld [vmem:[%s192 + $0x25a] sm:$0xff]
      %v2862 = vld [vmem:[%s192 + $0x262] sm:$0xff]
      %v2863 = vld [vmem:[%s192 + $0x26a] sm:$0xff]
      %v2864 = vld [vmem:[%s192 + $0x272] sm:$0xff]
      %v2865 = vld [vmem:[%s192 + $0x27a] sm:$0xff]
      %v2866 = vld [vmem:[%s192 + $0x282] sm:$0xff]
      %v2867 = vld [vmem:[%s192 + $0x28a] sm:$0xff]
      %v2868 = vld [vmem:[%s192 + $0x292] sm:$0xff]
      %v2869 = vld [vmem:[%s192 + $0x29a] sm:$0xff]
      %v2870 = vld [vmem:[%s192 + $0x2a2] sm:$0xff]
      %v2871 = vld [vmem:[%s192 + $0x2aa] sm:$0xff]
      %v2872 = vld [vmem:[%s192 + $0x2b2] sm:$0xff]
      %v2873 = vld [vmem:[%s192 + $0x2ba] sm:$0xff]
      %v2874 = vld [vmem:[%s192 + $0x2c2] sm:$0xff]
      %v2875 = vld [vmem:[%s192 + $0x2ca] sm:$0xff]
      %v2876 = vld [vmem:[%s192 + $0x2d2] sm:$0xff]
      %v2877 = vld [vmem:[%s192 + $0x2da] sm:$0xff]
      %v2878 = vld [vmem:[%s192 + $0x2e2] sm:$0xff]
      %v2879 = vld [vmem:[%s192 + $0x2ea] sm:$0xff]
      %v2880 = vld [vmem:[%s192 + $0x2f2] sm:$0xff]
      %v2881 = vld [vmem:[%s192 + $0x2fa] sm:$0xff]
      %v2882 = vld [vmem:[%s192 + $0x302] sm:$0xff]
      %v2883 = vld [vmem:[%s192 + $0x30a] sm:$0xff]
      %v2884 = vld [vmem:[%s192 + $0x312] sm:$0xff]
      %v2885 = vld [vmem:[%s192 + $0x31a] sm:$0xff]
      %v2886 = vld [vmem:[%s192 + $0x322] sm:$0xff]
      %v2887 = vld [vmem:[%s192 + $0x32a] sm:$0xff]
      %v2888 = vld [vmem:[%s192 + $0x332] sm:$0xff]
      %v2889 = vld [vmem:[%s192 + $0x33a] sm:$0xff]
      %v2890 = vld [vmem:[%s192 + $0x342] sm:$0xff]
      %v2891 = vld [vmem:[%s192 + $0x34a] sm:$0xff]
      %v2892 = vld [vmem:[%s192 + $0x352] sm:$0xff]
      %v2893 = vld [vmem:[%s192 + $0x35a] sm:$0xff]
      %v2894 = vld [vmem:[%s192 + $0x362] sm:$0xff]
      %v2895 = vld [vmem:[%s192 + $0x36a] sm:$0xff]
      %v2896 = vld [vmem:[%s192 + $0x372] sm:$0xff]
      %v2897 = vld [vmem:[%s192 + $0x37a] sm:$0xff]
      %v2898 = vld [vmem:[%s192 + $0x382] sm:$0xff]
      %v2899 = vld [vmem:[%s192 + $0x38a] sm:$0xff]
      %v2900 = vld [vmem:[%s192 + $0x392] sm:$0xff]
      %v2901 = vld [vmem:[%s192 + $0x39a] sm:$0xff]
      %v2902 = vld [vmem:[%s192 + $0x3a2] sm:$0xff]
      %v2903 = vld [vmem:[%s192 + $0x3aa] sm:$0xff]
      %v2904 = vld [vmem:[%s192 + $0x3b2] sm:$0xff]
      %v2905 = vld [vmem:[%s192 + $0x3ba] sm:$0xff]
      %v2906 = vld [vmem:[%s192 + $0x3c2] sm:$0xff]
      %v2907 = vld [vmem:[%s192 + $0x3ca] sm:$0xff]
      %v2908 = vld [vmem:[%s192 + $0x3d2] sm:$0xff]
      %v2909 = vld [vmem:[%s192 + $0x3da] sm:$0xff]
      %v2910 = vld [vmem:[%s192 + $0x3e2] sm:$0xff]
      %v2911 = vld [vmem:[%s192 + $0x3ea] sm:$0xff]
      %v2912 = vld [vmem:[%s192 + $0x3f2] sm:$0xff]
      %v2913 = vld [vmem:[%s192 + $0x3fa] sm:$0xff]
      %v2914 = vld [vmem:[%s192 + $0x402] sm:$0xff]
      %v2915 = vld [vmem:[%s192 + $0x40a] sm:$0xff]
      %v2916 = vld [vmem:[%s192 + $0x412] sm:$0xff]
      %v2917 = vld [vmem:[%s192 + $0x41a] sm:$0xff]
      %v2918 = vld [vmem:[%s192 + $0x422] sm:$0xff]
      %v2919 = vld [vmem:[%s192 + $0x42a] sm:$0xff]
      %v2920 = vld [vmem:[%s192 + $0x432] sm:$0xff]
      %v2921 = vld [vmem:[%s192 + $0x43a] sm:$0xff]
      %v2922 = vld [vmem:[%s192 + $0x442] sm:$0xff]
      %v2923 = vld [vmem:[%s192 + $0x44a] sm:$0xff]
      %v2924 = vld [vmem:[%s192 + $0x452] sm:$0xff]
      %v2925 = vld [vmem:[%s192 + $0x45a] sm:$0xff]
      %v2926 = vld [vmem:[%s192 + $0x462] sm:$0xff]
      %v2927 = vld [vmem:[%s192 + $0x46a] sm:$0xff]
      %v2928 = vld [vmem:[%s192 + $0x472] sm:$0xff]
      %v2929 = vld [vmem:[%s192 + $0x47a] sm:$0xff]
      %v2930 = vld [vmem:[%s192 + $0x482] sm:$0xff]
      %v2931 = vld [vmem:[%s192 + $0x48a] sm:$0xff]
      %v2932 = vld [vmem:[%s192 + $0x492] sm:$0xff]
      %v2933 = vld [vmem:[%s192 + $0x49a] sm:$0xff]
      %v2934 = vld [vmem:[%s192 + $0x4a2] sm:$0xf]
      %v2935 = vpack.c.bf16 %v2791, %v2790
      %v2936 = vpack.c.bf16 %v2793, %v2792
      %v2937 = vpack.c.bf16 %v2795, %v2794
      %v2938 = vpack.c.bf16 %v2797, %v2796
      %v2939 = vpack.c.bf16 %v2799, %v2798
      %v2940 = vpack.c.bf16 %v2801, %v2800
      %v2941 = vpack.c.bf16 %v2803, %v2802
      %v2942 = vpack.c.bf16 %v2805, %v2804
      %v2943 = vpack.c.bf16 %v2807, %v2806
      %v2944 = vpack.c.bf16 %v2809, %v2808
      %v2945 = vpack.c.bf16 %v2811, %v2810
      %v2946 = vpack.c.bf16 %v2813, %v2812
      %v2947 = vpack.c.bf16 %v2815, %v2814
      %v2948 = vpack.c.bf16 %v2817, %v2816
      %v2949 = vpack.c.bf16 %v2819, %v2818
      %v2950 = vpack.c.bf16 %v2821, %v2820
      %v2951 = vpack.c.bf16 %v2823, %v2822
      %v2952 = vpack.c.bf16 %v2825, %v2824
      %v2953 = vpack.c.bf16 %v2827, %v2826
      %v2954 = vpack.c.bf16 %v2829, %v2828
      %v2955 = vpack.c.bf16 %v2831, %v2830
      %v2956 = vpack.c.bf16 %v2833, %v2832
      %v2957 = vpack.c.bf16 %v2835, %v2834
      %v2958 = vpack.c.bf16 %v2837, %v2836
      %v2959 = vpack.c.bf16 %v2839, %v2838
      %v2960 = vpack.c.bf16 %v2841, %v2840
      %v2961 = vpack.c.bf16 %v2843, %v2842
      %v2962 = vpack.c.bf16 %v2845, %v2844
      %v2963 = vpack.c.bf16 %v2847, %v2846
      %v2964 = vpack.c.bf16 %v2849, %v2848
      %v2965 = vpack.c.bf16 %v2851, %v2850
      %v2966 = vpack.c.bf16 %v2853, %v2852
      %v2967 = vpack.c.bf16 %v2855, %v2854
      %v2968 = vpack.c.bf16 %v2857, %v2856
      %v2969 = vpack.c.bf16 %v2859, %v2858
      %v2970 = vpack.c.bf16 %v2861, %v2860
      %v2971 = vpack.c.bf16 %v2863, %v2862
      %v2972 = vpack.c.bf16 %v2865, %v2864
      %v2973 = vpack.c.bf16 %v2867, %v2866
      %v2974 = vpack.c.bf16 %v2869, %v2868
      %v2975 = vpack.c.bf16 %v2871, %v2870
      %v2976 = vpack.c.bf16 %v2873, %v2872
      %v2977 = vpack.c.bf16 %v2875, %v2874
      %v2978 = vpack.c.bf16 %v2877, %v2876
      %v2979 = vpack.c.bf16 %v2879, %v2878
      %v2980 = vpack.c.bf16 %v2881, %v2880
      %v2981 = vpack.c.bf16 %v2883, %v2882
      %v2982 = vpack.c.bf16 %v2885, %v2884
      %v2983 = vpack.c.bf16 %v2887, %v2886
      %v2984 = vpack.c.bf16 %v2889, %v2888
      %v2985 = vpack.c.bf16 %v2891, %v2890
      %v2986 = vpack.c.bf16 %v2893, %v2892
      %v2987 = vpack.c.bf16 %v2895, %v2894
      %v2988 = vpack.c.bf16 %v2897, %v2896
      %v2989 = vpack.c.bf16 %v2899, %v2898
      %v2990 = vpack.c.bf16 %v2901, %v2900
      %v2991 = vpack.c.bf16 %v2903, %v2902
      %v2992 = vpack.c.bf16 %v2905, %v2904
      %v2993 = vpack.c.bf16 %v2907, %v2906
      %v2994 = vpack.c.bf16 %v2909, %v2908
      %v2995 = vpack.c.bf16 %v2911, %v2910
      %v2996 = vpack.c.bf16 %v2913, %v2912
      %v2997 = vpack.c.bf16 %v2915, %v2914
      %v2998 = vpack.c.bf16 %v2917, %v2916
      %v2999 = vpack.c.bf16 %v2919, %v2918
      %v3000 = vpack.c.bf16 %v2921, %v2920
      %v3001 = vpack.c.bf16 %v2923, %v2922
      %v3002 = vpack.c.bf16 %v2925, %v2924
      %v3003 = vpack.c.bf16 %v2927, %v2926
      %v3004 = vpack.c.bf16 %v2929, %v2928
      %v3005 = vpack.c.bf16 %v2931, %v2930
      %v3006 = vpack.c.bf16 %v2933, %v2932
      %v3007 = vpack.c.bf16 %v2934, %v2934
      %s3008 = scalar_lea.vmem %s1, 12
      %v3009 = vld [vmem:[%s3008] sm:$0xf]
      %v3011 = vsel %vm638, %v2935, 0
      %v3014 = vsel %vm638, %v2936, 0
      %v3017 = vsel %vm638, %v2937, 0
      %v3020 = vsel %vm638, %v2938, 0
      %v3023 = vsel %vm638, %v2939, 0
      %v3026 = vsel %vm638, %v2940, 0
      %v3029 = vsel %vm638, %v2941, 0
      %v3032 = vsel %vm638, %v2942, 0
      %v3035 = vsel %vm638, %v2943, 0
      %v3038 = vsel %vm638, %v2944, 0
      %v3041 = vsel %vm638, %v2945, 0
      %v3044 = vsel %vm638, %v2946, 0
      %v3047 = vsel %vm638, %v2947, 0
      %v3050 = vsel %vm638, %v2948, 0
      %v3053 = vsel %vm638, %v2949, 0
      %v3056 = vsel %vm638, %v2950, 0
      %v3059 = vsel %vm638, %v2951, 0
      %v3062 = vsel %vm638, %v2952, 0
      %v3065 = vsel %vm638, %v2953, 0
      %v3068 = vsel %vm638, %v2954, 0
      %v3071 = vsel %vm638, %v2955, 0
      %v3074 = vsel %vm638, %v2956, 0
      %v3077 = vsel %vm638, %v2957, 0
      %v3080 = vsel %vm638, %v2958, 0
      %v3083 = vsel %vm638, %v2959, 0
      %v3086 = vsel %vm638, %v2960, 0
      %v3089 = vsel %vm638, %v2961, 0
      %v3092 = vsel %vm638, %v2962, 0
      %v3095 = vsel %vm638, %v2963, 0
      %v3098 = vsel %vm638, %v2964, 0
      %v3101 = vsel %vm638, %v2965, 0
      %v3104 = vsel %vm638, %v2966, 0
      %v3107 = vsel %vm638, %v2967, 0
      %v3110 = vsel %vm638, %v2968, 0
      %v3113 = vsel %vm638, %v2969, 0
      %v3116 = vsel %vm638, %v2970, 0
      %v3119 = vsel %vm638, %v2971, 0
      %v3122 = vsel %vm638, %v2972, 0
      %v3125 = vsel %vm638, %v2973, 0
      %v3128 = vsel %vm638, %v2974, 0
      %v3131 = vsel %vm638, %v2975, 0
      %v3134 = vsel %vm638, %v2976, 0
      %v3137 = vsel %vm638, %v2977, 0
      %v3140 = vsel %vm638, %v2978, 0
      %v3143 = vsel %vm638, %v2979, 0
      %v3146 = vsel %vm638, %v2980, 0
      %v3149 = vsel %vm638, %v2981, 0
      %v3152 = vsel %vm638, %v2982, 0
      %v3155 = vsel %vm638, %v2983, 0
      %v3158 = vsel %vm638, %v2984, 0
      %v3161 = vsel %vm638, %v2985, 0
      %v3164 = vsel %vm638, %v2986, 0
      %v3167 = vsel %vm638, %v2987, 0
      %v3170 = vsel %vm638, %v2988, 0
      %v3173 = vsel %vm638, %v2989, 0
      %v3176 = vsel %vm638, %v2990, 0
      %v3179 = vsel %vm638, %v2991, 0
      %v3182 = vsel %vm638, %v2992, 0
      %v3185 = vsel %vm638, %v2993, 0
      %v3188 = vsel %vm638, %v2994, 0
      %v3191 = vsel %vm638, %v2995, 0
      %v3194 = vsel %vm638, %v2996, 0
      %v3197 = vsel %vm638, %v2997, 0
      %v3200 = vsel %vm638, %v2998, 0
      %v3203 = vsel %vm638, %v2999, 0
      %v3206 = vsel %vm638, %v3000, 0
      %v3209 = vsel %vm638, %v3001, 0
      %v3212 = vsel %vm638, %v3002, 0
      %v3215 = vsel %vm638, %v3003, 0
      %v3218 = vsel %vm638, %v3004, 0
      %v3221 = vsel %vm638, %v3005, 0
      %v3224 = vsel %vm638, %v3006, 0
      %v3227 = vsel %vm638, %v3007, 0
      %v3230 = vsel %vm858, %v3009, 0
      %3232 = vmatpush.bf16.msra.mxu0 0
      %3233 = vmatpush.bf16.msra.mxu0 0
      %3234 = vmatpush.bf16.msra.mxu0 0
      %3235 = vmatpush.bf16.msra.mxu0 0
      %3236 = vmatpush.bf16.msra.mxu0 0
      %3237 = vmatpush.bf16.msra.mxu0 0
      %3238 = vmatpush.bf16.msra.mxu0 0
      %3239 = vmatpush.bf16.msra.mxu0 %v3230
      %3240 = vmatmul.bf16.gmra.mxu0 %v3011
      %v3241 = vpop.f32.mrf.mxu0
      %v3242 = vadd.f32 0.0, %v3241
      %v3243 = vpop.f32.mrf.mxu0
      %v3244 = vadd.f32 0.0, %v3243
      %3245 = vmatmul.bf16.gmra.mxu0 %v3014
      %v3246 = vpop.f32.mrf.mxu0
      %v3247 = vadd.f32 0.0, %v3246
      %v3248 = vpop.f32.mrf.mxu0
      %v3249 = vadd.f32 0.0, %v3248
      %3250 = vmatmul.bf16.gmra.mxu0 %v3017
      %v3251 = vpop.f32.mrf.mxu0
      %v3252 = vadd.f32 0.0, %v3251
      %v3253 = vpop.f32.mrf.mxu0
      %v3254 = vadd.f32 0.0, %v3253
      %3255 = vmatmul.bf16.gmra.mxu0 %v3020
      %v3256 = vpop.f32.mrf.mxu0
      %v3257 = vadd.f32 0.0, %v3256
      %v3258 = vpop.f32.mrf.mxu0
      %v3259 = vadd.f32 0.0, %v3258
      %3260 = vmatmul.bf16.gmra.mxu0 %v3023
      %v3261 = vpop.f32.mrf.mxu0
      %v3262 = vadd.f32 0.0, %v3261
      %v3263 = vpop.f32.mrf.mxu0
      %v3264 = vadd.f32 0.0, %v3263
      %3265 = vmatmul.bf16.gmra.mxu0 %v3026
      %v3266 = vpop.f32.mrf.mxu0
      %v3267 = vadd.f32 0.0, %v3266
      %v3268 = vpop.f32.mrf.mxu0
      %v3269 = vadd.f32 0.0, %v3268
      %3270 = vmatmul.bf16.gmra.mxu0 %v3029
      %v3271 = vpop.f32.mrf.mxu0
      %v3272 = vadd.f32 0.0, %v3271
      %v3273 = vpop.f32.mrf.mxu0
      %v3274 = vadd.f32 0.0, %v3273
      %3275 = vmatmul.bf16.gmra.mxu0 %v3032
      %v3276 = vpop.f32.mrf.mxu0
      %v3277 = vadd.f32 0.0, %v3276
      %v3278 = vpop.f32.mrf.mxu0
      %v3279 = vadd.f32 0.0, %v3278
      %3280 = vmatmul.bf16.gmra.mxu0 %v3035
      %v3281 = vpop.f32.mrf.mxu0
      %v3282 = vadd.f32 0.0, %v3281
      %v3283 = vpop.f32.mrf.mxu0
      %v3284 = vadd.f32 0.0, %v3283
      %3285 = vmatmul.bf16.gmra.mxu0 %v3038
      %v3286 = vpop.f32.mrf.mxu0
      %v3287 = vadd.f32 0.0, %v3286
      %v3288 = vpop.f32.mrf.mxu0
      %v3289 = vadd.f32 0.0, %v3288
      %3290 = vmatmul.bf16.gmra.mxu0 %v3041
      %v3291 = vpop.f32.mrf.mxu0
      %v3292 = vadd.f32 0.0, %v3291
      %v3293 = vpop.f32.mrf.mxu0
      %v3294 = vadd.f32 0.0, %v3293
      %3295 = vmatmul.bf16.gmra.mxu0 %v3044
      %v3296 = vpop.f32.mrf.mxu0
      %v3297 = vadd.f32 0.0, %v3296
      %v3298 = vpop.f32.mrf.mxu0
      %v3299 = vadd.f32 0.0, %v3298
      %3300 = vmatmul.bf16.gmra.mxu0 %v3047
      %v3301 = vpop.f32.mrf.mxu0
      %v3302 = vadd.f32 0.0, %v3301
      %v3303 = vpop.f32.mrf.mxu0
      %v3304 = vadd.f32 0.0, %v3303
      %3305 = vmatmul.bf16.gmra.mxu0 %v3050
      %v3306 = vpop.f32.mrf.mxu0
      %v3307 = vadd.f32 0.0, %v3306
      %v3308 = vpop.f32.mrf.mxu0
      %v3309 = vadd.f32 0.0, %v3308
      %3310 = vmatmul.bf16.gmra.mxu0 %v3053
      %v3311 = vpop.f32.mrf.mxu0
      %v3312 = vadd.f32 0.0, %v3311
      %v3313 = vpop.f32.mrf.mxu0
      %v3314 = vadd.f32 0.0, %v3313
      %3315 = vmatmul.bf16.gmra.mxu0 %v3056
      %v3316 = vpop.f32.mrf.mxu0
      %v3317 = vadd.f32 0.0, %v3316
      %v3318 = vpop.f32.mrf.mxu0
      %v3319 = vadd.f32 0.0, %v3318
      %3320 = vmatmul.bf16.gmra.mxu0 %v3059
      %v3321 = vpop.f32.mrf.mxu0
      %v3322 = vadd.f32 0.0, %v3321
      %v3323 = vpop.f32.mrf.mxu0
      %v3324 = vadd.f32 0.0, %v3323
      %3325 = vmatmul.bf16.gmra.mxu0 %v3062
      %v3326 = vpop.f32.mrf.mxu0
      %v3327 = vadd.f32 0.0, %v3326
      %v3328 = vpop.f32.mrf.mxu0
      %v3329 = vadd.f32 0.0, %v3328
      %3330 = vmatmul.bf16.gmra.mxu0 %v3065
      %v3331 = vpop.f32.mrf.mxu0
      %v3332 = vadd.f32 0.0, %v3331
      %v3333 = vpop.f32.mrf.mxu0
      %v3334 = vadd.f32 0.0, %v3333
      %3335 = vmatmul.bf16.gmra.mxu0 %v3068
      %v3336 = vpop.f32.mrf.mxu0
      %v3337 = vadd.f32 0.0, %v3336
      %v3338 = vpop.f32.mrf.mxu0
      %v3339 = vadd.f32 0.0, %v3338
      %3340 = vmatmul.bf16.gmra.mxu0 %v3071
      %v3341 = vpop.f32.mrf.mxu0
      %v3342 = vadd.f32 0.0, %v3341
      %v3343 = vpop.f32.mrf.mxu0
      %v3344 = vadd.f32 0.0, %v3343
      %3345 = vmatmul.bf16.gmra.mxu0 %v3074
      %v3346 = vpop.f32.mrf.mxu0
      %v3347 = vadd.f32 0.0, %v3346
      %v3348 = vpop.f32.mrf.mxu0
      %v3349 = vadd.f32 0.0, %v3348
      %3350 = vmatmul.bf16.gmra.mxu0 %v3077
      %v3351 = vpop.f32.mrf.mxu0
      %v3352 = vadd.f32 0.0, %v3351
      %v3353 = vpop.f32.mrf.mxu0
      %v3354 = vadd.f32 0.0, %v3353
      %3355 = vmatmul.bf16.gmra.mxu0 %v3080
      %v3356 = vpop.f32.mrf.mxu0
      %v3357 = vadd.f32 0.0, %v3356
      %v3358 = vpop.f32.mrf.mxu0
      %v3359 = vadd.f32 0.0, %v3358
      %3360 = vmatmul.bf16.gmra.mxu0 %v3083
      %v3361 = vpop.f32.mrf.mxu0
      %v3362 = vadd.f32 0.0, %v3361
      %v3363 = vpop.f32.mrf.mxu0
      %v3364 = vadd.f32 0.0, %v3363
      %3365 = vmatmul.bf16.gmra.mxu0 %v3086
      %v3366 = vpop.f32.mrf.mxu0
      %v3367 = vadd.f32 0.0, %v3366
      %v3368 = vpop.f32.mrf.mxu0
      %v3369 = vadd.f32 0.0, %v3368
      %3370 = vmatmul.bf16.gmra.mxu0 %v3089
      %v3371 = vpop.f32.mrf.mxu0
      %v3372 = vadd.f32 0.0, %v3371
      %v3373 = vpop.f32.mrf.mxu0
      %v3374 = vadd.f32 0.0, %v3373
      %3375 = vmatmul.bf16.gmra.mxu0 %v3092
      %v3376 = vpop.f32.mrf.mxu0
      %v3377 = vadd.f32 0.0, %v3376
      %v3378 = vpop.f32.mrf.mxu0
      %v3379 = vadd.f32 0.0, %v3378
      %3380 = vmatmul.bf16.gmra.mxu0 %v3095
      %v3381 = vpop.f32.mrf.mxu0
      %v3382 = vadd.f32 0.0, %v3381
      %v3383 = vpop.f32.mrf.mxu0
      %v3384 = vadd.f32 0.0, %v3383
      %3385 = vmatmul.bf16.gmra.mxu0 %v3098
      %v3386 = vpop.f32.mrf.mxu0
      %v3387 = vadd.f32 0.0, %v3386
      %v3388 = vpop.f32.mrf.mxu0
      %v3389 = vadd.f32 0.0, %v3388
      %3390 = vmatmul.bf16.gmra.mxu0 %v3101
      %v3391 = vpop.f32.mrf.mxu0
      %v3392 = vadd.f32 0.0, %v3391
      %v3393 = vpop.f32.mrf.mxu0
      %v3394 = vadd.f32 0.0, %v3393
      %3395 = vmatmul.bf16.gmra.mxu0 %v3104
      %v3396 = vpop.f32.mrf.mxu0
      %v3397 = vadd.f32 0.0, %v3396
      %v3398 = vpop.f32.mrf.mxu0
      %v3399 = vadd.f32 0.0, %v3398
      %3400 = vmatmul.bf16.gmra.mxu0 %v3107
      %v3401 = vpop.f32.mrf.mxu0
      %v3402 = vadd.f32 0.0, %v3401
      %v3403 = vpop.f32.mrf.mxu0
      %v3404 = vadd.f32 0.0, %v3403
      %3405 = vmatmul.bf16.gmra.mxu0 %v3110
      %v3406 = vpop.f32.mrf.mxu0
      %v3407 = vadd.f32 0.0, %v3406
      %v3408 = vpop.f32.mrf.mxu0
      %v3409 = vadd.f32 0.0, %v3408
      %3410 = vmatmul.bf16.gmra.mxu0 %v3113
      %v3411 = vpop.f32.mrf.mxu0
      %v3412 = vadd.f32 0.0, %v3411
      %v3413 = vpop.f32.mrf.mxu0
      %v3414 = vadd.f32 0.0, %v3413
      %3415 = vmatmul.bf16.gmra.mxu0 %v3116
      %v3416 = vpop.f32.mrf.mxu0
      %v3417 = vadd.f32 0.0, %v3416
      %v3418 = vpop.f32.mrf.mxu0
      %v3419 = vadd.f32 0.0, %v3418
      %3420 = vmatmul.bf16.gmra.mxu0 %v3119
      %v3421 = vpop.f32.mrf.mxu0
      %v3422 = vadd.f32 0.0, %v3421
      %v3423 = vpop.f32.mrf.mxu0
      %v3424 = vadd.f32 0.0, %v3423
      %3425 = vmatmul.bf16.gmra.mxu0 %v3122
      %v3426 = vpop.f32.mrf.mxu0
      %v3427 = vadd.f32 0.0, %v3426
      %v3428 = vpop.f32.mrf.mxu0
      %v3429 = vadd.f32 0.0, %v3428
      %3430 = vmatmul.bf16.gmra.mxu0 %v3125
      %v3431 = vpop.f32.mrf.mxu0
      %v3432 = vadd.f32 0.0, %v3431
      %v3433 = vpop.f32.mrf.mxu0
      %v3434 = vadd.f32 0.0, %v3433
      %3435 = vmatmul.bf16.gmra.mxu0 %v3128
      %v3436 = vpop.f32.mrf.mxu0
      %v3437 = vadd.f32 0.0, %v3436
      %v3438 = vpop.f32.mrf.mxu0
      %v3439 = vadd.f32 0.0, %v3438
      %3440 = vmatmul.bf16.gmra.mxu0 %v3131
      %v3441 = vpop.f32.mrf.mxu0
      %v3442 = vadd.f32 0.0, %v3441
      %v3443 = vpop.f32.mrf.mxu0
      %v3444 = vadd.f32 0.0, %v3443
      %3445 = vmatmul.bf16.gmra.mxu0 %v3134
      %v3446 = vpop.f32.mrf.mxu0
      %v3447 = vadd.f32 0.0, %v3446
      %v3448 = vpop.f32.mrf.mxu0
      %v3449 = vadd.f32 0.0, %v3448
      %3450 = vmatmul.bf16.gmra.mxu0 %v3137
      %v3451 = vpop.f32.mrf.mxu0
      %v3452 = vadd.f32 0.0, %v3451
      %v3453 = vpop.f32.mrf.mxu0
      %v3454 = vadd.f32 0.0, %v3453
      %3455 = vmatmul.bf16.gmra.mxu0 %v3140
      %v3456 = vpop.f32.mrf.mxu0
      %v3457 = vadd.f32 0.0, %v3456
      %v3458 = vpop.f32.mrf.mxu0
      %v3459 = vadd.f32 0.0, %v3458
      %3460 = vmatmul.bf16.gmra.mxu0 %v3143
      %v3461 = vpop.f32.mrf.mxu0
      %v3462 = vadd.f32 0.0, %v3461
      %v3463 = vpop.f32.mrf.mxu0
      %v3464 = vadd.f32 0.0, %v3463
      %3465 = vmatmul.bf16.gmra.mxu0 %v3146
      %v3466 = vpop.f32.mrf.mxu0
      %v3467 = vadd.f32 0.0, %v3466
      %v3468 = vpop.f32.mrf.mxu0
      %v3469 = vadd.f32 0.0, %v3468
      %3470 = vmatmul.bf16.gmra.mxu0 %v3149
      %v3471 = vpop.f32.mrf.mxu0
      %v3472 = vadd.f32 0.0, %v3471
      %v3473 = vpop.f32.mrf.mxu0
      %v3474 = vadd.f32 0.0, %v3473
      %3475 = vmatmul.bf16.gmra.mxu0 %v3152
      %v3476 = vpop.f32.mrf.mxu0
      %v3477 = vadd.f32 0.0, %v3476
      %v3478 = vpop.f32.mrf.mxu0
      %v3479 = vadd.f32 0.0, %v3478
      %3480 = vmatmul.bf16.gmra.mxu0 %v3155
      %v3481 = vpop.f32.mrf.mxu0
      %v3482 = vadd.f32 0.0, %v3481
      %v3483 = vpop.f32.mrf.mxu0
      %v3484 = vadd.f32 0.0, %v3483
      %3485 = vmatmul.bf16.gmra.mxu0 %v3158
      %v3486 = vpop.f32.mrf.mxu0
      %v3487 = vadd.f32 0.0, %v3486
      %v3488 = vpop.f32.mrf.mxu0
      %v3489 = vadd.f32 0.0, %v3488
      %3490 = vmatmul.bf16.gmra.mxu0 %v3161
      %v3491 = vpop.f32.mrf.mxu0
      %v3492 = vadd.f32 0.0, %v3491
      %v3493 = vpop.f32.mrf.mxu0
      %v3494 = vadd.f32 0.0, %v3493
      %3495 = vmatmul.bf16.gmra.mxu0 %v3164
      %v3496 = vpop.f32.mrf.mxu0
      %v3497 = vadd.f32 0.0, %v3496
      %v3498 = vpop.f32.mrf.mxu0
      %v3499 = vadd.f32 0.0, %v3498
      %3500 = vmatmul.bf16.gmra.mxu0 %v3167
      %v3501 = vpop.f32.mrf.mxu0
      %v3502 = vadd.f32 0.0, %v3501
      %v3503 = vpop.f32.mrf.mxu0
      %v3504 = vadd.f32 0.0, %v3503
      %3505 = vmatmul.bf16.gmra.mxu0 %v3170
      %v3506 = vpop.f32.mrf.mxu0
      %v3507 = vadd.f32 0.0, %v3506
      %v3508 = vpop.f32.mrf.mxu0
      %v3509 = vadd.f32 0.0, %v3508
      %3510 = vmatmul.bf16.gmra.mxu0 %v3173
      %v3511 = vpop.f32.mrf.mxu0
      %v3512 = vadd.f32 0.0, %v3511
      %v3513 = vpop.f32.mrf.mxu0
      %v3514 = vadd.f32 0.0, %v3513
      %3515 = vmatmul.bf16.gmra.mxu0 %v3176
      %v3516 = vpop.f32.mrf.mxu0
      %v3517 = vadd.f32 0.0, %v3516
      %v3518 = vpop.f32.mrf.mxu0
      %v3519 = vadd.f32 0.0, %v3518
      %3520 = vmatmul.bf16.gmra.mxu0 %v3179
      %v3521 = vpop.f32.mrf.mxu0
      %v3522 = vadd.f32 0.0, %v3521
      %v3523 = vpop.f32.mrf.mxu0
      %v3524 = vadd.f32 0.0, %v3523
      %3525 = vmatmul.bf16.gmra.mxu0 %v3182
      %v3526 = vpop.f32.mrf.mxu0
      %v3527 = vadd.f32 0.0, %v3526
      %v3528 = vpop.f32.mrf.mxu0
      %v3529 = vadd.f32 0.0, %v3528
      %3530 = vmatmul.bf16.gmra.mxu0 %v3185
      %v3531 = vpop.f32.mrf.mxu0
      %v3532 = vadd.f32 0.0, %v3531
      %v3533 = vpop.f32.mrf.mxu0
      %v3534 = vadd.f32 0.0, %v3533
      %3535 = vmatmul.bf16.gmra.mxu0 %v3188
      %v3536 = vpop.f32.mrf.mxu0
      %v3537 = vadd.f32 0.0, %v3536
      %v3538 = vpop.f32.mrf.mxu0
      %v3539 = vadd.f32 0.0, %v3538
      %3540 = vmatmul.bf16.gmra.mxu0 %v3191
      %v3541 = vpop.f32.mrf.mxu0
      %v3542 = vadd.f32 0.0, %v3541
      %v3543 = vpop.f32.mrf.mxu0
      %v3544 = vadd.f32 0.0, %v3543
      %3545 = vmatmul.bf16.gmra.mxu0 %v3194
      %v3546 = vpop.f32.mrf.mxu0
      %v3547 = vadd.f32 0.0, %v3546
      %v3548 = vpop.f32.mrf.mxu0
      %v3549 = vadd.f32 0.0, %v3548
      %3550 = vmatmul.bf16.gmra.mxu0 %v3197
      %v3551 = vpop.f32.mrf.mxu0
      %v3552 = vadd.f32 0.0, %v3551
      %v3553 = vpop.f32.mrf.mxu0
      %v3554 = vadd.f32 0.0, %v3553
      %3555 = vmatmul.bf16.gmra.mxu0 %v3200
      %v3556 = vpop.f32.mrf.mxu0
      %v3557 = vadd.f32 0.0, %v3556
      %v3558 = vpop.f32.mrf.mxu0
      %v3559 = vadd.f32 0.0, %v3558
      %3560 = vmatmul.bf16.gmra.mxu0 %v3203
      %v3561 = vpop.f32.mrf.mxu0
      %v3562 = vadd.f32 0.0, %v3561
      %v3563 = vpop.f32.mrf.mxu0
      %v3564 = vadd.f32 0.0, %v3563
      %3565 = vmatmul.bf16.gmra.mxu0 %v3206
      %v3566 = vpop.f32.mrf.mxu0
      %v3567 = vadd.f32 0.0, %v3566
      %v3568 = vpop.f32.mrf.mxu0
      %v3569 = vadd.f32 0.0, %v3568
      %3570 = vmatmul.bf16.gmra.mxu0 %v3209
      %v3571 = vpop.f32.mrf.mxu0
      %v3572 = vadd.f32 0.0, %v3571
      %v3573 = vpop.f32.mrf.mxu0
      %v3574 = vadd.f32 0.0, %v3573
      %3575 = vmatmul.bf16.gmra.mxu0 %v3212
      %v3576 = vpop.f32.mrf.mxu0
      %v3577 = vadd.f32 0.0, %v3576
      %v3578 = vpop.f32.mrf.mxu0
      %v3579 = vadd.f32 0.0, %v3578
      %3580 = vmatmul.bf16.gmra.mxu0 %v3215
      %v3581 = vpop.f32.mrf.mxu0
      %v3582 = vadd.f32 0.0, %v3581
      %v3583 = vpop.f32.mrf.mxu0
      %v3584 = vadd.f32 0.0, %v3583
      %3585 = vmatmul.bf16.gmra.mxu0 %v3218
      %v3586 = vpop.f32.mrf.mxu0
      %v3587 = vadd.f32 0.0, %v3586
      %v3588 = vpop.f32.mrf.mxu0
      %v3589 = vadd.f32 0.0, %v3588
      %3590 = vmatmul.bf16.gmra.mxu0 %v3221
      %v3591 = vpop.f32.mrf.mxu0
      %v3592 = vadd.f32 0.0, %v3591
      %v3593 = vpop.f32.mrf.mxu0
      %v3594 = vadd.f32 0.0, %v3593
      %3595 = vmatmul.bf16.gmra.mxu0 %v3224
      %v3596 = vpop.f32.mrf.mxu0
      %v3597 = vadd.f32 0.0, %v3596
      %v3598 = vpop.f32.mrf.mxu0
      %v3599 = vadd.f32 0.0, %v3598
      %3600 = vmatmul.bf16.gmra.mxu0 %v3227
      %v3601 = vpop.f32.mrf.mxu0
      %v3602 = vadd.f32 0.0, %v3601
      %v3603 = vpop.f32.mrf.mxu0
      %3604 = vdwg.mxu0
      %v3605 = vadd.f32 %v2645, %v3242
      %v3606 = vadd.f32 %v2646, %v3244
      %v3607 = vadd.f32 %v2647, %v3247
      %v3608 = vadd.f32 %v2648, %v3249
      %v3609 = vadd.f32 %v2649, %v3252
      %v3610 = vadd.f32 %v2650, %v3254
      %v3611 = vadd.f32 %v2651, %v3257
      %v3612 = vadd.f32 %v2652, %v3259
      %v3613 = vadd.f32 %v2653, %v3262
      %v3614 = vadd.f32 %v2654, %v3264
      %v3615 = vadd.f32 %v2655, %v3267
      %v3616 = vadd.f32 %v2656, %v3269
      %v3617 = vadd.f32 %v2657, %v3272
      %v3618 = vadd.f32 %v2658, %v3274
      %v3619 = vadd.f32 %v2659, %v3277
      %v3620 = vadd.f32 %v2660, %v3279
      %v3621 = vadd.f32 %v2661, %v3282
      %v3622 = vadd.f32 %v2662, %v3284
      %v3623 = vadd.f32 %v2663, %v3287
      %v3624 = vadd.f32 %v2664, %v3289
      %v3625 = vadd.f32 %v2665, %v3292
      %v3626 = vadd.f32 %v2666, %v3294
      %v3627 = vadd.f32 %v2667, %v3297
      %v3628 = vadd.f32 %v2668, %v3299
      %v3629 = vadd.f32 %v2669, %v3302
      %v3630 = vadd.f32 %v2670, %v3304
      %v3631 = vadd.f32 %v2671, %v3307
      %v3632 = vadd.f32 %v2672, %v3309
      %v3633 = vadd.f32 %v2673, %v3312
      %v3634 = vadd.f32 %v2674, %v3314
      %v3635 = vadd.f32 %v2675, %v3317
      %v3636 = vadd.f32 %v2676, %v3319
      %v3637 = vadd.f32 %v2677, %v3322
      %v3638 = vadd.f32 %v2678, %v3324
      %v3639 = vadd.f32 %v2679, %v3327
      %v3640 = vadd.f32 %v2680, %v3329
      %v3641 = vadd.f32 %v2681, %v3332
      %v3642 = vadd.f32 %v2682, %v3334
      %v3643 = vadd.f32 %v2683, %v3337
      %v3644 = vadd.f32 %v2684, %v3339
      %v3645 = vadd.f32 %v2685, %v3342
      %v3646 = vadd.f32 %v2686, %v3344
      %v3647 = vadd.f32 %v2687, %v3347
      %v3648 = vadd.f32 %v2688, %v3349
      %v3649 = vadd.f32 %v2689, %v3352
      %v3650 = vadd.f32 %v2690, %v3354
      %v3651 = vadd.f32 %v2691, %v3357
      %v3652 = vadd.f32 %v2692, %v3359
      %v3653 = vadd.f32 %v2693, %v3362
      %v3654 = vadd.f32 %v2694, %v3364
      %v3655 = vadd.f32 %v2695, %v3367
      %v3656 = vadd.f32 %v2696, %v3369
      %v3657 = vadd.f32 %v2697, %v3372
      %v3658 = vadd.f32 %v2698, %v3374
      %v3659 = vadd.f32 %v2699, %v3377
      %v3660 = vadd.f32 %v2700, %v3379
      %v3661 = vadd.f32 %v2701, %v3382
      %v3662 = vadd.f32 %v2702, %v3384
      %v3663 = vadd.f32 %v2703, %v3387
      %v3664 = vadd.f32 %v2704, %v3389
      %v3665 = vadd.f32 %v2705, %v3392
      %v3666 = vadd.f32 %v2706, %v3394
      %v3667 = vadd.f32 %v2707, %v3397
      %v3668 = vadd.f32 %v2708, %v3399
      %v3669 = vadd.f32 %v2709, %v3402
      %v3670 = vadd.f32 %v2710, %v3404
      %v3671 = vadd.f32 %v2711, %v3407
      %v3672 = vadd.f32 %v2712, %v3409
      %v3673 = vadd.f32 %v2713, %v3412
      %v3674 = vadd.f32 %v2714, %v3414
      %v3675 = vadd.f32 %v2715, %v3417
      %v3676 = vadd.f32 %v2716, %v3419
      %v3677 = vadd.f32 %v2717, %v3422
      %v3678 = vadd.f32 %v2718, %v3424
      %v3679 = vadd.f32 %v2719, %v3427
      %v3680 = vadd.f32 %v2720, %v3429
      %v3681 = vadd.f32 %v2721, %v3432
      %v3682 = vadd.f32 %v2722, %v3434
      %v3683 = vadd.f32 %v2723, %v3437
      %v3684 = vadd.f32 %v2724, %v3439
      %v3685 = vadd.f32 %v2725, %v3442
      %v3686 = vadd.f32 %v2726, %v3444
      %v3687 = vadd.f32 %v2727, %v3447
      %v3688 = vadd.f32 %v2728, %v3449
      %v3689 = vadd.f32 %v2729, %v3452
      %v3690 = vadd.f32 %v2730, %v3454
      %v3691 = vadd.f32 %v2731, %v3457
      %v3692 = vadd.f32 %v2732, %v3459
      %v3693 = vadd.f32 %v2733, %v3462
      %v3694 = vadd.f32 %v2734, %v3464
      %v3695 = vadd.f32 %v2735, %v3467
      %v3696 = vadd.f32 %v2736, %v3469
      %v3697 = vadd.f32 %v2737, %v3472
      %v3698 = vadd.f32 %v2738, %v3474
      %v3699 = vadd.f32 %v2739, %v3477
      %v3700 = vadd.f32 %v2740, %v3479
      %v3701 = vadd.f32 %v2741, %v3482
      %v3702 = vadd.f32 %v2742, %v3484
      %v3703 = vadd.f32 %v2743, %v3487
      %v3704 = vadd.f32 %v2744, %v3489
      %v3705 = vadd.f32 %v2745, %v3492
      %v3706 = vadd.f32 %v2746, %v3494
      %v3707 = vadd.f32 %v2747, %v3497
      %v3708 = vadd.f32 %v2748, %v3499
      %v3709 = vadd.f32 %v2749, %v3502
      %v3710 = vadd.f32 %v2750, %v3504
      %v3711 = vadd.f32 %v2751, %v3507
      %v3712 = vadd.f32 %v2752, %v3509
      %v3713 = vadd.f32 %v2753, %v3512
      %v3714 = vadd.f32 %v2754, %v3514
      %v3715 = vadd.f32 %v2755, %v3517
      %v3716 = vadd.f32 %v2756, %v3519
      %v3717 = vadd.f32 %v2757, %v3522
      %v3718 = vadd.f32 %v2758, %v3524
      %v3719 = vadd.f32 %v2759, %v3527
      %v3720 = vadd.f32 %v2760, %v3529
      %v3721 = vadd.f32 %v2761, %v3532
      %v3722 = vadd.f32 %v2762, %v3534
      %v3723 = vadd.f32 %v2763, %v3537
      %v3724 = vadd.f32 %v2764, %v3539
      %v3725 = vadd.f32 %v2765, %v3542
      %v3726 = vadd.f32 %v2766, %v3544
      %v3727 = vadd.f32 %v2767, %v3547
      %v3728 = vadd.f32 %v2768, %v3549
      %v3729 = vadd.f32 %v2769, %v3552
      %v3730 = vadd.f32 %v2770, %v3554
      %v3731 = vadd.f32 %v2771, %v3557
      %v3732 = vadd.f32 %v2772, %v3559
      %v3733 = vadd.f32 %v2773, %v3562
      %v3734 = vadd.f32 %v2774, %v3564
      %v3735 = vadd.f32 %v2775, %v3567
      %v3736 = vadd.f32 %v2776, %v3569
      %v3737 = vadd.f32 %v2777, %v3572
      %v3738 = vadd.f32 %v2778, %v3574
      %v3739 = vadd.f32 %v2779, %v3577
      %v3740 = vadd.f32 %v2780, %v3579
      %v3741 = vadd.f32 %v2781, %v3582
      %v3742 = vadd.f32 %v2782, %v3584
      %v3743 = vadd.f32 %v2783, %v3587
      %v3744 = vadd.f32 %v2784, %v3589
      %v3745 = vadd.f32 %v2785, %v3592
      %v3746 = vadd.f32 %v2786, %v3594
      %v3747 = vadd.f32 %v2787, %v3597
      %v3748 = vadd.f32 %v2788, %v3599
      %v3749 = vadd.f32 %v2789, %v3602
      %v3750 = vld [vmem:[%s192 + $0x23] sm:$0xff]
      %v3751 = vld [vmem:[%s192 + $0x2b] sm:$0xff]
      %v3752 = vld [vmem:[%s192 + $0x33] sm:$0xff]
      %v3753 = vld [vmem:[%s192 + $0x3b] sm:$0xff]
      %v3754 = vld [vmem:[%s192 + $0x43] sm:$0xff]
      %v3755 = vld [vmem:[%s192 + $0x4b] sm:$0xff]
      %v3756 = vld [vmem:[%s192 + $0x53] sm:$0xff]
      %v3757 = vld [vmem:[%s192 + $0x5b] sm:$0xff]
      %v3758 = vld [vmem:[%s192 + $0x63] sm:$0xff]
      %v3759 = vld [vmem:[%s192 + $0x6b] sm:$0xff]
      %v3760 = vld [vmem:[%s192 + $0x73] sm:$0xff]
      %v3761 = vld [vmem:[%s192 + $0x7b] sm:$0xff]
      %v3762 = vld [vmem:[%s192 + $0x83] sm:$0xff]
      %v3763 = vld [vmem:[%s192 + $0x8b] sm:$0xff]
      %v3764 = vld [vmem:[%s192 + $0x93] sm:$0xff]
      %v3765 = vld [vmem:[%s192 + $0x9b] sm:$0xff]
      %v3766 = vld [vmem:[%s192 + $0xa3] sm:$0xff]
      %v3767 = vld [vmem:[%s192 + $0xab] sm:$0xff]
      %v3768 = vld [vmem:[%s192 + $0xb3] sm:$0xff]
      %v3769 = vld [vmem:[%s192 + $0xbb] sm:$0xff]
      %v3770 = vld [vmem:[%s192 + $0xc3] sm:$0xff]
      %v3771 = vld [vmem:[%s192 + $0xcb] sm:$0xff]
      %v3772 = vld [vmem:[%s192 + $0xd3] sm:$0xff]
      %v3773 = vld [vmem:[%s192 + $0xdb] sm:$0xff]
      %v3774 = vld [vmem:[%s192 + $0xe3] sm:$0xff]
      %v3775 = vld [vmem:[%s192 + $0xeb] sm:$0xff]
      %v3776 = vld [vmem:[%s192 + $0xf3] sm:$0xff]
      %v3777 = vld [vmem:[%s192 + $0xfb] sm:$0xff]
      %v3778 = vld [vmem:[%s192 + $0x103] sm:$0xff]
      %v3779 = vld [vmem:[%s192 + $0x10b] sm:$0xff]
      %v3780 = vld [vmem:[%s192 + $0x113] sm:$0xff]
      %v3781 = vld [vmem:[%s192 + $0x11b] sm:$0xff]
      %v3782 = vld [vmem:[%s192 + $0x123] sm:$0xff]
      %v3783 = vld [vmem:[%s192 + $0x12b] sm:$0xff]
      %v3784 = vld [vmem:[%s192 + $0x133] sm:$0xff]
      %v3785 = vld [vmem:[%s192 + $0x13b] sm:$0xff]
      %v3786 = vld [vmem:[%s192 + $0x143] sm:$0xff]
      %v3787 = vld [vmem:[%s192 + $0x14b] sm:$0xff]
      %v3788 = vld [vmem:[%s192 + $0x153] sm:$0xff]
      %v3789 = vld [vmem:[%s192 + $0x15b] sm:$0xff]
      %v3790 = vld [vmem:[%s192 + $0x163] sm:$0xff]
      %v3791 = vld [vmem:[%s192 + $0x16b] sm:$0xff]
      %v3792 = vld [vmem:[%s192 + $0x173] sm:$0xff]
      %v3793 = vld [vmem:[%s192 + $0x17b] sm:$0xff]
      %v3794 = vld [vmem:[%s192 + $0x183] sm:$0xff]
      %v3795 = vld [vmem:[%s192 + $0x18b] sm:$0xff]
      %v3796 = vld [vmem:[%s192 + $0x193] sm:$0xff]
      %v3797 = vld [vmem:[%s192 + $0x19b] sm:$0xff]
      %v3798 = vld [vmem:[%s192 + $0x1a3] sm:$0xff]
      %v3799 = vld [vmem:[%s192 + $0x1ab] sm:$0xff]
      %v3800 = vld [vmem:[%s192 + $0x1b3] sm:$0xff]
      %v3801 = vld [vmem:[%s192 + $0x1bb] sm:$0xff]
      %v3802 = vld [vmem:[%s192 + $0x1c3] sm:$0xff]
      %v3803 = vld [vmem:[%s192 + $0x1cb] sm:$0xff]
      %v3804 = vld [vmem:[%s192 + $0x1d3] sm:$0xff]
      %v3805 = vld [vmem:[%s192 + $0x1db] sm:$0xff]
      %v3806 = vld [vmem:[%s192 + $0x1e3] sm:$0xff]
      %v3807 = vld [vmem:[%s192 + $0x1eb] sm:$0xff]
      %v3808 = vld [vmem:[%s192 + $0x1f3] sm:$0xff]
      %v3809 = vld [vmem:[%s192 + $0x1fb] sm:$0xff]
      %v3810 = vld [vmem:[%s192 + $0x203] sm:$0xff]
      %v3811 = vld [vmem:[%s192 + $0x20b] sm:$0xff]
      %v3812 = vld [vmem:[%s192 + $0x213] sm:$0xff]
      %v3813 = vld [vmem:[%s192 + $0x21b] sm:$0xff]
      %v3814 = vld [vmem:[%s192 + $0x223] sm:$0xff]
      %v3815 = vld [vmem:[%s192 + $0x22b] sm:$0xff]
      %v3816 = vld [vmem:[%s192 + $0x233] sm:$0xff]
      %v3817 = vld [vmem:[%s192 + $0x23b] sm:$0xff]
      %v3818 = vld [vmem:[%s192 + $0x243] sm:$0xff]
      %v3819 = vld [vmem:[%s192 + $0x24b] sm:$0xff]
      %v3820 = vld [vmem:[%s192 + $0x253] sm:$0xff]
      %v3821 = vld [vmem:[%s192 + $0x25b] sm:$0xff]
      %v3822 = vld [vmem:[%s192 + $0x263] sm:$0xff]
      %v3823 = vld [vmem:[%s192 + $0x26b] sm:$0xff]
      %v3824 = vld [vmem:[%s192 + $0x273] sm:$0xff]
      %v3825 = vld [vmem:[%s192 + $0x27b] sm:$0xff]
      %v3826 = vld [vmem:[%s192 + $0x283] sm:$0xff]
      %v3827 = vld [vmem:[%s192 + $0x28b] sm:$0xff]
      %v3828 = vld [vmem:[%s192 + $0x293] sm:$0xff]
      %v3829 = vld [vmem:[%s192 + $0x29b] sm:$0xff]
      %v3830 = vld [vmem:[%s192 + $0x2a3] sm:$0xff]
      %v3831 = vld [vmem:[%s192 + $0x2ab] sm:$0xff]
      %v3832 = vld [vmem:[%s192 + $0x2b3] sm:$0xff]
      %v3833 = vld [vmem:[%s192 + $0x2bb] sm:$0xff]
      %v3834 = vld [vmem:[%s192 + $0x2c3] sm:$0xff]
      %v3835 = vld [vmem:[%s192 + $0x2cb] sm:$0xff]
      %v3836 = vld [vmem:[%s192 + $0x2d3] sm:$0xff]
      %v3837 = vld [vmem:[%s192 + $0x2db] sm:$0xff]
      %v3838 = vld [vmem:[%s192 + $0x2e3] sm:$0xff]
      %v3839 = vld [vmem:[%s192 + $0x2eb] sm:$0xff]
      %v3840 = vld [vmem:[%s192 + $0x2f3] sm:$0xff]
      %v3841 = vld [vmem:[%s192 + $0x2fb] sm:$0xff]
      %v3842 = vld [vmem:[%s192 + $0x303] sm:$0xff]
      %v3843 = vld [vmem:[%s192 + $0x30b] sm:$0xff]
      %v3844 = vld [vmem:[%s192 + $0x313] sm:$0xff]
      %v3845 = vld [vmem:[%s192 + $0x31b] sm:$0xff]
      %v3846 = vld [vmem:[%s192 + $0x323] sm:$0xff]
      %v3847 = vld [vmem:[%s192 + $0x32b] sm:$0xff]
      %v3848 = vld [vmem:[%s192 + $0x333] sm:$0xff]
      %v3849 = vld [vmem:[%s192 + $0x33b] sm:$0xff]
      %v3850 = vld [vmem:[%s192 + $0x343] sm:$0xff]
      %v3851 = vld [vmem:[%s192 + $0x34b] sm:$0xff]
      %v3852 = vld [vmem:[%s192 + $0x353] sm:$0xff]
      %v3853 = vld [vmem:[%s192 + $0x35b] sm:$0xff]
      %v3854 = vld [vmem:[%s192 + $0x363] sm:$0xff]
      %v3855 = vld [vmem:[%s192 + $0x36b] sm:$0xff]
      %v3856 = vld [vmem:[%s192 + $0x373] sm:$0xff]
      %v3857 = vld [vmem:[%s192 + $0x37b] sm:$0xff]
      %v3858 = vld [vmem:[%s192 + $0x383] sm:$0xff]
      %v3859 = vld [vmem:[%s192 + $0x38b] sm:$0xff]
      %v3860 = vld [vmem:[%s192 + $0x393] sm:$0xff]
      %v3861 = vld [vmem:[%s192 + $0x39b] sm:$0xff]
      %v3862 = vld [vmem:[%s192 + $0x3a3] sm:$0xff]
      %v3863 = vld [vmem:[%s192 + $0x3ab] sm:$0xff]
      %v3864 = vld [vmem:[%s192 + $0x3b3] sm:$0xff]
      %v3865 = vld [vmem:[%s192 + $0x3bb] sm:$0xff]
      %v3866 = vld [vmem:[%s192 + $0x3c3] sm:$0xff]
      %v3867 = vld [vmem:[%s192 + $0x3cb] sm:$0xff]
      %v3868 = vld [vmem:[%s192 + $0x3d3] sm:$0xff]
      %v3869 = vld [vmem:[%s192 + $0x3db] sm:$0xff]
      %v3870 = vld [vmem:[%s192 + $0x3e3] sm:$0xff]
      %v3871 = vld [vmem:[%s192 + $0x3eb] sm:$0xff]
      %v3872 = vld [vmem:[%s192 + $0x3f3] sm:$0xff]
      %v3873 = vld [vmem:[%s192 + $0x3fb] sm:$0xff]
      %v3874 = vld [vmem:[%s192 + $0x403] sm:$0xff]
      %v3875 = vld [vmem:[%s192 + $0x40b] sm:$0xff]
      %v3876 = vld [vmem:[%s192 + $0x413] sm:$0xff]
      %v3877 = vld [vmem:[%s192 + $0x41b] sm:$0xff]
      %v3878 = vld [vmem:[%s192 + $0x423] sm:$0xff]
      %v3879 = vld [vmem:[%s192 + $0x42b] sm:$0xff]
      %v3880 = vld [vmem:[%s192 + $0x433] sm:$0xff]
      %v3881 = vld [vmem:[%s192 + $0x43b] sm:$0xff]
      %v3882 = vld [vmem:[%s192 + $0x443] sm:$0xff]
      %v3883 = vld [vmem:[%s192 + $0x44b] sm:$0xff]
      %v3884 = vld [vmem:[%s192 + $0x453] sm:$0xff]
      %v3885 = vld [vmem:[%s192 + $0x45b] sm:$0xff]
      %v3886 = vld [vmem:[%s192 + $0x463] sm:$0xff]
      %v3887 = vld [vmem:[%s192 + $0x46b] sm:$0xff]
      %v3888 = vld [vmem:[%s192 + $0x473] sm:$0xff]
      %v3889 = vld [vmem:[%s192 + $0x47b] sm:$0xff]
      %v3890 = vld [vmem:[%s192 + $0x483] sm:$0xff]
      %v3891 = vld [vmem:[%s192 + $0x48b] sm:$0xff]
      %v3892 = vld [vmem:[%s192 + $0x493] sm:$0xff]
      %v3893 = vld [vmem:[%s192 + $0x49b] sm:$0xff]
      %v3894 = vld [vmem:[%s192 + $0x4a3] sm:$0xf]
      %v3895 = vpack.c.bf16 %v3751, %v3750
      %v3896 = vpack.c.bf16 %v3753, %v3752
      %v3897 = vpack.c.bf16 %v3755, %v3754
      %v3898 = vpack.c.bf16 %v3757, %v3756
      %v3899 = vpack.c.bf16 %v3759, %v3758
      %v3900 = vpack.c.bf16 %v3761, %v3760
      %v3901 = vpack.c.bf16 %v3763, %v3762
      %v3902 = vpack.c.bf16 %v3765, %v3764
      %v3903 = vpack.c.bf16 %v3767, %v3766
      %v3904 = vpack.c.bf16 %v3769, %v3768
      %v3905 = vpack.c.bf16 %v3771, %v3770
      %v3906 = vpack.c.bf16 %v3773, %v3772
      %v3907 = vpack.c.bf16 %v3775, %v3774
      %v3908 = vpack.c.bf16 %v3777, %v3776
      %v3909 = vpack.c.bf16 %v3779, %v3778
      %v3910 = vpack.c.bf16 %v3781, %v3780
      %v3911 = vpack.c.bf16 %v3783, %v3782
      %v3912 = vpack.c.bf16 %v3785, %v3784
      %v3913 = vpack.c.bf16 %v3787, %v3786
      %v3914 = vpack.c.bf16 %v3789, %v3788
      %v3915 = vpack.c.bf16 %v3791, %v3790
      %v3916 = vpack.c.bf16 %v3793, %v3792
      %v3917 = vpack.c.bf16 %v3795, %v3794
      %v3918 = vpack.c.bf16 %v3797, %v3796
      %v3919 = vpack.c.bf16 %v3799, %v3798
      %v3920 = vpack.c.bf16 %v3801, %v3800
      %v3921 = vpack.c.bf16 %v3803, %v3802
      %v3922 = vpack.c.bf16 %v3805, %v3804
      %v3923 = vpack.c.bf16 %v3807, %v3806
      %v3924 = vpack.c.bf16 %v3809, %v3808
      %v3925 = vpack.c.bf16 %v3811, %v3810
      %v3926 = vpack.c.bf16 %v3813, %v3812
      %v3927 = vpack.c.bf16 %v3815, %v3814
      %v3928 = vpack.c.bf16 %v3817, %v3816
      %v3929 = vpack.c.bf16 %v3819, %v3818
      %v3930 = vpack.c.bf16 %v3821, %v3820
      %v3931 = vpack.c.bf16 %v3823, %v3822
      %v3932 = vpack.c.bf16 %v3825, %v3824
      %v3933 = vpack.c.bf16 %v3827, %v3826
      %v3934 = vpack.c.bf16 %v3829, %v3828
      %v3935 = vpack.c.bf16 %v3831, %v3830
      %v3936 = vpack.c.bf16 %v3833, %v3832
      %v3937 = vpack.c.bf16 %v3835, %v3834
      %v3938 = vpack.c.bf16 %v3837, %v3836
      %v3939 = vpack.c.bf16 %v3839, %v3838
      %v3940 = vpack.c.bf16 %v3841, %v3840
      %v3941 = vpack.c.bf16 %v3843, %v3842
      %v3942 = vpack.c.bf16 %v3845, %v3844
      %v3943 = vpack.c.bf16 %v3847, %v3846
      %v3944 = vpack.c.bf16 %v3849, %v3848
      %v3945 = vpack.c.bf16 %v3851, %v3850
      %v3946 = vpack.c.bf16 %v3853, %v3852
      %v3947 = vpack.c.bf16 %v3855, %v3854
      %v3948 = vpack.c.bf16 %v3857, %v3856
      %v3949 = vpack.c.bf16 %v3859, %v3858
      %v3950 = vpack.c.bf16 %v3861, %v3860
      %v3951 = vpack.c.bf16 %v3863, %v3862
      %v3952 = vpack.c.bf16 %v3865, %v3864
      %v3953 = vpack.c.bf16 %v3867, %v3866
      %v3954 = vpack.c.bf16 %v3869, %v3868
      %v3955 = vpack.c.bf16 %v3871, %v3870
      %v3956 = vpack.c.bf16 %v3873, %v3872
      %v3957 = vpack.c.bf16 %v3875, %v3874
      %v3958 = vpack.c.bf16 %v3877, %v3876
      %v3959 = vpack.c.bf16 %v3879, %v3878
      %v3960 = vpack.c.bf16 %v3881, %v3880
      %v3961 = vpack.c.bf16 %v3883, %v3882
      %v3962 = vpack.c.bf16 %v3885, %v3884
      %v3963 = vpack.c.bf16 %v3887, %v3886
      %v3964 = vpack.c.bf16 %v3889, %v3888
      %v3965 = vpack.c.bf16 %v3891, %v3890
      %v3966 = vpack.c.bf16 %v3893, %v3892
      %v3967 = vpack.c.bf16 %v3894, %v3894
      %s3968 = scalar_lea.vmem %s1, 16
      %v3969 = vld [vmem:[%s3968] sm:$0xf]
      %v3971 = vsel %vm638, %v3895, 0
      %v3974 = vsel %vm638, %v3896, 0
      %v3977 = vsel %vm638, %v3897, 0
      %v3980 = vsel %vm638, %v3898, 0
      %v3983 = vsel %vm638, %v3899, 0
      %v3986 = vsel %vm638, %v3900, 0
      %v3989 = vsel %vm638, %v3901, 0
      %v3992 = vsel %vm638, %v3902, 0
      %v3995 = vsel %vm638, %v3903, 0
      %v3998 = vsel %vm638, %v3904, 0
      %v4001 = vsel %vm638, %v3905, 0
      %v4004 = vsel %vm638, %v3906, 0
      %v4007 = vsel %vm638, %v3907, 0
      %v4010 = vsel %vm638, %v3908, 0
      %v4013 = vsel %vm638, %v3909, 0
      %v4016 = vsel %vm638, %v3910, 0
      %v4019 = vsel %vm638, %v3911, 0
      %v4022 = vsel %vm638, %v3912, 0
      %v4025 = vsel %vm638, %v3913, 0
      %v4028 = vsel %vm638, %v3914, 0
      %v4031 = vsel %vm638, %v3915, 0
      %v4034 = vsel %vm638, %v3916, 0
      %v4037 = vsel %vm638, %v3917, 0
      %v4040 = vsel %vm638, %v3918, 0
      %v4043 = vsel %vm638, %v3919, 0
      %v4046 = vsel %vm638, %v3920, 0
      %v4049 = vsel %vm638, %v3921, 0
      %v4052 = vsel %vm638, %v3922, 0
      %v4055 = vsel %vm638, %v3923, 0
      %v4058 = vsel %vm638, %v3924, 0
      %v4061 = vsel %vm638, %v3925, 0
      %v4064 = vsel %vm638, %v3926, 0
      %v4067 = vsel %vm638, %v3927, 0
      %v4070 = vsel %vm638, %v3928, 0
      %v4073 = vsel %vm638, %v3929, 0
      %v4076 = vsel %vm638, %v3930, 0
      %v4079 = vsel %vm638, %v3931, 0
      %v4082 = vsel %vm638, %v3932, 0
      %v4085 = vsel %vm638, %v3933, 0
      %v4088 = vsel %vm638, %v3934, 0
      %v4091 = vsel %vm638, %v3935, 0
      %v4094 = vsel %vm638, %v3936, 0
      %v4097 = vsel %vm638, %v3937, 0
      %v4100 = vsel %vm638, %v3938, 0
      %v4103 = vsel %vm638, %v3939, 0
      %v4106 = vsel %vm638, %v3940, 0
      %v4109 = vsel %vm638, %v3941, 0
      %v4112 = vsel %vm638, %v3942, 0
      %v4115 = vsel %vm638, %v3943, 0
      %v4118 = vsel %vm638, %v3944, 0
      %v4121 = vsel %vm638, %v3945, 0
      %v4124 = vsel %vm638, %v3946, 0
      %v4127 = vsel %vm638, %v3947, 0
      %v4130 = vsel %vm638, %v3948, 0
      %v4133 = vsel %vm638, %v3949, 0
      %v4136 = vsel %vm638, %v3950, 0
      %v4139 = vsel %vm638, %v3951, 0
      %v4142 = vsel %vm638, %v3952, 0
      %v4145 = vsel %vm638, %v3953, 0
      %v4148 = vsel %vm638, %v3954, 0
      %v4151 = vsel %vm638, %v3955, 0
      %v4154 = vsel %vm638, %v3956, 0
      %v4157 = vsel %vm638, %v3957, 0
      %v4160 = vsel %vm638, %v3958, 0
      %v4163 = vsel %vm638, %v3959, 0
      %v4166 = vsel %vm638, %v3960, 0
      %v4169 = vsel %vm638, %v3961, 0
      %v4172 = vsel %vm638, %v3962, 0
      %v4175 = vsel %vm638, %v3963, 0
      %v4178 = vsel %vm638, %v3964, 0
      %v4181 = vsel %vm638, %v3965, 0
      %v4184 = vsel %vm638, %v3966, 0
      %v4187 = vsel %vm638, %v3967, 0
      %v4190 = vsel %vm858, %v3969, 0
      %4192 = vmatpush.bf16.msra.mxu0 0
      %4193 = vmatpush.bf16.msra.mxu0 0
      %4194 = vmatpush.bf16.msra.mxu0 0
      %4195 = vmatpush.bf16.msra.mxu0 0
      %4196 = vmatpush.bf16.msra.mxu0 0
      %4197 = vmatpush.bf16.msra.mxu0 0
      %4198 = vmatpush.bf16.msra.mxu0 0
      %4199 = vmatpush.bf16.msra.mxu0 %v4190
      %4200 = vmatmul.bf16.gmra.mxu0 %v3971
      %v4201 = vpop.f32.mrf.mxu0
      %v4202 = vadd.f32 0.0, %v4201
      %v4203 = vpop.f32.mrf.mxu0
      %v4204 = vadd.f32 0.0, %v4203
      %4205 = vmatmul.bf16.gmra.mxu0 %v3974
      %v4206 = vpop.f32.mrf.mxu0
      %v4207 = vadd.f32 0.0, %v4206
      %v4208 = vpop.f32.mrf.mxu0
      %v4209 = vadd.f32 0.0, %v4208
      %4210 = vmatmul.bf16.gmra.mxu0 %v3977
      %v4211 = vpop.f32.mrf.mxu0
      %v4212 = vadd.f32 0.0, %v4211
      %v4213 = vpop.f32.mrf.mxu0
      %v4214 = vadd.f32 0.0, %v4213
      %4215 = vmatmul.bf16.gmra.mxu0 %v3980
      %v4216 = vpop.f32.mrf.mxu0
      %v4217 = vadd.f32 0.0, %v4216
      %v4218 = vpop.f32.mrf.mxu0
      %v4219 = vadd.f32 0.0, %v4218
      %4220 = vmatmul.bf16.gmra.mxu0 %v3983
      %v4221 = vpop.f32.mrf.mxu0
      %v4222 = vadd.f32 0.0, %v4221
      %v4223 = vpop.f32.mrf.mxu0
      %v4224 = vadd.f32 0.0, %v4223
      %4225 = vmatmul.bf16.gmra.mxu0 %v3986
      %v4226 = vpop.f32.mrf.mxu0
      %v4227 = vadd.f32 0.0, %v4226
      %v4228 = vpop.f32.mrf.mxu0
      %v4229 = vadd.f32 0.0, %v4228
      %4230 = vmatmul.bf16.gmra.mxu0 %v3989
      %v4231 = vpop.f32.mrf.mxu0
      %v4232 = vadd.f32 0.0, %v4231
      %v4233 = vpop.f32.mrf.mxu0
      %v4234 = vadd.f32 0.0, %v4233
      %4235 = vmatmul.bf16.gmra.mxu0 %v3992
      %v4236 = vpop.f32.mrf.mxu0
      %v4237 = vadd.f32 0.0, %v4236
      %v4238 = vpop.f32.mrf.mxu0
      %v4239 = vadd.f32 0.0, %v4238
      %4240 = vmatmul.bf16.gmra.mxu0 %v3995
      %v4241 = vpop.f32.mrf.mxu0
      %v4242 = vadd.f32 0.0, %v4241
      %v4243 = vpop.f32.mrf.mxu0
      %v4244 = vadd.f32 0.0, %v4243
      %4245 = vmatmul.bf16.gmra.mxu0 %v3998
      %v4246 = vpop.f32.mrf.mxu0
      %v4247 = vadd.f32 0.0, %v4246
      %v4248 = vpop.f32.mrf.mxu0
      %v4249 = vadd.f32 0.0, %v4248
      %4250 = vmatmul.bf16.gmra.mxu0 %v4001
      %v4251 = vpop.f32.mrf.mxu0
      %v4252 = vadd.f32 0.0, %v4251
      %v4253 = vpop.f32.mrf.mxu0
      %v4254 = vadd.f32 0.0, %v4253
      %4255 = vmatmul.bf16.gmra.mxu0 %v4004
      %v4256 = vpop.f32.mrf.mxu0
      %v4257 = vadd.f32 0.0, %v4256
      %v4258 = vpop.f32.mrf.mxu0
      %v4259 = vadd.f32 0.0, %v4258
      %4260 = vmatmul.bf16.gmra.mxu0 %v4007
      %v4261 = vpop.f32.mrf.mxu0
      %v4262 = vadd.f32 0.0, %v4261
      %v4263 = vpop.f32.mrf.mxu0
      %v4264 = vadd.f32 0.0, %v4263
      %4265 = vmatmul.bf16.gmra.mxu0 %v4010
      %v4266 = vpop.f32.mrf.mxu0
      %v4267 = vadd.f32 0.0, %v4266
      %v4268 = vpop.f32.mrf.mxu0
      %v4269 = vadd.f32 0.0, %v4268
      %4270 = vmatmul.bf16.gmra.mxu0 %v4013
      %v4271 = vpop.f32.mrf.mxu0
      %v4272 = vadd.f32 0.0, %v4271
      %v4273 = vpop.f32.mrf.mxu0
      %v4274 = vadd.f32 0.0, %v4273
      %4275 = vmatmul.bf16.gmra.mxu0 %v4016
      %v4276 = vpop.f32.mrf.mxu0
      %v4277 = vadd.f32 0.0, %v4276
      %v4278 = vpop.f32.mrf.mxu0
      %v4279 = vadd.f32 0.0, %v4278
      %4280 = vmatmul.bf16.gmra.mxu0 %v4019
      %v4281 = vpop.f32.mrf.mxu0
      %v4282 = vadd.f32 0.0, %v4281
      %v4283 = vpop.f32.mrf.mxu0
      %v4284 = vadd.f32 0.0, %v4283
      %4285 = vmatmul.bf16.gmra.mxu0 %v4022
      %v4286 = vpop.f32.mrf.mxu0
      %v4287 = vadd.f32 0.0, %v4286
      %v4288 = vpop.f32.mrf.mxu0
      %v4289 = vadd.f32 0.0, %v4288
      %4290 = vmatmul.bf16.gmra.mxu0 %v4025
      %v4291 = vpop.f32.mrf.mxu0
      %v4292 = vadd.f32 0.0, %v4291
      %v4293 = vpop.f32.mrf.mxu0
      %v4294 = vadd.f32 0.0, %v4293
      %4295 = vmatmul.bf16.gmra.mxu0 %v4028
      %v4296 = vpop.f32.mrf.mxu0
      %v4297 = vadd.f32 0.0, %v4296
      %v4298 = vpop.f32.mrf.mxu0
      %v4299 = vadd.f32 0.0, %v4298
      %4300 = vmatmul.bf16.gmra.mxu0 %v4031
      %v4301 = vpop.f32.mrf.mxu0
      %v4302 = vadd.f32 0.0, %v4301
      %v4303 = vpop.f32.mrf.mxu0
      %v4304 = vadd.f32 0.0, %v4303
      %4305 = vmatmul.bf16.gmra.mxu0 %v4034
      %v4306 = vpop.f32.mrf.mxu0
      %v4307 = vadd.f32 0.0, %v4306
      %v4308 = vpop.f32.mrf.mxu0
      %v4309 = vadd.f32 0.0, %v4308
      %4310 = vmatmul.bf16.gmra.mxu0 %v4037
      %v4311 = vpop.f32.mrf.mxu0
      %v4312 = vadd.f32 0.0, %v4311
      %v4313 = vpop.f32.mrf.mxu0
      %v4314 = vadd.f32 0.0, %v4313
      %4315 = vmatmul.bf16.gmra.mxu0 %v4040
      %v4316 = vpop.f32.mrf.mxu0
      %v4317 = vadd.f32 0.0, %v4316
      %v4318 = vpop.f32.mrf.mxu0
      %v4319 = vadd.f32 0.0, %v4318
      %4320 = vmatmul.bf16.gmra.mxu0 %v4043
      %v4321 = vpop.f32.mrf.mxu0
      %v4322 = vadd.f32 0.0, %v4321
      %v4323 = vpop.f32.mrf.mxu0
      %v4324 = vadd.f32 0.0, %v4323
      %4325 = vmatmul.bf16.gmra.mxu0 %v4046
      %v4326 = vpop.f32.mrf.mxu0
      %v4327 = vadd.f32 0.0, %v4326
      %v4328 = vpop.f32.mrf.mxu0
      %v4329 = vadd.f32 0.0, %v4328
      %4330 = vmatmul.bf16.gmra.mxu0 %v4049
      %v4331 = vpop.f32.mrf.mxu0
      %v4332 = vadd.f32 0.0, %v4331
      %v4333 = vpop.f32.mrf.mxu0
      %v4334 = vadd.f32 0.0, %v4333
      %4335 = vmatmul.bf16.gmra.mxu0 %v4052
      %v4336 = vpop.f32.mrf.mxu0
      %v4337 = vadd.f32 0.0, %v4336
      %v4338 = vpop.f32.mrf.mxu0
      %v4339 = vadd.f32 0.0, %v4338
      %4340 = vmatmul.bf16.gmra.mxu0 %v4055
      %v4341 = vpop.f32.mrf.mxu0
      %v4342 = vadd.f32 0.0, %v4341
      %v4343 = vpop.f32.mrf.mxu0
      %v4344 = vadd.f32 0.0, %v4343
      %4345 = vmatmul.bf16.gmra.mxu0 %v4058
      %v4346 = vpop.f32.mrf.mxu0
      %v4347 = vadd.f32 0.0, %v4346
      %v4348 = vpop.f32.mrf.mxu0
      %v4349 = vadd.f32 0.0, %v4348
      %4350 = vmatmul.bf16.gmra.mxu0 %v4061
      %v4351 = vpop.f32.mrf.mxu0
      %v4352 = vadd.f32 0.0, %v4351
      %v4353 = vpop.f32.mrf.mxu0
      %v4354 = vadd.f32 0.0, %v4353
      %4355 = vmatmul.bf16.gmra.mxu0 %v4064
      %v4356 = vpop.f32.mrf.mxu0
      %v4357 = vadd.f32 0.0, %v4356
      %v4358 = vpop.f32.mrf.mxu0
      %v4359 = vadd.f32 0.0, %v4358
      %4360 = vmatmul.bf16.gmra.mxu0 %v4067
      %v4361 = vpop.f32.mrf.mxu0
      %v4362 = vadd.f32 0.0, %v4361
      %v4363 = vpop.f32.mrf.mxu0
      %v4364 = vadd.f32 0.0, %v4363
      %4365 = vmatmul.bf16.gmra.mxu0 %v4070
      %v4366 = vpop.f32.mrf.mxu0
      %v4367 = vadd.f32 0.0, %v4366
      %v4368 = vpop.f32.mrf.mxu0
      %v4369 = vadd.f32 0.0, %v4368
      %4370 = vmatmul.bf16.gmra.mxu0 %v4073
      %v4371 = vpop.f32.mrf.mxu0
      %v4372 = vadd.f32 0.0, %v4371
      %v4373 = vpop.f32.mrf.mxu0
      %v4374 = vadd.f32 0.0, %v4373
      %4375 = vmatmul.bf16.gmra.mxu0 %v4076
      %v4376 = vpop.f32.mrf.mxu0
      %v4377 = vadd.f32 0.0, %v4376
      %v4378 = vpop.f32.mrf.mxu0
      %v4379 = vadd.f32 0.0, %v4378
      %4380 = vmatmul.bf16.gmra.mxu0 %v4079
      %v4381 = vpop.f32.mrf.mxu0
      %v4382 = vadd.f32 0.0, %v4381
      %v4383 = vpop.f32.mrf.mxu0
      %v4384 = vadd.f32 0.0, %v4383
      %4385 = vmatmul.bf16.gmra.mxu0 %v4082
      %v4386 = vpop.f32.mrf.mxu0
      %v4387 = vadd.f32 0.0, %v4386
      %v4388 = vpop.f32.mrf.mxu0
      %v4389 = vadd.f32 0.0, %v4388
      %4390 = vmatmul.bf16.gmra.mxu0 %v4085
      %v4391 = vpop.f32.mrf.mxu0
      %v4392 = vadd.f32 0.0, %v4391
      %v4393 = vpop.f32.mrf.mxu0
      %v4394 = vadd.f32 0.0, %v4393
      %4395 = vmatmul.bf16.gmra.mxu0 %v4088
      %v4396 = vpop.f32.mrf.mxu0
      %v4397 = vadd.f32 0.0, %v4396
      %v4398 = vpop.f32.mrf.mxu0
      %v4399 = vadd.f32 0.0, %v4398
      %4400 = vmatmul.bf16.gmra.mxu0 %v4091
      %v4401 = vpop.f32.mrf.mxu0
      %v4402 = vadd.f32 0.0, %v4401
      %v4403 = vpop.f32.mrf.mxu0
      %v4404 = vadd.f32 0.0, %v4403
      %4405 = vmatmul.bf16.gmra.mxu0 %v4094
      %v4406 = vpop.f32.mrf.mxu0
      %v4407 = vadd.f32 0.0, %v4406
      %v4408 = vpop.f32.mrf.mxu0
      %v4409 = vadd.f32 0.0, %v4408
      %4410 = vmatmul.bf16.gmra.mxu0 %v4097
      %v4411 = vpop.f32.mrf.mxu0
      %v4412 = vadd.f32 0.0, %v4411
      %v4413 = vpop.f32.mrf.mxu0
      %v4414 = vadd.f32 0.0, %v4413
      %4415 = vmatmul.bf16.gmra.mxu0 %v4100
      %v4416 = vpop.f32.mrf.mxu0
      %v4417 = vadd.f32 0.0, %v4416
      %v4418 = vpop.f32.mrf.mxu0
      %v4419 = vadd.f32 0.0, %v4418
      %4420 = vmatmul.bf16.gmra.mxu0 %v4103
      %v4421 = vpop.f32.mrf.mxu0
      %v4422 = vadd.f32 0.0, %v4421
      %v4423 = vpop.f32.mrf.mxu0
      %v4424 = vadd.f32 0.0, %v4423
      %4425 = vmatmul.bf16.gmra.mxu0 %v4106
      %v4426 = vpop.f32.mrf.mxu0
      %v4427 = vadd.f32 0.0, %v4426
      %v4428 = vpop.f32.mrf.mxu0
      %v4429 = vadd.f32 0.0, %v4428
      %4430 = vmatmul.bf16.gmra.mxu0 %v4109
      %v4431 = vpop.f32.mrf.mxu0
      %v4432 = vadd.f32 0.0, %v4431
      %v4433 = vpop.f32.mrf.mxu0
      %v4434 = vadd.f32 0.0, %v4433
      %4435 = vmatmul.bf16.gmra.mxu0 %v4112
      %v4436 = vpop.f32.mrf.mxu0
      %v4437 = vadd.f32 0.0, %v4436
      %v4438 = vpop.f32.mrf.mxu0
      %v4439 = vadd.f32 0.0, %v4438
      %4440 = vmatmul.bf16.gmra.mxu0 %v4115
      %v4441 = vpop.f32.mrf.mxu0
      %v4442 = vadd.f32 0.0, %v4441
      %v4443 = vpop.f32.mrf.mxu0
      %v4444 = vadd.f32 0.0, %v4443
      %4445 = vmatmul.bf16.gmra.mxu0 %v4118
      %v4446 = vpop.f32.mrf.mxu0
      %v4447 = vadd.f32 0.0, %v4446
      %v4448 = vpop.f32.mrf.mxu0
      %v4449 = vadd.f32 0.0, %v4448
      %4450 = vmatmul.bf16.gmra.mxu0 %v4121
      %v4451 = vpop.f32.mrf.mxu0
      %v4452 = vadd.f32 0.0, %v4451
      %v4453 = vpop.f32.mrf.mxu0
      %v4454 = vadd.f32 0.0, %v4453
      %4455 = vmatmul.bf16.gmra.mxu0 %v4124
      %v4456 = vpop.f32.mrf.mxu0
      %v4457 = vadd.f32 0.0, %v4456
      %v4458 = vpop.f32.mrf.mxu0
      %v4459 = vadd.f32 0.0, %v4458
      %4460 = vmatmul.bf16.gmra.mxu0 %v4127
      %v4461 = vpop.f32.mrf.mxu0
      %v4462 = vadd.f32 0.0, %v4461
      %v4463 = vpop.f32.mrf.mxu0
      %v4464 = vadd.f32 0.0, %v4463
      %4465 = vmatmul.bf16.gmra.mxu0 %v4130
      %v4466 = vpop.f32.mrf.mxu0
      %v4467 = vadd.f32 0.0, %v4466
      %v4468 = vpop.f32.mrf.mxu0
      %v4469 = vadd.f32 0.0, %v4468
      %4470 = vmatmul.bf16.gmra.mxu0 %v4133
      %v4471 = vpop.f32.mrf.mxu0
      %v4472 = vadd.f32 0.0, %v4471
      %v4473 = vpop.f32.mrf.mxu0
      %v4474 = vadd.f32 0.0, %v4473
      %4475 = vmatmul.bf16.gmra.mxu0 %v4136
      %v4476 = vpop.f32.mrf.mxu0
      %v4477 = vadd.f32 0.0, %v4476
      %v4478 = vpop.f32.mrf.mxu0
      %v4479 = vadd.f32 0.0, %v4478
      %4480 = vmatmul.bf16.gmra.mxu0 %v4139
      %v4481 = vpop.f32.mrf.mxu0
      %v4482 = vadd.f32 0.0, %v4481
      %v4483 = vpop.f32.mrf.mxu0
      %v4484 = vadd.f32 0.0, %v4483
      %4485 = vmatmul.bf16.gmra.mxu0 %v4142
      %v4486 = vpop.f32.mrf.mxu0
      %v4487 = vadd.f32 0.0, %v4486
      %v4488 = vpop.f32.mrf.mxu0
      %v4489 = vadd.f32 0.0, %v4488
      %4490 = vmatmul.bf16.gmra.mxu0 %v4145
      %v4491 = vpop.f32.mrf.mxu0
      %v4492 = vadd.f32 0.0, %v4491
      %v4493 = vpop.f32.mrf.mxu0
      %v4494 = vadd.f32 0.0, %v4493
      %4495 = vmatmul.bf16.gmra.mxu0 %v4148
      %v4496 = vpop.f32.mrf.mxu0
      %v4497 = vadd.f32 0.0, %v4496
      %v4498 = vpop.f32.mrf.mxu0
      %v4499 = vadd.f32 0.0, %v4498
      %4500 = vmatmul.bf16.gmra.mxu0 %v4151
      %v4501 = vpop.f32.mrf.mxu0
      %v4502 = vadd.f32 0.0, %v4501
      %v4503 = vpop.f32.mrf.mxu0
      %v4504 = vadd.f32 0.0, %v4503
      %4505 = vmatmul.bf16.gmra.mxu0 %v4154
      %v4506 = vpop.f32.mrf.mxu0
      %v4507 = vadd.f32 0.0, %v4506
      %v4508 = vpop.f32.mrf.mxu0
      %v4509 = vadd.f32 0.0, %v4508
      %4510 = vmatmul.bf16.gmra.mxu0 %v4157
      %v4511 = vpop.f32.mrf.mxu0
      %v4512 = vadd.f32 0.0, %v4511
      %v4513 = vpop.f32.mrf.mxu0
      %v4514 = vadd.f32 0.0, %v4513
      %4515 = vmatmul.bf16.gmra.mxu0 %v4160
      %v4516 = vpop.f32.mrf.mxu0
      %v4517 = vadd.f32 0.0, %v4516
      %v4518 = vpop.f32.mrf.mxu0
      %v4519 = vadd.f32 0.0, %v4518
      %4520 = vmatmul.bf16.gmra.mxu0 %v4163
      %v4521 = vpop.f32.mrf.mxu0
      %v4522 = vadd.f32 0.0, %v4521
      %v4523 = vpop.f32.mrf.mxu0
      %v4524 = vadd.f32 0.0, %v4523
      %4525 = vmatmul.bf16.gmra.mxu0 %v4166
      %v4526 = vpop.f32.mrf.mxu0
      %v4527 = vadd.f32 0.0, %v4526
      %v4528 = vpop.f32.mrf.mxu0
      %v4529 = vadd.f32 0.0, %v4528
      %4530 = vmatmul.bf16.gmra.mxu0 %v4169
      %v4531 = vpop.f32.mrf.mxu0
      %v4532 = vadd.f32 0.0, %v4531
      %v4533 = vpop.f32.mrf.mxu0
      %v4534 = vadd.f32 0.0, %v4533
      %4535 = vmatmul.bf16.gmra.mxu0 %v4172
      %v4536 = vpop.f32.mrf.mxu0
      %v4537 = vadd.f32 0.0, %v4536
      %v4538 = vpop.f32.mrf.mxu0
      %v4539 = vadd.f32 0.0, %v4538
      %4540 = vmatmul.bf16.gmra.mxu0 %v4175
      %v4541 = vpop.f32.mrf.mxu0
      %v4542 = vadd.f32 0.0, %v4541
      %v4543 = vpop.f32.mrf.mxu0
      %v4544 = vadd.f32 0.0, %v4543
      %4545 = vmatmul.bf16.gmra.mxu0 %v4178
      %v4546 = vpop.f32.mrf.mxu0
      %v4547 = vadd.f32 0.0, %v4546
      %v4548 = vpop.f32.mrf.mxu0
      %v4549 = vadd.f32 0.0, %v4548
      %4550 = vmatmul.bf16.gmra.mxu0 %v4181
      %v4551 = vpop.f32.mrf.mxu0
      %v4552 = vadd.f32 0.0, %v4551
      %v4553 = vpop.f32.mrf.mxu0
      %v4554 = vadd.f32 0.0, %v4553
      %4555 = vmatmul.bf16.gmra.mxu0 %v4184
      %v4556 = vpop.f32.mrf.mxu0
      %v4557 = vadd.f32 0.0, %v4556
      %v4558 = vpop.f32.mrf.mxu0
      %v4559 = vadd.f32 0.0, %v4558
      %4560 = vmatmul.bf16.gmra.mxu0 %v4187
      %v4561 = vpop.f32.mrf.mxu0
      %v4562 = vadd.f32 0.0, %v4561
      %v4563 = vpop.f32.mrf.mxu0
      %4564 = vdwg.mxu0
      %v4565 = vadd.f32 %v3605, %v4202
      %v4566 = vadd.f32 %v3606, %v4204
      %v4567 = vadd.f32 %v3607, %v4207
      %v4568 = vadd.f32 %v3608, %v4209
      %v4569 = vadd.f32 %v3609, %v4212
      %v4570 = vadd.f32 %v3610, %v4214
      %v4571 = vadd.f32 %v3611, %v4217
      %v4572 = vadd.f32 %v3612, %v4219
      %v4573 = vadd.f32 %v3613, %v4222
      %v4574 = vadd.f32 %v3614, %v4224
      %v4575 = vadd.f32 %v3615, %v4227
      %v4576 = vadd.f32 %v3616, %v4229
      %v4577 = vadd.f32 %v3617, %v4232
      %v4578 = vadd.f32 %v3618, %v4234
      %v4579 = vadd.f32 %v3619, %v4237
      %v4580 = vadd.f32 %v3620, %v4239
      %v4581 = vadd.f32 %v3621, %v4242
      %v4582 = vadd.f32 %v3622, %v4244
      %v4583 = vadd.f32 %v3623, %v4247
      %v4584 = vadd.f32 %v3624, %v4249
      %v4585 = vadd.f32 %v3625, %v4252
      %v4586 = vadd.f32 %v3626, %v4254
      %v4587 = vadd.f32 %v3627, %v4257
      %v4588 = vadd.f32 %v3628, %v4259
      %v4589 = vadd.f32 %v3629, %v4262
      %v4590 = vadd.f32 %v3630, %v4264
      %v4591 = vadd.f32 %v3631, %v4267
      %v4592 = vadd.f32 %v3632, %v4269
      %v4593 = vadd.f32 %v3633, %v4272
      %v4594 = vadd.f32 %v3634, %v4274
      %v4595 = vadd.f32 %v3635, %v4277
      %v4596 = vadd.f32 %v3636, %v4279
      %v4597 = vadd.f32 %v3637, %v4282
      %v4598 = vadd.f32 %v3638, %v4284
      %v4599 = vadd.f32 %v3639, %v4287
      %v4600 = vadd.f32 %v3640, %v4289
      %v4601 = vadd.f32 %v3641, %v4292
      %v4602 = vadd.f32 %v3642, %v4294
      %v4603 = vadd.f32 %v3643, %v4297
      %v4604 = vadd.f32 %v3644, %v4299
      %v4605 = vadd.f32 %v3645, %v4302
      %v4606 = vadd.f32 %v3646, %v4304
      %v4607 = vadd.f32 %v3647, %v4307
      %v4608 = vadd.f32 %v3648, %v4309
      %v4609 = vadd.f32 %v3649, %v4312
      %v4610 = vadd.f32 %v3650, %v4314
      %v4611 = vadd.f32 %v3651, %v4317
      %v4612 = vadd.f32 %v3652, %v4319
      %v4613 = vadd.f32 %v3653, %v4322
      %v4614 = vadd.f32 %v3654, %v4324
      %v4615 = vadd.f32 %v3655, %v4327
      %v4616 = vadd.f32 %v3656, %v4329
      %v4617 = vadd.f32 %v3657, %v4332
      %v4618 = vadd.f32 %v3658, %v4334
      %v4619 = vadd.f32 %v3659, %v4337
      %v4620 = vadd.f32 %v3660, %v4339
      %v4621 = vadd.f32 %v3661, %v4342
      %v4622 = vadd.f32 %v3662, %v4344
      %v4623 = vadd.f32 %v3663, %v4347
      %v4624 = vadd.f32 %v3664, %v4349
      %v4625 = vadd.f32 %v3665, %v4352
      %v4626 = vadd.f32 %v3666, %v4354
      %v4627 = vadd.f32 %v3667, %v4357
      %v4628 = vadd.f32 %v3668, %v4359
      %v4629 = vadd.f32 %v3669, %v4362
      %v4630 = vadd.f32 %v3670, %v4364
      %v4631 = vadd.f32 %v3671, %v4367
      %v4632 = vadd.f32 %v3672, %v4369
      %v4633 = vadd.f32 %v3673, %v4372
      %v4634 = vadd.f32 %v3674, %v4374
      %v4635 = vadd.f32 %v3675, %v4377
      %v4636 = vadd.f32 %v3676, %v4379
      %v4637 = vadd.f32 %v3677, %v4382
      %v4638 = vadd.f32 %v3678, %v4384
      %v4639 = vadd.f32 %v3679, %v4387
      %v4640 = vadd.f32 %v3680, %v4389
      %v4641 = vadd.f32 %v3681, %v4392
      %v4642 = vadd.f32 %v3682, %v4394
      %v4643 = vadd.f32 %v3683, %v4397
      %v4644 = vadd.f32 %v3684, %v4399
      %v4645 = vadd.f32 %v3685, %v4402
      %v4646 = vadd.f32 %v3686, %v4404
      %v4647 = vadd.f32 %v3687, %v4407
      %v4648 = vadd.f32 %v3688, %v4409
      %v4649 = vadd.f32 %v3689, %v4412
      %v4650 = vadd.f32 %v3690, %v4414
      %v4651 = vadd.f32 %v3691, %v4417
      %v4652 = vadd.f32 %v3692, %v4419
      %v4653 = vadd.f32 %v3693, %v4422
      %v4654 = vadd.f32 %v3694, %v4424
      %v4655 = vadd.f32 %v3695, %v4427
      %v4656 = vadd.f32 %v3696, %v4429
      %v4657 = vadd.f32 %v3697, %v4432
      %v4658 = vadd.f32 %v3698, %v4434
      %v4659 = vadd.f32 %v3699, %v4437
      %v4660 = vadd.f32 %v3700, %v4439
      %v4661 = vadd.f32 %v3701, %v4442
      %v4662 = vadd.f32 %v3702, %v4444
      %v4663 = vadd.f32 %v3703, %v4447
      %v4664 = vadd.f32 %v3704, %v4449
      %v4665 = vadd.f32 %v3705, %v4452
      %v4666 = vadd.f32 %v3706, %v4454
      %v4667 = vadd.f32 %v3707, %v4457
      %v4668 = vadd.f32 %v3708, %v4459
      %v4669 = vadd.f32 %v3709, %v4462
      %v4670 = vadd.f32 %v3710, %v4464
      %v4671 = vadd.f32 %v3711, %v4467
      %v4672 = vadd.f32 %v3712, %v4469
      %v4673 = vadd.f32 %v3713, %v4472
      %v4674 = vadd.f32 %v3714, %v4474
      %v4675 = vadd.f32 %v3715, %v4477
      %v4676 = vadd.f32 %v3716, %v4479
      %v4677 = vadd.f32 %v3717, %v4482
      %v4678 = vadd.f32 %v3718, %v4484
      %v4679 = vadd.f32 %v3719, %v4487
      %v4680 = vadd.f32 %v3720, %v4489
      %v4681 = vadd.f32 %v3721, %v4492
      %v4682 = vadd.f32 %v3722, %v4494
      %v4683 = vadd.f32 %v3723, %v4497
      %v4684 = vadd.f32 %v3724, %v4499
      %v4685 = vadd.f32 %v3725, %v4502
      %v4686 = vadd.f32 %v3726, %v4504
      %v4687 = vadd.f32 %v3727, %v4507
      %v4688 = vadd.f32 %v3728, %v4509
      %v4689 = vadd.f32 %v3729, %v4512
      %v4690 = vadd.f32 %v3730, %v4514
      %v4691 = vadd.f32 %v3731, %v4517
      %v4692 = vadd.f32 %v3732, %v4519
      %v4693 = vadd.f32 %v3733, %v4522
      %v4694 = vadd.f32 %v3734, %v4524
      %v4695 = vadd.f32 %v3735, %v4527
      %v4696 = vadd.f32 %v3736, %v4529
      %v4697 = vadd.f32 %v3737, %v4532
      %v4698 = vadd.f32 %v3738, %v4534
      %v4699 = vadd.f32 %v3739, %v4537
      %v4700 = vadd.f32 %v3740, %v4539
      %v4701 = vadd.f32 %v3741, %v4542
      %v4702 = vadd.f32 %v3742, %v4544
      %v4703 = vadd.f32 %v3743, %v4547
      %v4704 = vadd.f32 %v3744, %v4549
      %v4705 = vadd.f32 %v3745, %v4552
      %v4706 = vadd.f32 %v3746, %v4554
      %v4707 = vadd.f32 %v3747, %v4557
      %v4708 = vadd.f32 %v3748, %v4559
      %v4709 = vadd.f32 %v3749, %v4562
      %v4710 = vld [vmem:[%s192 + $0x24] sm:$0xff]
      %v4711 = vld [vmem:[%s192 + $0x2c] sm:$0xff]
      %v4712 = vld [vmem:[%s192 + $0x34] sm:$0xff]
      %v4713 = vld [vmem:[%s192 + $0x3c] sm:$0xff]
      %v4714 = vld [vmem:[%s192 + $0x44] sm:$0xff]
      %v4715 = vld [vmem:[%s192 + $0x4c] sm:$0xff]
      %v4716 = vld [vmem:[%s192 + $0x54] sm:$0xff]
      %v4717 = vld [vmem:[%s192 + $0x5c] sm:$0xff]
      %v4718 = vld [vmem:[%s192 + $0x64] sm:$0xff]
      %v4719 = vld [vmem:[%s192 + $0x6c] sm:$0xff]
      %v4720 = vld [vmem:[%s192 + $0x74] sm:$0xff]
      %v4721 = vld [vmem:[%s192 + $0x7c] sm:$0xff]
      %v4722 = vld [vmem:[%s192 + $0x84] sm:$0xff]
      %v4723 = vld [vmem:[%s192 + $0x8c] sm:$0xff]
      %v4724 = vld [vmem:[%s192 + $0x94] sm:$0xff]
      %v4725 = vld [vmem:[%s192 + $0x9c] sm:$0xff]
      %v4726 = vld [vmem:[%s192 + $0xa4] sm:$0xff]
      %v4727 = vld [vmem:[%s192 + $0xac] sm:$0xff]
      %v4728 = vld [vmem:[%s192 + $0xb4] sm:$0xff]
      %v4729 = vld [vmem:[%s192 + $0xbc] sm:$0xff]
      %v4730 = vld [vmem:[%s192 + $0xc4] sm:$0xff]
      %v4731 = vld [vmem:[%s192 + $0xcc] sm:$0xff]
      %v4732 = vld [vmem:[%s192 + $0xd4] sm:$0xff]
      %v4733 = vld [vmem:[%s192 + $0xdc] sm:$0xff]
      %v4734 = vld [vmem:[%s192 + $0xe4] sm:$0xff]
      %v4735 = vld [vmem:[%s192 + $0xec] sm:$0xff]
      %v4736 = vld [vmem:[%s192 + $0xf4] sm:$0xff]
      %v4737 = vld [vmem:[%s192 + $0xfc] sm:$0xff]
      %v4738 = vld [vmem:[%s192 + $0x104] sm:$0xff]
      %v4739 = vld [vmem:[%s192 + $0x10c] sm:$0xff]
      %v4740 = vld [vmem:[%s192 + $0x114] sm:$0xff]
      %v4741 = vld [vmem:[%s192 + $0x11c] sm:$0xff]
      %v4742 = vld [vmem:[%s192 + $0x124] sm:$0xff]
      %v4743 = vld [vmem:[%s192 + $0x12c] sm:$0xff]
      %v4744 = vld [vmem:[%s192 + $0x134] sm:$0xff]
      %v4745 = vld [vmem:[%s192 + $0x13c] sm:$0xff]
      %v4746 = vld [vmem:[%s192 + $0x144] sm:$0xff]
      %v4747 = vld [vmem:[%s192 + $0x14c] sm:$0xff]
      %v4748 = vld [vmem:[%s192 + $0x154] sm:$0xff]
      %v4749 = vld [vmem:[%s192 + $0x15c] sm:$0xff]
      %v4750 = vld [vmem:[%s192 + $0x164] sm:$0xff]
      %v4751 = vld [vmem:[%s192 + $0x16c] sm:$0xff]
      %v4752 = vld [vmem:[%s192 + $0x174] sm:$0xff]
      %v4753 = vld [vmem:[%s192 + $0x17c] sm:$0xff]
      %v4754 = vld [vmem:[%s192 + $0x184] sm:$0xff]
      %v4755 = vld [vmem:[%s192 + $0x18c] sm:$0xff]
      %v4756 = vld [vmem:[%s192 + $0x194] sm:$0xff]
      %v4757 = vld [vmem:[%s192 + $0x19c] sm:$0xff]
      %v4758 = vld [vmem:[%s192 + $0x1a4] sm:$0xff]
      %v4759 = vld [vmem:[%s192 + $0x1ac] sm:$0xff]
      %v4760 = vld [vmem:[%s192 + $0x1b4] sm:$0xff]
      %v4761 = vld [vmem:[%s192 + $0x1bc] sm:$0xff]
      %v4762 = vld [vmem:[%s192 + $0x1c4] sm:$0xff]
      %v4763 = vld [vmem:[%s192 + $0x1cc] sm:$0xff]
      %v4764 = vld [vmem:[%s192 + $0x1d4] sm:$0xff]
      %v4765 = vld [vmem:[%s192 + $0x1dc] sm:$0xff]
      %v4766 = vld [vmem:[%s192 + $0x1e4] sm:$0xff]
      %v4767 = vld [vmem:[%s192 + $0x1ec] sm:$0xff]
      %v4768 = vld [vmem:[%s192 + $0x1f4] sm:$0xff]
      %v4769 = vld [vmem:[%s192 + $0x1fc] sm:$0xff]
      %v4770 = vld [vmem:[%s192 + $0x204] sm:$0xff]
      %v4771 = vld [vmem:[%s192 + $0x20c] sm:$0xff]
      %v4772 = vld [vmem:[%s192 + $0x214] sm:$0xff]
      %v4773 = vld [vmem:[%s192 + $0x21c] sm:$0xff]
      %v4774 = vld [vmem:[%s192 + $0x224] sm:$0xff]
      %v4775 = vld [vmem:[%s192 + $0x22c] sm:$0xff]
      %v4776 = vld [vmem:[%s192 + $0x234] sm:$0xff]
      %v4777 = vld [vmem:[%s192 + $0x23c] sm:$0xff]
      %v4778 = vld [vmem:[%s192 + $0x244] sm:$0xff]
      %v4779 = vld [vmem:[%s192 + $0x24c] sm:$0xff]
      %v4780 = vld [vmem:[%s192 + $0x254] sm:$0xff]
      %v4781 = vld [vmem:[%s192 + $0x25c] sm:$0xff]
      %v4782 = vld [vmem:[%s192 + $0x264] sm:$0xff]
      %v4783 = vld [vmem:[%s192 + $0x26c] sm:$0xff]
      %v4784 = vld [vmem:[%s192 + $0x274] sm:$0xff]
      %v4785 = vld [vmem:[%s192 + $0x27c] sm:$0xff]
      %v4786 = vld [vmem:[%s192 + $0x284] sm:$0xff]
      %v4787 = vld [vmem:[%s192 + $0x28c] sm:$0xff]
      %v4788 = vld [vmem:[%s192 + $0x294] sm:$0xff]
      %v4789 = vld [vmem:[%s192 + $0x29c] sm:$0xff]
      %v4790 = vld [vmem:[%s192 + $0x2a4] sm:$0xff]
      %v4791 = vld [vmem:[%s192 + $0x2ac] sm:$0xff]
      %v4792 = vld [vmem:[%s192 + $0x2b4] sm:$0xff]
      %v4793 = vld [vmem:[%s192 + $0x2bc] sm:$0xff]
      %v4794 = vld [vmem:[%s192 + $0x2c4] sm:$0xff]
      %v4795 = vld [vmem:[%s192 + $0x2cc] sm:$0xff]
      %v4796 = vld [vmem:[%s192 + $0x2d4] sm:$0xff]
      %v4797 = vld [vmem:[%s192 + $0x2dc] sm:$0xff]
      %v4798 = vld [vmem:[%s192 + $0x2e4] sm:$0xff]
      %v4799 = vld [vmem:[%s192 + $0x2ec] sm:$0xff]
      %v4800 = vld [vmem:[%s192 + $0x2f4] sm:$0xff]
      %v4801 = vld [vmem:[%s192 + $0x2fc] sm:$0xff]
      %v4802 = vld [vmem:[%s192 + $0x304] sm:$0xff]
      %v4803 = vld [vmem:[%s192 + $0x30c] sm:$0xff]
      %v4804 = vld [vmem:[%s192 + $0x314] sm:$0xff]
      %v4805 = vld [vmem:[%s192 + $0x31c] sm:$0xff]
      %v4806 = vld [vmem:[%s192 + $0x324] sm:$0xff]
      %v4807 = vld [vmem:[%s192 + $0x32c] sm:$0xff]
      %v4808 = vld [vmem:[%s192 + $0x334] sm:$0xff]
      %v4809 = vld [vmem:[%s192 + $0x33c] sm:$0xff]
      %v4810 = vld [vmem:[%s192 + $0x344] sm:$0xff]
      %v4811 = vld [vmem:[%s192 + $0x34c] sm:$0xff]
      %v4812 = vld [vmem:[%s192 + $0x354] sm:$0xff]
      %v4813 = vld [vmem:[%s192 + $0x35c] sm:$0xff]
      %v4814 = vld [vmem:[%s192 + $0x364] sm:$0xff]
      %v4815 = vld [vmem:[%s192 + $0x36c] sm:$0xff]
      %v4816 = vld [vmem:[%s192 + $0x374] sm:$0xff]
      %v4817 = vld [vmem:[%s192 + $0x37c] sm:$0xff]
      %v4818 = vld [vmem:[%s192 + $0x384] sm:$0xff]
      %v4819 = vld [vmem:[%s192 + $0x38c] sm:$0xff]
      %v4820 = vld [vmem:[%s192 + $0x394] sm:$0xff]
      %v4821 = vld [vmem:[%s192 + $0x39c] sm:$0xff]
      %v4822 = vld [vmem:[%s192 + $0x3a4] sm:$0xff]
      %v4823 = vld [vmem:[%s192 + $0x3ac] sm:$0xff]
      %v4824 = vld [vmem:[%s192 + $0x3b4] sm:$0xff]
      %v4825 = vld [vmem:[%s192 + $0x3bc] sm:$0xff]
      %v4826 = vld [vmem:[%s192 + $0x3c4] sm:$0xff]
      %v4827 = vld [vmem:[%s192 + $0x3cc] sm:$0xff]
      %v4828 = vld [vmem:[%s192 + $0x3d4] sm:$0xff]
      %v4829 = vld [vmem:[%s192 + $0x3dc] sm:$0xff]
      %v4830 = vld [vmem:[%s192 + $0x3e4] sm:$0xff]
      %v4831 = vld [vmem:[%s192 + $0x3ec] sm:$0xff]
      %v4832 = vld [vmem:[%s192 + $0x3f4] sm:$0xff]
      %v4833 = vld [vmem:[%s192 + $0x3fc] sm:$0xff]
      %v4834 = vld [vmem:[%s192 + $0x404] sm:$0xff]
      %v4835 = vld [vmem:[%s192 + $0x40c] sm:$0xff]
      %v4836 = vld [vmem:[%s192 + $0x414] sm:$0xff]
      %v4837 = vld [vmem:[%s192 + $0x41c] sm:$0xff]
      %v4838 = vld [vmem:[%s192 + $0x424] sm:$0xff]
      %v4839 = vld [vmem:[%s192 + $0x42c] sm:$0xff]
      %v4840 = vld [vmem:[%s192 + $0x434] sm:$0xff]
      %v4841 = vld [vmem:[%s192 + $0x43c] sm:$0xff]
      %v4842 = vld [vmem:[%s192 + $0x444] sm:$0xff]
      %v4843 = vld [vmem:[%s192 + $0x44c] sm:$0xff]
      %v4844 = vld [vmem:[%s192 + $0x454] sm:$0xff]
      %v4845 = vld [vmem:[%s192 + $0x45c] sm:$0xff]
      %v4846 = vld [vmem:[%s192 + $0x464] sm:$0xff]
      %v4847 = vld [vmem:[%s192 + $0x46c] sm:$0xff]
      %v4848 = vld [vmem:[%s192 + $0x474] sm:$0xff]
      %v4849 = vld [vmem:[%s192 + $0x47c] sm:$0xff]
      %v4850 = vld [vmem:[%s192 + $0x484] sm:$0xff]
      %v4851 = vld [vmem:[%s192 + $0x48c] sm:$0xff]
      %v4852 = vld [vmem:[%s192 + $0x494] sm:$0xff]
      %v4853 = vld [vmem:[%s192 + $0x49c] sm:$0xff]
      %v4854 = vld [vmem:[%s192 + $0x4a4] sm:$0xf]
      %v4855 = vpack.c.bf16 %v4711, %v4710
      %v4856 = vpack.c.bf16 %v4713, %v4712
      %v4857 = vpack.c.bf16 %v4715, %v4714
      %v4858 = vpack.c.bf16 %v4717, %v4716
      %v4859 = vpack.c.bf16 %v4719, %v4718
      %v4860 = vpack.c.bf16 %v4721, %v4720
      %v4861 = vpack.c.bf16 %v4723, %v4722
      %v4862 = vpack.c.bf16 %v4725, %v4724
      %v4863 = vpack.c.bf16 %v4727, %v4726
      %v4864 = vpack.c.bf16 %v4729, %v4728
      %v4865 = vpack.c.bf16 %v4731, %v4730
      %v4866 = vpack.c.bf16 %v4733, %v4732
      %v4867 = vpack.c.bf16 %v4735, %v4734
      %v4868 = vpack.c.bf16 %v4737, %v4736
      %v4869 = vpack.c.bf16 %v4739, %v4738
      %v4870 = vpack.c.bf16 %v4741, %v4740
      %v4871 = vpack.c.bf16 %v4743, %v4742
      %v4872 = vpack.c.bf16 %v4745, %v4744
      %v4873 = vpack.c.bf16 %v4747, %v4746
      %v4874 = vpack.c.bf16 %v4749, %v4748
      %v4875 = vpack.c.bf16 %v4751, %v4750
      %v4876 = vpack.c.bf16 %v4753, %v4752
      %v4877 = vpack.c.bf16 %v4755, %v4754
      %v4878 = vpack.c.bf16 %v4757, %v4756
      %v4879 = vpack.c.bf16 %v4759, %v4758
      %v4880 = vpack.c.bf16 %v4761, %v4760
      %v4881 = vpack.c.bf16 %v4763, %v4762
      %v4882 = vpack.c.bf16 %v4765, %v4764
      %v4883 = vpack.c.bf16 %v4767, %v4766
      %v4884 = vpack.c.bf16 %v4769, %v4768
      %v4885 = vpack.c.bf16 %v4771, %v4770
      %v4886 = vpack.c.bf16 %v4773, %v4772
      %v4887 = vpack.c.bf16 %v4775, %v4774
      %v4888 = vpack.c.bf16 %v4777, %v4776
      %v4889 = vpack.c.bf16 %v4779, %v4778
      %v4890 = vpack.c.bf16 %v4781, %v4780
      %v4891 = vpack.c.bf16 %v4783, %v4782
      %v4892 = vpack.c.bf16 %v4785, %v4784
      %v4893 = vpack.c.bf16 %v4787, %v4786
      %v4894 = vpack.c.bf16 %v4789, %v4788
      %v4895 = vpack.c.bf16 %v4791, %v4790
      %v4896 = vpack.c.bf16 %v4793, %v4792
      %v4897 = vpack.c.bf16 %v4795, %v4794
      %v4898 = vpack.c.bf16 %v4797, %v4796
      %v4899 = vpack.c.bf16 %v4799, %v4798
      %v4900 = vpack.c.bf16 %v4801, %v4800
      %v4901 = vpack.c.bf16 %v4803, %v4802
      %v4902 = vpack.c.bf16 %v4805, %v4804
      %v4903 = vpack.c.bf16 %v4807, %v4806
      %v4904 = vpack.c.bf16 %v4809, %v4808
      %v4905 = vpack.c.bf16 %v4811, %v4810
      %v4906 = vpack.c.bf16 %v4813, %v4812
      %v4907 = vpack.c.bf16 %v4815, %v4814
      %v4908 = vpack.c.bf16 %v4817, %v4816
      %v4909 = vpack.c.bf16 %v4819, %v4818
      %v4910 = vpack.c.bf16 %v4821, %v4820
      %v4911 = vpack.c.bf16 %v4823, %v4822
      %v4912 = vpack.c.bf16 %v4825, %v4824
      %v4913 = vpack.c.bf16 %v4827, %v4826
      %v4914 = vpack.c.bf16 %v4829, %v4828
      %v4915 = vpack.c.bf16 %v4831, %v4830
      %v4916 = vpack.c.bf16 %v4833, %v4832
      %v4917 = vpack.c.bf16 %v4835, %v4834
      %v4918 = vpack.c.bf16 %v4837, %v4836
      %v4919 = vpack.c.bf16 %v4839, %v4838
      %v4920 = vpack.c.bf16 %v4841, %v4840
      %v4921 = vpack.c.bf16 %v4843, %v4842
      %v4922 = vpack.c.bf16 %v4845, %v4844
      %v4923 = vpack.c.bf16 %v4847, %v4846
      %v4924 = vpack.c.bf16 %v4849, %v4848
      %v4925 = vpack.c.bf16 %v4851, %v4850
      %v4926 = vpack.c.bf16 %v4853, %v4852
      %v4927 = vpack.c.bf16 %v4854, %v4854
      %s4928 = scalar_lea.vmem %s1, 20
      %v4929 = vld [vmem:[%s4928] sm:$0xf]
      %v4931 = vsel %vm638, %v4855, 0
      %v4934 = vsel %vm638, %v4856, 0
      %v4937 = vsel %vm638, %v4857, 0
      %v4940 = vsel %vm638, %v4858, 0
      %v4943 = vsel %vm638, %v4859, 0
      %v4946 = vsel %vm638, %v4860, 0
      %v4949 = vsel %vm638, %v4861, 0
      %v4952 = vsel %vm638, %v4862, 0
      %v4955 = vsel %vm638, %v4863, 0
      %v4958 = vsel %vm638, %v4864, 0
      %v4961 = vsel %vm638, %v4865, 0
      %v4964 = vsel %vm638, %v4866, 0
      %v4967 = vsel %vm638, %v4867, 0
      %v4970 = vsel %vm638, %v4868, 0
      %v4973 = vsel %vm638, %v4869, 0
      %v4976 = vsel %vm638, %v4870, 0
      %v4979 = vsel %vm638, %v4871, 0
      %v4982 = vsel %vm638, %v4872, 0
      %v4985 = vsel %vm638, %v4873, 0
      %v4988 = vsel %vm638, %v4874, 0
      %v4991 = vsel %vm638, %v4875, 0
      %v4994 = vsel %vm638, %v4876, 0
      %v4997 = vsel %vm638, %v4877, 0
      %v5000 = vsel %vm638, %v4878, 0
      %v5003 = vsel %vm638, %v4879, 0
      %v5006 = vsel %vm638, %v4880, 0
      %v5009 = vsel %vm638, %v4881, 0
      %v5012 = vsel %vm638, %v4882, 0
      %v5015 = vsel %vm638, %v4883, 0
      %v5018 = vsel %vm638, %v4884, 0
      %v5021 = vsel %vm638, %v4885, 0
      %v5024 = vsel %vm638, %v4886, 0
      %v5027 = vsel %vm638, %v4887, 0
      %v5030 = vsel %vm638, %v4888, 0
      %v5033 = vsel %vm638, %v4889, 0
      %v5036 = vsel %vm638, %v4890, 0
      %v5039 = vsel %vm638, %v4891, 0
      %v5042 = vsel %vm638, %v4892, 0
      %v5045 = vsel %vm638, %v4893, 0
      %v5048 = vsel %vm638, %v4894, 0
      %v5051 = vsel %vm638, %v4895, 0
      %v5054 = vsel %vm638, %v4896, 0
      %v5057 = vsel %vm638, %v4897, 0
      %v5060 = vsel %vm638, %v4898, 0
      %v5063 = vsel %vm638, %v4899, 0
      %v5066 = vsel %vm638, %v4900, 0
      %v5069 = vsel %vm638, %v4901, 0
      %v5072 = vsel %vm638, %v4902, 0
      %v5075 = vsel %vm638, %v4903, 0
      %v5078 = vsel %vm638, %v4904, 0
      %v5081 = vsel %vm638, %v4905, 0
      %v5084 = vsel %vm638, %v4906, 0
      %v5087 = vsel %vm638, %v4907, 0
      %v5090 = vsel %vm638, %v4908, 0
      %v5093 = vsel %vm638, %v4909, 0
      %v5096 = vsel %vm638, %v4910, 0
      %v5099 = vsel %vm638, %v4911, 0
      %v5102 = vsel %vm638, %v4912, 0
      %v5105 = vsel %vm638, %v4913, 0
      %v5108 = vsel %vm638, %v4914, 0
      %v5111 = vsel %vm638, %v4915, 0
      %v5114 = vsel %vm638, %v4916, 0
      %v5117 = vsel %vm638, %v4917, 0
      %v5120 = vsel %vm638, %v4918, 0
      %v5123 = vsel %vm638, %v4919, 0
      %v5126 = vsel %vm638, %v4920, 0
      %v5129 = vsel %vm638, %v4921, 0
      %v5132 = vsel %vm638, %v4922, 0
      %v5135 = vsel %vm638, %v4923, 0
      %v5138 = vsel %vm638, %v4924, 0
      %v5141 = vsel %vm638, %v4925, 0
      %v5144 = vsel %vm638, %v4926, 0
      %v5147 = vsel %vm638, %v4927, 0
      %v5150 = vsel %vm858, %v4929, 0
      %5152 = vmatpush.bf16.msra.mxu0 0
      %5153 = vmatpush.bf16.msra.mxu0 0
      %5154 = vmatpush.bf16.msra.mxu0 0
      %5155 = vmatpush.bf16.msra.mxu0 0
      %5156 = vmatpush.bf16.msra.mxu0 0
      %5157 = vmatpush.bf16.msra.mxu0 0
      %5158 = vmatpush.bf16.msra.mxu0 0
      %5159 = vmatpush.bf16.msra.mxu0 %v5150
      %5160 = vmatmul.bf16.gmra.mxu0 %v4931
      %v5161 = vpop.f32.mrf.mxu0
      %v5162 = vadd.f32 0.0, %v5161
      %v5163 = vpop.f32.mrf.mxu0
      %v5164 = vadd.f32 0.0, %v5163
      %5165 = vmatmul.bf16.gmra.mxu0 %v4934
      %v5166 = vpop.f32.mrf.mxu0
      %v5167 = vadd.f32 0.0, %v5166
      %v5168 = vpop.f32.mrf.mxu0
      %v5169 = vadd.f32 0.0, %v5168
      %5170 = vmatmul.bf16.gmra.mxu0 %v4937
      %v5171 = vpop.f32.mrf.mxu0
      %v5172 = vadd.f32 0.0, %v5171
      %v5173 = vpop.f32.mrf.mxu0
      %v5174 = vadd.f32 0.0, %v5173
      %5175 = vmatmul.bf16.gmra.mxu0 %v4940
      %v5176 = vpop.f32.mrf.mxu0
      %v5177 = vadd.f32 0.0, %v5176
      %v5178 = vpop.f32.mrf.mxu0
      %v5179 = vadd.f32 0.0, %v5178
      %5180 = vmatmul.bf16.gmra.mxu0 %v4943
      %v5181 = vpop.f32.mrf.mxu0
      %v5182 = vadd.f32 0.0, %v5181
      %v5183 = vpop.f32.mrf.mxu0
      %v5184 = vadd.f32 0.0, %v5183
      %5185 = vmatmul.bf16.gmra.mxu0 %v4946
      %v5186 = vpop.f32.mrf.mxu0
      %v5187 = vadd.f32 0.0, %v5186
      %v5188 = vpop.f32.mrf.mxu0
      %v5189 = vadd.f32 0.0, %v5188
      %5190 = vmatmul.bf16.gmra.mxu0 %v4949
      %v5191 = vpop.f32.mrf.mxu0
      %v5192 = vadd.f32 0.0, %v5191
      %v5193 = vpop.f32.mrf.mxu0
      %v5194 = vadd.f32 0.0, %v5193
      %5195 = vmatmul.bf16.gmra.mxu0 %v4952
      %v5196 = vpop.f32.mrf.mxu0
      %v5197 = vadd.f32 0.0, %v5196
      %v5198 = vpop.f32.mrf.mxu0
      %v5199 = vadd.f32 0.0, %v5198
      %5200 = vmatmul.bf16.gmra.mxu0 %v4955
      %v5201 = vpop.f32.mrf.mxu0
      %v5202 = vadd.f32 0.0, %v5201
      %v5203 = vpop.f32.mrf.mxu0
      %v5204 = vadd.f32 0.0, %v5203
      %5205 = vmatmul.bf16.gmra.mxu0 %v4958
      %v5206 = vpop.f32.mrf.mxu0
      %v5207 = vadd.f32 0.0, %v5206
      %v5208 = vpop.f32.mrf.mxu0
      %v5209 = vadd.f32 0.0, %v5208
      %5210 = vmatmul.bf16.gmra.mxu0 %v4961
      %v5211 = vpop.f32.mrf.mxu0
      %v5212 = vadd.f32 0.0, %v5211
      %v5213 = vpop.f32.mrf.mxu0
      %v5214 = vadd.f32 0.0, %v5213
      %5215 = vmatmul.bf16.gmra.mxu0 %v4964
      %v5216 = vpop.f32.mrf.mxu0
      %v5217 = vadd.f32 0.0, %v5216
      %v5218 = vpop.f32.mrf.mxu0
      %v5219 = vadd.f32 0.0, %v5218
      %5220 = vmatmul.bf16.gmra.mxu0 %v4967
      %v5221 = vpop.f32.mrf.mxu0
      %v5222 = vadd.f32 0.0, %v5221
      %v5223 = vpop.f32.mrf.mxu0
      %v5224 = vadd.f32 0.0, %v5223
      %5225 = vmatmul.bf16.gmra.mxu0 %v4970
      %v5226 = vpop.f32.mrf.mxu0
      %v5227 = vadd.f32 0.0, %v5226
      %v5228 = vpop.f32.mrf.mxu0
      %v5229 = vadd.f32 0.0, %v5228
      %5230 = vmatmul.bf16.gmra.mxu0 %v4973
      %v5231 = vpop.f32.mrf.mxu0
      %v5232 = vadd.f32 0.0, %v5231
      %v5233 = vpop.f32.mrf.mxu0
      %v5234 = vadd.f32 0.0, %v5233
      %5235 = vmatmul.bf16.gmra.mxu0 %v4976
      %v5236 = vpop.f32.mrf.mxu0
      %v5237 = vadd.f32 0.0, %v5236
      %v5238 = vpop.f32.mrf.mxu0
      %v5239 = vadd.f32 0.0, %v5238
      %5240 = vmatmul.bf16.gmra.mxu0 %v4979
      %v5241 = vpop.f32.mrf.mxu0
      %v5242 = vadd.f32 0.0, %v5241
      %v5243 = vpop.f32.mrf.mxu0
      %v5244 = vadd.f32 0.0, %v5243
      %5245 = vmatmul.bf16.gmra.mxu0 %v4982
      %v5246 = vpop.f32.mrf.mxu0
      %v5247 = vadd.f32 0.0, %v5246
      %v5248 = vpop.f32.mrf.mxu0
      %v5249 = vadd.f32 0.0, %v5248
      %5250 = vmatmul.bf16.gmra.mxu0 %v4985
      %v5251 = vpop.f32.mrf.mxu0
      %v5252 = vadd.f32 0.0, %v5251
      %v5253 = vpop.f32.mrf.mxu0
      %v5254 = vadd.f32 0.0, %v5253
      %5255 = vmatmul.bf16.gmra.mxu0 %v4988
      %v5256 = vpop.f32.mrf.mxu0
      %v5257 = vadd.f32 0.0, %v5256
      %v5258 = vpop.f32.mrf.mxu0
      %v5259 = vadd.f32 0.0, %v5258
      %5260 = vmatmul.bf16.gmra.mxu0 %v4991
      %v5261 = vpop.f32.mrf.mxu0
      %v5262 = vadd.f32 0.0, %v5261
      %v5263 = vpop.f32.mrf.mxu0
      %v5264 = vadd.f32 0.0, %v5263
      %5265 = vmatmul.bf16.gmra.mxu0 %v4994
      %v5266 = vpop.f32.mrf.mxu0
      %v5267 = vadd.f32 0.0, %v5266
      %v5268 = vpop.f32.mrf.mxu0
      %v5269 = vadd.f32 0.0, %v5268
      %5270 = vmatmul.bf16.gmra.mxu0 %v4997
      %v5271 = vpop.f32.mrf.mxu0
      %v5272 = vadd.f32 0.0, %v5271
      %v5273 = vpop.f32.mrf.mxu0
      %v5274 = vadd.f32 0.0, %v5273
      %5275 = vmatmul.bf16.gmra.mxu0 %v5000
      %v5276 = vpop.f32.mrf.mxu0
      %v5277 = vadd.f32 0.0, %v5276
      %v5278 = vpop.f32.mrf.mxu0
      %v5279 = vadd.f32 0.0, %v5278
      %5280 = vmatmul.bf16.gmra.mxu0 %v5003
      %v5281 = vpop.f32.mrf.mxu0
      %v5282 = vadd.f32 0.0, %v5281
      %v5283 = vpop.f32.mrf.mxu0
      %v5284 = vadd.f32 0.0, %v5283
      %5285 = vmatmul.bf16.gmra.mxu0 %v5006
      %v5286 = vpop.f32.mrf.mxu0
      %v5287 = vadd.f32 0.0, %v5286
      %v5288 = vpop.f32.mrf.mxu0
      %v5289 = vadd.f32 0.0, %v5288
      %5290 = vmatmul.bf16.gmra.mxu0 %v5009
      %v5291 = vpop.f32.mrf.mxu0
      %v5292 = vadd.f32 0.0, %v5291
      %v5293 = vpop.f32.mrf.mxu0
      %v5294 = vadd.f32 0.0, %v5293
      %5295 = vmatmul.bf16.gmra.mxu0 %v5012
      %v5296 = vpop.f32.mrf.mxu0
      %v5297 = vadd.f32 0.0, %v5296
      %v5298 = vpop.f32.mrf.mxu0
      %v5299 = vadd.f32 0.0, %v5298
      %5300 = vmatmul.bf16.gmra.mxu0 %v5015
      %v5301 = vpop.f32.mrf.mxu0
      %v5302 = vadd.f32 0.0, %v5301
      %v5303 = vpop.f32.mrf.mxu0
      %v5304 = vadd.f32 0.0, %v5303
      %5305 = vmatmul.bf16.gmra.mxu0 %v5018
      %v5306 = vpop.f32.mrf.mxu0
      %v5307 = vadd.f32 0.0, %v5306
      %v5308 = vpop.f32.mrf.mxu0
      %v5309 = vadd.f32 0.0, %v5308
      %5310 = vmatmul.bf16.gmra.mxu0 %v5021
      %v5311 = vpop.f32.mrf.mxu0
      %v5312 = vadd.f32 0.0, %v5311
      %v5313 = vpop.f32.mrf.mxu0
      %v5314 = vadd.f32 0.0, %v5313
      %5315 = vmatmul.bf16.gmra.mxu0 %v5024
      %v5316 = vpop.f32.mrf.mxu0
      %v5317 = vadd.f32 0.0, %v5316
      %v5318 = vpop.f32.mrf.mxu0
      %v5319 = vadd.f32 0.0, %v5318
      %5320 = vmatmul.bf16.gmra.mxu0 %v5027
      %v5321 = vpop.f32.mrf.mxu0
      %v5322 = vadd.f32 0.0, %v5321
      %v5323 = vpop.f32.mrf.mxu0
      %v5324 = vadd.f32 0.0, %v5323
      %5325 = vmatmul.bf16.gmra.mxu0 %v5030
      %v5326 = vpop.f32.mrf.mxu0
      %v5327 = vadd.f32 0.0, %v5326
      %v5328 = vpop.f32.mrf.mxu0
      %v5329 = vadd.f32 0.0, %v5328
      %5330 = vmatmul.bf16.gmra.mxu0 %v5033
      %v5331 = vpop.f32.mrf.mxu0
      %v5332 = vadd.f32 0.0, %v5331
      %v5333 = vpop.f32.mrf.mxu0
      %v5334 = vadd.f32 0.0, %v5333
      %5335 = vmatmul.bf16.gmra.mxu0 %v5036
      %v5336 = vpop.f32.mrf.mxu0
      %v5337 = vadd.f32 0.0, %v5336
      %v5338 = vpop.f32.mrf.mxu0
      %v5339 = vadd.f32 0.0, %v5338
      %5340 = vmatmul.bf16.gmra.mxu0 %v5039
      %v5341 = vpop.f32.mrf.mxu0
      %v5342 = vadd.f32 0.0, %v5341
      %v5343 = vpop.f32.mrf.mxu0
      %v5344 = vadd.f32 0.0, %v5343
      %5345 = vmatmul.bf16.gmra.mxu0 %v5042
      %v5346 = vpop.f32.mrf.mxu0
      %v5347 = vadd.f32 0.0, %v5346
      %v5348 = vpop.f32.mrf.mxu0
      %v5349 = vadd.f32 0.0, %v5348
      %5350 = vmatmul.bf16.gmra.mxu0 %v5045
      %v5351 = vpop.f32.mrf.mxu0
      %v5352 = vadd.f32 0.0, %v5351
      %v5353 = vpop.f32.mrf.mxu0
      %v5354 = vadd.f32 0.0, %v5353
      %5355 = vmatmul.bf16.gmra.mxu0 %v5048
      %v5356 = vpop.f32.mrf.mxu0
      %v5357 = vadd.f32 0.0, %v5356
      %v5358 = vpop.f32.mrf.mxu0
      %v5359 = vadd.f32 0.0, %v5358
      %5360 = vmatmul.bf16.gmra.mxu0 %v5051
      %v5361 = vpop.f32.mrf.mxu0
      %v5362 = vadd.f32 0.0, %v5361
      %v5363 = vpop.f32.mrf.mxu0
      %v5364 = vadd.f32 0.0, %v5363
      %5365 = vmatmul.bf16.gmra.mxu0 %v5054
      %v5366 = vpop.f32.mrf.mxu0
      %v5367 = vadd.f32 0.0, %v5366
      %v5368 = vpop.f32.mrf.mxu0
      %v5369 = vadd.f32 0.0, %v5368
      %5370 = vmatmul.bf16.gmra.mxu0 %v5057
      %v5371 = vpop.f32.mrf.mxu0
      %v5372 = vadd.f32 0.0, %v5371
      %v5373 = vpop.f32.mrf.mxu0
      %v5374 = vadd.f32 0.0, %v5373
      %5375 = vmatmul.bf16.gmra.mxu0 %v5060
      %v5376 = vpop.f32.mrf.mxu0
      %v5377 = vadd.f32 0.0, %v5376
      %v5378 = vpop.f32.mrf.mxu0
      %v5379 = vadd.f32 0.0, %v5378
      %5380 = vmatmul.bf16.gmra.mxu0 %v5063
      %v5381 = vpop.f32.mrf.mxu0
      %v5382 = vadd.f32 0.0, %v5381
      %v5383 = vpop.f32.mrf.mxu0
      %v5384 = vadd.f32 0.0, %v5383
      %5385 = vmatmul.bf16.gmra.mxu0 %v5066
      %v5386 = vpop.f32.mrf.mxu0
      %v5387 = vadd.f32 0.0, %v5386
      %v5388 = vpop.f32.mrf.mxu0
      %v5389 = vadd.f32 0.0, %v5388
      %5390 = vmatmul.bf16.gmra.mxu0 %v5069
      %v5391 = vpop.f32.mrf.mxu0
      %v5392 = vadd.f32 0.0, %v5391
      %v5393 = vpop.f32.mrf.mxu0
      %v5394 = vadd.f32 0.0, %v5393
      %5395 = vmatmul.bf16.gmra.mxu0 %v5072
      %v5396 = vpop.f32.mrf.mxu0
      %v5397 = vadd.f32 0.0, %v5396
      %v5398 = vpop.f32.mrf.mxu0
      %v5399 = vadd.f32 0.0, %v5398
      %5400 = vmatmul.bf16.gmra.mxu0 %v5075
      %v5401 = vpop.f32.mrf.mxu0
      %v5402 = vadd.f32 0.0, %v5401
      %v5403 = vpop.f32.mrf.mxu0
      %v5404 = vadd.f32 0.0, %v5403
      %5405 = vmatmul.bf16.gmra.mxu0 %v5078
      %v5406 = vpop.f32.mrf.mxu0
      %v5407 = vadd.f32 0.0, %v5406
      %v5408 = vpop.f32.mrf.mxu0
      %v5409 = vadd.f32 0.0, %v5408
      %5410 = vmatmul.bf16.gmra.mxu0 %v5081
      %v5411 = vpop.f32.mrf.mxu0
      %v5412 = vadd.f32 0.0, %v5411
      %v5413 = vpop.f32.mrf.mxu0
      %v5414 = vadd.f32 0.0, %v5413
      %5415 = vmatmul.bf16.gmra.mxu0 %v5084
      %v5416 = vpop.f32.mrf.mxu0
      %v5417 = vadd.f32 0.0, %v5416
      %v5418 = vpop.f32.mrf.mxu0
      %v5419 = vadd.f32 0.0, %v5418
      %5420 = vmatmul.bf16.gmra.mxu0 %v5087
      %v5421 = vpop.f32.mrf.mxu0
      %v5422 = vadd.f32 0.0, %v5421
      %v5423 = vpop.f32.mrf.mxu0
      %v5424 = vadd.f32 0.0, %v5423
      %5425 = vmatmul.bf16.gmra.mxu0 %v5090
      %v5426 = vpop.f32.mrf.mxu0
      %v5427 = vadd.f32 0.0, %v5426
      %v5428 = vpop.f32.mrf.mxu0
      %v5429 = vadd.f32 0.0, %v5428
      %5430 = vmatmul.bf16.gmra.mxu0 %v5093
      %v5431 = vpop.f32.mrf.mxu0
      %v5432 = vadd.f32 0.0, %v5431
      %v5433 = vpop.f32.mrf.mxu0
      %v5434 = vadd.f32 0.0, %v5433
      %5435 = vmatmul.bf16.gmra.mxu0 %v5096
      %v5436 = vpop.f32.mrf.mxu0
      %v5437 = vadd.f32 0.0, %v5436
      %v5438 = vpop.f32.mrf.mxu0
      %v5439 = vadd.f32 0.0, %v5438
      %5440 = vmatmul.bf16.gmra.mxu0 %v5099
      %v5441 = vpop.f32.mrf.mxu0
      %v5442 = vadd.f32 0.0, %v5441
      %v5443 = vpop.f32.mrf.mxu0
      %v5444 = vadd.f32 0.0, %v5443
      %5445 = vmatmul.bf16.gmra.mxu0 %v5102
      %v5446 = vpop.f32.mrf.mxu0
      %v5447 = vadd.f32 0.0, %v5446
      %v5448 = vpop.f32.mrf.mxu0
      %v5449 = vadd.f32 0.0, %v5448
      %5450 = vmatmul.bf16.gmra.mxu0 %v5105
      %v5451 = vpop.f32.mrf.mxu0
      %v5452 = vadd.f32 0.0, %v5451
      %v5453 = vpop.f32.mrf.mxu0
      %v5454 = vadd.f32 0.0, %v5453
      %5455 = vmatmul.bf16.gmra.mxu0 %v5108
      %v5456 = vpop.f32.mrf.mxu0
      %v5457 = vadd.f32 0.0, %v5456
      %v5458 = vpop.f32.mrf.mxu0
      %v5459 = vadd.f32 0.0, %v5458
      %5460 = vmatmul.bf16.gmra.mxu0 %v5111
      %v5461 = vpop.f32.mrf.mxu0
      %v5462 = vadd.f32 0.0, %v5461
      %v5463 = vpop.f32.mrf.mxu0
      %v5464 = vadd.f32 0.0, %v5463
      %5465 = vmatmul.bf16.gmra.mxu0 %v5114
      %v5466 = vpop.f32.mrf.mxu0
      %v5467 = vadd.f32 0.0, %v5466
      %v5468 = vpop.f32.mrf.mxu0
      %v5469 = vadd.f32 0.0, %v5468
      %5470 = vmatmul.bf16.gmra.mxu0 %v5117
      %v5471 = vpop.f32.mrf.mxu0
      %v5472 = vadd.f32 0.0, %v5471
      %v5473 = vpop.f32.mrf.mxu0
      %v5474 = vadd.f32 0.0, %v5473
      %5475 = vmatmul.bf16.gmra.mxu0 %v5120
      %v5476 = vpop.f32.mrf.mxu0
      %v5477 = vadd.f32 0.0, %v5476
      %v5478 = vpop.f32.mrf.mxu0
      %v5479 = vadd.f32 0.0, %v5478
      %5480 = vmatmul.bf16.gmra.mxu0 %v5123
      %v5481 = vpop.f32.mrf.mxu0
      %v5482 = vadd.f32 0.0, %v5481
      %v5483 = vpop.f32.mrf.mxu0
      %v5484 = vadd.f32 0.0, %v5483
      %5485 = vmatmul.bf16.gmra.mxu0 %v5126
      %v5486 = vpop.f32.mrf.mxu0
      %v5487 = vadd.f32 0.0, %v5486
      %v5488 = vpop.f32.mrf.mxu0
      %v5489 = vadd.f32 0.0, %v5488
      %5490 = vmatmul.bf16.gmra.mxu0 %v5129
      %v5491 = vpop.f32.mrf.mxu0
      %v5492 = vadd.f32 0.0, %v5491
      %v5493 = vpop.f32.mrf.mxu0
      %v5494 = vadd.f32 0.0, %v5493
      %5495 = vmatmul.bf16.gmra.mxu0 %v5132
      %v5496 = vpop.f32.mrf.mxu0
      %v5497 = vadd.f32 0.0, %v5496
      %v5498 = vpop.f32.mrf.mxu0
      %v5499 = vadd.f32 0.0, %v5498
      %5500 = vmatmul.bf16.gmra.mxu0 %v5135
      %v5501 = vpop.f32.mrf.mxu0
      %v5502 = vadd.f32 0.0, %v5501
      %v5503 = vpop.f32.mrf.mxu0
      %v5504 = vadd.f32 0.0, %v5503
      %5505 = vmatmul.bf16.gmra.mxu0 %v5138
      %v5506 = vpop.f32.mrf.mxu0
      %v5507 = vadd.f32 0.0, %v5506
      %v5508 = vpop.f32.mrf.mxu0
      %v5509 = vadd.f32 0.0, %v5508
      %5510 = vmatmul.bf16.gmra.mxu0 %v5141
      %v5511 = vpop.f32.mrf.mxu0
      %v5512 = vadd.f32 0.0, %v5511
      %v5513 = vpop.f32.mrf.mxu0
      %v5514 = vadd.f32 0.0, %v5513
      %5515 = vmatmul.bf16.gmra.mxu0 %v5144
      %v5516 = vpop.f32.mrf.mxu0
      %v5517 = vadd.f32 0.0, %v5516
      %v5518 = vpop.f32.mrf.mxu0
      %v5519 = vadd.f32 0.0, %v5518
      %5520 = vmatmul.bf16.gmra.mxu0 %v5147
      %v5521 = vpop.f32.mrf.mxu0
      %v5522 = vadd.f32 0.0, %v5521
      %v5523 = vpop.f32.mrf.mxu0
      %5524 = vdwg.mxu0
      %v5525 = vadd.f32 %v4565, %v5162
      %v5526 = vadd.f32 %v4566, %v5164
      %v5527 = vadd.f32 %v4567, %v5167
      %v5528 = vadd.f32 %v4568, %v5169
      %v5529 = vadd.f32 %v4569, %v5172
      %v5530 = vadd.f32 %v4570, %v5174
      %v5531 = vadd.f32 %v4571, %v5177
      %v5532 = vadd.f32 %v4572, %v5179
      %v5533 = vadd.f32 %v4573, %v5182
      %v5534 = vadd.f32 %v4574, %v5184
      %v5535 = vadd.f32 %v4575, %v5187
      %v5536 = vadd.f32 %v4576, %v5189
      %v5537 = vadd.f32 %v4577, %v5192
      %v5538 = vadd.f32 %v4578, %v5194
      %v5539 = vadd.f32 %v4579, %v5197
      %v5540 = vadd.f32 %v4580, %v5199
      %v5541 = vadd.f32 %v4581, %v5202
      %v5542 = vadd.f32 %v4582, %v5204
      %v5543 = vadd.f32 %v4583, %v5207
      %v5544 = vadd.f32 %v4584, %v5209
      %v5545 = vadd.f32 %v4585, %v5212
      %v5546 = vadd.f32 %v4586, %v5214
      %v5547 = vadd.f32 %v4587, %v5217
      %v5548 = vadd.f32 %v4588, %v5219
      %v5549 = vadd.f32 %v4589, %v5222
      %v5550 = vadd.f32 %v4590, %v5224
      %v5551 = vadd.f32 %v4591, %v5227
      %v5552 = vadd.f32 %v4592, %v5229
      %v5553 = vadd.f32 %v4593, %v5232
      %v5554 = vadd.f32 %v4594, %v5234
      %v5555 = vadd.f32 %v4595, %v5237
      %v5556 = vadd.f32 %v4596, %v5239
      %v5557 = vadd.f32 %v4597, %v5242
      %v5558 = vadd.f32 %v4598, %v5244
      %v5559 = vadd.f32 %v4599, %v5247
      %v5560 = vadd.f32 %v4600, %v5249
      %v5561 = vadd.f32 %v4601, %v5252
      %v5562 = vadd.f32 %v4602, %v5254
      %v5563 = vadd.f32 %v4603, %v5257
      %v5564 = vadd.f32 %v4604, %v5259
      %v5565 = vadd.f32 %v4605, %v5262
      %v5566 = vadd.f32 %v4606, %v5264
      %v5567 = vadd.f32 %v4607, %v5267
      %v5568 = vadd.f32 %v4608, %v5269
      %v5569 = vadd.f32 %v4609, %v5272
      %v5570 = vadd.f32 %v4610, %v5274
      %v5571 = vadd.f32 %v4611, %v5277
      %v5572 = vadd.f32 %v4612, %v5279
      %v5573 = vadd.f32 %v4613, %v5282
      %v5574 = vadd.f32 %v4614, %v5284
      %v5575 = vadd.f32 %v4615, %v5287
      %v5576 = vadd.f32 %v4616, %v5289
      %v5577 = vadd.f32 %v4617, %v5292
      %v5578 = vadd.f32 %v4618, %v5294
      %v5579 = vadd.f32 %v4619, %v5297
      %v5580 = vadd.f32 %v4620, %v5299
      %v5581 = vadd.f32 %v4621, %v5302
      %v5582 = vadd.f32 %v4622, %v5304
      %v5583 = vadd.f32 %v4623, %v5307
      %v5584 = vadd.f32 %v4624, %v5309
      %v5585 = vadd.f32 %v4625, %v5312
      %v5586 = vadd.f32 %v4626, %v5314
      %v5587 = vadd.f32 %v4627, %v5317
      %v5588 = vadd.f32 %v4628, %v5319
      %v5589 = vadd.f32 %v4629, %v5322
      %v5590 = vadd.f32 %v4630, %v5324
      %v5591 = vadd.f32 %v4631, %v5327
      %v5592 = vadd.f32 %v4632, %v5329
      %v5593 = vadd.f32 %v4633, %v5332
      %v5594 = vadd.f32 %v4634, %v5334
      %v5595 = vadd.f32 %v4635, %v5337
      %v5596 = vadd.f32 %v4636, %v5339
      %v5597 = vadd.f32 %v4637, %v5342
      %v5598 = vadd.f32 %v4638, %v5344
      %v5599 = vadd.f32 %v4639, %v5347
      %v5600 = vadd.f32 %v4640, %v5349
      %v5601 = vadd.f32 %v4641, %v5352
      %v5602 = vadd.f32 %v4642, %v5354
      %v5603 = vadd.f32 %v4643, %v5357
      %v5604 = vadd.f32 %v4644, %v5359
      %v5605 = vadd.f32 %v4645, %v5362
      %v5606 = vadd.f32 %v4646, %v5364
      %v5607 = vadd.f32 %v4647, %v5367
      %v5608 = vadd.f32 %v4648, %v5369
      %v5609 = vadd.f32 %v4649, %v5372
      %v5610 = vadd.f32 %v4650, %v5374
      %v5611 = vadd.f32 %v4651, %v5377
      %v5612 = vadd.f32 %v4652, %v5379
      %v5613 = vadd.f32 %v4653, %v5382
      %v5614 = vadd.f32 %v4654, %v5384
      %v5615 = vadd.f32 %v4655, %v5387
      %v5616 = vadd.f32 %v4656, %v5389
      %v5617 = vadd.f32 %v4657, %v5392
      %v5618 = vadd.f32 %v4658, %v5394
      %v5619 = vadd.f32 %v4659, %v5397
      %v5620 = vadd.f32 %v4660, %v5399
      %v5621 = vadd.f32 %v4661, %v5402
      %v5622 = vadd.f32 %v4662, %v5404
      %v5623 = vadd.f32 %v4663, %v5407
      %v5624 = vadd.f32 %v4664, %v5409
      %v5625 = vadd.f32 %v4665, %v5412
      %v5626 = vadd.f32 %v4666, %v5414
      %v5627 = vadd.f32 %v4667, %v5417
      %v5628 = vadd.f32 %v4668, %v5419
      %v5629 = vadd.f32 %v4669, %v5422
      %v5630 = vadd.f32 %v4670, %v5424
      %v5631 = vadd.f32 %v4671, %v5427
      %v5632 = vadd.f32 %v4672, %v5429
      %v5633 = vadd.f32 %v4673, %v5432
      %v5634 = vadd.f32 %v4674, %v5434
      %v5635 = vadd.f32 %v4675, %v5437
      %v5636 = vadd.f32 %v4676, %v5439
      %v5637 = vadd.f32 %v4677, %v5442
      %v5638 = vadd.f32 %v4678, %v5444
      %v5639 = vadd.f32 %v4679, %v5447
      %v5640 = vadd.f32 %v4680, %v5449
      %v5641 = vadd.f32 %v4681, %v5452
      %v5642 = vadd.f32 %v4682, %v5454
      %v5643 = vadd.f32 %v4683, %v5457
      %v5644 = vadd.f32 %v4684, %v5459
      %v5645 = vadd.f32 %v4685, %v5462
      %v5646 = vadd.f32 %v4686, %v5464
      %v5647 = vadd.f32 %v4687, %v5467
      %v5648 = vadd.f32 %v4688, %v5469
      %v5649 = vadd.f32 %v4689, %v5472
      %v5650 = vadd.f32 %v4690, %v5474
      %v5651 = vadd.f32 %v4691, %v5477
      %v5652 = vadd.f32 %v4692, %v5479
      %v5653 = vadd.f32 %v4693, %v5482
      %v5654 = vadd.f32 %v4694, %v5484
      %v5655 = vadd.f32 %v4695, %v5487
      %v5656 = vadd.f32 %v4696, %v5489
      %v5657 = vadd.f32 %v4697, %v5492
      %v5658 = vadd.f32 %v4698, %v5494
      %v5659 = vadd.f32 %v4699, %v5497
      %v5660 = vadd.f32 %v4700, %v5499
      %v5661 = vadd.f32 %v4701, %v5502
      %v5662 = vadd.f32 %v4702, %v5504
      %v5663 = vadd.f32 %v4703, %v5507
      %v5664 = vadd.f32 %v4704, %v5509
      %v5665 = vadd.f32 %v4705, %v5512
      %v5666 = vadd.f32 %v4706, %v5514
      %v5667 = vadd.f32 %v4707, %v5517
      %v5668 = vadd.f32 %v4708, %v5519
      %v5669 = vadd.f32 %v4709, %v5522
      %v5670 = vld [vmem:[%s192 + $0x44] sm:$0xff]
      %v5671 = vld [vmem:[%s192 + $0x4c] sm:$0xff]
      %v5672 = vld [vmem:[%s192 + $0x54] sm:$0xff]
      %v5673 = vld [vmem:[%s192 + $0x5c] sm:$0xff]
      %v5674 = vld [vmem:[%s192 + $0x64] sm:$0xff]
      %v5675 = vld [vmem:[%s192 + $0x6c] sm:$0xff]
      %v5676 = vld [vmem:[%s192 + $0x74] sm:$0xff]
      %v5677 = vld [vmem:[%s192 + $0x7c] sm:$0xff]
      %v5678 = vld [vmem:[%s192 + $0x84] sm:$0xff]
      %v5679 = vld [vmem:[%s192 + $0x8c] sm:$0xff]
      %v5680 = vld [vmem:[%s192 + $0x94] sm:$0xff]
      %v5681 = vld [vmem:[%s192 + $0x9c] sm:$0xff]
      %v5682 = vld [vmem:[%s192 + $0xa4] sm:$0xff]
      %v5683 = vld [vmem:[%s192 + $0xac] sm:$0xff]
      %v5684 = vld [vmem:[%s192 + $0xb4] sm:$0xff]
      %v5685 = vld [vmem:[%s192 + $0xbc] sm:$0xff]
      %v5686 = vld [vmem:[%s192 + $0xc4] sm:$0xff]
      %v5687 = vld [vmem:[%s192 + $0xcc] sm:$0xff]
      %v5688 = vld [vmem:[%s192 + $0xd4] sm:$0xff]
      %v5689 = vld [vmem:[%s192 + $0xdc] sm:$0xff]
      %v5690 = vld [vmem:[%s192 + $0xe4] sm:$0xff]
      %v5691 = vld [vmem:[%s192 + $0xec] sm:$0xff]
      %v5692 = vld [vmem:[%s192 + $0xf4] sm:$0xff]
      %v5693 = vld [vmem:[%s192 + $0xfc] sm:$0xff]
      %v5694 = vld [vmem:[%s192 + $0x104] sm:$0xff]
      %v5695 = vld [vmem:[%s192 + $0x10c] sm:$0xff]
      %v5696 = vld [vmem:[%s192 + $0x114] sm:$0xff]
      %v5697 = vld [vmem:[%s192 + $0x11c] sm:$0xff]
      %v5698 = vld [vmem:[%s192 + $0x124] sm:$0xff]
      %v5699 = vld [vmem:[%s192 + $0x12c] sm:$0xff]
      %v5700 = vld [vmem:[%s192 + $0x134] sm:$0xff]
      %v5701 = vld [vmem:[%s192 + $0x13c] sm:$0xff]
      %v5702 = vld [vmem:[%s192 + $0x144] sm:$0xff]
      %v5703 = vld [vmem:[%s192 + $0x14c] sm:$0xff]
      %v5704 = vld [vmem:[%s192 + $0x154] sm:$0xff]
      %v5705 = vld [vmem:[%s192 + $0x15c] sm:$0xff]
      %v5706 = vld [vmem:[%s192 + $0x164] sm:$0xff]
      %v5707 = vld [vmem:[%s192 + $0x16c] sm:$0xff]
      %v5708 = vld [vmem:[%s192 + $0x174] sm:$0xff]
      %v5709 = vld [vmem:[%s192 + $0x17c] sm:$0xff]
      %v5710 = vld [vmem:[%s192 + $0x184] sm:$0xff]
      %v5711 = vld [vmem:[%s192 + $0x18c] sm:$0xff]
      %v5712 = vld [vmem:[%s192 + $0x194] sm:$0xff]
      %v5713 = vld [vmem:[%s192 + $0x19c] sm:$0xff]
      %v5714 = vld [vmem:[%s192 + $0x1a4] sm:$0xff]
      %v5715 = vld [vmem:[%s192 + $0x1ac] sm:$0xff]
      %v5716 = vld [vmem:[%s192 + $0x1b4] sm:$0xff]
      %v5717 = vld [vmem:[%s192 + $0x1bc] sm:$0xff]
      %v5718 = vld [vmem:[%s192 + $0x1c4] sm:$0xff]
      %v5719 = vld [vmem:[%s192 + $0x1cc] sm:$0xff]
      %v5720 = vld [vmem:[%s192 + $0x1d4] sm:$0xff]
      %v5721 = vld [vmem:[%s192 + $0x1dc] sm:$0xff]
      %v5722 = vld [vmem:[%s192 + $0x1e4] sm:$0xff]
      %v5723 = vld [vmem:[%s192 + $0x1ec] sm:$0xff]
      %v5724 = vld [vmem:[%s192 + $0x1f4] sm:$0xff]
      %v5725 = vld [vmem:[%s192 + $0x1fc] sm:$0xff]
      %v5726 = vld [vmem:[%s192 + $0x204] sm:$0xff]
      %v5727 = vld [vmem:[%s192 + $0x20c] sm:$0xff]
      %v5728 = vld [vmem:[%s192 + $0x214] sm:$0xff]
      %v5729 = vld [vmem:[%s192 + $0x21c] sm:$0xff]
      %v5730 = vld [vmem:[%s192 + $0x224] sm:$0xff]
      %v5731 = vld [vmem:[%s192 + $0x22c] sm:$0xff]
      %v5732 = vld [vmem:[%s192 + $0x234] sm:$0xff]
      %v5733 = vld [vmem:[%s192 + $0x23c] sm:$0xff]
      %v5734 = vld [vmem:[%s192 + $0x244] sm:$0xff]
      %v5735 = vld [vmem:[%s192 + $0x24c] sm:$0xff]
      %v5736 = vld [vmem:[%s192 + $0x254] sm:$0xff]
      %v5737 = vld [vmem:[%s192 + $0x25c] sm:$0xff]
      %v5738 = vld [vmem:[%s192 + $0x264] sm:$0xff]
      %v5739 = vld [vmem:[%s192 + $0x26c] sm:$0xff]
      %v5740 = vld [vmem:[%s192 + $0x274] sm:$0xff]
      %v5741 = vld [vmem:[%s192 + $0x27c] sm:$0xff]
      %v5742 = vld [vmem:[%s192 + $0x284] sm:$0xff]
      %v5743 = vld [vmem:[%s192 + $0x28c] sm:$0xff]
      %v5744 = vld [vmem:[%s192 + $0x294] sm:$0xff]
      %v5745 = vld [vmem:[%s192 + $0x29c] sm:$0xff]
      %v5746 = vld [vmem:[%s192 + $0x2a4] sm:$0xff]
      %v5747 = vld [vmem:[%s192 + $0x2ac] sm:$0xff]
      %v5748 = vld [vmem:[%s192 + $0x2b4] sm:$0xff]
      %v5749 = vld [vmem:[%s192 + $0x2bc] sm:$0xff]
      %v5750 = vld [vmem:[%s192 + $0x2c4] sm:$0xff]
      %v5751 = vld [vmem:[%s192 + $0x2cc] sm:$0xff]
      %v5752 = vld [vmem:[%s192 + $0x2d4] sm:$0xff]
      %v5753 = vld [vmem:[%s192 + $0x2dc] sm:$0xff]
      %v5754 = vld [vmem:[%s192 + $0x2e4] sm:$0xff]
      %v5755 = vld [vmem:[%s192 + $0x2ec] sm:$0xff]
      %v5756 = vld [vmem:[%s192 + $0x2f4] sm:$0xff]
      %v5757 = vld [vmem:[%s192 + $0x2fc] sm:$0xff]
      %v5758 = vld [vmem:[%s192 + $0x304] sm:$0xff]
      %v5759 = vld [vmem:[%s192 + $0x30c] sm:$0xff]
      %v5760 = vld [vmem:[%s192 + $0x314] sm:$0xff]
      %v5761 = vld [vmem:[%s192 + $0x31c] sm:$0xff]
      %v5762 = vld [vmem:[%s192 + $0x324] sm:$0xff]
      %v5763 = vld [vmem:[%s192 + $0x32c] sm:$0xff]
      %v5764 = vld [vmem:[%s192 + $0x334] sm:$0xff]
      %v5765 = vld [vmem:[%s192 + $0x33c] sm:$0xff]
      %v5766 = vld [vmem:[%s192 + $0x344] sm:$0xff]
      %v5767 = vld [vmem:[%s192 + $0x34c] sm:$0xff]
      %v5768 = vld [vmem:[%s192 + $0x354] sm:$0xff]
      %v5769 = vld [vmem:[%s192 + $0x35c] sm:$0xff]
      %v5770 = vld [vmem:[%s192 + $0x364] sm:$0xff]
      %v5771 = vld [vmem:[%s192 + $0x36c] sm:$0xff]
      %v5772 = vld [vmem:[%s192 + $0x374] sm:$0xff]
      %v5773 = vld [vmem:[%s192 + $0x37c] sm:$0xff]
      %v5774 = vld [vmem:[%s192 + $0x384] sm:$0xff]
      %v5775 = vld [vmem:[%s192 + $0x38c] sm:$0xff]
      %v5776 = vld [vmem:[%s192 + $0x394] sm:$0xff]
      %v5777 = vld [vmem:[%s192 + $0x39c] sm:$0xff]
      %v5778 = vld [vmem:[%s192 + $0x3a4] sm:$0xff]
      %v5779 = vld [vmem:[%s192 + $0x3ac] sm:$0xff]
      %v5780 = vld [vmem:[%s192 + $0x3b4] sm:$0xff]
      %v5781 = vld [vmem:[%s192 + $0x3bc] sm:$0xff]
      %v5782 = vld [vmem:[%s192 + $0x3c4] sm:$0xff]
      %v5783 = vld [vmem:[%s192 + $0x3cc] sm:$0xff]
      %v5784 = vld [vmem:[%s192 + $0x3d4] sm:$0xff]
      %v5785 = vld [vmem:[%s192 + $0x3dc] sm:$0xff]
      %v5786 = vld [vmem:[%s192 + $0x3e4] sm:$0xff]
      %v5787 = vld [vmem:[%s192 + $0x3ec] sm:$0xff]
      %v5788 = vld [vmem:[%s192 + $0x3f4] sm:$0xff]
      %v5789 = vld [vmem:[%s192 + $0x3fc] sm:$0xff]
      %v5790 = vld [vmem:[%s192 + $0x404] sm:$0xff]
      %v5791 = vld [vmem:[%s192 + $0x40c] sm:$0xff]
      %v5792 = vld [vmem:[%s192 + $0x414] sm:$0xff]
      %v5793 = vld [vmem:[%s192 + $0x41c] sm:$0xff]
      %v5794 = vld [vmem:[%s192 + $0x424] sm:$0xff]
      %v5795 = vld [vmem:[%s192 + $0x42c] sm:$0xff]
      %v5796 = vld [vmem:[%s192 + $0x434] sm:$0xff]
      %v5797 = vld [vmem:[%s192 + $0x43c] sm:$0xff]
      %v5798 = vld [vmem:[%s192 + $0x444] sm:$0xff]
      %v5799 = vld [vmem:[%s192 + $0x44c] sm:$0xff]
      %v5800 = vld [vmem:[%s192 + $0x454] sm:$0xff]
      %v5801 = vld [vmem:[%s192 + $0x45c] sm:$0xff]
      %v5802 = vld [vmem:[%s192 + $0x464] sm:$0xff]
      %v5803 = vld [vmem:[%s192 + $0x46c] sm:$0xff]
      %v5804 = vld [vmem:[%s192 + $0x474] sm:$0xff]
      %v5805 = vld [vmem:[%s192 + $0x47c] sm:$0xff]
      %v5806 = vld [vmem:[%s192 + $0x484] sm:$0xff]
      %v5807 = vld [vmem:[%s192 + $0x48c] sm:$0xff]
      %v5808 = vld [vmem:[%s192 + $0x494] sm:$0xff]
      %v5809 = vld [vmem:[%s192 + $0x49c] sm:$0xff]
      %v5810 = vld [vmem:[%s192 + $0x4a4] sm:$0xff]
      %v5811 = vld [vmem:[%s192 + $0x4ac] sm:$0xff]
      %v5812 = vld [vmem:[%s192 + $0x4b4] sm:$0xff]
      %v5813 = vld [vmem:[%s192 + $0x4bc] sm:$0xff]
      %v5814 = vld [vmem:[%s192 + $0x4c4] sm:$0xf]
      %v5815 = vpack.c.bf16 %v5671, %v5670
      %v5816 = vpack.c.bf16 %v5673, %v5672
      %v5817 = vpack.c.bf16 %v5675, %v5674
      %v5818 = vpack.c.bf16 %v5677, %v5676
      %v5819 = vpack.c.bf16 %v5679, %v5678
      %v5820 = vpack.c.bf16 %v5681, %v5680
      %v5821 = vpack.c.bf16 %v5683, %v5682
      %v5822 = vpack.c.bf16 %v5685, %v5684
      %v5823 = vpack.c.bf16 %v5687, %v5686
      %v5824 = vpack.c.bf16 %v5689, %v5688
      %v5825 = vpack.c.bf16 %v5691, %v5690
      %v5826 = vpack.c.bf16 %v5693, %v5692
      %v5827 = vpack.c.bf16 %v5695, %v5694
      %v5828 = vpack.c.bf16 %v5697, %v5696
      %v5829 = vpack.c.bf16 %v5699, %v5698
      %v5830 = vpack.c.bf16 %v5701, %v5700
      %v5831 = vpack.c.bf16 %v5703, %v5702
      %v5832 = vpack.c.bf16 %v5705, %v5704
      %v5833 = vpack.c.bf16 %v5707, %v5706
      %v5834 = vpack.c.bf16 %v5709, %v5708
      %v5835 = vpack.c.bf16 %v5711, %v5710
      %v5836 = vpack.c.bf16 %v5713, %v5712
      %v5837 = vpack.c.bf16 %v5715, %v5714
      %v5838 = vpack.c.bf16 %v5717, %v5716
      %v5839 = vpack.c.bf16 %v5719, %v5718
      %v5840 = vpack.c.bf16 %v5721, %v5720
      %v5841 = vpack.c.bf16 %v5723, %v5722
      %v5842 = vpack.c.bf16 %v5725, %v5724
      %v5843 = vpack.c.bf16 %v5727, %v5726
      %v5844 = vpack.c.bf16 %v5729, %v5728
      %v5845 = vpack.c.bf16 %v5731, %v5730
      %v5846 = vpack.c.bf16 %v5733, %v5732
      %v5847 = vpack.c.bf16 %v5735, %v5734
      %v5848 = vpack.c.bf16 %v5737, %v5736
      %v5849 = vpack.c.bf16 %v5739, %v5738
      %v5850 = vpack.c.bf16 %v5741, %v5740
      %v5851 = vpack.c.bf16 %v5743, %v5742
      %v5852 = vpack.c.bf16 %v5745, %v5744
      %v5853 = vpack.c.bf16 %v5747, %v5746
      %v5854 = vpack.c.bf16 %v5749, %v5748
      %v5855 = vpack.c.bf16 %v5751, %v5750
      %v5856 = vpack.c.bf16 %v5753, %v5752
      %v5857 = vpack.c.bf16 %v5755, %v5754
      %v5858 = vpack.c.bf16 %v5757, %v5756
      %v5859 = vpack.c.bf16 %v5759, %v5758
      %v5860 = vpack.c.bf16 %v5761, %v5760
      %v5861 = vpack.c.bf16 %v5763, %v5762
      %v5862 = vpack.c.bf16 %v5765, %v5764
      %v5863 = vpack.c.bf16 %v5767, %v5766
      %v5864 = vpack.c.bf16 %v5769, %v5768
      %v5865 = vpack.c.bf16 %v5771, %v5770
      %v5866 = vpack.c.bf16 %v5773, %v5772
      %v5867 = vpack.c.bf16 %v5775, %v5774
      %v5868 = vpack.c.bf16 %v5777, %v5776
      %v5869 = vpack.c.bf16 %v5779, %v5778
      %v5870 = vpack.c.bf16 %v5781, %v5780
      %v5871 = vpack.c.bf16 %v5783, %v5782
      %v5872 = vpack.c.bf16 %v5785, %v5784
      %v5873 = vpack.c.bf16 %v5787, %v5786
      %v5874 = vpack.c.bf16 %v5789, %v5788
      %v5875 = vpack.c.bf16 %v5791, %v5790
      %v5876 = vpack.c.bf16 %v5793, %v5792
      %v5877 = vpack.c.bf16 %v5795, %v5794
      %v5878 = vpack.c.bf16 %v5797, %v5796
      %v5879 = vpack.c.bf16 %v5799, %v5798
      %v5880 = vpack.c.bf16 %v5801, %v5800
      %v5881 = vpack.c.bf16 %v5803, %v5802
      %v5882 = vpack.c.bf16 %v5805, %v5804
      %v5883 = vpack.c.bf16 %v5807, %v5806
      %v5884 = vpack.c.bf16 %v5809, %v5808
      %v5885 = vpack.c.bf16 %v5811, %v5810
      %v5886 = vpack.c.bf16 %v5813, %v5812
      %v5887 = vpack.c.bf16 %v5814, %v5814
      %s5888 = scalar_lea.vmem %s1, 24
      %v5889 = vld [vmem:[%s5888] sm:$0xf]
      %v5891 = vsel %vm638, %v5815, 0
      %v5894 = vsel %vm638, %v5816, 0
      %v5897 = vsel %vm638, %v5817, 0
      %v5900 = vsel %vm638, %v5818, 0
      %v5903 = vsel %vm638, %v5819, 0
      %v5906 = vsel %vm638, %v5820, 0
      %v5909 = vsel %vm638, %v5821, 0
      %v5912 = vsel %vm638, %v5822, 0
      %v5915 = vsel %vm638, %v5823, 0
      %v5918 = vsel %vm638, %v5824, 0
      %v5921 = vsel %vm638, %v5825, 0
      %v5924 = vsel %vm638, %v5826, 0
      %v5927 = vsel %vm638, %v5827, 0
      %v5930 = vsel %vm638, %v5828, 0
      %v5933 = vsel %vm638, %v5829, 0
      %v5936 = vsel %vm638, %v5830, 0
      %v5939 = vsel %vm638, %v5831, 0
      %v5942 = vsel %vm638, %v5832, 0
      %v5945 = vsel %vm638, %v5833, 0
      %v5948 = vsel %vm638, %v5834, 0
      %v5951 = vsel %vm638, %v5835, 0
      %v5954 = vsel %vm638, %v5836, 0
      %v5957 = vsel %vm638, %v5837, 0
      %v5960 = vsel %vm638, %v5838, 0
      %v5963 = vsel %vm638, %v5839, 0
      %v5966 = vsel %vm638, %v5840, 0
      %v5969 = vsel %vm638, %v5841, 0
      %v5972 = vsel %vm638, %v5842, 0
      %v5975 = vsel %vm638, %v5843, 0
      %v5978 = vsel %vm638, %v5844, 0
      %v5981 = vsel %vm638, %v5845, 0
      %v5984 = vsel %vm638, %v5846, 0
      %v5987 = vsel %vm638, %v5847, 0
      %v5990 = vsel %vm638, %v5848, 0
      %v5993 = vsel %vm638, %v5849, 0
      %v5996 = vsel %vm638, %v5850, 0
      %v5999 = vsel %vm638, %v5851, 0
      %v6002 = vsel %vm638, %v5852, 0
      %v6005 = vsel %vm638, %v5853, 0
      %v6008 = vsel %vm638, %v5854, 0
      %v6011 = vsel %vm638, %v5855, 0
      %v6014 = vsel %vm638, %v5856, 0
      %v6017 = vsel %vm638, %v5857, 0
      %v6020 = vsel %vm638, %v5858, 0
      %v6023 = vsel %vm638, %v5859, 0
      %v6026 = vsel %vm638, %v5860, 0
      %v6029 = vsel %vm638, %v5861, 0
      %v6032 = vsel %vm638, %v5862, 0
      %v6035 = vsel %vm638, %v5863, 0
      %v6038 = vsel %vm638, %v5864, 0
      %v6041 = vsel %vm638, %v5865, 0
      %v6044 = vsel %vm638, %v5866, 0
      %v6047 = vsel %vm638, %v5867, 0
      %v6050 = vsel %vm638, %v5868, 0
      %v6053 = vsel %vm638, %v5869, 0
      %v6056 = vsel %vm638, %v5870, 0
      %v6059 = vsel %vm638, %v5871, 0
      %v6062 = vsel %vm638, %v5872, 0
      %v6065 = vsel %vm638, %v5873, 0
      %v6068 = vsel %vm638, %v5874, 0
      %v6071 = vsel %vm638, %v5875, 0
      %v6074 = vsel %vm638, %v5876, 0
      %v6077 = vsel %vm638, %v5877, 0
      %v6080 = vsel %vm638, %v5878, 0
      %v6083 = vsel %vm638, %v5879, 0
      %v6086 = vsel %vm638, %v5880, 0
      %v6089 = vsel %vm638, %v5881, 0
      %v6092 = vsel %vm638, %v5882, 0
      %v6095 = vsel %vm638, %v5883, 0
      %v6098 = vsel %vm638, %v5884, 0
      %v6101 = vsel %vm638, %v5885, 0
      %v6104 = vsel %vm638, %v5886, 0
      %v6107 = vsel %vm638, %v5887, 0
      %v6110 = vsel %vm858, %v5889, 0
      %6112 = vmatpush.bf16.msra.mxu0 0
      %6113 = vmatpush.bf16.msra.mxu0 0
      %6114 = vmatpush.bf16.msra.mxu0 0
      %6115 = vmatpush.bf16.msra.mxu0 0
      %6116 = vmatpush.bf16.msra.mxu0 0
      %6117 = vmatpush.bf16.msra.mxu0 0
      %6118 = vmatpush.bf16.msra.mxu0 0
      %6119 = vmatpush.bf16.msra.mxu0 %v6110
      %6120 = vmatmul.bf16.gmra.mxu0 %v5891
      %v6121 = vpop.f32.mrf.mxu0
      %v6122 = vadd.f32 0.0, %v6121
      %v6123 = vpop.f32.mrf.mxu0
      %v6124 = vadd.f32 0.0, %v6123
      %6125 = vmatmul.bf16.gmra.mxu0 %v5894
      %v6126 = vpop.f32.mrf.mxu0
      %v6127 = vadd.f32 0.0, %v6126
      %v6128 = vpop.f32.mrf.mxu0
      %v6129 = vadd.f32 0.0, %v6128
      %6130 = vmatmul.bf16.gmra.mxu0 %v5897
      %v6131 = vpop.f32.mrf.mxu0
      %v6132 = vadd.f32 0.0, %v6131
      %v6133 = vpop.f32.mrf.mxu0
      %v6134 = vadd.f32 0.0, %v6133
      %6135 = vmatmul.bf16.gmra.mxu0 %v5900
      %v6136 = vpop.f32.mrf.mxu0
      %v6137 = vadd.f32 0.0, %v6136
      %v6138 = vpop.f32.mrf.mxu0
      %v6139 = vadd.f32 0.0, %v6138
      %6140 = vmatmul.bf16.gmra.mxu0 %v5903
      %v6141 = vpop.f32.mrf.mxu0
      %v6142 = vadd.f32 0.0, %v6141
      %v6143 = vpop.f32.mrf.mxu0
      %v6144 = vadd.f32 0.0, %v6143
      %6145 = vmatmul.bf16.gmra.mxu0 %v5906
      %v6146 = vpop.f32.mrf.mxu0
      %v6147 = vadd.f32 0.0, %v6146
      %v6148 = vpop.f32.mrf.mxu0
      %v6149 = vadd.f32 0.0, %v6148
      %6150 = vmatmul.bf16.gmra.mxu0 %v5909
      %v6151 = vpop.f32.mrf.mxu0
      %v6152 = vadd.f32 0.0, %v6151
      %v6153 = vpop.f32.mrf.mxu0
      %v6154 = vadd.f32 0.0, %v6153
      %6155 = vmatmul.bf16.gmra.mxu0 %v5912
      %v6156 = vpop.f32.mrf.mxu0
      %v6157 = vadd.f32 0.0, %v6156
      %v6158 = vpop.f32.mrf.mxu0
      %v6159 = vadd.f32 0.0, %v6158
      %6160 = vmatmul.bf16.gmra.mxu0 %v5915
      %v6161 = vpop.f32.mrf.mxu0
      %v6162 = vadd.f32 0.0, %v6161
      %v6163 = vpop.f32.mrf.mxu0
      %v6164 = vadd.f32 0.0, %v6163
      %6165 = vmatmul.bf16.gmra.mxu0 %v5918
      %v6166 = vpop.f32.mrf.mxu0
      %v6167 = vadd.f32 0.0, %v6166
      %v6168 = vpop.f32.mrf.mxu0
      %v6169 = vadd.f32 0.0, %v6168
      %6170 = vmatmul.bf16.gmra.mxu0 %v5921
      %v6171 = vpop.f32.mrf.mxu0
      %v6172 = vadd.f32 0.0, %v6171
      %v6173 = vpop.f32.mrf.mxu0
      %v6174 = vadd.f32 0.0, %v6173
      %6175 = vmatmul.bf16.gmra.mxu0 %v5924
      %v6176 = vpop.f32.mrf.mxu0
      %v6177 = vadd.f32 0.0, %v6176
      %v6178 = vpop.f32.mrf.mxu0
      %v6179 = vadd.f32 0.0, %v6178
      %6180 = vmatmul.bf16.gmra.mxu0 %v5927
      %v6181 = vpop.f32.mrf.mxu0
      %v6182 = vadd.f32 0.0, %v6181
      %v6183 = vpop.f32.mrf.mxu0
      %v6184 = vadd.f32 0.0, %v6183
      %6185 = vmatmul.bf16.gmra.mxu0 %v5930
      %v6186 = vpop.f32.mrf.mxu0
      %v6187 = vadd.f32 0.0, %v6186
      %v6188 = vpop.f32.mrf.mxu0
      %v6189 = vadd.f32 0.0, %v6188
      %6190 = vmatmul.bf16.gmra.mxu0 %v5933
      %v6191 = vpop.f32.mrf.mxu0
      %v6192 = vadd.f32 0.0, %v6191
      %v6193 = vpop.f32.mrf.mxu0
      %v6194 = vadd.f32 0.0, %v6193
      %6195 = vmatmul.bf16.gmra.mxu0 %v5936
      %v6196 = vpop.f32.mrf.mxu0
      %v6197 = vadd.f32 0.0, %v6196
      %v6198 = vpop.f32.mrf.mxu0
      %v6199 = vadd.f32 0.0, %v6198
      %6200 = vmatmul.bf16.gmra.mxu0 %v5939
      %v6201 = vpop.f32.mrf.mxu0
      %v6202 = vadd.f32 0.0, %v6201
      %v6203 = vpop.f32.mrf.mxu0
      %v6204 = vadd.f32 0.0, %v6203
      %6205 = vmatmul.bf16.gmra.mxu0 %v5942
      %v6206 = vpop.f32.mrf.mxu0
      %v6207 = vadd.f32 0.0, %v6206
      %v6208 = vpop.f32.mrf.mxu0
      %v6209 = vadd.f32 0.0, %v6208
      %6210 = vmatmul.bf16.gmra.mxu0 %v5945
      %v6211 = vpop.f32.mrf.mxu0
      %v6212 = vadd.f32 0.0, %v6211
      %v6213 = vpop.f32.mrf.mxu0
      %v6214 = vadd.f32 0.0, %v6213
      %6215 = vmatmul.bf16.gmra.mxu0 %v5948
      %v6216 = vpop.f32.mrf.mxu0
      %v6217 = vadd.f32 0.0, %v6216
      %v6218 = vpop.f32.mrf.mxu0
      %v6219 = vadd.f32 0.0, %v6218
      %6220 = vmatmul.bf16.gmra.mxu0 %v5951
      %v6221 = vpop.f32.mrf.mxu0
      %v6222 = vadd.f32 0.0, %v6221
      %v6223 = vpop.f32.mrf.mxu0
      %v6224 = vadd.f32 0.0, %v6223
      %6225 = vmatmul.bf16.gmra.mxu0 %v5954
      %v6226 = vpop.f32.mrf.mxu0
      %v6227 = vadd.f32 0.0, %v6226
      %v6228 = vpop.f32.mrf.mxu0
      %v6229 = vadd.f32 0.0, %v6228
      %6230 = vmatmul.bf16.gmra.mxu0 %v5957
      %v6231 = vpop.f32.mrf.mxu0
      %v6232 = vadd.f32 0.0, %v6231
      %v6233 = vpop.f32.mrf.mxu0
      %v6234 = vadd.f32 0.0, %v6233
      %6235 = vmatmul.bf16.gmra.mxu0 %v5960
      %v6236 = vpop.f32.mrf.mxu0
      %v6237 = vadd.f32 0.0, %v6236
      %v6238 = vpop.f32.mrf.mxu0
      %v6239 = vadd.f32 0.0, %v6238
      %6240 = vmatmul.bf16.gmra.mxu0 %v5963
      %v6241 = vpop.f32.mrf.mxu0
      %v6242 = vadd.f32 0.0, %v6241
      %v6243 = vpop.f32.mrf.mxu0
      %v6244 = vadd.f32 0.0, %v6243
      %6245 = vmatmul.bf16.gmra.mxu0 %v5966
      %v6246 = vpop.f32.mrf.mxu0
      %v6247 = vadd.f32 0.0, %v6246
      %v6248 = vpop.f32.mrf.mxu0
      %v6249 = vadd.f32 0.0, %v6248
      %6250 = vmatmul.bf16.gmra.mxu0 %v5969
      %v6251 = vpop.f32.mrf.mxu0
      %v6252 = vadd.f32 0.0, %v6251
      %v6253 = vpop.f32.mrf.mxu0
      %v6254 = vadd.f32 0.0, %v6253
      %6255 = vmatmul.bf16.gmra.mxu0 %v5972
      %v6256 = vpop.f32.mrf.mxu0
      %v6257 = vadd.f32 0.0, %v6256
      %v6258 = vpop.f32.mrf.mxu0
      %v6259 = vadd.f32 0.0, %v6258
      %6260 = vmatmul.bf16.gmra.mxu0 %v5975
      %v6261 = vpop.f32.mrf.mxu0
      %v6262 = vadd.f32 0.0, %v6261
      %v6263 = vpop.f32.mrf.mxu0
      %v6264 = vadd.f32 0.0, %v6263
      %6265 = vmatmul.bf16.gmra.mxu0 %v5978
      %v6266 = vpop.f32.mrf.mxu0
      %v6267 = vadd.f32 0.0, %v6266
      %v6268 = vpop.f32.mrf.mxu0
      %v6269 = vadd.f32 0.0, %v6268
      %6270 = vmatmul.bf16.gmra.mxu0 %v5981
      %v6271 = vpop.f32.mrf.mxu0
      %v6272 = vadd.f32 0.0, %v6271
      %v6273 = vpop.f32.mrf.mxu0
      %v6274 = vadd.f32 0.0, %v6273
      %6275 = vmatmul.bf16.gmra.mxu0 %v5984
      %v6276 = vpop.f32.mrf.mxu0
      %v6277 = vadd.f32 0.0, %v6276
      %v6278 = vpop.f32.mrf.mxu0
      %v6279 = vadd.f32 0.0, %v6278
      %6280 = vmatmul.bf16.gmra.mxu0 %v5987
      %v6281 = vpop.f32.mrf.mxu0
      %v6282 = vadd.f32 0.0, %v6281
      %v6283 = vpop.f32.mrf.mxu0
      %v6284 = vadd.f32 0.0, %v6283
      %6285 = vmatmul.bf16.gmra.mxu0 %v5990
      %v6286 = vpop.f32.mrf.mxu0
      %v6287 = vadd.f32 0.0, %v6286
      %v6288 = vpop.f32.mrf.mxu0
      %v6289 = vadd.f32 0.0, %v6288
      %6290 = vmatmul.bf16.gmra.mxu0 %v5993
      %v6291 = vpop.f32.mrf.mxu0
      %v6292 = vadd.f32 0.0, %v6291
      %v6293 = vpop.f32.mrf.mxu0
      %v6294 = vadd.f32 0.0, %v6293
      %6295 = vmatmul.bf16.gmra.mxu0 %v5996
      %v6296 = vpop.f32.mrf.mxu0
      %v6297 = vadd.f32 0.0, %v6296
      %v6298 = vpop.f32.mrf.mxu0
      %v6299 = vadd.f32 0.0, %v6298
      %6300 = vmatmul.bf16.gmra.mxu0 %v5999
      %v6301 = vpop.f32.mrf.mxu0
      %v6302 = vadd.f32 0.0, %v6301
      %v6303 = vpop.f32.mrf.mxu0
      %v6304 = vadd.f32 0.0, %v6303
      %6305 = vmatmul.bf16.gmra.mxu0 %v6002
      %v6306 = vpop.f32.mrf.mxu0
      %v6307 = vadd.f32 0.0, %v6306
      %v6308 = vpop.f32.mrf.mxu0
      %v6309 = vadd.f32 0.0, %v6308
      %6310 = vmatmul.bf16.gmra.mxu0 %v6005
      %v6311 = vpop.f32.mrf.mxu0
      %v6312 = vadd.f32 0.0, %v6311
      %v6313 = vpop.f32.mrf.mxu0
      %v6314 = vadd.f32 0.0, %v6313
      %6315 = vmatmul.bf16.gmra.mxu0 %v6008
      %v6316 = vpop.f32.mrf.mxu0
      %v6317 = vadd.f32 0.0, %v6316
      %v6318 = vpop.f32.mrf.mxu0
      %v6319 = vadd.f32 0.0, %v6318
      %6320 = vmatmul.bf16.gmra.mxu0 %v6011
      %v6321 = vpop.f32.mrf.mxu0
      %v6322 = vadd.f32 0.0, %v6321
      %v6323 = vpop.f32.mrf.mxu0
      %v6324 = vadd.f32 0.0, %v6323
      %6325 = vmatmul.bf16.gmra.mxu0 %v6014
      %v6326 = vpop.f32.mrf.mxu0
      %v6327 = vadd.f32 0.0, %v6326
      %v6328 = vpop.f32.mrf.mxu0
      %v6329 = vadd.f32 0.0, %v6328
      %6330 = vmatmul.bf16.gmra.mxu0 %v6017
      %v6331 = vpop.f32.mrf.mxu0
      %v6332 = vadd.f32 0.0, %v6331
      %v6333 = vpop.f32.mrf.mxu0
      %v6334 = vadd.f32 0.0, %v6333
      %6335 = vmatmul.bf16.gmra.mxu0 %v6020
      %v6336 = vpop.f32.mrf.mxu0
      %v6337 = vadd.f32 0.0, %v6336
      %v6338 = vpop.f32.mrf.mxu0
      %v6339 = vadd.f32 0.0, %v6338
      %6340 = vmatmul.bf16.gmra.mxu0 %v6023
      %v6341 = vpop.f32.mrf.mxu0
      %v6342 = vadd.f32 0.0, %v6341
      %v6343 = vpop.f32.mrf.mxu0
      %v6344 = vadd.f32 0.0, %v6343
      %6345 = vmatmul.bf16.gmra.mxu0 %v6026
      %v6346 = vpop.f32.mrf.mxu0
      %v6347 = vadd.f32 0.0, %v6346
      %v6348 = vpop.f32.mrf.mxu0
      %v6349 = vadd.f32 0.0, %v6348
      %6350 = vmatmul.bf16.gmra.mxu0 %v6029
      %v6351 = vpop.f32.mrf.mxu0
      %v6352 = vadd.f32 0.0, %v6351
      %v6353 = vpop.f32.mrf.mxu0
      %v6354 = vadd.f32 0.0, %v6353
      %6355 = vmatmul.bf16.gmra.mxu0 %v6032
      %v6356 = vpop.f32.mrf.mxu0
      %v6357 = vadd.f32 0.0, %v6356
      %v6358 = vpop.f32.mrf.mxu0
      %v6359 = vadd.f32 0.0, %v6358
      %6360 = vmatmul.bf16.gmra.mxu0 %v6035
      %v6361 = vpop.f32.mrf.mxu0
      %v6362 = vadd.f32 0.0, %v6361
      %v6363 = vpop.f32.mrf.mxu0
      %v6364 = vadd.f32 0.0, %v6363
      %6365 = vmatmul.bf16.gmra.mxu0 %v6038
      %v6366 = vpop.f32.mrf.mxu0
      %v6367 = vadd.f32 0.0, %v6366
      %v6368 = vpop.f32.mrf.mxu0
      %v6369 = vadd.f32 0.0, %v6368
      %6370 = vmatmul.bf16.gmra.mxu0 %v6041
      %v6371 = vpop.f32.mrf.mxu0
      %v6372 = vadd.f32 0.0, %v6371
      %v6373 = vpop.f32.mrf.mxu0
      %v6374 = vadd.f32 0.0, %v6373
      %6375 = vmatmul.bf16.gmra.mxu0 %v6044
      %v6376 = vpop.f32.mrf.mxu0
      %v6377 = vadd.f32 0.0, %v6376
      %v6378 = vpop.f32.mrf.mxu0
      %v6379 = vadd.f32 0.0, %v6378
      %6380 = vmatmul.bf16.gmra.mxu0 %v6047
      %v6381 = vpop.f32.mrf.mxu0
      %v6382 = vadd.f32 0.0, %v6381
      %v6383 = vpop.f32.mrf.mxu0
      %v6384 = vadd.f32 0.0, %v6383
      %6385 = vmatmul.bf16.gmra.mxu0 %v6050
      %v6386 = vpop.f32.mrf.mxu0
      %v6387 = vadd.f32 0.0, %v6386
      %v6388 = vpop.f32.mrf.mxu0
      %v6389 = vadd.f32 0.0, %v6388
      %6390 = vmatmul.bf16.gmra.mxu0 %v6053
      %v6391 = vpop.f32.mrf.mxu0
      %v6392 = vadd.f32 0.0, %v6391
      %v6393 = vpop.f32.mrf.mxu0
      %v6394 = vadd.f32 0.0, %v6393
      %6395 = vmatmul.bf16.gmra.mxu0 %v6056
      %v6396 = vpop.f32.mrf.mxu0
      %v6397 = vadd.f32 0.0, %v6396
      %v6398 = vpop.f32.mrf.mxu0
      %v6399 = vadd.f32 0.0, %v6398
      %6400 = vmatmul.bf16.gmra.mxu0 %v6059
      %v6401 = vpop.f32.mrf.mxu0
      %v6402 = vadd.f32 0.0, %v6401
      %v6403 = vpop.f32.mrf.mxu0
      %v6404 = vadd.f32 0.0, %v6403
      %6405 = vmatmul.bf16.gmra.mxu0 %v6062
      %v6406 = vpop.f32.mrf.mxu0
      %v6407 = vadd.f32 0.0, %v6406
      %v6408 = vpop.f32.mrf.mxu0
      %v6409 = vadd.f32 0.0, %v6408
      %6410 = vmatmul.bf16.gmra.mxu0 %v6065
      %v6411 = vpop.f32.mrf.mxu0
      %v6412 = vadd.f32 0.0, %v6411
      %v6413 = vpop.f32.mrf.mxu0
      %v6414 = vadd.f32 0.0, %v6413
      %6415 = vmatmul.bf16.gmra.mxu0 %v6068
      %v6416 = vpop.f32.mrf.mxu0
      %v6417 = vadd.f32 0.0, %v6416
      %v6418 = vpop.f32.mrf.mxu0
      %v6419 = vadd.f32 0.0, %v6418
      %6420 = vmatmul.bf16.gmra.mxu0 %v6071
      %v6421 = vpop.f32.mrf.mxu0
      %v6422 = vadd.f32 0.0, %v6421
      %v6423 = vpop.f32.mrf.mxu0
      %v6424 = vadd.f32 0.0, %v6423
      %6425 = vmatmul.bf16.gmra.mxu0 %v6074
      %v6426 = vpop.f32.mrf.mxu0
      %v6427 = vadd.f32 0.0, %v6426
      %v6428 = vpop.f32.mrf.mxu0
      %v6429 = vadd.f32 0.0, %v6428
      %6430 = vmatmul.bf16.gmra.mxu0 %v6077
      %v6431 = vpop.f32.mrf.mxu0
      %v6432 = vadd.f32 0.0, %v6431
      %v6433 = vpop.f32.mrf.mxu0
      %v6434 = vadd.f32 0.0, %v6433
      %6435 = vmatmul.bf16.gmra.mxu0 %v6080
      %v6436 = vpop.f32.mrf.mxu0
      %v6437 = vadd.f32 0.0, %v6436
      %v6438 = vpop.f32.mrf.mxu0
      %v6439 = vadd.f32 0.0, %v6438
      %6440 = vmatmul.bf16.gmra.mxu0 %v6083
      %v6441 = vpop.f32.mrf.mxu0
      %v6442 = vadd.f32 0.0, %v6441
      %v6443 = vpop.f32.mrf.mxu0
      %v6444 = vadd.f32 0.0, %v6443
      %6445 = vmatmul.bf16.gmra.mxu0 %v6086
      %v6446 = vpop.f32.mrf.mxu0
      %v6447 = vadd.f32 0.0, %v6446
      %v6448 = vpop.f32.mrf.mxu0
      %v6449 = vadd.f32 0.0, %v6448
      %6450 = vmatmul.bf16.gmra.mxu0 %v6089
      %v6451 = vpop.f32.mrf.mxu0
      %v6452 = vadd.f32 0.0, %v6451
      %v6453 = vpop.f32.mrf.mxu0
      %v6454 = vadd.f32 0.0, %v6453
      %6455 = vmatmul.bf16.gmra.mxu0 %v6092
      %v6456 = vpop.f32.mrf.mxu0
      %v6457 = vadd.f32 0.0, %v6456
      %v6458 = vpop.f32.mrf.mxu0
      %v6459 = vadd.f32 0.0, %v6458
      %6460 = vmatmul.bf16.gmra.mxu0 %v6095
      %v6461 = vpop.f32.mrf.mxu0
      %v6462 = vadd.f32 0.0, %v6461
      %v6463 = vpop.f32.mrf.mxu0
      %v6464 = vadd.f32 0.0, %v6463
      %6465 = vmatmul.bf16.gmra.mxu0 %v6098
      %v6466 = vpop.f32.mrf.mxu0
      %v6467 = vadd.f32 0.0, %v6466
      %v6468 = vpop.f32.mrf.mxu0
      %v6469 = vadd.f32 0.0, %v6468
      %6470 = vmatmul.bf16.gmra.mxu0 %v6101
      %v6471 = vpop.f32.mrf.mxu0
      %v6472 = vadd.f32 0.0, %v6471
      %v6473 = vpop.f32.mrf.mxu0
      %v6474 = vadd.f32 0.0, %v6473
      %6475 = vmatmul.bf16.gmra.mxu0 %v6104
      %v6476 = vpop.f32.mrf.mxu0
      %v6477 = vadd.f32 0.0, %v6476
      %v6478 = vpop.f32.mrf.mxu0
      %v6479 = vadd.f32 0.0, %v6478
      %6480 = vmatmul.bf16.gmra.mxu0 %v6107
      %v6481 = vpop.f32.mrf.mxu0
      %v6482 = vadd.f32 0.0, %v6481
      %v6483 = vpop.f32.mrf.mxu0
      %6484 = vdwg.mxu0
      %v6485 = vadd.f32 %v5525, %v6122
      %v6486 = vadd.f32 %v5526, %v6124
      %v6487 = vadd.f32 %v5527, %v6127
      %v6488 = vadd.f32 %v5528, %v6129
      %v6489 = vadd.f32 %v5529, %v6132
      %v6490 = vadd.f32 %v5530, %v6134
      %v6491 = vadd.f32 %v5531, %v6137
      %v6492 = vadd.f32 %v5532, %v6139
      %v6493 = vadd.f32 %v5533, %v6142
      %v6494 = vadd.f32 %v5534, %v6144
      %v6495 = vadd.f32 %v5535, %v6147
      %v6496 = vadd.f32 %v5536, %v6149
      %v6497 = vadd.f32 %v5537, %v6152
      %v6498 = vadd.f32 %v5538, %v6154
      %v6499 = vadd.f32 %v5539, %v6157
      %v6500 = vadd.f32 %v5540, %v6159
      %v6501 = vadd.f32 %v5541, %v6162
      %v6502 = vadd.f32 %v5542, %v6164
      %v6503 = vadd.f32 %v5543, %v6167
      %v6504 = vadd.f32 %v5544, %v6169
      %v6505 = vadd.f32 %v5545, %v6172
      %v6506 = vadd.f32 %v5546, %v6174
      %v6507 = vadd.f32 %v5547, %v6177
      %v6508 = vadd.f32 %v5548, %v6179
      %v6509 = vadd.f32 %v5549, %v6182
      %v6510 = vadd.f32 %v5550, %v6184
      %v6511 = vadd.f32 %v5551, %v6187
      %v6512 = vadd.f32 %v5552, %v6189
      %v6513 = vadd.f32 %v5553, %v6192
      %v6514 = vadd.f32 %v5554, %v6194
      %v6515 = vadd.f32 %v5555, %v6197
      %v6516 = vadd.f32 %v5556, %v6199
      %v6517 = vadd.f32 %v5557, %v6202
      %v6518 = vadd.f32 %v5558, %v6204
      %v6519 = vadd.f32 %v5559, %v6207
      %v6520 = vadd.f32 %v5560, %v6209
      %v6521 = vadd.f32 %v5561, %v6212
      %v6522 = vadd.f32 %v5562, %v6214
      %v6523 = vadd.f32 %v5563, %v6217
      %v6524 = vadd.f32 %v5564, %v6219
      %v6525 = vadd.f32 %v5565, %v6222
      %v6526 = vadd.f32 %v5566, %v6224
      %v6527 = vadd.f32 %v5567, %v6227
      %v6528 = vadd.f32 %v5568, %v6229
      %v6529 = vadd.f32 %v5569, %v6232
      %v6530 = vadd.f32 %v5570, %v6234
      %v6531 = vadd.f32 %v5571, %v6237
      %v6532 = vadd.f32 %v5572, %v6239
      %v6533 = vadd.f32 %v5573, %v6242
      %v6534 = vadd.f32 %v5574, %v6244
      %v6535 = vadd.f32 %v5575, %v6247
      %v6536 = vadd.f32 %v5576, %v6249
      %v6537 = vadd.f32 %v5577, %v6252
      %v6538 = vadd.f32 %v5578, %v6254
      %v6539 = vadd.f32 %v5579, %v6257
      %v6540 = vadd.f32 %v5580, %v6259
      %v6541 = vadd.f32 %v5581, %v6262
      %v6542 = vadd.f32 %v5582, %v6264
      %v6543 = vadd.f32 %v5583, %v6267
      %v6544 = vadd.f32 %v5584, %v6269
      %v6545 = vadd.f32 %v5585, %v6272
      %v6546 = vadd.f32 %v5586, %v6274
      %v6547 = vadd.f32 %v5587, %v6277
      %v6548 = vadd.f32 %v5588, %v6279
      %v6549 = vadd.f32 %v5589, %v6282
      %v6550 = vadd.f32 %v5590, %v6284
      %v6551 = vadd.f32 %v5591, %v6287
      %v6552 = vadd.f32 %v5592, %v6289
      %v6553 = vadd.f32 %v5593, %v6292
      %v6554 = vadd.f32 %v5594, %v6294
      %v6555 = vadd.f32 %v5595, %v6297
      %v6556 = vadd.f32 %v5596, %v6299
      %v6557 = vadd.f32 %v5597, %v6302
      %v6558 = vadd.f32 %v5598, %v6304
      %v6559 = vadd.f32 %v5599, %v6307
      %v6560 = vadd.f32 %v5600, %v6309
      %v6561 = vadd.f32 %v5601, %v6312
      %v6562 = vadd.f32 %v5602, %v6314
      %v6563 = vadd.f32 %v5603, %v6317
      %v6564 = vadd.f32 %v5604, %v6319
      %v6565 = vadd.f32 %v5605, %v6322
      %v6566 = vadd.f32 %v5606, %v6324
      %v6567 = vadd.f32 %v5607, %v6327
      %v6568 = vadd.f32 %v5608, %v6329
      %v6569 = vadd.f32 %v5609, %v6332
      %v6570 = vadd.f32 %v5610, %v6334
      %v6571 = vadd.f32 %v5611, %v6337
      %v6572 = vadd.f32 %v5612, %v6339
      %v6573 = vadd.f32 %v5613, %v6342
      %v6574 = vadd.f32 %v5614, %v6344
      %v6575 = vadd.f32 %v5615, %v6347
      %v6576 = vadd.f32 %v5616, %v6349
      %v6577 = vadd.f32 %v5617, %v6352
      %v6578 = vadd.f32 %v5618, %v6354
      %v6579 = vadd.f32 %v5619, %v6357
      %v6580 = vadd.f32 %v5620, %v6359
      %v6581 = vadd.f32 %v5621, %v6362
      %v6582 = vadd.f32 %v5622, %v6364
      %v6583 = vadd.f32 %v5623, %v6367
      %v6584 = vadd.f32 %v5624, %v6369
      %v6585 = vadd.f32 %v5625, %v6372
      %v6586 = vadd.f32 %v5626, %v6374
      %v6587 = vadd.f32 %v5627, %v6377
      %v6588 = vadd.f32 %v5628, %v6379
      %v6589 = vadd.f32 %v5629, %v6382
      %v6590 = vadd.f32 %v5630, %v6384
      %v6591 = vadd.f32 %v5631, %v6387
      %v6592 = vadd.f32 %v5632, %v6389
      %v6593 = vadd.f32 %v5633, %v6392
      %v6594 = vadd.f32 %v5634, %v6394
      %v6595 = vadd.f32 %v5635, %v6397
      %v6596 = vadd.f32 %v5636, %v6399
      %v6597 = vadd.f32 %v5637, %v6402
      %v6598 = vadd.f32 %v5638, %v6404
      %v6599 = vadd.f32 %v5639, %v6407
      %v6600 = vadd.f32 %v5640, %v6409
      %v6601 = vadd.f32 %v5641, %v6412
      %v6602 = vadd.f32 %v5642, %v6414
      %v6603 = vadd.f32 %v5643, %v6417
      %v6604 = vadd.f32 %v5644, %v6419
      %v6605 = vadd.f32 %v5645, %v6422
      %v6606 = vadd.f32 %v5646, %v6424
      %v6607 = vadd.f32 %v5647, %v6427
      %v6608 = vadd.f32 %v5648, %v6429
      %v6609 = vadd.f32 %v5649, %v6432
      %v6610 = vadd.f32 %v5650, %v6434
      %v6611 = vadd.f32 %v5651, %v6437
      %v6612 = vadd.f32 %v5652, %v6439
      %v6613 = vadd.f32 %v5653, %v6442
      %v6614 = vadd.f32 %v5654, %v6444
      %v6615 = vadd.f32 %v5655, %v6447
      %v6616 = vadd.f32 %v5656, %v6449
      %v6617 = vadd.f32 %v5657, %v6452
      %v6618 = vadd.f32 %v5658, %v6454
      %v6619 = vadd.f32 %v5659, %v6457
      %v6620 = vadd.f32 %v5660, %v6459
      %v6621 = vadd.f32 %v5661, %v6462
      %v6622 = vadd.f32 %v5662, %v6464
      %v6623 = vadd.f32 %v5663, %v6467
      %v6624 = vadd.f32 %v5664, %v6469
      %v6625 = vadd.f32 %v5665, %v6472
      %v6626 = vadd.f32 %v5666, %v6474
      %v6627 = vadd.f32 %v5667, %v6477
      %v6628 = vadd.f32 %v5668, %v6479
      %v6629 = vadd.f32 %v5669, %v6482
      %v6630 = vld [vmem:[%s192 + $0x45] sm:$0xff]
      %v6631 = vld [vmem:[%s192 + $0x4d] sm:$0xff]
      %v6632 = vld [vmem:[%s192 + $0x55] sm:$0xff]
      %v6633 = vld [vmem:[%s192 + $0x5d] sm:$0xff]
      %v6634 = vld [vmem:[%s192 + $0x65] sm:$0xff]
      %v6635 = vld [vmem:[%s192 + $0x6d] sm:$0xff]
      %v6636 = vld [vmem:[%s192 + $0x75] sm:$0xff]
      %v6637 = vld [vmem:[%s192 + $0x7d] sm:$0xff]
      %v6638 = vld [vmem:[%s192 + $0x85] sm:$0xff]
      %v6639 = vld [vmem:[%s192 + $0x8d] sm:$0xff]
      %v6640 = vld [vmem:[%s192 + $0x95] sm:$0xff]
      %v6641 = vld [vmem:[%s192 + $0x9d] sm:$0xff]
      %v6642 = vld [vmem:[%s192 + $0xa5] sm:$0xff]
      %v6643 = vld [vmem:[%s192 + $0xad] sm:$0xff]
      %v6644 = vld [vmem:[%s192 + $0xb5] sm:$0xff]
      %v6645 = vld [vmem:[%s192 + $0xbd] sm:$0xff]
      %v6646 = vld [vmem:[%s192 + $0xc5] sm:$0xff]
      %v6647 = vld [vmem:[%s192 + $0xcd] sm:$0xff]
      %v6648 = vld [vmem:[%s192 + $0xd5] sm:$0xff]
      %v6649 = vld [vmem:[%s192 + $0xdd] sm:$0xff]
      %v6650 = vld [vmem:[%s192 + $0xe5] sm:$0xff]
      %v6651 = vld [vmem:[%s192 + $0xed] sm:$0xff]
      %v6652 = vld [vmem:[%s192 + $0xf5] sm:$0xff]
      %v6653 = vld [vmem:[%s192 + $0xfd] sm:$0xff]
      %v6654 = vld [vmem:[%s192 + $0x105] sm:$0xff]
      %v6655 = vld [vmem:[%s192 + $0x10d] sm:$0xff]
      %v6656 = vld [vmem:[%s192 + $0x115] sm:$0xff]
      %v6657 = vld [vmem:[%s192 + $0x11d] sm:$0xff]
      %v6658 = vld [vmem:[%s192 + $0x125] sm:$0xff]
      %v6659 = vld [vmem:[%s192 + $0x12d] sm:$0xff]
      %v6660 = vld [vmem:[%s192 + $0x135] sm:$0xff]
      %v6661 = vld [vmem:[%s192 + $0x13d] sm:$0xff]
      %v6662 = vld [vmem:[%s192 + $0x145] sm:$0xff]
      %v6663 = vld [vmem:[%s192 + $0x14d] sm:$0xff]
      %v6664 = vld [vmem:[%s192 + $0x155] sm:$0xff]
      %v6665 = vld [vmem:[%s192 + $0x15d] sm:$0xff]
      %v6666 = vld [vmem:[%s192 + $0x165] sm:$0xff]
      %v6667 = vld [vmem:[%s192 + $0x16d] sm:$0xff]
      %v6668 = vld [vmem:[%s192 + $0x175] sm:$0xff]
      %v6669 = vld [vmem:[%s192 + $0x17d] sm:$0xff]
      %v6670 = vld [vmem:[%s192 + $0x185] sm:$0xff]
      %v6671 = vld [vmem:[%s192 + $0x18d] sm:$0xff]
      %v6672 = vld [vmem:[%s192 + $0x195] sm:$0xff]
      %v6673 = vld [vmem:[%s192 + $0x19d] sm:$0xff]
      %v6674 = vld [vmem:[%s192 + $0x1a5] sm:$0xff]
      %v6675 = vld [vmem:[%s192 + $0x1ad] sm:$0xff]
      %v6676 = vld [vmem:[%s192 + $0x1b5] sm:$0xff]
      %v6677 = vld [vmem:[%s192 + $0x1bd] sm:$0xff]
      %v6678 = vld [vmem:[%s192 + $0x1c5] sm:$0xff]
      %v6679 = vld [vmem:[%s192 + $0x1cd] sm:$0xff]
      %v6680 = vld [vmem:[%s192 + $0x1d5] sm:$0xff]
      %v6681 = vld [vmem:[%s192 + $0x1dd] sm:$0xff]
      %v6682 = vld [vmem:[%s192 + $0x1e5] sm:$0xff]
      %v6683 = vld [vmem:[%s192 + $0x1ed] sm:$0xff]
      %v6684 = vld [vmem:[%s192 + $0x1f5] sm:$0xff]
      %v6685 = vld [vmem:[%s192 + $0x1fd] sm:$0xff]
      %v6686 = vld [vmem:[%s192 + $0x205] sm:$0xff]
      %v6687 = vld [vmem:[%s192 + $0x20d] sm:$0xff]
      %v6688 = vld [vmem:[%s192 + $0x215] sm:$0xff]
      %v6689 = vld [vmem:[%s192 + $0x21d] sm:$0xff]
      %v6690 = vld [vmem:[%s192 + $0x225] sm:$0xff]
      %v6691 = vld [vmem:[%s192 + $0x22d] sm:$0xff]
      %v6692 = vld [vmem:[%s192 + $0x235] sm:$0xff]
      %v6693 = vld [vmem:[%s192 + $0x23d] sm:$0xff]
      %v6694 = vld [vmem:[%s192 + $0x245] sm:$0xff]
      %v6695 = vld [vmem:[%s192 + $0x24d] sm:$0xff]
      %v6696 = vld [vmem:[%s192 + $0x255] sm:$0xff]
      %v6697 = vld [vmem:[%s192 + $0x25d] sm:$0xff]
      %v6698 = vld [vmem:[%s192 + $0x265] sm:$0xff]
      %v6699 = vld [vmem:[%s192 + $0x26d] sm:$0xff]
      %v6700 = vld [vmem:[%s192 + $0x275] sm:$0xff]
      %v6701 = vld [vmem:[%s192 + $0x27d] sm:$0xff]
      %v6702 = vld [vmem:[%s192 + $0x285] sm:$0xff]
      %v6703 = vld [vmem:[%s192 + $0x28d] sm:$0xff]
      %v6704 = vld [vmem:[%s192 + $0x295] sm:$0xff]
      %v6705 = vld [vmem:[%s192 + $0x29d] sm:$0xff]
      %v6706 = vld [vmem:[%s192 + $0x2a5] sm:$0xff]
      %v6707 = vld [vmem:[%s192 + $0x2ad] sm:$0xff]
      %v6708 = vld [vmem:[%s192 + $0x2b5] sm:$0xff]
      %v6709 = vld [vmem:[%s192 + $0x2bd] sm:$0xff]
      %v6710 = vld [vmem:[%s192 + $0x2c5] sm:$0xff]
      %v6711 = vld [vmem:[%s192 + $0x2cd] sm:$0xff]
      %v6712 = vld [vmem:[%s192 + $0x2d5] sm:$0xff]
      %v6713 = vld [vmem:[%s192 + $0x2dd] sm:$0xff]
      %v6714 = vld [vmem:[%s192 + $0x2e5] sm:$0xff]
      %v6715 = vld [vmem:[%s192 + $0x2ed] sm:$0xff]
      %v6716 = vld [vmem:[%s192 + $0x2f5] sm:$0xff]
      %v6717 = vld [vmem:[%s192 + $0x2fd] sm:$0xff]
      %v6718 = vld [vmem:[%s192 + $0x305] sm:$0xff]
      %v6719 = vld [vmem:[%s192 + $0x30d] sm:$0xff]
      %v6720 = vld [vmem:[%s192 + $0x315] sm:$0xff]
      %v6721 = vld [vmem:[%s192 + $0x31d] sm:$0xff]
      %v6722 = vld [vmem:[%s192 + $0x325] sm:$0xff]
      %v6723 = vld [vmem:[%s192 + $0x32d] sm:$0xff]
      %v6724 = vld [vmem:[%s192 + $0x335] sm:$0xff]
      %v6725 = vld [vmem:[%s192 + $0x33d] sm:$0xff]
      %v6726 = vld [vmem:[%s192 + $0x345] sm:$0xff]
      %v6727 = vld [vmem:[%s192 + $0x34d] sm:$0xff]
      %v6728 = vld [vmem:[%s192 + $0x355] sm:$0xff]
      %v6729 = vld [vmem:[%s192 + $0x35d] sm:$0xff]
      %v6730 = vld [vmem:[%s192 + $0x365] sm:$0xff]
      %v6731 = vld [vmem:[%s192 + $0x36d] sm:$0xff]
      %v6732 = vld [vmem:[%s192 + $0x375] sm:$0xff]
      %v6733 = vld [vmem:[%s192 + $0x37d] sm:$0xff]
      %v6734 = vld [vmem:[%s192 + $0x385] sm:$0xff]
      %v6735 = vld [vmem:[%s192 + $0x38d] sm:$0xff]
      %v6736 = vld [vmem:[%s192 + $0x395] sm:$0xff]
      %v6737 = vld [vmem:[%s192 + $0x39d] sm:$0xff]
      %v6738 = vld [vmem:[%s192 + $0x3a5] sm:$0xff]
      %v6739 = vld [vmem:[%s192 + $0x3ad] sm:$0xff]
      %v6740 = vld [vmem:[%s192 + $0x3b5] sm:$0xff]
      %v6741 = vld [vmem:[%s192 + $0x3bd] sm:$0xff]
      %v6742 = vld [vmem:[%s192 + $0x3c5] sm:$0xff]
      %v6743 = vld [vmem:[%s192 + $0x3cd] sm:$0xff]
      %v6744 = vld [vmem:[%s192 + $0x3d5] sm:$0xff]
      %v6745 = vld [vmem:[%s192 + $0x3dd] sm:$0xff]
      %v6746 = vld [vmem:[%s192 + $0x3e5] sm:$0xff]
      %v6747 = vld [vmem:[%s192 + $0x3ed] sm:$0xff]
      %v6748 = vld [vmem:[%s192 + $0x3f5] sm:$0xff]
      %v6749 = vld [vmem:[%s192 + $0x3fd] sm:$0xff]
      %v6750 = vld [vmem:[%s192 + $0x405] sm:$0xff]
      %v6751 = vld [vmem:[%s192 + $0x40d] sm:$0xff]
      %v6752 = vld [vmem:[%s192 + $0x415] sm:$0xff]
      %v6753 = vld [vmem:[%s192 + $0x41d] sm:$0xff]
      %v6754 = vld [vmem:[%s192 + $0x425] sm:$0xff]
      %v6755 = vld [vmem:[%s192 + $0x42d] sm:$0xff]
      %v6756 = vld [vmem:[%s192 + $0x435] sm:$0xff]
      %v6757 = vld [vmem:[%s192 + $0x43d] sm:$0xff]
      %v6758 = vld [vmem:[%s192 + $0x445] sm:$0xff]
      %v6759 = vld [vmem:[%s192 + $0x44d] sm:$0xff]
      %v6760 = vld [vmem:[%s192 + $0x455] sm:$0xff]
      %v6761 = vld [vmem:[%s192 + $0x45d] sm:$0xff]
      %v6762 = vld [vmem:[%s192 + $0x465] sm:$0xff]
      %v6763 = vld [vmem:[%s192 + $0x46d] sm:$0xff]
      %v6764 = vld [vmem:[%s192 + $0x475] sm:$0xff]
      %v6765 = vld [vmem:[%s192 + $0x47d] sm:$0xff]
      %v6766 = vld [vmem:[%s192 + $0x485] sm:$0xff]
      %v6767 = vld [vmem:[%s192 + $0x48d] sm:$0xff]
      %v6768 = vld [vmem:[%s192 + $0x495] sm:$0xff]
      %v6769 = vld [vmem:[%s192 + $0x49d] sm:$0xff]
      %v6770 = vld [vmem:[%s192 + $0x4a5] sm:$0xff]
      %v6771 = vld [vmem:[%s192 + $0x4ad] sm:$0xff]
      %v6772 = vld [vmem:[%s192 + $0x4b5] sm:$0xff]
      %v6773 = vld [vmem:[%s192 + $0x4bd] sm:$0xff]
      %v6774 = vld [vmem:[%s192 + $0x4c5] sm:$0xf]
      %v6775 = vpack.c.bf16 %v6631, %v6630
      %v6776 = vpack.c.bf16 %v6633, %v6632
      %v6777 = vpack.c.bf16 %v6635, %v6634
      %v6778 = vpack.c.bf16 %v6637, %v6636
      %v6779 = vpack.c.bf16 %v6639, %v6638
      %v6780 = vpack.c.bf16 %v6641, %v6640
      %v6781 = vpack.c.bf16 %v6643, %v6642
      %v6782 = vpack.c.bf16 %v6645, %v6644
      %v6783 = vpack.c.bf16 %v6647, %v6646
      %v6784 = vpack.c.bf16 %v6649, %v6648
      %v6785 = vpack.c.bf16 %v6651, %v6650
      %v6786 = vpack.c.bf16 %v6653, %v6652
      %v6787 = vpack.c.bf16 %v6655, %v6654
      %v6788 = vpack.c.bf16 %v6657, %v6656
      %v6789 = vpack.c.bf16 %v6659, %v6658
      %v6790 = vpack.c.bf16 %v6661, %v6660
      %v6791 = vpack.c.bf16 %v6663, %v6662
      %v6792 = vpack.c.bf16 %v6665, %v6664
      %v6793 = vpack.c.bf16 %v6667, %v6666
      %v6794 = vpack.c.bf16 %v6669, %v6668
      %v6795 = vpack.c.bf16 %v6671, %v6670
      %v6796 = vpack.c.bf16 %v6673, %v6672
      %v6797 = vpack.c.bf16 %v6675, %v6674
      %v6798 = vpack.c.bf16 %v6677, %v6676
      %v6799 = vpack.c.bf16 %v6679, %v6678
      %v6800 = vpack.c.bf16 %v6681, %v6680
      %v6801 = vpack.c.bf16 %v6683, %v6682
      %v6802 = vpack.c.bf16 %v6685, %v6684
      %v6803 = vpack.c.bf16 %v6687, %v6686
      %v6804 = vpack.c.bf16 %v6689, %v6688
      %v6805 = vpack.c.bf16 %v6691, %v6690
      %v6806 = vpack.c.bf16 %v6693, %v6692
      %v6807 = vpack.c.bf16 %v6695, %v6694
      %v6808 = vpack.c.bf16 %v6697, %v6696
      %v6809 = vpack.c.bf16 %v6699, %v6698
      %v6810 = vpack.c.bf16 %v6701, %v6700
      %v6811 = vpack.c.bf16 %v6703, %v6702
      %v6812 = vpack.c.bf16 %v6705, %v6704
      %v6813 = vpack.c.bf16 %v6707, %v6706
      %v6814 = vpack.c.bf16 %v6709, %v6708
      %v6815 = vpack.c.bf16 %v6711, %v6710
      %v6816 = vpack.c.bf16 %v6713, %v6712
      %v6817 = vpack.c.bf16 %v6715, %v6714
      %v6818 = vpack.c.bf16 %v6717, %v6716
      %v6819 = vpack.c.bf16 %v6719, %v6718
      %v6820 = vpack.c.bf16 %v6721, %v6720
      %v6821 = vpack.c.bf16 %v6723, %v6722
      %v6822 = vpack.c.bf16 %v6725, %v6724
      %v6823 = vpack.c.bf16 %v6727, %v6726
      %v6824 = vpack.c.bf16 %v6729, %v6728
      %v6825 = vpack.c.bf16 %v6731, %v6730
      %v6826 = vpack.c.bf16 %v6733, %v6732
      %v6827 = vpack.c.bf16 %v6735, %v6734
      %v6828 = vpack.c.bf16 %v6737, %v6736
      %v6829 = vpack.c.bf16 %v6739, %v6738
      %v6830 = vpack.c.bf16 %v6741, %v6740
      %v6831 = vpack.c.bf16 %v6743, %v6742
      %v6832 = vpack.c.bf16 %v6745, %v6744
      %v6833 = vpack.c.bf16 %v6747, %v6746
      %v6834 = vpack.c.bf16 %v6749, %v6748
      %v6835 = vpack.c.bf16 %v6751, %v6750
      %v6836 = vpack.c.bf16 %v6753, %v6752
      %v6837 = vpack.c.bf16 %v6755, %v6754
      %v6838 = vpack.c.bf16 %v6757, %v6756
      %v6839 = vpack.c.bf16 %v6759, %v6758
      %v6840 = vpack.c.bf16 %v6761, %v6760
      %v6841 = vpack.c.bf16 %v6763, %v6762
      %v6842 = vpack.c.bf16 %v6765, %v6764
      %v6843 = vpack.c.bf16 %v6767, %v6766
      %v6844 = vpack.c.bf16 %v6769, %v6768
      %v6845 = vpack.c.bf16 %v6771, %v6770
      %v6846 = vpack.c.bf16 %v6773, %v6772
      %v6847 = vpack.c.bf16 %v6774, %v6774
      %s6848 = scalar_lea.vmem %s1, 28
      %v6849 = vld [vmem:[%s6848] sm:$0xf]
      %v6851 = vsel %vm638, %v6775, 0
      %v6854 = vsel %vm638, %v6776, 0
      %v6857 = vsel %vm638, %v6777, 0
      %v6860 = vsel %vm638, %v6778, 0
      %v6863 = vsel %vm638, %v6779, 0
      %v6866 = vsel %vm638, %v6780, 0
      %v6869 = vsel %vm638, %v6781, 0
      %v6872 = vsel %vm638, %v6782, 0
      %v6875 = vsel %vm638, %v6783, 0
      %v6878 = vsel %vm638, %v6784, 0
      %v6881 = vsel %vm638, %v6785, 0
      %v6884 = vsel %vm638, %v6786, 0
      %v6887 = vsel %vm638, %v6787, 0
      %v6890 = vsel %vm638, %v6788, 0
      %v6893 = vsel %vm638, %v6789, 0
      %v6896 = vsel %vm638, %v6790, 0
      %v6899 = vsel %vm638, %v6791, 0
      %v6902 = vsel %vm638, %v6792, 0
      %v6905 = vsel %vm638, %v6793, 0
      %v6908 = vsel %vm638, %v6794, 0
      %v6911 = vsel %vm638, %v6795, 0
      %v6914 = vsel %vm638, %v6796, 0
      %v6917 = vsel %vm638, %v6797, 0
      %v6920 = vsel %vm638, %v6798, 0
      %v6923 = vsel %vm638, %v6799, 0
      %v6926 = vsel %vm638, %v6800, 0
      %v6929 = vsel %vm638, %v6801, 0
      %v6932 = vsel %vm638, %v6802, 0
      %v6935 = vsel %vm638, %v6803, 0
      %v6938 = vsel %vm638, %v6804, 0
      %v6941 = vsel %vm638, %v6805, 0
      %v6944 = vsel %vm638, %v6806, 0
      %v6947 = vsel %vm638, %v6807, 0
      %v6950 = vsel %vm638, %v6808, 0
      %v6953 = vsel %vm638, %v6809, 0
      %v6956 = vsel %vm638, %v6810, 0
      %v6959 = vsel %vm638, %v6811, 0
      %v6962 = vsel %vm638, %v6812, 0
      %v6965 = vsel %vm638, %v6813, 0
      %v6968 = vsel %vm638, %v6814, 0
      %v6971 = vsel %vm638, %v6815, 0
      %v6974 = vsel %vm638, %v6816, 0
      %v6977 = vsel %vm638, %v6817, 0
      %v6980 = vsel %vm638, %v6818, 0
      %v6983 = vsel %vm638, %v6819, 0
      %v6986 = vsel %vm638, %v6820, 0
      %v6989 = vsel %vm638, %v6821, 0
      %v6992 = vsel %vm638, %v6822, 0
      %v6995 = vsel %vm638, %v6823, 0
      %v6998 = vsel %vm638, %v6824, 0
      %v7001 = vsel %vm638, %v6825, 0
      %v7004 = vsel %vm638, %v6826, 0
      %v7007 = vsel %vm638, %v6827, 0
      %v7010 = vsel %vm638, %v6828, 0
      %v7013 = vsel %vm638, %v6829, 0
      %v7016 = vsel %vm638, %v6830, 0
      %v7019 = vsel %vm638, %v6831, 0
      %v7022 = vsel %vm638, %v6832, 0
      %v7025 = vsel %vm638, %v6833, 0
      %v7028 = vsel %vm638, %v6834, 0
      %v7031 = vsel %vm638, %v6835, 0
      %v7034 = vsel %vm638, %v6836, 0
      %v7037 = vsel %vm638, %v6837, 0
      %v7040 = vsel %vm638, %v6838, 0
      %v7043 = vsel %vm638, %v6839, 0
      %v7046 = vsel %vm638, %v6840, 0
      %v7049 = vsel %vm638, %v6841, 0
      %v7052 = vsel %vm638, %v6842, 0
      %v7055 = vsel %vm638, %v6843, 0
      %v7058 = vsel %vm638, %v6844, 0
      %v7061 = vsel %vm638, %v6845, 0
      %v7064 = vsel %vm638, %v6846, 0
      %v7067 = vsel %vm638, %v6847, 0
      %v7070 = vsel %vm858, %v6849, 0
      %7072 = vmatpush.bf16.msra.mxu0 0
      %7073 = vmatpush.bf16.msra.mxu0 0
      %7074 = vmatpush.bf16.msra.mxu0 0
      %7075 = vmatpush.bf16.msra.mxu0 0
      %7076 = vmatpush.bf16.msra.mxu0 0
      %7077 = vmatpush.bf16.msra.mxu0 0
      %7078 = vmatpush.bf16.msra.mxu0 0
      %7079 = vmatpush.bf16.msra.mxu0 %v7070
      %7080 = vmatmul.bf16.gmra.mxu0 %v6851
      %v7081 = vpop.f32.mrf.mxu0
      %v7082 = vadd.f32 0.0, %v7081
      %v7083 = vpop.f32.mrf.mxu0
      %v7084 = vadd.f32 0.0, %v7083
      %7085 = vmatmul.bf16.gmra.mxu0 %v6854
      %v7086 = vpop.f32.mrf.mxu0
      %v7087 = vadd.f32 0.0, %v7086
      %v7088 = vpop.f32.mrf.mxu0
      %v7089 = vadd.f32 0.0, %v7088
      %7090 = vmatmul.bf16.gmra.mxu0 %v6857
      %v7091 = vpop.f32.mrf.mxu0
      %v7092 = vadd.f32 0.0, %v7091
      %v7093 = vpop.f32.mrf.mxu0
      %v7094 = vadd.f32 0.0, %v7093
      %7095 = vmatmul.bf16.gmra.mxu0 %v6860
      %v7096 = vpop.f32.mrf.mxu0
      %v7097 = vadd.f32 0.0, %v7096
      %v7098 = vpop.f32.mrf.mxu0
      %v7099 = vadd.f32 0.0, %v7098
      %7100 = vmatmul.bf16.gmra.mxu0 %v6863
      %v7101 = vpop.f32.mrf.mxu0
      %v7102 = vadd.f32 0.0, %v7101
      %v7103 = vpop.f32.mrf.mxu0
      %v7104 = vadd.f32 0.0, %v7103
      %7105 = vmatmul.bf16.gmra.mxu0 %v6866
      %v7106 = vpop.f32.mrf.mxu0
      %v7107 = vadd.f32 0.0, %v7106
      %v7108 = vpop.f32.mrf.mxu0
      %v7109 = vadd.f32 0.0, %v7108
      %7110 = vmatmul.bf16.gmra.mxu0 %v6869
      %v7111 = vpop.f32.mrf.mxu0
      %v7112 = vadd.f32 0.0, %v7111
      %v7113 = vpop.f32.mrf.mxu0
      %v7114 = vadd.f32 0.0, %v7113
      %7115 = vmatmul.bf16.gmra.mxu0 %v6872
      %v7116 = vpop.f32.mrf.mxu0
      %v7117 = vadd.f32 0.0, %v7116
      %v7118 = vpop.f32.mrf.mxu0
      %v7119 = vadd.f32 0.0, %v7118
      %7120 = vmatmul.bf16.gmra.mxu0 %v6875
      %v7121 = vpop.f32.mrf.mxu0
      %v7122 = vadd.f32 0.0, %v7121
      %v7123 = vpop.f32.mrf.mxu0
      %v7124 = vadd.f32 0.0, %v7123
      %7125 = vmatmul.bf16.gmra.mxu0 %v6878
      %v7126 = vpop.f32.mrf.mxu0
      %v7127 = vadd.f32 0.0, %v7126
      %v7128 = vpop.f32.mrf.mxu0
      %v7129 = vadd.f32 0.0, %v7128
      %7130 = vmatmul.bf16.gmra.mxu0 %v6881
      %v7131 = vpop.f32.mrf.mxu0
      %v7132 = vadd.f32 0.0, %v7131
      %v7133 = vpop.f32.mrf.mxu0
      %v7134 = vadd.f32 0.0, %v7133
      %7135 = vmatmul.bf16.gmra.mxu0 %v6884
      %v7136 = vpop.f32.mrf.mxu0
      %v7137 = vadd.f32 0.0, %v7136
      %v7138 = vpop.f32.mrf.mxu0
      %v7139 = vadd.f32 0.0, %v7138
      %7140 = vmatmul.bf16.gmra.mxu0 %v6887
      %v7141 = vpop.f32.mrf.mxu0
      %v7142 = vadd.f32 0.0, %v7141
      %v7143 = vpop.f32.mrf.mxu0
      %v7144 = vadd.f32 0.0, %v7143
      %7145 = vmatmul.bf16.gmra.mxu0 %v6890
      %v7146 = vpop.f32.mrf.mxu0
      %v7147 = vadd.f32 0.0, %v7146
      %v7148 = vpop.f32.mrf.mxu0
      %v7149 = vadd.f32 0.0, %v7148
      %7150 = vmatmul.bf16.gmra.mxu0 %v6893
      %v7151 = vpop.f32.mrf.mxu0
      %v7152 = vadd.f32 0.0, %v7151
      %v7153 = vpop.f32.mrf.mxu0
      %v7154 = vadd.f32 0.0, %v7153
      %7155 = vmatmul.bf16.gmra.mxu0 %v6896
      %v7156 = vpop.f32.mrf.mxu0
      %v7157 = vadd.f32 0.0, %v7156
      %v7158 = vpop.f32.mrf.mxu0
      %v7159 = vadd.f32 0.0, %v7158
      %7160 = vmatmul.bf16.gmra.mxu0 %v6899
      %v7161 = vpop.f32.mrf.mxu0
      %v7162 = vadd.f32 0.0, %v7161
      %v7163 = vpop.f32.mrf.mxu0
      %v7164 = vadd.f32 0.0, %v7163
      %7165 = vmatmul.bf16.gmra.mxu0 %v6902
      %v7166 = vpop.f32.mrf.mxu0
      %v7167 = vadd.f32 0.0, %v7166
      %v7168 = vpop.f32.mrf.mxu0
      %v7169 = vadd.f32 0.0, %v7168
      %7170 = vmatmul.bf16.gmra.mxu0 %v6905
      %v7171 = vpop.f32.mrf.mxu0
      %v7172 = vadd.f32 0.0, %v7171
      %v7173 = vpop.f32.mrf.mxu0
      %v7174 = vadd.f32 0.0, %v7173
      %7175 = vmatmul.bf16.gmra.mxu0 %v6908
      %v7176 = vpop.f32.mrf.mxu0
      %v7177 = vadd.f32 0.0, %v7176
      %v7178 = vpop.f32.mrf.mxu0
      %v7179 = vadd.f32 0.0, %v7178
      %7180 = vmatmul.bf16.gmra.mxu0 %v6911
      %v7181 = vpop.f32.mrf.mxu0
      %v7182 = vadd.f32 0.0, %v7181
      %v7183 = vpop.f32.mrf.mxu0
      %v7184 = vadd.f32 0.0, %v7183
      %7185 = vmatmul.bf16.gmra.mxu0 %v6914
      %v7186 = vpop.f32.mrf.mxu0
      %v7187 = vadd.f32 0.0, %v7186
      %v7188 = vpop.f32.mrf.mxu0
      %v7189 = vadd.f32 0.0, %v7188
      %7190 = vmatmul.bf16.gmra.mxu0 %v6917
      %v7191 = vpop.f32.mrf.mxu0
      %v7192 = vadd.f32 0.0, %v7191
      %v7193 = vpop.f32.mrf.mxu0
      %v7194 = vadd.f32 0.0, %v7193
      %7195 = vmatmul.bf16.gmra.mxu0 %v6920
      %v7196 = vpop.f32.mrf.mxu0
      %v7197 = vadd.f32 0.0, %v7196
      %v7198 = vpop.f32.mrf.mxu0
      %v7199 = vadd.f32 0.0, %v7198
      %7200 = vmatmul.bf16.gmra.mxu0 %v6923
      %v7201 = vpop.f32.mrf.mxu0
      %v7202 = vadd.f32 0.0, %v7201
      %v7203 = vpop.f32.mrf.mxu0
      %v7204 = vadd.f32 0.0, %v7203
      %7205 = vmatmul.bf16.gmra.mxu0 %v6926
      %v7206 = vpop.f32.mrf.mxu0
      %v7207 = vadd.f32 0.0, %v7206
      %v7208 = vpop.f32.mrf.mxu0
      %v7209 = vadd.f32 0.0, %v7208
      %7210 = vmatmul.bf16.gmra.mxu0 %v6929
      %v7211 = vpop.f32.mrf.mxu0
      %v7212 = vadd.f32 0.0, %v7211
      %v7213 = vpop.f32.mrf.mxu0
      %v7214 = vadd.f32 0.0, %v7213
      %7215 = vmatmul.bf16.gmra.mxu0 %v6932
      %v7216 = vpop.f32.mrf.mxu0
      %v7217 = vadd.f32 0.0, %v7216
      %v7218 = vpop.f32.mrf.mxu0
      %v7219 = vadd.f32 0.0, %v7218
      %7220 = vmatmul.bf16.gmra.mxu0 %v6935
      %v7221 = vpop.f32.mrf.mxu0
      %v7222 = vadd.f32 0.0, %v7221
      %v7223 = vpop.f32.mrf.mxu0
      %v7224 = vadd.f32 0.0, %v7223
      %7225 = vmatmul.bf16.gmra.mxu0 %v6938
      %v7226 = vpop.f32.mrf.mxu0
      %v7227 = vadd.f32 0.0, %v7226
      %v7228 = vpop.f32.mrf.mxu0
      %v7229 = vadd.f32 0.0, %v7228
      %7230 = vmatmul.bf16.gmra.mxu0 %v6941
      %v7231 = vpop.f32.mrf.mxu0
      %v7232 = vadd.f32 0.0, %v7231
      %v7233 = vpop.f32.mrf.mxu0
      %v7234 = vadd.f32 0.0, %v7233
      %7235 = vmatmul.bf16.gmra.mxu0 %v6944
      %v7236 = vpop.f32.mrf.mxu0
      %v7237 = vadd.f32 0.0, %v7236
      %v7238 = vpop.f32.mrf.mxu0
      %v7239 = vadd.f32 0.0, %v7238
      %7240 = vmatmul.bf16.gmra.mxu0 %v6947
      %v7241 = vpop.f32.mrf.mxu0
      %v7242 = vadd.f32 0.0, %v7241
      %v7243 = vpop.f32.mrf.mxu0
      %v7244 = vadd.f32 0.0, %v7243
      %7245 = vmatmul.bf16.gmra.mxu0 %v6950
      %v7246 = vpop.f32.mrf.mxu0
      %v7247 = vadd.f32 0.0, %v7246
      %v7248 = vpop.f32.mrf.mxu0
      %v7249 = vadd.f32 0.0, %v7248
      %7250 = vmatmul.bf16.gmra.mxu0 %v6953
      %v7251 = vpop.f32.mrf.mxu0
      %v7252 = vadd.f32 0.0, %v7251
      %v7253 = vpop.f32.mrf.mxu0
      %v7254 = vadd.f32 0.0, %v7253
      %7255 = vmatmul.bf16.gmra.mxu0 %v6956
      %v7256 = vpop.f32.mrf.mxu0
      %v7257 = vadd.f32 0.0, %v7256
      %v7258 = vpop.f32.mrf.mxu0
      %v7259 = vadd.f32 0.0, %v7258
      %7260 = vmatmul.bf16.gmra.mxu0 %v6959
      %v7261 = vpop.f32.mrf.mxu0
      %v7262 = vadd.f32 0.0, %v7261
      %v7263 = vpop.f32.mrf.mxu0
      %v7264 = vadd.f32 0.0, %v7263
      %7265 = vmatmul.bf16.gmra.mxu0 %v6962
      %v7266 = vpop.f32.mrf.mxu0
      %v7267 = vadd.f32 0.0, %v7266
      %v7268 = vpop.f32.mrf.mxu0
      %v7269 = vadd.f32 0.0, %v7268
      %7270 = vmatmul.bf16.gmra.mxu0 %v6965
      %v7271 = vpop.f32.mrf.mxu0
      %v7272 = vadd.f32 0.0, %v7271
      %v7273 = vpop.f32.mrf.mxu0
      %v7274 = vadd.f32 0.0, %v7273
      %7275 = vmatmul.bf16.gmra.mxu0 %v6968
      %v7276 = vpop.f32.mrf.mxu0
      %v7277 = vadd.f32 0.0, %v7276
      %v7278 = vpop.f32.mrf.mxu0
      %v7279 = vadd.f32 0.0, %v7278
      %7280 = vmatmul.bf16.gmra.mxu0 %v6971
      %v7281 = vpop.f32.mrf.mxu0
      %v7282 = vadd.f32 0.0, %v7281
      %v7283 = vpop.f32.mrf.mxu0
      %v7284 = vadd.f32 0.0, %v7283
      %7285 = vmatmul.bf16.gmra.mxu0 %v6974
      %v7286 = vpop.f32.mrf.mxu0
      %v7287 = vadd.f32 0.0, %v7286
      %v7288 = vpop.f32.mrf.mxu0
      %v7289 = vadd.f32 0.0, %v7288
      %7290 = vmatmul.bf16.gmra.mxu0 %v6977
      %v7291 = vpop.f32.mrf.mxu0
      %v7292 = vadd.f32 0.0, %v7291
      %v7293 = vpop.f32.mrf.mxu0
      %v7294 = vadd.f32 0.0, %v7293
      %7295 = vmatmul.bf16.gmra.mxu0 %v6980
      %v7296 = vpop.f32.mrf.mxu0
      %v7297 = vadd.f32 0.0, %v7296
      %v7298 = vpop.f32.mrf.mxu0
      %v7299 = vadd.f32 0.0, %v7298
      %7300 = vmatmul.bf16.gmra.mxu0 %v6983
      %v7301 = vpop.f32.mrf.mxu0
      %v7302 = vadd.f32 0.0, %v7301
      %v7303 = vpop.f32.mrf.mxu0
      %v7304 = vadd.f32 0.0, %v7303
      %7305 = vmatmul.bf16.gmra.mxu0 %v6986
      %v7306 = vpop.f32.mrf.mxu0
      %v7307 = vadd.f32 0.0, %v7306
      %v7308 = vpop.f32.mrf.mxu0
      %v7309 = vadd.f32 0.0, %v7308
      %7310 = vmatmul.bf16.gmra.mxu0 %v6989
      %v7311 = vpop.f32.mrf.mxu0
      %v7312 = vadd.f32 0.0, %v7311
      %v7313 = vpop.f32.mrf.mxu0
      %v7314 = vadd.f32 0.0, %v7313
      %7315 = vmatmul.bf16.gmra.mxu0 %v6992
      %v7316 = vpop.f32.mrf.mxu0
      %v7317 = vadd.f32 0.0, %v7316
      %v7318 = vpop.f32.mrf.mxu0
      %v7319 = vadd.f32 0.0, %v7318
      %7320 = vmatmul.bf16.gmra.mxu0 %v6995
      %v7321 = vpop.f32.mrf.mxu0
      %v7322 = vadd.f32 0.0, %v7321
      %v7323 = vpop.f32.mrf.mxu0
      %v7324 = vadd.f32 0.0, %v7323
      %7325 = vmatmul.bf16.gmra.mxu0 %v6998
      %v7326 = vpop.f32.mrf.mxu0
      %v7327 = vadd.f32 0.0, %v7326
      %v7328 = vpop.f32.mrf.mxu0
      %v7329 = vadd.f32 0.0, %v7328
      %7330 = vmatmul.bf16.gmra.mxu0 %v7001
      %v7331 = vpop.f32.mrf.mxu0
      %v7332 = vadd.f32 0.0, %v7331
      %v7333 = vpop.f32.mrf.mxu0
      %v7334 = vadd.f32 0.0, %v7333
      %7335 = vmatmul.bf16.gmra.mxu0 %v7004
      %v7336 = vpop.f32.mrf.mxu0
      %v7337 = vadd.f32 0.0, %v7336
      %v7338 = vpop.f32.mrf.mxu0
      %v7339 = vadd.f32 0.0, %v7338
      %7340 = vmatmul.bf16.gmra.mxu0 %v7007
      %v7341 = vpop.f32.mrf.mxu0
      %v7342 = vadd.f32 0.0, %v7341
      %v7343 = vpop.f32.mrf.mxu0
      %v7344 = vadd.f32 0.0, %v7343
      %7345 = vmatmul.bf16.gmra.mxu0 %v7010
      %v7346 = vpop.f32.mrf.mxu0
      %v7347 = vadd.f32 0.0, %v7346
      %v7348 = vpop.f32.mrf.mxu0
      %v7349 = vadd.f32 0.0, %v7348
      %7350 = vmatmul.bf16.gmra.mxu0 %v7013
      %v7351 = vpop.f32.mrf.mxu0
      %v7352 = vadd.f32 0.0, %v7351
      %v7353 = vpop.f32.mrf.mxu0
      %v7354 = vadd.f32 0.0, %v7353
      %7355 = vmatmul.bf16.gmra.mxu0 %v7016
      %v7356 = vpop.f32.mrf.mxu0
      %v7357 = vadd.f32 0.0, %v7356
      %v7358 = vpop.f32.mrf.mxu0
      %v7359 = vadd.f32 0.0, %v7358
      %7360 = vmatmul.bf16.gmra.mxu0 %v7019
      %v7361 = vpop.f32.mrf.mxu0
      %v7362 = vadd.f32 0.0, %v7361
      %v7363 = vpop.f32.mrf.mxu0
      %v7364 = vadd.f32 0.0, %v7363
      %7365 = vmatmul.bf16.gmra.mxu0 %v7022
      %v7366 = vpop.f32.mrf.mxu0
      %v7367 = vadd.f32 0.0, %v7366
      %v7368 = vpop.f32.mrf.mxu0
      %v7369 = vadd.f32 0.0, %v7368
      %7370 = vmatmul.bf16.gmra.mxu0 %v7025
      %v7371 = vpop.f32.mrf.mxu0
      %v7372 = vadd.f32 0.0, %v7371
      %v7373 = vpop.f32.mrf.mxu0
      %v7374 = vadd.f32 0.0, %v7373
      %7375 = vmatmul.bf16.gmra.mxu0 %v7028
      %v7376 = vpop.f32.mrf.mxu0
      %v7377 = vadd.f32 0.0, %v7376
      %v7378 = vpop.f32.mrf.mxu0
      %v7379 = vadd.f32 0.0, %v7378
      %7380 = vmatmul.bf16.gmra.mxu0 %v7031
      %v7381 = vpop.f32.mrf.mxu0
      %v7382 = vadd.f32 0.0, %v7381
      %v7383 = vpop.f32.mrf.mxu0
      %v7384 = vadd.f32 0.0, %v7383
      %7385 = vmatmul.bf16.gmra.mxu0 %v7034
      %v7386 = vpop.f32.mrf.mxu0
      %v7387 = vadd.f32 0.0, %v7386
      %v7388 = vpop.f32.mrf.mxu0
      %v7389 = vadd.f32 0.0, %v7388
      %7390 = vmatmul.bf16.gmra.mxu0 %v7037
      %v7391 = vpop.f32.mrf.mxu0
      %v7392 = vadd.f32 0.0, %v7391
      %v7393 = vpop.f32.mrf.mxu0
      %v7394 = vadd.f32 0.0, %v7393
      %7395 = vmatmul.bf16.gmra.mxu0 %v7040
      %v7396 = vpop.f32.mrf.mxu0
      %v7397 = vadd.f32 0.0, %v7396
      %v7398 = vpop.f32.mrf.mxu0
      %v7399 = vadd.f32 0.0, %v7398
      %7400 = vmatmul.bf16.gmra.mxu0 %v7043
      %v7401 = vpop.f32.mrf.mxu0
      %v7402 = vadd.f32 0.0, %v7401
      %v7403 = vpop.f32.mrf.mxu0
      %v7404 = vadd.f32 0.0, %v7403
      %7405 = vmatmul.bf16.gmra.mxu0 %v7046
      %v7406 = vpop.f32.mrf.mxu0
      %v7407 = vadd.f32 0.0, %v7406
      %v7408 = vpop.f32.mrf.mxu0
      %v7409 = vadd.f32 0.0, %v7408
      %7410 = vmatmul.bf16.gmra.mxu0 %v7049
      %v7411 = vpop.f32.mrf.mxu0
      %v7412 = vadd.f32 0.0, %v7411
      %v7413 = vpop.f32.mrf.mxu0
      %v7414 = vadd.f32 0.0, %v7413
      %7415 = vmatmul.bf16.gmra.mxu0 %v7052
      %v7416 = vpop.f32.mrf.mxu0
      %v7417 = vadd.f32 0.0, %v7416
      %v7418 = vpop.f32.mrf.mxu0
      %v7419 = vadd.f32 0.0, %v7418
      %7420 = vmatmul.bf16.gmra.mxu0 %v7055
      %v7421 = vpop.f32.mrf.mxu0
      %v7422 = vadd.f32 0.0, %v7421
      %v7423 = vpop.f32.mrf.mxu0
      %v7424 = vadd.f32 0.0, %v7423
      %7425 = vmatmul.bf16.gmra.mxu0 %v7058
      %v7426 = vpop.f32.mrf.mxu0
      %v7427 = vadd.f32 0.0, %v7426
      %v7428 = vpop.f32.mrf.mxu0
      %v7429 = vadd.f32 0.0, %v7428
      %7430 = vmatmul.bf16.gmra.mxu0 %v7061
      %v7431 = vpop.f32.mrf.mxu0
      %v7432 = vadd.f32 0.0, %v7431
      %v7433 = vpop.f32.mrf.mxu0
      %v7434 = vadd.f32 0.0, %v7433
      %7435 = vmatmul.bf16.gmra.mxu0 %v7064
      %v7436 = vpop.f32.mrf.mxu0
      %v7437 = vadd.f32 0.0, %v7436
      %v7438 = vpop.f32.mrf.mxu0
      %v7439 = vadd.f32 0.0, %v7438
      %7440 = vmatmul.bf16.gmra.mxu0 %v7067
      %v7441 = vpop.f32.mrf.mxu0
      %v7442 = vadd.f32 0.0, %v7441
      %v7443 = vpop.f32.mrf.mxu0
      %7444 = vdwg.mxu0
      %v7445 = vadd.f32 %v6485, %v7082
      %v7446 = vadd.f32 %v6486, %v7084
      %v7447 = vadd.f32 %v6487, %v7087
      %v7448 = vadd.f32 %v6488, %v7089
      %v7449 = vadd.f32 %v6489, %v7092
      %v7450 = vadd.f32 %v6490, %v7094
      %v7451 = vadd.f32 %v6491, %v7097
      %v7452 = vadd.f32 %v6492, %v7099
      %v7453 = vadd.f32 %v6493, %v7102
      %v7454 = vadd.f32 %v6494, %v7104
      %v7455 = vadd.f32 %v6495, %v7107
      %v7456 = vadd.f32 %v6496, %v7109
      %v7457 = vadd.f32 %v6497, %v7112
      %v7458 = vadd.f32 %v6498, %v7114
      %v7459 = vadd.f32 %v6499, %v7117
      %v7460 = vadd.f32 %v6500, %v7119
      %v7461 = vadd.f32 %v6501, %v7122
      %v7462 = vadd.f32 %v6502, %v7124
      %v7463 = vadd.f32 %v6503, %v7127
      %v7464 = vadd.f32 %v6504, %v7129
      %v7465 = vadd.f32 %v6505, %v7132
      %v7466 = vadd.f32 %v6506, %v7134
      %v7467 = vadd.f32 %v6507, %v7137
      %v7468 = vadd.f32 %v6508, %v7139
      %v7469 = vadd.f32 %v6509, %v7142
      %v7470 = vadd.f32 %v6510, %v7144
      %v7471 = vadd.f32 %v6511, %v7147
      %v7472 = vadd.f32 %v6512, %v7149
      %v7473 = vadd.f32 %v6513, %v7152
      %v7474 = vadd.f32 %v6514, %v7154
      %v7475 = vadd.f32 %v6515, %v7157
      %v7476 = vadd.f32 %v6516, %v7159
      %v7477 = vadd.f32 %v6517, %v7162
      %v7478 = vadd.f32 %v6518, %v7164
      %v7479 = vadd.f32 %v6519, %v7167
      %v7480 = vadd.f32 %v6520, %v7169
      %v7481 = vadd.f32 %v6521, %v7172
      %v7482 = vadd.f32 %v6522, %v7174
      %v7483 = vadd.f32 %v6523, %v7177
      %v7484 = vadd.f32 %v6524, %v7179
      %v7485 = vadd.f32 %v6525, %v7182
      %v7486 = vadd.f32 %v6526, %v7184
      %v7487 = vadd.f32 %v6527, %v7187
      %v7488 = vadd.f32 %v6528, %v7189
      %v7489 = vadd.f32 %v6529, %v7192
      %v7490 = vadd.f32 %v6530, %v7194
      %v7491 = vadd.f32 %v6531, %v7197
      %v7492 = vadd.f32 %v6532, %v7199
      %v7493 = vadd.f32 %v6533, %v7202
      %v7494 = vadd.f32 %v6534, %v7204
      %v7495 = vadd.f32 %v6535, %v7207
      %v7496 = vadd.f32 %v6536, %v7209
      %v7497 = vadd.f32 %v6537, %v7212
      %v7498 = vadd.f32 %v6538, %v7214
      %v7499 = vadd.f32 %v6539, %v7217
      %v7500 = vadd.f32 %v6540, %v7219
      %v7501 = vadd.f32 %v6541, %v7222
      %v7502 = vadd.f32 %v6542, %v7224
      %v7503 = vadd.f32 %v6543, %v7227
      %v7504 = vadd.f32 %v6544, %v7229
      %v7505 = vadd.f32 %v6545, %v7232
      %v7506 = vadd.f32 %v6546, %v7234
      %v7507 = vadd.f32 %v6547, %v7237
      %v7508 = vadd.f32 %v6548, %v7239
      %v7509 = vadd.f32 %v6549, %v7242
      %v7510 = vadd.f32 %v6550, %v7244
      %v7511 = vadd.f32 %v6551, %v7247
      %v7512 = vadd.f32 %v6552, %v7249
      %v7513 = vadd.f32 %v6553, %v7252
      %v7514 = vadd.f32 %v6554, %v7254
      %v7515 = vadd.f32 %v6555, %v7257
      %v7516 = vadd.f32 %v6556, %v7259
      %v7517 = vadd.f32 %v6557, %v7262
      %v7518 = vadd.f32 %v6558, %v7264
      %v7519 = vadd.f32 %v6559, %v7267
      %v7520 = vadd.f32 %v6560, %v7269
      %v7521 = vadd.f32 %v6561, %v7272
      %v7522 = vadd.f32 %v6562, %v7274
      %v7523 = vadd.f32 %v6563, %v7277
      %v7524 = vadd.f32 %v6564, %v7279
      %v7525 = vadd.f32 %v6565, %v7282
      %v7526 = vadd.f32 %v6566, %v7284
      %v7527 = vadd.f32 %v6567, %v7287
      %v7528 = vadd.f32 %v6568, %v7289
      %v7529 = vadd.f32 %v6569, %v7292
      %v7530 = vadd.f32 %v6570, %v7294
      %v7531 = vadd.f32 %v6571, %v7297
      %v7532 = vadd.f32 %v6572, %v7299
      %v7533 = vadd.f32 %v6573, %v7302
      %v7534 = vadd.f32 %v6574, %v7304
      %v7535 = vadd.f32 %v6575, %v7307
      %v7536 = vadd.f32 %v6576, %v7309
      %v7537 = vadd.f32 %v6577, %v7312
      %v7538 = vadd.f32 %v6578, %v7314
      %v7539 = vadd.f32 %v6579, %v7317
      %v7540 = vadd.f32 %v6580, %v7319
      %v7541 = vadd.f32 %v6581, %v7322
      %v7542 = vadd.f32 %v6582, %v7324
      %v7543 = vadd.f32 %v6583, %v7327
      %v7544 = vadd.f32 %v6584, %v7329
      %v7545 = vadd.f32 %v6585, %v7332
      %v7546 = vadd.f32 %v6586, %v7334
      %v7547 = vadd.f32 %v6587, %v7337
      %v7548 = vadd.f32 %v6588, %v7339
      %v7549 = vadd.f32 %v6589, %v7342
      %v7550 = vadd.f32 %v6590, %v7344
      %v7551 = vadd.f32 %v6591, %v7347
      %v7552 = vadd.f32 %v6592, %v7349
      %v7553 = vadd.f32 %v6593, %v7352
      %v7554 = vadd.f32 %v6594, %v7354
      %v7555 = vadd.f32 %v6595, %v7357
      %v7556 = vadd.f32 %v6596, %v7359
      %v7557 = vadd.f32 %v6597, %v7362
      %v7558 = vadd.f32 %v6598, %v7364
      %v7559 = vadd.f32 %v6599, %v7367
      %v7560 = vadd.f32 %v6600, %v7369
      %v7561 = vadd.f32 %v6601, %v7372
      %v7562 = vadd.f32 %v6602, %v7374
      %v7563 = vadd.f32 %v6603, %v7377
      %v7564 = vadd.f32 %v6604, %v7379
      %v7565 = vadd.f32 %v6605, %v7382
      %v7566 = vadd.f32 %v6606, %v7384
      %v7567 = vadd.f32 %v6607, %v7387
      %v7568 = vadd.f32 %v6608, %v7389
      %v7569 = vadd.f32 %v6609, %v7392
      %v7570 = vadd.f32 %v6610, %v7394
      %v7571 = vadd.f32 %v6611, %v7397
      %v7572 = vadd.f32 %v6612, %v7399
      %v7573 = vadd.f32 %v6613, %v7402
      %v7574 = vadd.f32 %v6614, %v7404
      %v7575 = vadd.f32 %v6615, %v7407
      %v7576 = vadd.f32 %v6616, %v7409
      %v7577 = vadd.f32 %v6617, %v7412
      %v7578 = vadd.f32 %v6618, %v7414
      %v7579 = vadd.f32 %v6619, %v7417
      %v7580 = vadd.f32 %v6620, %v7419
      %v7581 = vadd.f32 %v6621, %v7422
      %v7582 = vadd.f32 %v6622, %v7424
      %v7583 = vadd.f32 %v6623, %v7427
      %v7584 = vadd.f32 %v6624, %v7429
      %v7585 = vadd.f32 %v6625, %v7432
      %v7586 = vadd.f32 %v6626, %v7434
      %v7587 = vadd.f32 %v6627, %v7437
      %v7588 = vadd.f32 %v6628, %v7439
      %v7589 = vadd.f32 %v6629, %v7442
      %v7590 = vld [vmem:[%s192 + $0x46] sm:$0xff]
      %v7591 = vld [vmem:[%s192 + $0x4e] sm:$0xff]
      %v7592 = vld [vmem:[%s192 + $0x56] sm:$0xff]
      %v7593 = vld [vmem:[%s192 + $0x5e] sm:$0xff]
      %v7594 = vld [vmem:[%s192 + $0x66] sm:$0xff]
      %v7595 = vld [vmem:[%s192 + $0x6e] sm:$0xff]
      %v7596 = vld [vmem:[%s192 + $0x76] sm:$0xff]
      %v7597 = vld [vmem:[%s192 + $0x7e] sm:$0xff]
      %v7598 = vld [vmem:[%s192 + $0x86] sm:$0xff]
      %v7599 = vld [vmem:[%s192 + $0x8e] sm:$0xff]
      %v7600 = vld [vmem:[%s192 + $0x96] sm:$0xff]
      %v7601 = vld [vmem:[%s192 + $0x9e] sm:$0xff]
      %v7602 = vld [vmem:[%s192 + $0xa6] sm:$0xff]
      %v7603 = vld [vmem:[%s192 + $0xae] sm:$0xff]
      %v7604 = vld [vmem:[%s192 + $0xb6] sm:$0xff]
      %v7605 = vld [vmem:[%s192 + $0xbe] sm:$0xff]
      %v7606 = vld [vmem:[%s192 + $0xc6] sm:$0xff]
      %v7607 = vld [vmem:[%s192 + $0xce] sm:$0xff]
      %v7608 = vld [vmem:[%s192 + $0xd6] sm:$0xff]
      %v7609 = vld [vmem:[%s192 + $0xde] sm:$0xff]
      %v7610 = vld [vmem:[%s192 + $0xe6] sm:$0xff]
      %v7611 = vld [vmem:[%s192 + $0xee] sm:$0xff]
      %v7612 = vld [vmem:[%s192 + $0xf6] sm:$0xff]
      %v7613 = vld [vmem:[%s192 + $0xfe] sm:$0xff]
      %v7614 = vld [vmem:[%s192 + $0x106] sm:$0xff]
      %v7615 = vld [vmem:[%s192 + $0x10e] sm:$0xff]
      %v7616 = vld [vmem:[%s192 + $0x116] sm:$0xff]
      %v7617 = vld [vmem:[%s192 + $0x11e] sm:$0xff]
      %v7618 = vld [vmem:[%s192 + $0x126] sm:$0xff]
      %v7619 = vld [vmem:[%s192 + $0x12e] sm:$0xff]
      %v7620 = vld [vmem:[%s192 + $0x136] sm:$0xff]
      %v7621 = vld [vmem:[%s192 + $0x13e] sm:$0xff]
      %v7622 = vld [vmem:[%s192 + $0x146] sm:$0xff]
      %v7623 = vld [vmem:[%s192 + $0x14e] sm:$0xff]
      %v7624 = vld [vmem:[%s192 + $0x156] sm:$0xff]
      %v7625 = vld [vmem:[%s192 + $0x15e] sm:$0xff]
      %v7626 = vld [vmem:[%s192 + $0x166] sm:$0xff]
      %v7627 = vld [vmem:[%s192 + $0x16e] sm:$0xff]
      %v7628 = vld [vmem:[%s192 + $0x176] sm:$0xff]
      %v7629 = vld [vmem:[%s192 + $0x17e] sm:$0xff]
      %v7630 = vld [vmem:[%s192 + $0x186] sm:$0xff]
      %v7631 = vld [vmem:[%s192 + $0x18e] sm:$0xff]
      %v7632 = vld [vmem:[%s192 + $0x196] sm:$0xff]
      %v7633 = vld [vmem:[%s192 + $0x19e] sm:$0xff]
      %v7634 = vld [vmem:[%s192 + $0x1a6] sm:$0xff]
      %v7635 = vld [vmem:[%s192 + $0x1ae] sm:$0xff]
      %v7636 = vld [vmem:[%s192 + $0x1b6] sm:$0xff]
      %v7637 = vld [vmem:[%s192 + $0x1be] sm:$0xff]
      %v7638 = vld [vmem:[%s192 + $0x1c6] sm:$0xff]
      %v7639 = vld [vmem:[%s192 + $0x1ce] sm:$0xff]
      %v7640 = vld [vmem:[%s192 + $0x1d6] sm:$0xff]
      %v7641 = vld [vmem:[%s192 + $0x1de] sm:$0xff]
      %v7642 = vld [vmem:[%s192 + $0x1e6] sm:$0xff]
      %v7643 = vld [vmem:[%s192 + $0x1ee] sm:$0xff]
      %v7644 = vld [vmem:[%s192 + $0x1f6] sm:$0xff]
      %v7645 = vld [vmem:[%s192 + $0x1fe] sm:$0xff]
      %v7646 = vld [vmem:[%s192 + $0x206] sm:$0xff]
      %v7647 = vld [vmem:[%s192 + $0x20e] sm:$0xff]
      %v7648 = vld [vmem:[%s192 + $0x216] sm:$0xff]
      %v7649 = vld [vmem:[%s192 + $0x21e] sm:$0xff]
      %v7650 = vld [vmem:[%s192 + $0x226] sm:$0xff]
      %v7651 = vld [vmem:[%s192 + $0x22e] sm:$0xff]
      %v7652 = vld [vmem:[%s192 + $0x236] sm:$0xff]
      %v7653 = vld [vmem:[%s192 + $0x23e] sm:$0xff]
      %v7654 = vld [vmem:[%s192 + $0x246] sm:$0xff]
      %v7655 = vld [vmem:[%s192 + $0x24e] sm:$0xff]
      %v7656 = vld [vmem:[%s192 + $0x256] sm:$0xff]
      %v7657 = vld [vmem:[%s192 + $0x25e] sm:$0xff]
      %v7658 = vld [vmem:[%s192 + $0x266] sm:$0xff]
      %v7659 = vld [vmem:[%s192 + $0x26e] sm:$0xff]
      %v7660 = vld [vmem:[%s192 + $0x276] sm:$0xff]
      %v7661 = vld [vmem:[%s192 + $0x27e] sm:$0xff]
      %v7662 = vld [vmem:[%s192 + $0x286] sm:$0xff]
      %v7663 = vld [vmem:[%s192 + $0x28e] sm:$0xff]
      %v7664 = vld [vmem:[%s192 + $0x296] sm:$0xff]
      %v7665 = vld [vmem:[%s192 + $0x29e] sm:$0xff]
      %v7666 = vld [vmem:[%s192 + $0x2a6] sm:$0xff]
      %v7667 = vld [vmem:[%s192 + $0x2ae] sm:$0xff]
      %v7668 = vld [vmem:[%s192 + $0x2b6] sm:$0xff]
      %v7669 = vld [vmem:[%s192 + $0x2be] sm:$0xff]
      %v7670 = vld [vmem:[%s192 + $0x2c6] sm:$0xff]
      %v7671 = vld [vmem:[%s192 + $0x2ce] sm:$0xff]
      %v7672 = vld [vmem:[%s192 + $0x2d6] sm:$0xff]
      %v7673 = vld [vmem:[%s192 + $0x2de] sm:$0xff]
      %v7674 = vld [vmem:[%s192 + $0x2e6] sm:$0xff]
      %v7675 = vld [vmem:[%s192 + $0x2ee] sm:$0xff]
      %v7676 = vld [vmem:[%s192 + $0x2f6] sm:$0xff]
      %v7677 = vld [vmem:[%s192 + $0x2fe] sm:$0xff]
      %v7678 = vld [vmem:[%s192 + $0x306] sm:$0xff]
      %v7679 = vld [vmem:[%s192 + $0x30e] sm:$0xff]
      %v7680 = vld [vmem:[%s192 + $0x316] sm:$0xff]
      %v7681 = vld [vmem:[%s192 + $0x31e] sm:$0xff]
      %v7682 = vld [vmem:[%s192 + $0x326] sm:$0xff]
      %v7683 = vld [vmem:[%s192 + $0x32e] sm:$0xff]
      %v7684 = vld [vmem:[%s192 + $0x336] sm:$0xff]
      %v7685 = vld [vmem:[%s192 + $0x33e] sm:$0xff]
      %v7686 = vld [vmem:[%s192 + $0x346] sm:$0xff]
      %v7687 = vld [vmem:[%s192 + $0x34e] sm:$0xff]
      %v7688 = vld [vmem:[%s192 + $0x356] sm:$0xff]
      %v7689 = vld [vmem:[%s192 + $0x35e] sm:$0xff]
      %v7690 = vld [vmem:[%s192 + $0x366] sm:$0xff]
      %v7691 = vld [vmem:[%s192 + $0x36e] sm:$0xff]
      %v7692 = vld [vmem:[%s192 + $0x376] sm:$0xff]
      %v7693 = vld [vmem:[%s192 + $0x37e] sm:$0xff]
      %v7694 = vld [vmem:[%s192 + $0x386] sm:$0xff]
      %v7695 = vld [vmem:[%s192 + $0x38e] sm:$0xff]
      %v7696 = vld [vmem:[%s192 + $0x396] sm:$0xff]
      %v7697 = vld [vmem:[%s192 + $0x39e] sm:$0xff]
      %v7698 = vld [vmem:[%s192 + $0x3a6] sm:$0xff]
      %v7699 = vld [vmem:[%s192 + $0x3ae] sm:$0xff]
      %v7700 = vld [vmem:[%s192 + $0x3b6] sm:$0xff]
      %v7701 = vld [vmem:[%s192 + $0x3be] sm:$0xff]
      %v7702 = vld [vmem:[%s192 + $0x3c6] sm:$0xff]
      %v7703 = vld [vmem:[%s192 + $0x3ce] sm:$0xff]
      %v7704 = vld [vmem:[%s192 + $0x3d6] sm:$0xff]
      %v7705 = vld [vmem:[%s192 + $0x3de] sm:$0xff]
      %v7706 = vld [vmem:[%s192 + $0x3e6] sm:$0xff]
      %v7707 = vld [vmem:[%s192 + $0x3ee] sm:$0xff]
      %v7708 = vld [vmem:[%s192 + $0x3f6] sm:$0xff]
      %v7709 = vld [vmem:[%s192 + $0x3fe] sm:$0xff]
      %v7710 = vld [vmem:[%s192 + $0x406] sm:$0xff]
      %v7711 = vld [vmem:[%s192 + $0x40e] sm:$0xff]
      %v7712 = vld [vmem:[%s192 + $0x416] sm:$0xff]
      %v7713 = vld [vmem:[%s192 + $0x41e] sm:$0xff]
      %v7714 = vld [vmem:[%s192 + $0x426] sm:$0xff]
      %v7715 = vld [vmem:[%s192 + $0x42e] sm:$0xff]
      %v7716 = vld [vmem:[%s192 + $0x436] sm:$0xff]
      %v7717 = vld [vmem:[%s192 + $0x43e] sm:$0xff]
      %v7718 = vld [vmem:[%s192 + $0x446] sm:$0xff]
      %v7719 = vld [vmem:[%s192 + $0x44e] sm:$0xff]
      %v7720 = vld [vmem:[%s192 + $0x456] sm:$0xff]
      %v7721 = vld [vmem:[%s192 + $0x45e] sm:$0xff]
      %v7722 = vld [vmem:[%s192 + $0x466] sm:$0xff]
      %v7723 = vld [vmem:[%s192 + $0x46e] sm:$0xff]
      %v7724 = vld [vmem:[%s192 + $0x476] sm:$0xff]
      %v7725 = vld [vmem:[%s192 + $0x47e] sm:$0xff]
      %v7726 = vld [vmem:[%s192 + $0x486] sm:$0xff]
      %v7727 = vld [vmem:[%s192 + $0x48e] sm:$0xff]
      %v7728 = vld [vmem:[%s192 + $0x496] sm:$0xff]
      %v7729 = vld [vmem:[%s192 + $0x49e] sm:$0xff]
      %v7730 = vld [vmem:[%s192 + $0x4a6] sm:$0xff]
      %v7731 = vld [vmem:[%s192 + $0x4ae] sm:$0xff]
      %v7732 = vld [vmem:[%s192 + $0x4b6] sm:$0xff]
      %v7733 = vld [vmem:[%s192 + $0x4be] sm:$0xff]
      %v7734 = vld [vmem:[%s192 + $0x4c6] sm:$0xf]
      %v7735 = vpack.c.bf16 %v7591, %v7590
      %v7736 = vpack.c.bf16 %v7593, %v7592
      %v7737 = vpack.c.bf16 %v7595, %v7594
      %v7738 = vpack.c.bf16 %v7597, %v7596
      %v7739 = vpack.c.bf16 %v7599, %v7598
      %v7740 = vpack.c.bf16 %v7601, %v7600
      %v7741 = vpack.c.bf16 %v7603, %v7602
      %v7742 = vpack.c.bf16 %v7605, %v7604
      %v7743 = vpack.c.bf16 %v7607, %v7606
      %v7744 = vpack.c.bf16 %v7609, %v7608
      %v7745 = vpack.c.bf16 %v7611, %v7610
      %v7746 = vpack.c.bf16 %v7613, %v7612
      %v7747 = vpack.c.bf16 %v7615, %v7614
      %v7748 = vpack.c.bf16 %v7617, %v7616
      %v7749 = vpack.c.bf16 %v7619, %v7618
      %v7750 = vpack.c.bf16 %v7621, %v7620
      %v7751 = vpack.c.bf16 %v7623, %v7622
      %v7752 = vpack.c.bf16 %v7625, %v7624
      %v7753 = vpack.c.bf16 %v7627, %v7626
      %v7754 = vpack.c.bf16 %v7629, %v7628
      %v7755 = vpack.c.bf16 %v7631, %v7630
      %v7756 = vpack.c.bf16 %v7633, %v7632
      %v7757 = vpack.c.bf16 %v7635, %v7634
      %v7758 = vpack.c.bf16 %v7637, %v7636
      %v7759 = vpack.c.bf16 %v7639, %v7638
      %v7760 = vpack.c.bf16 %v7641, %v7640
      %v7761 = vpack.c.bf16 %v7643, %v7642
      %v7762 = vpack.c.bf16 %v7645, %v7644
      %v7763 = vpack.c.bf16 %v7647, %v7646
      %v7764 = vpack.c.bf16 %v7649, %v7648
      %v7765 = vpack.c.bf16 %v7651, %v7650
      %v7766 = vpack.c.bf16 %v7653, %v7652
      %v7767 = vpack.c.bf16 %v7655, %v7654
      %v7768 = vpack.c.bf16 %v7657, %v7656
      %v7769 = vpack.c.bf16 %v7659, %v7658
      %v7770 = vpack.c.bf16 %v7661, %v7660
      %v7771 = vpack.c.bf16 %v7663, %v7662
      %v7772 = vpack.c.bf16 %v7665, %v7664
      %v7773 = vpack.c.bf16 %v7667, %v7666
      %v7774 = vpack.c.bf16 %v7669, %v7668
      %v7775 = vpack.c.bf16 %v7671, %v7670
      %v7776 = vpack.c.bf16 %v7673, %v7672
      %v7777 = vpack.c.bf16 %v7675, %v7674
      %v7778 = vpack.c.bf16 %v7677, %v7676
      %v7779 = vpack.c.bf16 %v7679, %v7678
      %v7780 = vpack.c.bf16 %v7681, %v7680
      %v7781 = vpack.c.bf16 %v7683, %v7682
      %v7782 = vpack.c.bf16 %v7685, %v7684
      %v7783 = vpack.c.bf16 %v7687, %v7686
      %v7784 = vpack.c.bf16 %v7689, %v7688
      %v7785 = vpack.c.bf16 %v7691, %v7690
      %v7786 = vpack.c.bf16 %v7693, %v7692
      %v7787 = vpack.c.bf16 %v7695, %v7694
      %v7788 = vpack.c.bf16 %v7697, %v7696
      %v7789 = vpack.c.bf16 %v7699, %v7698
      %v7790 = vpack.c.bf16 %v7701, %v7700
      %v7791 = vpack.c.bf16 %v7703, %v7702
      %v7792 = vpack.c.bf16 %v7705, %v7704
      %v7793 = vpack.c.bf16 %v7707, %v7706
      %v7794 = vpack.c.bf16 %v7709, %v7708
      %v7795 = vpack.c.bf16 %v7711, %v7710
      %v7796 = vpack.c.bf16 %v7713, %v7712
      %v7797 = vpack.c.bf16 %v7715, %v7714
      %v7798 = vpack.c.bf16 %v7717, %v7716
      %v7799 = vpack.c.bf16 %v7719, %v7718
      %v7800 = vpack.c.bf16 %v7721, %v7720
      %v7801 = vpack.c.bf16 %v7723, %v7722
      %v7802 = vpack.c.bf16 %v7725, %v7724
      %v7803 = vpack.c.bf16 %v7727, %v7726
      %v7804 = vpack.c.bf16 %v7729, %v7728
      %v7805 = vpack.c.bf16 %v7731, %v7730
      %v7806 = vpack.c.bf16 %v7733, %v7732
      %v7807 = vpack.c.bf16 %v7734, %v7734
      %s7808 = scalar_lea.vmem %s1, 32
      %v7809 = vld [vmem:[%s7808] sm:$0xf]
      %v7811 = vsel %vm638, %v7735, 0
      %v7814 = vsel %vm638, %v7736, 0
      %v7817 = vsel %vm638, %v7737, 0
      %v7820 = vsel %vm638, %v7738, 0
      %v7823 = vsel %vm638, %v7739, 0
      %v7826 = vsel %vm638, %v7740, 0
      %v7829 = vsel %vm638, %v7741, 0
      %v7832 = vsel %vm638, %v7742, 0
      %v7835 = vsel %vm638, %v7743, 0
      %v7838 = vsel %vm638, %v7744, 0
      %v7841 = vsel %vm638, %v7745, 0
      %v7844 = vsel %vm638, %v7746, 0
      %v7847 = vsel %vm638, %v7747, 0
      %v7850 = vsel %vm638, %v7748, 0
      %v7853 = vsel %vm638, %v7749, 0
      %v7856 = vsel %vm638, %v7750, 0
      %v7859 = vsel %vm638, %v7751, 0
      %v7862 = vsel %vm638, %v7752, 0
      %v7865 = vsel %vm638, %v7753, 0
      %v7868 = vsel %vm638, %v7754, 0
      %v7871 = vsel %vm638, %v7755, 0
      %v7874 = vsel %vm638, %v7756, 0
      %v7877 = vsel %vm638, %v7757, 0
      %v7880 = vsel %vm638, %v7758, 0
      %v7883 = vsel %vm638, %v7759, 0
      %v7886 = vsel %vm638, %v7760, 0
      %v7889 = vsel %vm638, %v7761, 0
      %v7892 = vsel %vm638, %v7762, 0
      %v7895 = vsel %vm638, %v7763, 0
      %v7898 = vsel %vm638, %v7764, 0
      %v7901 = vsel %vm638, %v7765, 0
      %v7904 = vsel %vm638, %v7766, 0
      %v7907 = vsel %vm638, %v7767, 0
      %v7910 = vsel %vm638, %v7768, 0
      %v7913 = vsel %vm638, %v7769, 0
      %v7916 = vsel %vm638, %v7770, 0
      %v7919 = vsel %vm638, %v7771, 0
      %v7922 = vsel %vm638, %v7772, 0
      %v7925 = vsel %vm638, %v7773, 0
      %v7928 = vsel %vm638, %v7774, 0
      %v7931 = vsel %vm638, %v7775, 0
      %v7934 = vsel %vm638, %v7776, 0
      %v7937 = vsel %vm638, %v7777, 0
      %v7940 = vsel %vm638, %v7778, 0
      %v7943 = vsel %vm638, %v7779, 0
      %v7946 = vsel %vm638, %v7780, 0
      %v7949 = vsel %vm638, %v7781, 0
      %v7952 = vsel %vm638, %v7782, 0
      %v7955 = vsel %vm638, %v7783, 0
      %v7958 = vsel %vm638, %v7784, 0
      %v7961 = vsel %vm638, %v7785, 0
      %v7964 = vsel %vm638, %v7786, 0
      %v7967 = vsel %vm638, %v7787, 0
      %v7970 = vsel %vm638, %v7788, 0
      %v7973 = vsel %vm638, %v7789, 0
      %v7976 = vsel %vm638, %v7790, 0
      %v7979 = vsel %vm638, %v7791, 0
      %v7982 = vsel %vm638, %v7792, 0
      %v7985 = vsel %vm638, %v7793, 0
      %v7988 = vsel %vm638, %v7794, 0
      %v7991 = vsel %vm638, %v7795, 0
      %v7994 = vsel %vm638, %v7796, 0
      %v7997 = vsel %vm638, %v7797, 0
      %v8000 = vsel %vm638, %v7798, 0
      %v8003 = vsel %vm638, %v7799, 0
      %v8006 = vsel %vm638, %v7800, 0
      %v8009 = vsel %vm638, %v7801, 0
      %v8012 = vsel %vm638, %v7802, 0
      %v8015 = vsel %vm638, %v7803, 0
      %v8018 = vsel %vm638, %v7804, 0
      %v8021 = vsel %vm638, %v7805, 0
      %v8024 = vsel %vm638, %v7806, 0
      %v8027 = vsel %vm638, %v7807, 0
      %v8030 = vsel %vm858, %v7809, 0
      %8032 = vmatpush.bf16.msra.mxu0 0
      %8033 = vmatpush.bf16.msra.mxu0 0
      %8034 = vmatpush.bf16.msra.mxu0 0
      %8035 = vmatpush.bf16.msra.mxu0 0
      %8036 = vmatpush.bf16.msra.mxu0 0
      %8037 = vmatpush.bf16.msra.mxu0 0
      %8038 = vmatpush.bf16.msra.mxu0 0
      %8039 = vmatpush.bf16.msra.mxu0 %v8030
      %8040 = vmatmul.bf16.gmra.mxu0 %v7811
      %v8041 = vpop.f32.mrf.mxu0
      %v8042 = vadd.f32 0.0, %v8041
      %v8043 = vpop.f32.mrf.mxu0
      %v8044 = vadd.f32 0.0, %v8043
      %8045 = vmatmul.bf16.gmra.mxu0 %v7814
      %v8046 = vpop.f32.mrf.mxu0
      %v8047 = vadd.f32 0.0, %v8046
      %v8048 = vpop.f32.mrf.mxu0
      %v8049 = vadd.f32 0.0, %v8048
      %8050 = vmatmul.bf16.gmra.mxu0 %v7817
      %v8051 = vpop.f32.mrf.mxu0
      %v8052 = vadd.f32 0.0, %v8051
      %v8053 = vpop.f32.mrf.mxu0
      %v8054 = vadd.f32 0.0, %v8053
      %8055 = vmatmul.bf16.gmra.mxu0 %v7820
      %v8056 = vpop.f32.mrf.mxu0
      %v8057 = vadd.f32 0.0, %v8056
      %v8058 = vpop.f32.mrf.mxu0
      %v8059 = vadd.f32 0.0, %v8058
      %8060 = vmatmul.bf16.gmra.mxu0 %v7823
      %v8061 = vpop.f32.mrf.mxu0
      %v8062 = vadd.f32 0.0, %v8061
      %v8063 = vpop.f32.mrf.mxu0
      %v8064 = vadd.f32 0.0, %v8063
      %8065 = vmatmul.bf16.gmra.mxu0 %v7826
      %v8066 = vpop.f32.mrf.mxu0
      %v8067 = vadd.f32 0.0, %v8066
      %v8068 = vpop.f32.mrf.mxu0
      %v8069 = vadd.f32 0.0, %v8068
      %8070 = vmatmul.bf16.gmra.mxu0 %v7829
      %v8071 = vpop.f32.mrf.mxu0
      %v8072 = vadd.f32 0.0, %v8071
      %v8073 = vpop.f32.mrf.mxu0
      %v8074 = vadd.f32 0.0, %v8073
      %8075 = vmatmul.bf16.gmra.mxu0 %v7832
      %v8076 = vpop.f32.mrf.mxu0
      %v8077 = vadd.f32 0.0, %v8076
      %v8078 = vpop.f32.mrf.mxu0
      %v8079 = vadd.f32 0.0, %v8078
      %8080 = vmatmul.bf16.gmra.mxu0 %v7835
      %v8081 = vpop.f32.mrf.mxu0
      %v8082 = vadd.f32 0.0, %v8081
      %v8083 = vpop.f32.mrf.mxu0
      %v8084 = vadd.f32 0.0, %v8083
      %8085 = vmatmul.bf16.gmra.mxu0 %v7838
      %v8086 = vpop.f32.mrf.mxu0
      %v8087 = vadd.f32 0.0, %v8086
      %v8088 = vpop.f32.mrf.mxu0
      %v8089 = vadd.f32 0.0, %v8088
      %8090 = vmatmul.bf16.gmra.mxu0 %v7841
      %v8091 = vpop.f32.mrf.mxu0
      %v8092 = vadd.f32 0.0, %v8091
      %v8093 = vpop.f32.mrf.mxu0
      %v8094 = vadd.f32 0.0, %v8093
      %8095 = vmatmul.bf16.gmra.mxu0 %v7844
      %v8096 = vpop.f32.mrf.mxu0
      %v8097 = vadd.f32 0.0, %v8096
      %v8098 = vpop.f32.mrf.mxu0
      %v8099 = vadd.f32 0.0, %v8098
      %8100 = vmatmul.bf16.gmra.mxu0 %v7847
      %v8101 = vpop.f32.mrf.mxu0
      %v8102 = vadd.f32 0.0, %v8101
      %v8103 = vpop.f32.mrf.mxu0
      %v8104 = vadd.f32 0.0, %v8103
      %8105 = vmatmul.bf16.gmra.mxu0 %v7850
      %v8106 = vpop.f32.mrf.mxu0
      %v8107 = vadd.f32 0.0, %v8106
      %v8108 = vpop.f32.mrf.mxu0
      %v8109 = vadd.f32 0.0, %v8108
      %8110 = vmatmul.bf16.gmra.mxu0 %v7853
      %v8111 = vpop.f32.mrf.mxu0
      %v8112 = vadd.f32 0.0, %v8111
      %v8113 = vpop.f32.mrf.mxu0
      %v8114 = vadd.f32 0.0, %v8113
      %8115 = vmatmul.bf16.gmra.mxu0 %v7856
      %v8116 = vpop.f32.mrf.mxu0
      %v8117 = vadd.f32 0.0, %v8116
      %v8118 = vpop.f32.mrf.mxu0
      %v8119 = vadd.f32 0.0, %v8118
      %8120 = vmatmul.bf16.gmra.mxu0 %v7859
      %v8121 = vpop.f32.mrf.mxu0
      %v8122 = vadd.f32 0.0, %v8121
      %v8123 = vpop.f32.mrf.mxu0
      %v8124 = vadd.f32 0.0, %v8123
      %8125 = vmatmul.bf16.gmra.mxu0 %v7862
      %v8126 = vpop.f32.mrf.mxu0
      %v8127 = vadd.f32 0.0, %v8126
      %v8128 = vpop.f32.mrf.mxu0
      %v8129 = vadd.f32 0.0, %v8128
      %8130 = vmatmul.bf16.gmra.mxu0 %v7865
      %v8131 = vpop.f32.mrf.mxu0
      %v8132 = vadd.f32 0.0, %v8131
      %v8133 = vpop.f32.mrf.mxu0
      %v8134 = vadd.f32 0.0, %v8133
      %8135 = vmatmul.bf16.gmra.mxu0 %v7868
      %v8136 = vpop.f32.mrf.mxu0
      %v8137 = vadd.f32 0.0, %v8136
      %v8138 = vpop.f32.mrf.mxu0
      %v8139 = vadd.f32 0.0, %v8138
      %8140 = vmatmul.bf16.gmra.mxu0 %v7871
      %v8141 = vpop.f32.mrf.mxu0
      %v8142 = vadd.f32 0.0, %v8141
      %v8143 = vpop.f32.mrf.mxu0
      %v8144 = vadd.f32 0.0, %v8143
      %8145 = vmatmul.bf16.gmra.mxu0 %v7874
      %v8146 = vpop.f32.mrf.mxu0
      %v8147 = vadd.f32 0.0, %v8146
      %v8148 = vpop.f32.mrf.mxu0
      %v8149 = vadd.f32 0.0, %v8148
      %8150 = vmatmul.bf16.gmra.mxu0 %v7877
      %v8151 = vpop.f32.mrf.mxu0
      %v8152 = vadd.f32 0.0, %v8151
      %v8153 = vpop.f32.mrf.mxu0
      %v8154 = vadd.f32 0.0, %v8153
      %8155 = vmatmul.bf16.gmra.mxu0 %v7880
      %v8156 = vpop.f32.mrf.mxu0
      %v8157 = vadd.f32 0.0, %v8156
      %v8158 = vpop.f32.mrf.mxu0
      %v8159 = vadd.f32 0.0, %v8158
      %8160 = vmatmul.bf16.gmra.mxu0 %v7883
      %v8161 = vpop.f32.mrf.mxu0
      %v8162 = vadd.f32 0.0, %v8161
      %v8163 = vpop.f32.mrf.mxu0
      %v8164 = vadd.f32 0.0, %v8163
      %8165 = vmatmul.bf16.gmra.mxu0 %v7886
      %v8166 = vpop.f32.mrf.mxu0
      %v8167 = vadd.f32 0.0, %v8166
      %v8168 = vpop.f32.mrf.mxu0
      %v8169 = vadd.f32 0.0, %v8168
      %8170 = vmatmul.bf16.gmra.mxu0 %v7889
      %v8171 = vpop.f32.mrf.mxu0
      %v8172 = vadd.f32 0.0, %v8171
      %v8173 = vpop.f32.mrf.mxu0
      %v8174 = vadd.f32 0.0, %v8173
      %8175 = vmatmul.bf16.gmra.mxu0 %v7892
      %v8176 = vpop.f32.mrf.mxu0
      %v8177 = vadd.f32 0.0, %v8176
      %v8178 = vpop.f32.mrf.mxu0
      %v8179 = vadd.f32 0.0, %v8178
      %8180 = vmatmul.bf16.gmra.mxu0 %v7895
      %v8181 = vpop.f32.mrf.mxu0
      %v8182 = vadd.f32 0.0, %v8181
      %v8183 = vpop.f32.mrf.mxu0
      %v8184 = vadd.f32 0.0, %v8183
      %8185 = vmatmul.bf16.gmra.mxu0 %v7898
      %v8186 = vpop.f32.mrf.mxu0
      %v8187 = vadd.f32 0.0, %v8186
      %v8188 = vpop.f32.mrf.mxu0
      %v8189 = vadd.f32 0.0, %v8188
      %8190 = vmatmul.bf16.gmra.mxu0 %v7901
      %v8191 = vpop.f32.mrf.mxu0
      %v8192 = vadd.f32 0.0, %v8191
      %v8193 = vpop.f32.mrf.mxu0
      %v8194 = vadd.f32 0.0, %v8193
      %8195 = vmatmul.bf16.gmra.mxu0 %v7904
      %v8196 = vpop.f32.mrf.mxu0
      %v8197 = vadd.f32 0.0, %v8196
      %v8198 = vpop.f32.mrf.mxu0
      %v8199 = vadd.f32 0.0, %v8198
      %8200 = vmatmul.bf16.gmra.mxu0 %v7907
      %v8201 = vpop.f32.mrf.mxu0
      %v8202 = vadd.f32 0.0, %v8201
      %v8203 = vpop.f32.mrf.mxu0
      %v8204 = vadd.f32 0.0, %v8203
      %8205 = vmatmul.bf16.gmra.mxu0 %v7910
      %v8206 = vpop.f32.mrf.mxu0
      %v8207 = vadd.f32 0.0, %v8206
      %v8208 = vpop.f32.mrf.mxu0
      %v8209 = vadd.f32 0.0, %v8208
      %8210 = vmatmul.bf16.gmra.mxu0 %v7913
      %v8211 = vpop.f32.mrf.mxu0
      %v8212 = vadd.f32 0.0, %v8211
      %v8213 = vpop.f32.mrf.mxu0
      %v8214 = vadd.f32 0.0, %v8213
      %8215 = vmatmul.bf16.gmra.mxu0 %v7916
      %v8216 = vpop.f32.mrf.mxu0
      %v8217 = vadd.f32 0.0, %v8216
      %v8218 = vpop.f32.mrf.mxu0
      %v8219 = vadd.f32 0.0, %v8218
      %8220 = vmatmul.bf16.gmra.mxu0 %v7919
      %v8221 = vpop.f32.mrf.mxu0
      %v8222 = vadd.f32 0.0, %v8221
      %v8223 = vpop.f32.mrf.mxu0
      %v8224 = vadd.f32 0.0, %v8223
      %8225 = vmatmul.bf16.gmra.mxu0 %v7922
      %v8226 = vpop.f32.mrf.mxu0
      %v8227 = vadd.f32 0.0, %v8226
      %v8228 = vpop.f32.mrf.mxu0
      %v8229 = vadd.f32 0.0, %v8228
      %8230 = vmatmul.bf16.gmra.mxu0 %v7925
      %v8231 = vpop.f32.mrf.mxu0
      %v8232 = vadd.f32 0.0, %v8231
      %v8233 = vpop.f32.mrf.mxu0
      %v8234 = vadd.f32 0.0, %v8233
      %8235 = vmatmul.bf16.gmra.mxu0 %v7928
      %v8236 = vpop.f32.mrf.mxu0
      %v8237 = vadd.f32 0.0, %v8236
      %v8238 = vpop.f32.mrf.mxu0
      %v8239 = vadd.f32 0.0, %v8238
      %8240 = vmatmul.bf16.gmra.mxu0 %v7931
      %v8241 = vpop.f32.mrf.mxu0
      %v8242 = vadd.f32 0.0, %v8241
      %v8243 = vpop.f32.mrf.mxu0
      %v8244 = vadd.f32 0.0, %v8243
      %8245 = vmatmul.bf16.gmra.mxu0 %v7934
      %v8246 = vpop.f32.mrf.mxu0
      %v8247 = vadd.f32 0.0, %v8246
      %v8248 = vpop.f32.mrf.mxu0
      %v8249 = vadd.f32 0.0, %v8248
      %8250 = vmatmul.bf16.gmra.mxu0 %v7937
      %v8251 = vpop.f32.mrf.mxu0
      %v8252 = vadd.f32 0.0, %v8251
      %v8253 = vpop.f32.mrf.mxu0
      %v8254 = vadd.f32 0.0, %v8253
      %8255 = vmatmul.bf16.gmra.mxu0 %v7940
      %v8256 = vpop.f32.mrf.mxu0
      %v8257 = vadd.f32 0.0, %v8256
      %v8258 = vpop.f32.mrf.mxu0
      %v8259 = vadd.f32 0.0, %v8258
      %8260 = vmatmul.bf16.gmra.mxu0 %v7943
      %v8261 = vpop.f32.mrf.mxu0
      %v8262 = vadd.f32 0.0, %v8261
      %v8263 = vpop.f32.mrf.mxu0
      %v8264 = vadd.f32 0.0, %v8263
      %8265 = vmatmul.bf16.gmra.mxu0 %v7946
      %v8266 = vpop.f32.mrf.mxu0
      %v8267 = vadd.f32 0.0, %v8266
      %v8268 = vpop.f32.mrf.mxu0
      %v8269 = vadd.f32 0.0, %v8268
      %8270 = vmatmul.bf16.gmra.mxu0 %v7949
      %v8271 = vpop.f32.mrf.mxu0
      %v8272 = vadd.f32 0.0, %v8271
      %v8273 = vpop.f32.mrf.mxu0
      %v8274 = vadd.f32 0.0, %v8273
      %8275 = vmatmul.bf16.gmra.mxu0 %v7952
      %v8276 = vpop.f32.mrf.mxu0
      %v8277 = vadd.f32 0.0, %v8276
      %v8278 = vpop.f32.mrf.mxu0
      %v8279 = vadd.f32 0.0, %v8278
      %8280 = vmatmul.bf16.gmra.mxu0 %v7955
      %v8281 = vpop.f32.mrf.mxu0
      %v8282 = vadd.f32 0.0, %v8281
      %v8283 = vpop.f32.mrf.mxu0
      %v8284 = vadd.f32 0.0, %v8283
      %8285 = vmatmul.bf16.gmra.mxu0 %v7958
      %v8286 = vpop.f32.mrf.mxu0
      %v8287 = vadd.f32 0.0, %v8286
      %v8288 = vpop.f32.mrf.mxu0
      %v8289 = vadd.f32 0.0, %v8288
      %8290 = vmatmul.bf16.gmra.mxu0 %v7961
      %v8291 = vpop.f32.mrf.mxu0
      %v8292 = vadd.f32 0.0, %v8291
      %v8293 = vpop.f32.mrf.mxu0
      %v8294 = vadd.f32 0.0, %v8293
      %8295 = vmatmul.bf16.gmra.mxu0 %v7964
      %v8296 = vpop.f32.mrf.mxu0
      %v8297 = vadd.f32 0.0, %v8296
      %v8298 = vpop.f32.mrf.mxu0
      %v8299 = vadd.f32 0.0, %v8298
      %8300 = vmatmul.bf16.gmra.mxu0 %v7967
      %v8301 = vpop.f32.mrf.mxu0
      %v8302 = vadd.f32 0.0, %v8301
      %v8303 = vpop.f32.mrf.mxu0
      %v8304 = vadd.f32 0.0, %v8303
      %8305 = vmatmul.bf16.gmra.mxu0 %v7970
      %v8306 = vpop.f32.mrf.mxu0
      %v8307 = vadd.f32 0.0, %v8306
      %v8308 = vpop.f32.mrf.mxu0
      %v8309 = vadd.f32 0.0, %v8308
      %8310 = vmatmul.bf16.gmra.mxu0 %v7973
      %v8311 = vpop.f32.mrf.mxu0
      %v8312 = vadd.f32 0.0, %v8311
      %v8313 = vpop.f32.mrf.mxu0
      %v8314 = vadd.f32 0.0, %v8313
      %8315 = vmatmul.bf16.gmra.mxu0 %v7976
      %v8316 = vpop.f32.mrf.mxu0
      %v8317 = vadd.f32 0.0, %v8316
      %v8318 = vpop.f32.mrf.mxu0
      %v8319 = vadd.f32 0.0, %v8318
      %8320 = vmatmul.bf16.gmra.mxu0 %v7979
      %v8321 = vpop.f32.mrf.mxu0
      %v8322 = vadd.f32 0.0, %v8321
      %v8323 = vpop.f32.mrf.mxu0
      %v8324 = vadd.f32 0.0, %v8323
      %8325 = vmatmul.bf16.gmra.mxu0 %v7982
      %v8326 = vpop.f32.mrf.mxu0
      %v8327 = vadd.f32 0.0, %v8326
      %v8328 = vpop.f32.mrf.mxu0
      %v8329 = vadd.f32 0.0, %v8328
      %8330 = vmatmul.bf16.gmra.mxu0 %v7985
      %v8331 = vpop.f32.mrf.mxu0
      %v8332 = vadd.f32 0.0, %v8331
      %v8333 = vpop.f32.mrf.mxu0
      %v8334 = vadd.f32 0.0, %v8333
      %8335 = vmatmul.bf16.gmra.mxu0 %v7988
      %v8336 = vpop.f32.mrf.mxu0
      %v8337 = vadd.f32 0.0, %v8336
      %v8338 = vpop.f32.mrf.mxu0
      %v8339 = vadd.f32 0.0, %v8338
      %8340 = vmatmul.bf16.gmra.mxu0 %v7991
      %v8341 = vpop.f32.mrf.mxu0
      %v8342 = vadd.f32 0.0, %v8341
      %v8343 = vpop.f32.mrf.mxu0
      %v8344 = vadd.f32 0.0, %v8343
      %8345 = vmatmul.bf16.gmra.mxu0 %v7994
      %v8346 = vpop.f32.mrf.mxu0
      %v8347 = vadd.f32 0.0, %v8346
      %v8348 = vpop.f32.mrf.mxu0
      %v8349 = vadd.f32 0.0, %v8348
      %8350 = vmatmul.bf16.gmra.mxu0 %v7997
      %v8351 = vpop.f32.mrf.mxu0
      %v8352 = vadd.f32 0.0, %v8351
      %v8353 = vpop.f32.mrf.mxu0
      %v8354 = vadd.f32 0.0, %v8353
      %8355 = vmatmul.bf16.gmra.mxu0 %v8000
      %v8356 = vpop.f32.mrf.mxu0
      %v8357 = vadd.f32 0.0, %v8356
      %v8358 = vpop.f32.mrf.mxu0
      %v8359 = vadd.f32 0.0, %v8358
      %8360 = vmatmul.bf16.gmra.mxu0 %v8003
      %v8361 = vpop.f32.mrf.mxu0
      %v8362 = vadd.f32 0.0, %v8361
      %v8363 = vpop.f32.mrf.mxu0
      %v8364 = vadd.f32 0.0, %v8363
      %8365 = vmatmul.bf16.gmra.mxu0 %v8006
      %v8366 = vpop.f32.mrf.mxu0
      %v8367 = vadd.f32 0.0, %v8366
      %v8368 = vpop.f32.mrf.mxu0
      %v8369 = vadd.f32 0.0, %v8368
      %8370 = vmatmul.bf16.gmra.mxu0 %v8009
      %v8371 = vpop.f32.mrf.mxu0
      %v8372 = vadd.f32 0.0, %v8371
      %v8373 = vpop.f32.mrf.mxu0
      %v8374 = vadd.f32 0.0, %v8373
      %8375 = vmatmul.bf16.gmra.mxu0 %v8012
      %v8376 = vpop.f32.mrf.mxu0
      %v8377 = vadd.f32 0.0, %v8376
      %v8378 = vpop.f32.mrf.mxu0
      %v8379 = vadd.f32 0.0, %v8378
      %8380 = vmatmul.bf16.gmra.mxu0 %v8015
      %v8381 = vpop.f32.mrf.mxu0
      %v8382 = vadd.f32 0.0, %v8381
      %v8383 = vpop.f32.mrf.mxu0
      %v8384 = vadd.f32 0.0, %v8383
      %8385 = vmatmul.bf16.gmra.mxu0 %v8018
      %v8386 = vpop.f32.mrf.mxu0
      %v8387 = vadd.f32 0.0, %v8386
      %v8388 = vpop.f32.mrf.mxu0
      %v8389 = vadd.f32 0.0, %v8388
      %8390 = vmatmul.bf16.gmra.mxu0 %v8021
      %v8391 = vpop.f32.mrf.mxu0
      %v8392 = vadd.f32 0.0, %v8391
      %v8393 = vpop.f32.mrf.mxu0
      %v8394 = vadd.f32 0.0, %v8393
      %8395 = vmatmul.bf16.gmra.mxu0 %v8024
      %v8396 = vpop.f32.mrf.mxu0
      %v8397 = vadd.f32 0.0, %v8396
      %v8398 = vpop.f32.mrf.mxu0
      %v8399 = vadd.f32 0.0, %v8398
      %8400 = vmatmul.bf16.gmra.mxu0 %v8027
      %v8401 = vpop.f32.mrf.mxu0
      %v8402 = vadd.f32 0.0, %v8401
      %v8403 = vpop.f32.mrf.mxu0
      %8404 = vdwg.mxu0
      %v8405 = vadd.f32 %v7445, %v8042
      %v8406 = vadd.f32 %v7446, %v8044
      %v8407 = vadd.f32 %v7447, %v8047
      %v8408 = vadd.f32 %v7448, %v8049
      %v8409 = vadd.f32 %v7449, %v8052
      %v8410 = vadd.f32 %v7450, %v8054
      %v8411 = vadd.f32 %v7451, %v8057
      %v8412 = vadd.f32 %v7452, %v8059
      %v8413 = vadd.f32 %v7453, %v8062
      %v8414 = vadd.f32 %v7454, %v8064
      %v8415 = vadd.f32 %v7455, %v8067
      %v8416 = vadd.f32 %v7456, %v8069
      %v8417 = vadd.f32 %v7457, %v8072
      %v8418 = vadd.f32 %v7458, %v8074
      %v8419 = vadd.f32 %v7459, %v8077
      %v8420 = vadd.f32 %v7460, %v8079
      %v8421 = vadd.f32 %v7461, %v8082
      %v8422 = vadd.f32 %v7462, %v8084
      %v8423 = vadd.f32 %v7463, %v8087
      %v8424 = vadd.f32 %v7464, %v8089
      %v8425 = vadd.f32 %v7465, %v8092
      %v8426 = vadd.f32 %v7466, %v8094
      %v8427 = vadd.f32 %v7467, %v8097
      %v8428 = vadd.f32 %v7468, %v8099
      %v8429 = vadd.f32 %v7469, %v8102
      %v8430 = vadd.f32 %v7470, %v8104
      %v8431 = vadd.f32 %v7471, %v8107
      %v8432 = vadd.f32 %v7472, %v8109
      %v8433 = vadd.f32 %v7473, %v8112
      %v8434 = vadd.f32 %v7474, %v8114
      %v8435 = vadd.f32 %v7475, %v8117
      %v8436 = vadd.f32 %v7476, %v8119
      %v8437 = vadd.f32 %v7477, %v8122
      %v8438 = vadd.f32 %v7478, %v8124
      %v8439 = vadd.f32 %v7479, %v8127
      %v8440 = vadd.f32 %v7480, %v8129
      %v8441 = vadd.f32 %v7481, %v8132
      %v8442 = vadd.f32 %v7482, %v8134
      %v8443 = vadd.f32 %v7483, %v8137
      %v8444 = vadd.f32 %v7484, %v8139
      %v8445 = vadd.f32 %v7485, %v8142
      %v8446 = vadd.f32 %v7486, %v8144
      %v8447 = vadd.f32 %v7487, %v8147
      %v8448 = vadd.f32 %v7488, %v8149
      %v8449 = vadd.f32 %v7489, %v8152
      %v8450 = vadd.f32 %v7490, %v8154
      %v8451 = vadd.f32 %v7491, %v8157
      %v8452 = vadd.f32 %v7492, %v8159
      %v8453 = vadd.f32 %v7493, %v8162
      %v8454 = vadd.f32 %v7494, %v8164
      %v8455 = vadd.f32 %v7495, %v8167
      %v8456 = vadd.f32 %v7496, %v8169
      %v8457 = vadd.f32 %v7497, %v8172
      %v8458 = vadd.f32 %v7498, %v8174
      %v8459 = vadd.f32 %v7499, %v8177
      %v8460 = vadd.f32 %v7500, %v8179
      %v8461 = vadd.f32 %v7501, %v8182
      %v8462 = vadd.f32 %v7502, %v8184
      %v8463 = vadd.f32 %v7503, %v8187
      %v8464 = vadd.f32 %v7504, %v8189
      %v8465 = vadd.f32 %v7505, %v8192
      %v8466 = vadd.f32 %v7506, %v8194
      %v8467 = vadd.f32 %v7507, %v8197
      %v8468 = vadd.f32 %v7508, %v8199
      %v8469 = vadd.f32 %v7509, %v8202
      %v8470 = vadd.f32 %v7510, %v8204
      %v8471 = vadd.f32 %v7511, %v8207
      %v8472 = vadd.f32 %v7512, %v8209
      %v8473 = vadd.f32 %v7513, %v8212
      %v8474 = vadd.f32 %v7514, %v8214
      %v8475 = vadd.f32 %v7515, %v8217
      %v8476 = vadd.f32 %v7516, %v8219
      %v8477 = vadd.f32 %v7517, %v8222
      %v8478 = vadd.f32 %v7518, %v8224
      %v8479 = vadd.f32 %v7519, %v8227
      %v8480 = vadd.f32 %v7520, %v8229
      %v8481 = vadd.f32 %v7521, %v8232
      %v8482 = vadd.f32 %v7522, %v8234
      %v8483 = vadd.f32 %v7523, %v8237
      %v8484 = vadd.f32 %v7524, %v8239
      %v8485 = vadd.f32 %v7525, %v8242
      %v8486 = vadd.f32 %v7526, %v8244
      %v8487 = vadd.f32 %v7527, %v8247
      %v8488 = vadd.f32 %v7528, %v8249
      %v8489 = vadd.f32 %v7529, %v8252
      %v8490 = vadd.f32 %v7530, %v8254
      %v8491 = vadd.f32 %v7531, %v8257
      %v8492 = vadd.f32 %v7532, %v8259
      %v8493 = vadd.f32 %v7533, %v8262
      %v8494 = vadd.f32 %v7534, %v8264
      %v8495 = vadd.f32 %v7535, %v8267
      %v8496 = vadd.f32 %v7536, %v8269
      %v8497 = vadd.f32 %v7537, %v8272
      %v8498 = vadd.f32 %v7538, %v8274
      %v8499 = vadd.f32 %v7539, %v8277
      %v8500 = vadd.f32 %v7540, %v8279
      %v8501 = vadd.f32 %v7541, %v8282
      %v8502 = vadd.f32 %v7542, %v8284
      %v8503 = vadd.f32 %v7543, %v8287
      %v8504 = vadd.f32 %v7544, %v8289
      %v8505 = vadd.f32 %v7545, %v8292
      %v8506 = vadd.f32 %v7546, %v8294
      %v8507 = vadd.f32 %v7547, %v8297
      %v8508 = vadd.f32 %v7548, %v8299
      %v8509 = vadd.f32 %v7549, %v8302
      %v8510 = vadd.f32 %v7550, %v8304
      %v8511 = vadd.f32 %v7551, %v8307
      %v8512 = vadd.f32 %v7552, %v8309
      %v8513 = vadd.f32 %v7553, %v8312
      %v8514 = vadd.f32 %v7554, %v8314
      %v8515 = vadd.f32 %v7555, %v8317
      %v8516 = vadd.f32 %v7556, %v8319
      %v8517 = vadd.f32 %v7557, %v8322
      %v8518 = vadd.f32 %v7558, %v8324
      %v8519 = vadd.f32 %v7559, %v8327
      %v8520 = vadd.f32 %v7560, %v8329
      %v8521 = vadd.f32 %v7561, %v8332
      %v8522 = vadd.f32 %v7562, %v8334
      %v8523 = vadd.f32 %v7563, %v8337
      %v8524 = vadd.f32 %v7564, %v8339
      %v8525 = vadd.f32 %v7565, %v8342
      %v8526 = vadd.f32 %v7566, %v8344
      %v8527 = vadd.f32 %v7567, %v8347
      %v8528 = vadd.f32 %v7568, %v8349
      %v8529 = vadd.f32 %v7569, %v8352
      %v8530 = vadd.f32 %v7570, %v8354
      %v8531 = vadd.f32 %v7571, %v8357
      %v8532 = vadd.f32 %v7572, %v8359
      %v8533 = vadd.f32 %v7573, %v8362
      %v8534 = vadd.f32 %v7574, %v8364
      %v8535 = vadd.f32 %v7575, %v8367
      %v8536 = vadd.f32 %v7576, %v8369
      %v8537 = vadd.f32 %v7577, %v8372
      %v8538 = vadd.f32 %v7578, %v8374
      %v8539 = vadd.f32 %v7579, %v8377
      %v8540 = vadd.f32 %v7580, %v8379
      %v8541 = vadd.f32 %v7581, %v8382
      %v8542 = vadd.f32 %v7582, %v8384
      %v8543 = vadd.f32 %v7583, %v8387
      %v8544 = vadd.f32 %v7584, %v8389
      %v8545 = vadd.f32 %v7585, %v8392
      %v8546 = vadd.f32 %v7586, %v8394
      %v8547 = vadd.f32 %v7587, %v8397
      %v8548 = vadd.f32 %v7588, %v8399
      %v8549 = vadd.f32 %v7589, %v8402
      %v8550 = vld [vmem:[%s2] sm:$0x1]
      %v8552 = vperm.slane %v8550, 0
      %v8554 = vmul.f32 %v8405, %v8552
      %v8555 = vmul.f32 %v8406, %v8552
      %v8556 = vmul.f32 %v8407, %v8552
      %v8557 = vmul.f32 %v8408, %v8552
      %v8558 = vmul.f32 %v8409, %v8552
      %v8559 = vmul.f32 %v8410, %v8552
      %v8560 = vmul.f32 %v8411, %v8552
      %v8561 = vmul.f32 %v8412, %v8552
      %v8562 = vmul.f32 %v8413, %v8552
      %v8563 = vmul.f32 %v8414, %v8552
      %v8564 = vmul.f32 %v8415, %v8552
      %v8565 = vmul.f32 %v8416, %v8552
      %v8566 = vmul.f32 %v8417, %v8552
      %v8567 = vmul.f32 %v8418, %v8552
      %v8568 = vmul.f32 %v8419, %v8552
      %v8569 = vmul.f32 %v8420, %v8552
      %v8570 = vmul.f32 %v8421, %v8552
      %v8571 = vmul.f32 %v8422, %v8552
      %v8572 = vmul.f32 %v8423, %v8552
      %v8573 = vmul.f32 %v8424, %v8552
      %v8574 = vmul.f32 %v8425, %v8552
      %v8575 = vmul.f32 %v8426, %v8552
      %v8576 = vmul.f32 %v8427, %v8552
      %v8577 = vmul.f32 %v8428, %v8552
      %v8578 = vmul.f32 %v8429, %v8552
      %v8579 = vmul.f32 %v8430, %v8552
      %v8580 = vmul.f32 %v8431, %v8552
      %v8581 = vmul.f32 %v8432, %v8552
      %v8582 = vmul.f32 %v8433, %v8552
      %v8583 = vmul.f32 %v8434, %v8552
      %v8584 = vmul.f32 %v8435, %v8552
      %v8585 = vmul.f32 %v8436, %v8552
      %v8586 = vmul.f32 %v8437, %v8552
      %v8587 = vmul.f32 %v8438, %v8552
      %v8588 = vmul.f32 %v8439, %v8552
      %v8589 = vmul.f32 %v8440, %v8552
      %v8590 = vmul.f32 %v8441, %v8552
      %v8591 = vmul.f32 %v8442, %v8552
      %v8592 = vmul.f32 %v8443, %v8552
      %v8593 = vmul.f32 %v8444, %v8552
      %v8594 = vmul.f32 %v8445, %v8552
      %v8595 = vmul.f32 %v8446, %v8552
      %v8596 = vmul.f32 %v8447, %v8552
      %v8597 = vmul.f32 %v8448, %v8552
      %v8598 = vmul.f32 %v8449, %v8552
      %v8599 = vmul.f32 %v8450, %v8552
      %v8600 = vmul.f32 %v8451, %v8552
      %v8601 = vmul.f32 %v8452, %v8552
      %v8602 = vmul.f32 %v8453, %v8552
      %v8603 = vmul.f32 %v8454, %v8552
      %v8604 = vmul.f32 %v8455, %v8552
      %v8605 = vmul.f32 %v8456, %v8552
      %v8606 = vmul.f32 %v8457, %v8552
      %v8607 = vmul.f32 %v8458, %v8552
      %v8608 = vmul.f32 %v8459, %v8552
      %v8609 = vmul.f32 %v8460, %v8552
      %v8610 = vmul.f32 %v8461, %v8552
      %v8611 = vmul.f32 %v8462, %v8552
      %v8612 = vmul.f32 %v8463, %v8552
      %v8613 = vmul.f32 %v8464, %v8552
      %v8614 = vmul.f32 %v8465, %v8552
      %v8615 = vmul.f32 %v8466, %v8552
      %v8616 = vmul.f32 %v8467, %v8552
      %v8617 = vmul.f32 %v8468, %v8552
      %v8618 = vmul.f32 %v8469, %v8552
      %v8619 = vmul.f32 %v8470, %v8552
      %v8620 = vmul.f32 %v8471, %v8552
      %v8621 = vmul.f32 %v8472, %v8552
      %v8622 = vmul.f32 %v8473, %v8552
      %v8623 = vmul.f32 %v8474, %v8552
      %v8624 = vmul.f32 %v8475, %v8552
      %v8625 = vmul.f32 %v8476, %v8552
      %v8626 = vmul.f32 %v8477, %v8552
      %v8627 = vmul.f32 %v8478, %v8552
      %v8628 = vmul.f32 %v8479, %v8552
      %v8629 = vmul.f32 %v8480, %v8552
      %v8630 = vmul.f32 %v8481, %v8552
      %v8631 = vmul.f32 %v8482, %v8552
      %v8632 = vmul.f32 %v8483, %v8552
      %v8633 = vmul.f32 %v8484, %v8552
      %v8634 = vmul.f32 %v8485, %v8552
      %v8635 = vmul.f32 %v8486, %v8552
      %v8636 = vmul.f32 %v8487, %v8552
      %v8637 = vmul.f32 %v8488, %v8552
      %v8638 = vmul.f32 %v8489, %v8552
      %v8639 = vmul.f32 %v8490, %v8552
      %v8640 = vmul.f32 %v8491, %v8552
      %v8641 = vmul.f32 %v8492, %v8552
      %v8642 = vmul.f32 %v8493, %v8552
      %v8643 = vmul.f32 %v8494, %v8552
      %v8644 = vmul.f32 %v8495, %v8552
      %v8645 = vmul.f32 %v8496, %v8552
      %v8646 = vmul.f32 %v8497, %v8552
      %v8647 = vmul.f32 %v8498, %v8552
      %v8648 = vmul.f32 %v8499, %v8552
      %v8649 = vmul.f32 %v8500, %v8552
      %v8650 = vmul.f32 %v8501, %v8552
      %v8651 = vmul.f32 %v8502, %v8552
      %v8652 = vmul.f32 %v8503, %v8552
      %v8653 = vmul.f32 %v8504, %v8552
      %v8654 = vmul.f32 %v8505, %v8552
      %v8655 = vmul.f32 %v8506, %v8552
      %v8656 = vmul.f32 %v8507, %v8552
      %v8657 = vmul.f32 %v8508, %v8552
      %v8658 = vmul.f32 %v8509, %v8552
      %v8659 = vmul.f32 %v8510, %v8552
      %v8660 = vmul.f32 %v8511, %v8552
      %v8661 = vmul.f32 %v8512, %v8552
      %v8662 = vmul.f32 %v8513, %v8552
      %v8663 = vmul.f32 %v8514, %v8552
      %v8664 = vmul.f32 %v8515, %v8552
      %v8665 = vmul.f32 %v8516, %v8552
      %v8666 = vmul.f32 %v8517, %v8552
      %v8667 = vmul.f32 %v8518, %v8552
      %v8668 = vmul.f32 %v8519, %v8552
      %v8669 = vmul.f32 %v8520, %v8552
      %v8670 = vmul.f32 %v8521, %v8552
      %v8671 = vmul.f32 %v8522, %v8552
      %v8672 = vmul.f32 %v8523, %v8552
      %v8673 = vmul.f32 %v8524, %v8552
      %v8674 = vmul.f32 %v8525, %v8552
      %v8675 = vmul.f32 %v8526, %v8552
      %v8676 = vmul.f32 %v8527, %v8552
      %v8677 = vmul.f32 %v8528, %v8552
      %v8678 = vmul.f32 %v8529, %v8552
      %v8679 = vmul.f32 %v8530, %v8552
      %v8680 = vmul.f32 %v8531, %v8552
      %v8681 = vmul.f32 %v8532, %v8552
      %v8682 = vmul.f32 %v8533, %v8552
      %v8683 = vmul.f32 %v8534, %v8552
      %v8684 = vmul.f32 %v8535, %v8552
      %v8685 = vmul.f32 %v8536, %v8552
      %v8686 = vmul.f32 %v8537, %v8552
      %v8687 = vmul.f32 %v8538, %v8552
      %v8688 = vmul.f32 %v8539, %v8552
      %v8689 = vmul.f32 %v8540, %v8552
      %v8690 = vmul.f32 %v8541, %v8552
      %v8691 = vmul.f32 %v8542, %v8552
      %v8692 = vmul.f32 %v8543, %v8552
      %v8693 = vmul.f32 %v8544, %v8552
      %v8694 = vmul.f32 %v8545, %v8552
      %v8695 = vmul.f32 %v8546, %v8552
      %v8696 = vmul.f32 %v8547, %v8552
      %v8697 = vmul.f32 %v8548, %v8552
      %v8698 = vmul.f32 %v8549, %v8552
      %v8699 = vld [vmem:[%s3] sm:$0x1]
      %v8701 = vperm.slane %v8699, 0
      %v8703 = vadd.f32 %v8554, %v8701
      %v8704 = vadd.f32 %v8555, %v8701
      %v8705 = vadd.f32 %v8556, %v8701
      %v8706 = vadd.f32 %v8557, %v8701
      %v8707 = vadd.f32 %v8558, %v8701
      %v8708 = vadd.f32 %v8559, %v8701
      %v8709 = vadd.f32 %v8560, %v8701
      %v8710 = vadd.f32 %v8561, %v8701
      %v8711 = vadd.f32 %v8562, %v8701
      %v8712 = vadd.f32 %v8563, %v8701
      %v8713 = vadd.f32 %v8564, %v8701
      %v8714 = vadd.f32 %v8565, %v8701
      %v8715 = vadd.f32 %v8566, %v8701
      %v8716 = vadd.f32 %v8567, %v8701
      %v8717 = vadd.f32 %v8568, %v8701
      %v8718 = vadd.f32 %v8569, %v8701
      %v8719 = vadd.f32 %v8570, %v8701
      %v8720 = vadd.f32 %v8571, %v8701
      %v8721 = vadd.f32 %v8572, %v8701
      %v8722 = vadd.f32 %v8573, %v8701
      %v8723 = vadd.f32 %v8574, %v8701
      %v8724 = vadd.f32 %v8575, %v8701
      %v8725 = vadd.f32 %v8576, %v8701
      %v8726 = vadd.f32 %v8577, %v8701
      %v8727 = vadd.f32 %v8578, %v8701
      %v8728 = vadd.f32 %v8579, %v8701
      %v8729 = vadd.f32 %v8580, %v8701
      %v8730 = vadd.f32 %v8581, %v8701
      %v8731 = vadd.f32 %v8582, %v8701
      %v8732 = vadd.f32 %v8583, %v8701
      %v8733 = vadd.f32 %v8584, %v8701
      %v8734 = vadd.f32 %v8585, %v8701
      %v8735 = vadd.f32 %v8586, %v8701
      %v8736 = vadd.f32 %v8587, %v8701
      %v8737 = vadd.f32 %v8588, %v8701
      %v8738 = vadd.f32 %v8589, %v8701
      %v8739 = vadd.f32 %v8590, %v8701
      %v8740 = vadd.f32 %v8591, %v8701
      %v8741 = vadd.f32 %v8592, %v8701
      %v8742 = vadd.f32 %v8593, %v8701
      %v8743 = vadd.f32 %v8594, %v8701
      %v8744 = vadd.f32 %v8595, %v8701
      %v8745 = vadd.f32 %v8596, %v8701
      %v8746 = vadd.f32 %v8597, %v8701
      %v8747 = vadd.f32 %v8598, %v8701
      %v8748 = vadd.f32 %v8599, %v8701
      %v8749 = vadd.f32 %v8600, %v8701
      %v8750 = vadd.f32 %v8601, %v8701
      %v8751 = vadd.f32 %v8602, %v8701
      %v8752 = vadd.f32 %v8603, %v8701
      %v8753 = vadd.f32 %v8604, %v8701
      %v8754 = vadd.f32 %v8605, %v8701
      %v8755 = vadd.f32 %v8606, %v8701
      %v8756 = vadd.f32 %v8607, %v8701
      %v8757 = vadd.f32 %v8608, %v8701
      %v8758 = vadd.f32 %v8609, %v8701
      %v8759 = vadd.f32 %v8610, %v8701
      %v8760 = vadd.f32 %v8611, %v8701
      %v8761 = vadd.f32 %v8612, %v8701
      %v8762 = vadd.f32 %v8613, %v8701
      %v8763 = vadd.f32 %v8614, %v8701
      %v8764 = vadd.f32 %v8615, %v8701
      %v8765 = vadd.f32 %v8616, %v8701
      %v8766 = vadd.f32 %v8617, %v8701
      %v8767 = vadd.f32 %v8618, %v8701
      %v8768 = vadd.f32 %v8619, %v8701
      %v8769 = vadd.f32 %v8620, %v8701
      %v8770 = vadd.f32 %v8621, %v8701
      %v8771 = vadd.f32 %v8622, %v8701
      %v8772 = vadd.f32 %v8623, %v8701
      %v8773 = vadd.f32 %v8624, %v8701
      %v8774 = vadd.f32 %v8625, %v8701
      %v8775 = vadd.f32 %v8626, %v8701
      %v8776 = vadd.f32 %v8627, %v8701
      %v8777 = vadd.f32 %v8628, %v8701
      %v8778 = vadd.f32 %v8629, %v8701
      %v8779 = vadd.f32 %v8630, %v8701
      %v8780 = vadd.f32 %v8631, %v8701
      %v8781 = vadd.f32 %v8632, %v8701
      %v8782 = vadd.f32 %v8633, %v8701
      %v8783 = vadd.f32 %v8634, %v8701
      %v8784 = vadd.f32 %v8635, %v8701
      %v8785 = vadd.f32 %v8636, %v8701
      %v8786 = vadd.f32 %v8637, %v8701
      %v8787 = vadd.f32 %v8638, %v8701
      %v8788 = vadd.f32 %v8639, %v8701
      %v8789 = vadd.f32 %v8640, %v8701
      %v8790 = vadd.f32 %v8641, %v8701
      %v8791 = vadd.f32 %v8642, %v8701
      %v8792 = vadd.f32 %v8643, %v8701
      %v8793 = vadd.f32 %v8644, %v8701
      %v8794 = vadd.f32 %v8645, %v8701
      %v8795 = vadd.f32 %v8646, %v8701
      %v8796 = vadd.f32 %v8647, %v8701
      %v8797 = vadd.f32 %v8648, %v8701
      %v8798 = vadd.f32 %v8649, %v8701
      %v8799 = vadd.f32 %v8650, %v8701
      %v8800 = vadd.f32 %v8651, %v8701
      %v8801 = vadd.f32 %v8652, %v8701
      %v8802 = vadd.f32 %v8653, %v8701
      %v8803 = vadd.f32 %v8654, %v8701
      %v8804 = vadd.f32 %v8655, %v8701
      %v8805 = vadd.f32 %v8656, %v8701
      %v8806 = vadd.f32 %v8657, %v8701
      %v8807 = vadd.f32 %v8658, %v8701
      %v8808 = vadd.f32 %v8659, %v8701
      %v8809 = vadd.f32 %v8660, %v8701
      %v8810 = vadd.f32 %v8661, %v8701
      %v8811 = vadd.f32 %v8662, %v8701
      %v8812 = vadd.f32 %v8663, %v8701
      %v8813 = vadd.f32 %v8664, %v8701
      %v8814 = vadd.f32 %v8665, %v8701
      %v8815 = vadd.f32 %v8666, %v8701
      %v8816 = vadd.f32 %v8667, %v8701
      %v8817 = vadd.f32 %v8668, %v8701
      %v8818 = vadd.f32 %v8669, %v8701
      %v8819 = vadd.f32 %v8670, %v8701
      %v8820 = vadd.f32 %v8671, %v8701
      %v8821 = vadd.f32 %v8672, %v8701
      %v8822 = vadd.f32 %v8673, %v8701
      %v8823 = vadd.f32 %v8674, %v8701
      %v8824 = vadd.f32 %v8675, %v8701
      %v8825 = vadd.f32 %v8676, %v8701
      %v8826 = vadd.f32 %v8677, %v8701
      %v8827 = vadd.f32 %v8678, %v8701
      %v8828 = vadd.f32 %v8679, %v8701
      %v8829 = vadd.f32 %v8680, %v8701
      %v8830 = vadd.f32 %v8681, %v8701
      %v8831 = vadd.f32 %v8682, %v8701
      %v8832 = vadd.f32 %v8683, %v8701
      %v8833 = vadd.f32 %v8684, %v8701
      %v8834 = vadd.f32 %v8685, %v8701
      %v8835 = vadd.f32 %v8686, %v8701
      %v8836 = vadd.f32 %v8687, %v8701
      %v8837 = vadd.f32 %v8688, %v8701
      %v8838 = vadd.f32 %v8689, %v8701
      %v8839 = vadd.f32 %v8690, %v8701
      %v8840 = vadd.f32 %v8691, %v8701
      %v8841 = vadd.f32 %v8692, %v8701
      %v8842 = vadd.f32 %v8693, %v8701
      %v8843 = vadd.f32 %v8694, %v8701
      %v8844 = vadd.f32 %v8695, %v8701
      %v8845 = vadd.f32 %v8696, %v8701
      %v8846 = vadd.f32 %v8697, %v8701
      %v8847 = vadd.f32 %v8698, %v8701
      %v8848 = vmax.f32 %v8703, 0.0
      %v8849 = vmax.f32 %v8704, 0.0
      %v8850 = vmax.f32 %v8705, 0.0
      %v8851 = vmax.f32 %v8706, 0.0
      %v8852 = vmax.f32 %v8707, 0.0
      %v8853 = vmax.f32 %v8708, 0.0
      %v8854 = vmax.f32 %v8709, 0.0
      %v8855 = vmax.f32 %v8710, 0.0
      %v8856 = vmax.f32 %v8711, 0.0
      %v8857 = vmax.f32 %v8712, 0.0
      %v8858 = vmax.f32 %v8713, 0.0
      %v8859 = vmax.f32 %v8714, 0.0
      %v8860 = vmax.f32 %v8715, 0.0
      %v8861 = vmax.f32 %v8716, 0.0
      %v8862 = vmax.f32 %v8717, 0.0
      %v8863 = vmax.f32 %v8718, 0.0
      %v8864 = vmax.f32 %v8719, 0.0
      %v8865 = vmax.f32 %v8720, 0.0
      %v8866 = vmax.f32 %v8721, 0.0
      %v8867 = vmax.f32 %v8722, 0.0
      %v8868 = vmax.f32 %v8723, 0.0
      %v8869 = vmax.f32 %v8724, 0.0
      %v8870 = vmax.f32 %v8725, 0.0
      %v8871 = vmax.f32 %v8726, 0.0
      %v8872 = vmax.f32 %v8727, 0.0
      %v8873 = vmax.f32 %v8728, 0.0
      %v8874 = vmax.f32 %v8729, 0.0
      %v8875 = vmax.f32 %v8730, 0.0
      %v8876 = vmax.f32 %v8731, 0.0
      %v8877 = vmax.f32 %v8732, 0.0
      %v8878 = vmax.f32 %v8733, 0.0
      %v8879 = vmax.f32 %v8734, 0.0
      %v8880 = vmax.f32 %v8735, 0.0
      %v8881 = vmax.f32 %v8736, 0.0
      %v8882 = vmax.f32 %v8737, 0.0
      %v8883 = vmax.f32 %v8738, 0.0
      %v8884 = vmax.f32 %v8739, 0.0
      %v8885 = vmax.f32 %v8740, 0.0
      %v8886 = vmax.f32 %v8741, 0.0
      %v8887 = vmax.f32 %v8742, 0.0
      %v8888 = vmax.f32 %v8743, 0.0
      %v8889 = vmax.f32 %v8744, 0.0
      %v8890 = vmax.f32 %v8745, 0.0
      %v8891 = vmax.f32 %v8746, 0.0
      %v8892 = vmax.f32 %v8747, 0.0
      %v8893 = vmax.f32 %v8748, 0.0
      %v8894 = vmax.f32 %v8749, 0.0
      %v8895 = vmax.f32 %v8750, 0.0
      %v8896 = vmax.f32 %v8751, 0.0
      %v8897 = vmax.f32 %v8752, 0.0
      %v8898 = vmax.f32 %v8753, 0.0
      %v8899 = vmax.f32 %v8754, 0.0
      %v8900 = vmax.f32 %v8755, 0.0
      %v8901 = vmax.f32 %v8756, 0.0
      %v8902 = vmax.f32 %v8757, 0.0
      %v8903 = vmax.f32 %v8758, 0.0
      %v8904 = vmax.f32 %v8759, 0.0
      %v8905 = vmax.f32 %v8760, 0.0
      %v8906 = vmax.f32 %v8761, 0.0
      %v8907 = vmax.f32 %v8762, 0.0
      %v8908 = vmax.f32 %v8763, 0.0
      %v8909 = vmax.f32 %v8764, 0.0
      %v8910 = vmax.f32 %v8765, 0.0
      %v8911 = vmax.f32 %v8766, 0.0
      %v8912 = vmax.f32 %v8767, 0.0
      %v8913 = vmax.f32 %v8768, 0.0
      %v8914 = vmax.f32 %v8769, 0.0
      %v8915 = vmax.f32 %v8770, 0.0
      %v8916 = vmax.f32 %v8771, 0.0
      %v8917 = vmax.f32 %v8772, 0.0
      %v8918 = vmax.f32 %v8773, 0.0
      %v8919 = vmax.f32 %v8774, 0.0
      %v8920 = vmax.f32 %v8775, 0.0
      %v8921 = vmax.f32 %v8776, 0.0
      %v8922 = vmax.f32 %v8777, 0.0
      %v8923 = vmax.f32 %v8778, 0.0
      %v8924 = vmax.f32 %v8779, 0.0
      %v8925 = vmax.f32 %v8780, 0.0
      %v8926 = vmax.f32 %v8781, 0.0
      %v8927 = vmax.f32 %v8782, 0.0
      %v8928 = vmax.f32 %v8783, 0.0
      %v8929 = vmax.f32 %v8784, 0.0
      %v8930 = vmax.f32 %v8785, 0.0
      %v8931 = vmax.f32 %v8786, 0.0
      %v8932 = vmax.f32 %v8787, 0.0
      %v8933 = vmax.f32 %v8788, 0.0
      %v8934 = vmax.f32 %v8789, 0.0
      %v8935 = vmax.f32 %v8790, 0.0
      %v8936 = vmax.f32 %v8791, 0.0
      %v8937 = vmax.f32 %v8792, 0.0
      %v8938 = vmax.f32 %v8793, 0.0
      %v8939 = vmax.f32 %v8794, 0.0
      %v8940 = vmax.f32 %v8795, 0.0
      %v8941 = vmax.f32 %v8796, 0.0
      %v8942 = vmax.f32 %v8797, 0.0
      %v8943 = vmax.f32 %v8798, 0.0
      %v8944 = vmax.f32 %v8799, 0.0
      %v8945 = vmax.f32 %v8800, 0.0
      %v8946 = vmax.f32 %v8801, 0.0
      %v8947 = vmax.f32 %v8802, 0.0
      %v8948 = vmax.f32 %v8803, 0.0
      %v8949 = vmax.f32 %v8804, 0.0
      %v8950 = vmax.f32 %v8805, 0.0
      %v8951 = vmax.f32 %v8806, 0.0
      %v8952 = vmax.f32 %v8807, 0.0
      %v8953 = vmax.f32 %v8808, 0.0
      %v8954 = vmax.f32 %v8809, 0.0
      %v8955 = vmax.f32 %v8810, 0.0
      %v8956 = vmax.f32 %v8811, 0.0
      %v8957 = vmax.f32 %v8812, 0.0
      %v8958 = vmax.f32 %v8813, 0.0
      %v8959 = vmax.f32 %v8814, 0.0
      %v8960 = vmax.f32 %v8815, 0.0
      %v8961 = vmax.f32 %v8816, 0.0
      %v8962 = vmax.f32 %v8817, 0.0
      %v8963 = vmax.f32 %v8818, 0.0
      %v8964 = vmax.f32 %v8819, 0.0
      %v8965 = vmax.f32 %v8820, 0.0
      %v8966 = vmax.f32 %v8821, 0.0
      %v8967 = vmax.f32 %v8822, 0.0
      %v8968 = vmax.f32 %v8823, 0.0
      %v8969 = vmax.f32 %v8824, 0.0
      %v8970 = vmax.f32 %v8825, 0.0
      %v8971 = vmax.f32 %v8826, 0.0
      %v8972 = vmax.f32 %v8827, 0.0
      %v8973 = vmax.f32 %v8828, 0.0
      %v8974 = vmax.f32 %v8829, 0.0
      %v8975 = vmax.f32 %v8830, 0.0
      %v8976 = vmax.f32 %v8831, 0.0
      %v8977 = vmax.f32 %v8832, 0.0
      %v8978 = vmax.f32 %v8833, 0.0
      %v8979 = vmax.f32 %v8834, 0.0
      %v8980 = vmax.f32 %v8835, 0.0
      %v8981 = vmax.f32 %v8836, 0.0
      %v8982 = vmax.f32 %v8837, 0.0
      %v8983 = vmax.f32 %v8838, 0.0
      %v8984 = vmax.f32 %v8839, 0.0
      %v8985 = vmax.f32 %v8840, 0.0
      %v8986 = vmax.f32 %v8841, 0.0
      %v8987 = vmax.f32 %v8842, 0.0
      %v8988 = vmax.f32 %v8843, 0.0
      %v8989 = vmax.f32 %v8844, 0.0
      %v8990 = vmax.f32 %v8845, 0.0
      %v8991 = vmax.f32 %v8846, 0.0
      %v8992 = vmax.f32 %v8847, 0.0
      %v8993 = vpack.c.bf16 %v8848, %v8848
      %v8994 = vpack.c.bf16 %v8849, %v8849
      %v8995 = vpack.c.bf16 %v8850, %v8850
      %v8996 = vpack.c.bf16 %v8851, %v8851
      %v8997 = vpack.c.bf16 %v8852, %v8852
      %v8998 = vpack.c.bf16 %v8853, %v8853
      %v8999 = vpack.c.bf16 %v8854, %v8854
      %v9000 = vpack.c.bf16 %v8855, %v8855
      %v9001 = vpack.c.bf16 %v8856, %v8856
      %v9002 = vpack.c.bf16 %v8857, %v8857
      %v9003 = vpack.c.bf16 %v8858, %v8858
      %v9004 = vpack.c.bf16 %v8859, %v8859
      %v9005 = vpack.c.bf16 %v8860, %v8860
      %v9006 = vpack.c.bf16 %v8861, %v8861
      %v9007 = vpack.c.bf16 %v8862, %v8862
      %v9008 = vpack.c.bf16 %v8863, %v8863
      %v9009 = vpack.c.bf16 %v8864, %v8864
      %v9010 = vpack.c.bf16 %v8865, %v8865
      %v9011 = vpack.c.bf16 %v8866, %v8866
      %v9012 = vpack.c.bf16 %v8867, %v8867
      %v9013 = vpack.c.bf16 %v8868, %v8868
      %v9014 = vpack.c.bf16 %v8869, %v8869
      %v9015 = vpack.c.bf16 %v8870, %v8870
      %v9016 = vpack.c.bf16 %v8871, %v8871
      %v9017 = vpack.c.bf16 %v8872, %v8872
      %v9018 = vpack.c.bf16 %v8873, %v8873
      %v9019 = vpack.c.bf16 %v8874, %v8874
      %v9020 = vpack.c.bf16 %v8875, %v8875
      %v9021 = vpack.c.bf16 %v8876, %v8876
      %v9022 = vpack.c.bf16 %v8877, %v8877
      %v9023 = vpack.c.bf16 %v8878, %v8878
      %v9024 = vpack.c.bf16 %v8879, %v8879
      %v9025 = vpack.c.bf16 %v8880, %v8880
      %v9026 = vpack.c.bf16 %v8881, %v8881
      %v9027 = vpack.c.bf16 %v8882, %v8882
      %v9028 = vpack.c.bf16 %v8883, %v8883
      %v9029 = vpack.c.bf16 %v8884, %v8884
      %v9030 = vpack.c.bf16 %v8885, %v8885
      %v9031 = vpack.c.bf16 %v8886, %v8886
      %v9032 = vpack.c.bf16 %v8887, %v8887
      %v9033 = vpack.c.bf16 %v8888, %v8888
      %v9034 = vpack.c.bf16 %v8889, %v8889
      %v9035 = vpack.c.bf16 %v8890, %v8890
      %v9036 = vpack.c.bf16 %v8891, %v8891
      %v9037 = vpack.c.bf16 %v8892, %v8892
      %v9038 = vpack.c.bf16 %v8893, %v8893
      %v9039 = vpack.c.bf16 %v8894, %v8894
      %v9040 = vpack.c.bf16 %v8895, %v8895
      %v9041 = vpack.c.bf16 %v8896, %v8896
      %v9042 = vpack.c.bf16 %v8897, %v8897
      %v9043 = vpack.c.bf16 %v8898, %v8898
      %v9044 = vpack.c.bf16 %v8899, %v8899
      %v9045 = vpack.c.bf16 %v8900, %v8900
      %v9046 = vpack.c.bf16 %v8901, %v8901
      %v9047 = vpack.c.bf16 %v8902, %v8902
      %v9048 = vpack.c.bf16 %v8903, %v8903
      %v9049 = vpack.c.bf16 %v8904, %v8904
      %v9050 = vpack.c.bf16 %v8905, %v8905
      %v9051 = vpack.c.bf16 %v8906, %v8906
      %v9052 = vpack.c.bf16 %v8907, %v8907
      %v9053 = vpack.c.bf16 %v8908, %v8908
      %v9054 = vpack.c.bf16 %v8909, %v8909
      %v9055 = vpack.c.bf16 %v8910, %v8910
      %v9056 = vpack.c.bf16 %v8911, %v8911
      %v9057 = vpack.c.bf16 %v8912, %v8912
      %v9058 = vpack.c.bf16 %v8913, %v8913
      %v9059 = vpack.c.bf16 %v8914, %v8914
      %v9060 = vpack.c.bf16 %v8915, %v8915
      %v9061 = vpack.c.bf16 %v8916, %v8916
      %v9062 = vpack.c.bf16 %v8917, %v8917
      %v9063 = vpack.c.bf16 %v8918, %v8918
      %v9064 = vpack.c.bf16 %v8919, %v8919
      %v9065 = vpack.c.bf16 %v8920, %v8920
      %v9066 = vpack.c.bf16 %v8921, %v8921
      %v9067 = vpack.c.bf16 %v8922, %v8922
      %v9068 = vpack.c.bf16 %v8923, %v8923
      %v9069 = vpack.c.bf16 %v8924, %v8924
      %v9070 = vpack.c.bf16 %v8925, %v8925
      %v9071 = vpack.c.bf16 %v8926, %v8926
      %v9072 = vpack.c.bf16 %v8927, %v8927
      %v9073 = vpack.c.bf16 %v8928, %v8928
      %v9074 = vpack.c.bf16 %v8929, %v8929
      %v9075 = vpack.c.bf16 %v8930, %v8930
      %v9076 = vpack.c.bf16 %v8931, %v8931
      %v9077 = vpack.c.bf16 %v8932, %v8932
      %v9078 = vpack.c.bf16 %v8933, %v8933
      %v9079 = vpack.c.bf16 %v8934, %v8934
      %v9080 = vpack.c.bf16 %v8935, %v8935
      %v9081 = vpack.c.bf16 %v8936, %v8936
      %v9082 = vpack.c.bf16 %v8937, %v8937
      %v9083 = vpack.c.bf16 %v8938, %v8938
      %v9084 = vpack.c.bf16 %v8939, %v8939
      %v9085 = vpack.c.bf16 %v8940, %v8940
      %v9086 = vpack.c.bf16 %v8941, %v8941
      %v9087 = vpack.c.bf16 %v8942, %v8942
      %v9088 = vpack.c.bf16 %v8943, %v8943
      %v9089 = vpack.c.bf16 %v8944, %v8944
      %v9090 = vpack.c.bf16 %v8945, %v8945
      %v9091 = vpack.c.bf16 %v8946, %v8946
      %v9092 = vpack.c.bf16 %v8947, %v8947
      %v9093 = vpack.c.bf16 %v8948, %v8948
      %v9094 = vpack.c.bf16 %v8949, %v8949
      %v9095 = vpack.c.bf16 %v8950, %v8950
      %v9096 = vpack.c.bf16 %v8951, %v8951
      %v9097 = vpack.c.bf16 %v8952, %v8952
      %v9098 = vpack.c.bf16 %v8953, %v8953
      %v9099 = vpack.c.bf16 %v8954, %v8954
      %v9100 = vpack.c.bf16 %v8955, %v8955
      %v9101 = vpack.c.bf16 %v8956, %v8956
      %v9102 = vpack.c.bf16 %v8957, %v8957
      %v9103 = vpack.c.bf16 %v8958, %v8958
      %v9104 = vpack.c.bf16 %v8959, %v8959
      %v9105 = vpack.c.bf16 %v8960, %v8960
      %v9106 = vpack.c.bf16 %v8961, %v8961
      %v9107 = vpack.c.bf16 %v8962, %v8962
      %v9108 = vpack.c.bf16 %v8963, %v8963
      %v9109 = vpack.c.bf16 %v8964, %v8964
      %v9110 = vpack.c.bf16 %v8965, %v8965
      %v9111 = vpack.c.bf16 %v8966, %v8966
      %v9112 = vpack.c.bf16 %v8967, %v8967
      %v9113 = vpack.c.bf16 %v8968, %v8968
      %v9114 = vpack.c.bf16 %v8969, %v8969
      %v9115 = vpack.c.bf16 %v8970, %v8970
      %v9116 = vpack.c.bf16 %v8971, %v8971
      %v9117 = vpack.c.bf16 %v8972, %v8972
      %v9118 = vpack.c.bf16 %v8973, %v8973
      %v9119 = vpack.c.bf16 %v8974, %v8974
      %v9120 = vpack.c.bf16 %v8975, %v8975
      %v9121 = vpack.c.bf16 %v8976, %v8976
      %v9122 = vpack.c.bf16 %v8977, %v8977
      %v9123 = vpack.c.bf16 %v8978, %v8978
      %v9124 = vpack.c.bf16 %v8979, %v8979
      %v9125 = vpack.c.bf16 %v8980, %v8980
      %v9126 = vpack.c.bf16 %v8981, %v8981
      %v9127 = vpack.c.bf16 %v8982, %v8982
      %v9128 = vpack.c.bf16 %v8983, %v8983
      %v9129 = vpack.c.bf16 %v8984, %v8984
      %v9130 = vpack.c.bf16 %v8985, %v8985
      %v9131 = vpack.c.bf16 %v8986, %v8986
      %v9132 = vpack.c.bf16 %v8987, %v8987
      %v9133 = vpack.c.bf16 %v8988, %v8988
      %v9134 = vpack.c.bf16 %v8989, %v8989
      %v9135 = vpack.c.bf16 %v8990, %v8990
      %v9136 = vpack.c.bf16 %v8991, %v8991
      %v9137 = vpack.c.bf16 %v8992, %v8992
      %vm9138 = vcmask 519168
      %9139 = vst.msk [vmem:[%s197] sm:$0xf] %vm9138, %v8993
      %9140 = vst.msk [vmem:[%s197 + $0x4] sm:$0xf] %vm9138, %v8994
      %9141 = vst.msk [vmem:[%s197 + $0x8] sm:$0xf] %vm9138, %v8995
      %9142 = vst.msk [vmem:[%s197 + $0xc] sm:$0xf] %vm9138, %v8996
      %9143 = vst.msk [vmem:[%s197 + $0x10] sm:$0xf] %vm9138, %v8997
      %9144 = vst.msk [vmem:[%s197 + $0x14] sm:$0xf] %vm9138, %v8998
      %9145 = vst.msk [vmem:[%s197 + $0x18] sm:$0xf] %vm9138, %v8999
      %9146 = vst.msk [vmem:[%s197 + $0x1c] sm:$0xf] %vm9138, %v9000
      %9147 = vst.msk [vmem:[%s197 + $0x20] sm:$0xf] %vm9138, %v9001
      %9148 = vst.msk [vmem:[%s197 + $0x24] sm:$0xf] %vm9138, %v9002
      %9149 = vst.msk [vmem:[%s197 + $0x28] sm:$0xf] %vm9138, %v9003
      %9150 = vst.msk [vmem:[%s197 + $0x2c] sm:$0xf] %vm9138, %v9004
      %9151 = vst.msk [vmem:[%s197 + $0x30] sm:$0xf] %vm9138, %v9005
      %9152 = vst.msk [vmem:[%s197 + $0x34] sm:$0xf] %vm9138, %v9006
      %9153 = vst.msk [vmem:[%s197 + $0x38] sm:$0xf] %vm9138, %v9007
      %9154 = vst.msk [vmem:[%s197 + $0x3c] sm:$0xf] %vm9138, %v9008
      %9155 = vst.msk [vmem:[%s197 + $0x40] sm:$0xf] %vm9138, %v9009
      %9156 = vst.msk [vmem:[%s197 + $0x44] sm:$0xf] %vm9138, %v9010
      %9157 = vst.msk [vmem:[%s197 + $0x48] sm:$0xf] %vm9138, %v9011
      %9158 = vst.msk [vmem:[%s197 + $0x4c] sm:$0xf] %vm9138, %v9012
      %9159 = vst.msk [vmem:[%s197 + $0x50] sm:$0xf] %vm9138, %v9013
      %9160 = vst.msk [vmem:[%s197 + $0x54] sm:$0xf] %vm9138, %v9014
      %9161 = vst.msk [vmem:[%s197 + $0x58] sm:$0xf] %vm9138, %v9015
      %9162 = vst.msk [vmem:[%s197 + $0x5c] sm:$0xf] %vm9138, %v9016
      %9163 = vst.msk [vmem:[%s197 + $0x60] sm:$0xf] %vm9138, %v9017
      %9164 = vst.msk [vmem:[%s197 + $0x64] sm:$0xf] %vm9138, %v9018
      %9165 = vst.msk [vmem:[%s197 + $0x68] sm:$0xf] %vm9138, %v9019
      %9166 = vst.msk [vmem:[%s197 + $0x6c] sm:$0xf] %vm9138, %v9020
      %9167 = vst.msk [vmem:[%s197 + $0x70] sm:$0xf] %vm9138, %v9021
      %9168 = vst.msk [vmem:[%s197 + $0x74] sm:$0xf] %vm9138, %v9022
      %9169 = vst.msk [vmem:[%s197 + $0x78] sm:$0xf] %vm9138, %v9023
      %9170 = vst.msk [vmem:[%s197 + $0x7c] sm:$0xf] %vm9138, %v9024
      %9171 = vst.msk [vmem:[%s197 + $0x80] sm:$0xf] %vm9138, %v9025
      %9172 = vst.msk [vmem:[%s197 + $0x84] sm:$0xf] %vm9138, %v9026
      %9173 = vst.msk [vmem:[%s197 + $0x88] sm:$0xf] %vm9138, %v9027
      %9174 = vst.msk [vmem:[%s197 + $0x8c] sm:$0xf] %vm9138, %v9028
      %9175 = vst.msk [vmem:[%s197 + $0x90] sm:$0xf] %vm9138, %v9029
      %9176 = vst.msk [vmem:[%s197 + $0x94] sm:$0xf] %vm9138, %v9030
      %9177 = vst.msk [vmem:[%s197 + $0x98] sm:$0xf] %vm9138, %v9031
      %9178 = vst.msk [vmem:[%s197 + $0x9c] sm:$0xf] %vm9138, %v9032
      %9179 = vst.msk [vmem:[%s197 + $0xa0] sm:$0xf] %vm9138, %v9033
      %9180 = vst.msk [vmem:[%s197 + $0xa4] sm:$0xf] %vm9138, %v9034
      %9181 = vst.msk [vmem:[%s197 + $0xa8] sm:$0xf] %vm9138, %v9035
      %9182 = vst.msk [vmem:[%s197 + $0xac] sm:$0xf] %vm9138, %v9036
      %9183 = vst.msk [vmem:[%s197 + $0xb0] sm:$0xf] %vm9138, %v9037
      %9184 = vst.msk [vmem:[%s197 + $0xb4] sm:$0xf] %vm9138, %v9038
      %9185 = vst.msk [vmem:[%s197 + $0xb8] sm:$0xf] %vm9138, %v9039
      %9186 = vst.msk [vmem:[%s197 + $0xbc] sm:$0xf] %vm9138, %v9040
      %9187 = vst.msk [vmem:[%s197 + $0xc0] sm:$0xf] %vm9138, %v9041
      %9188 = vst.msk [vmem:[%s197 + $0xc4] sm:$0xf] %vm9138, %v9042
      %9189 = vst.msk [vmem:[%s197 + $0xc8] sm:$0xf] %vm9138, %v9043
      %9190 = vst.msk [vmem:[%s197 + $0xcc] sm:$0xf] %vm9138, %v9044
      %9191 = vst.msk [vmem:[%s197 + $0xd0] sm:$0xf] %vm9138, %v9045
      %9192 = vst.msk [vmem:[%s197 + $0xd4] sm:$0xf] %vm9138, %v9046
      %9193 = vst.msk [vmem:[%s197 + $0xd8] sm:$0xf] %vm9138, %v9047
      %9194 = vst.msk [vmem:[%s197 + $0xdc] sm:$0xf] %vm9138, %v9048
      %9195 = vst.msk [vmem:[%s197 + $0xe0] sm:$0xf] %vm9138, %v9049
      %9196 = vst.msk [vmem:[%s197 + $0xe4] sm:$0xf] %vm9138, %v9050
      %9197 = vst.msk [vmem:[%s197 + $0xe8] sm:$0xf] %vm9138, %v9051
      %9198 = vst.msk [vmem:[%s197 + $0xec] sm:$0xf] %vm9138, %v9052
      %9199 = vst.msk [vmem:[%s197 + $0xf0] sm:$0xf] %vm9138, %v9053
      %9200 = vst.msk [vmem:[%s197 + $0xf4] sm:$0xf] %vm9138, %v9054
      %9201 = vst.msk [vmem:[%s197 + $0xf8] sm:$0xf] %vm9138, %v9055
      %9202 = vst.msk [vmem:[%s197 + $0xfc] sm:$0xf] %vm9138, %v9056
      %9203 = vst.msk [vmem:[%s197 + $0x100] sm:$0xf] %vm9138, %v9057
      %9204 = vst.msk [vmem:[%s197 + $0x104] sm:$0xf] %vm9138, %v9058
      %9205 = vst.msk [vmem:[%s197 + $0x108] sm:$0xf] %vm9138, %v9059
      %9206 = vst.msk [vmem:[%s197 + $0x10c] sm:$0xf] %vm9138, %v9060
      %9207 = vst.msk [vmem:[%s197 + $0x110] sm:$0xf] %vm9138, %v9061
      %9208 = vst.msk [vmem:[%s197 + $0x114] sm:$0xf] %vm9138, %v9062
      %9209 = vst.msk [vmem:[%s197 + $0x118] sm:$0xf] %vm9138, %v9063
      %9210 = vst.msk [vmem:[%s197 + $0x11c] sm:$0xf] %vm9138, %v9064
      %9211 = vst.msk [vmem:[%s197 + $0x120] sm:$0xf] %vm9138, %v9065
      %9212 = vst.msk [vmem:[%s197 + $0x124] sm:$0xf] %vm9138, %v9066
      %9213 = vst.msk [vmem:[%s197 + $0x128] sm:$0xf] %vm9138, %v9067
      %9214 = vst.msk [vmem:[%s197 + $0x12c] sm:$0xf] %vm9138, %v9068
      %9215 = vst.msk [vmem:[%s197 + $0x130] sm:$0xf] %vm9138, %v9069
      %9216 = vst.msk [vmem:[%s197 + $0x134] sm:$0xf] %vm9138, %v9070
      %9217 = vst.msk [vmem:[%s197 + $0x138] sm:$0xf] %vm9138, %v9071
      %9218 = vst.msk [vmem:[%s197 + $0x13c] sm:$0xf] %vm9138, %v9072
      %9219 = vst.msk [vmem:[%s197 + $0x140] sm:$0xf] %vm9138, %v9073
      %9220 = vst.msk [vmem:[%s197 + $0x144] sm:$0xf] %vm9138, %v9074
      %9221 = vst.msk [vmem:[%s197 + $0x148] sm:$0xf] %vm9138, %v9075
      %9222 = vst.msk [vmem:[%s197 + $0x14c] sm:$0xf] %vm9138, %v9076
      %9223 = vst.msk [vmem:[%s197 + $0x150] sm:$0xf] %vm9138, %v9077
      %9224 = vst.msk [vmem:[%s197 + $0x154] sm:$0xf] %vm9138, %v9078
      %9225 = vst.msk [vmem:[%s197 + $0x158] sm:$0xf] %vm9138, %v9079
      %9226 = vst.msk [vmem:[%s197 + $0x15c] sm:$0xf] %vm9138, %v9080
      %9227 = vst.msk [vmem:[%s197 + $0x160] sm:$0xf] %vm9138, %v9081
      %9228 = vst.msk [vmem:[%s197 + $0x164] sm:$0xf] %vm9138, %v9082
      %9229 = vst.msk [vmem:[%s197 + $0x168] sm:$0xf] %vm9138, %v9083
      %9230 = vst.msk [vmem:[%s197 + $0x16c] sm:$0xf] %vm9138, %v9084
      %9231 = vst.msk [vmem:[%s197 + $0x170] sm:$0xf] %vm9138, %v9085
      %9232 = vst.msk [vmem:[%s197 + $0x174] sm:$0xf] %vm9138, %v9086
      %9233 = vst.msk [vmem:[%s197 + $0x178] sm:$0xf] %vm9138, %v9087
      %9234 = vst.msk [vmem:[%s197 + $0x17c] sm:$0xf] %vm9138, %v9088
      %9235 = vst.msk [vmem:[%s197 + $0x180] sm:$0xf] %vm9138, %v9089
      %9236 = vst.msk [vmem:[%s197 + $0x184] sm:$0xf] %vm9138, %v9090
      %9237 = vst.msk [vmem:[%s197 + $0x188] sm:$0xf] %vm9138, %v9091
      %9238 = vst.msk [vmem:[%s197 + $0x18c] sm:$0xf] %vm9138, %v9092
      %9239 = vst.msk [vmem:[%s197 + $0x190] sm:$0xf] %vm9138, %v9093
      %9240 = vst.msk [vmem:[%s197 + $0x194] sm:$0xf] %vm9138, %v9094
      %9241 = vst.msk [vmem:[%s197 + $0x198] sm:$0xf] %vm9138, %v9095
      %9242 = vst.msk [vmem:[%s197 + $0x19c] sm:$0xf] %vm9138, %v9096
      %9243 = vst.msk [vmem:[%s197 + $0x1a0] sm:$0xf] %vm9138, %v9097
      %9244 = vst.msk [vmem:[%s197 + $0x1a4] sm:$0xf] %vm9138, %v9098
      %9245 = vst.msk [vmem:[%s197 + $0x1a8] sm:$0xf] %vm9138, %v9099
      %9246 = vst.msk [vmem:[%s197 + $0x1ac] sm:$0xf] %vm9138, %v9100
      %9247 = vst.msk [vmem:[%s197 + $0x1b0] sm:$0xf] %vm9138, %v9101
      %9248 = vst.msk [vmem:[%s197 + $0x1b4] sm:$0xf] %vm9138, %v9102
      %9249 = vst.msk [vmem:[%s197 + $0x1b8] sm:$0xf] %vm9138, %v9103
      %9250 = vst.msk [vmem:[%s197 + $0x1bc] sm:$0xf] %vm9138, %v9104
      %9251 = vst.msk [vmem:[%s197 + $0x1c0] sm:$0xf] %vm9138, %v9105
      %9252 = vst.msk [vmem:[%s197 + $0x1c4] sm:$0xf] %vm9138, %v9106
      %9253 = vst.msk [vmem:[%s197 + $0x1c8] sm:$0xf] %vm9138, %v9107
      %9254 = vst.msk [vmem:[%s197 + $0x1cc] sm:$0xf] %vm9138, %v9108
      %9255 = vst.msk [vmem:[%s197 + $0x1d0] sm:$0xf] %vm9138, %v9109
      %9256 = vst.msk [vmem:[%s197 + $0x1d4] sm:$0xf] %vm9138, %v9110
      %9257 = vst.msk [vmem:[%s197 + $0x1d8] sm:$0xf] %vm9138, %v9111
      %9258 = vst.msk [vmem:[%s197 + $0x1dc] sm:$0xf] %vm9138, %v9112
      %9259 = vst.msk [vmem:[%s197 + $0x1e0] sm:$0xf] %vm9138, %v9113
      %9260 = vst.msk [vmem:[%s197 + $0x1e4] sm:$0xf] %vm9138, %v9114
      %9261 = vst.msk [vmem:[%s197 + $0x1e8] sm:$0xf] %vm9138, %v9115
      %9262 = vst.msk [vmem:[%s197 + $0x1ec] sm:$0xf] %vm9138, %v9116
      %9263 = vst.msk [vmem:[%s197 + $0x1f0] sm:$0xf] %vm9138, %v9117
      %9264 = vst.msk [vmem:[%s197 + $0x1f4] sm:$0xf] %vm9138, %v9118
      %9265 = vst.msk [vmem:[%s197 + $0x1f8] sm:$0xf] %vm9138, %v9119
      %9266 = vst.msk [vmem:[%s197 + $0x1fc] sm:$0xf] %vm9138, %v9120
      %9267 = vst.msk [vmem:[%s197 + $0x200] sm:$0xf] %vm9138, %v9121
      %9268 = vst.msk [vmem:[%s197 + $0x204] sm:$0xf] %vm9138, %v9122
      %9269 = vst.msk [vmem:[%s197 + $0x208] sm:$0xf] %vm9138, %v9123
      %9270 = vst.msk [vmem:[%s197 + $0x20c] sm:$0xf] %vm9138, %v9124
      %9271 = vst.msk [vmem:[%s197 + $0x210] sm:$0xf] %vm9138, %v9125
      %9272 = vst.msk [vmem:[%s197 + $0x214] sm:$0xf] %vm9138, %v9126
      %9273 = vst.msk [vmem:[%s197 + $0x218] sm:$0xf] %vm9138, %v9127
      %9274 = vst.msk [vmem:[%s197 + $0x21c] sm:$0xf] %vm9138, %v9128
      %9275 = vst.msk [vmem:[%s197 + $0x220] sm:$0xf] %vm9138, %v9129
      %9276 = vst.msk [vmem:[%s197 + $0x224] sm:$0xf] %vm9138, %v9130
      %9277 = vst.msk [vmem:[%s197 + $0x228] sm:$0xf] %vm9138, %v9131
      %9278 = vst.msk [vmem:[%s197 + $0x22c] sm:$0xf] %vm9138, %v9132
      %9279 = vst.msk [vmem:[%s197 + $0x230] sm:$0xf] %vm9138, %v9133
      %9280 = vst.msk [vmem:[%s197 + $0x234] sm:$0xf] %vm9138, %v9134
      %9281 = vst.msk [vmem:[%s197 + $0x238] sm:$0xf] %vm9138, %v9135
      %9282 = vst.msk [vmem:[%s197 + $0x23c] sm:$0xf] %vm9138, %v9136
      %vm9283 = vcmask 517120
      %9284 = vst.msk [vmem:[%s197 + $0x240] sm:$0x3] %vm9283, %v9137
      %p9285 = scmp.lt.s32.totalorder %s15, 1
      %s9286 = scalar_select %p9285, %s15, 1
      %s9287 = smul.addr %s9286, 145
      %s9288 = smul.addr %s9287, 4
      %s9289 = scalar_lea.vmem %s4, %s9288
      // Predicated region
      $region37: #{tpu_custom_call.1} parent=35 // pred_check
        %p9290 = pneg %p122
      $region38: #{tpu_custom_call.1} parent=35 // pred_check_branch
        %9292 = sbr.rel (%p9290) target = $region40
      $region39: #{tpu_custom_call.1} parent=35 // pred_region
        _
      $region40: #{tpu_custom_call.1} parent=35 // pred_fallthru
        _
    $region36: #{tpu_custom_call.1} parent=5 // pred_fallthru
      _
    %p9293 = scmp.le.s32.totalorder 2, %s10
    // Predicated region
    $region41: #{tpu_custom_call.1} parent=5 // pred_check
      %p9294 = pneg %p9293
    $region42: #{tpu_custom_call.1} parent=5 // pred_check_branch
      %9296 = sbr.rel (%p9294) target = $region44
    $region43: #{tpu_custom_call.1} parent=5 // pred_region
      %s9297 = ssub.s32 %s10, 2
      // Predicated region
      $region45: #{tpu_custom_call.1} parent=43 // pred_check
        %p9298 = pneg %p128
      $region46: #{tpu_custom_call.1} parent=43 // pred_check_branch
        %9300 = sbr.rel (%p9298) target = $region48
      $region47: #{tpu_custom_call.1} parent=43 // pred_region
        %p9301 = scmp.lt.s32.totalorder %s16, 1
        %s9302 = scalar_select %p9301, %s16, 1
        %s9303 = smul.addr %s9302, 145
        %s9304 = smul.addr %s9303, 4
        %s9305 = scalar_lea.vmem %s4, %s9304
      $region48: #{tpu_custom_call.1} parent=43 // pred_fallthru
        _
    $region44: #{tpu_custom_call.1} parent=5 // pred_fallthru
      _
  $region6: #{tpu_custom_call.1} parent=0 // loop_footer
    %s14 = sadd.s32 1, %s10
  $region7: #{tpu_custom_call.1} parent=0 // loop_footer_branch
    %9 = sbr.rel target = $region3
  $region8: #{tpu_custom_call.1} parent=0 // loop_exit
    _

</llo_original>
